<compile_context>
chip_gen: v6e
topology: v6e:2x2x1
jax: 0.10.0
libtpu: 0.0.40
codegen_flags: <defaults>
</compile_context>

<pallas_src>
import jax
import jax.numpy as jnp
from jax.experimental import pallas as pl
from jax.experimental.pallas import tpu as pltpu

PAD = 64  # Conv1d padding used by every layer of skip_model (kernel_size=129)


def _make_conv_kernel(part_meta, TL, C_out, tanh_in, tanh_out, transpose_out):
    """Fused (optional tanh) -> Conv1d -> bias -> (optional tanh) kernel.

    part_meta: per input part, (n_taps, tap_stride, channels). The convolution over
    the channel concatenation of the parts is computed as a sum of per-part
    convolutions; narrow parts arrive pre-grouped (several original taps packed along
    the channel axis) so every MXU matmul has a well-filled contraction dimension.
    """
    n_parts = len(part_meta)

    def kernel(*refs):
        x_refs = refs[0:n_parts]                   # (1, Lp_p, Cg_p) each
        w_refs = refs[n_parts:2 * n_parts]         # (Kt_p, Cg_p, C_out) each
        b_ref = refs[2 * n_parts]                  # (1, C_out)
        o_ref = refs[2 * n_parts + 1]              # (1, TL, C_out) or (1, C_out, TL)
        win_refs = refs[2 * n_parts + 2:]          # VMEM scratch (only if tanh_in)

        j = pl.program_id(1)
        row0 = j * TL
        if TL % 8 == 0:
            row0 = pl.multiple_of(row0, 8)         # tile starts are sublane-aligned

        acc = jnp.zeros((TL, C_out), jnp.float32)
        for p, (Kt, G, Cg) in enumerate(part_meta):
            x_ref = x_refs[p]
            w_ref = w_refs[p]
            W = TL + (Kt - 1) * G                  # input-window rows for this part

            if tanh_in:
                # tanh once per window (EUP), staged through VMEM scratch so the
                # per-tap loop only re-reads already-activated rows.
                win_refs[p][...] = jnp.tanh(x_ref[0, pl.ds(row0, W), :])

                def load(k, win=win_refs[p], G=G):
                    return win[pl.ds(k * G, TL), :]                 # (TL, Cg)
            else:
                def load(k, x_ref=x_ref, G=G, row0=row0):
                    return x_ref[0, pl.ds(row0 + k * G, TL), :]     # (TL, Cg)

            if Kt <= 32:
                # short (grouped) tap loop: fully unrolled, static aligned slices
                for t in range(Kt):
                    acc = acc + jnp.dot(load(t), w_ref[t],
                                        preferred_element_type=jnp.float32)
            else:
                U = 3 if Kt % 3 == 0 else 1        # K=129 -> unroll-by-3

                def body(i, a, load=load, w_ref=w_ref, U=U):
                    for u in range(U):
                        k = i * U + u
                        a = a + jnp.dot(load(k), w_ref[k],
                                        preferred_element_type=jnp.float32)
                    return a

                acc = jax.lax.fori_loop(0, Kt // U, body, acc)

        y = acc + b_ref[...]
        if tanh_out:
            y = jnp.tanh(y)
        if transpose_out:
            o_ref[0] = y.T.astype(o_ref.dtype)     # write directly in NCL layout
        else:
            o_ref[0] = y.astype(o_ref.dtype)       # channels-last for the next layer

    return kernel


def _pick_tile(L_out):
    # Output-row tile: whole L if small, else largest of {256,128} dividing L_out.
    if L_out <= 256:
        return L_out
    for t in (256, 128):
        if L_out % t == 0:
            return t
    return L_out  # fallback: single tile


def conv1d_layer(parts, b, *, L_out, tanh_in, tanh_out, transpose_out=False):
    """Conv1d over the channel-concatenation of `parts`, fused with optional
    input/output tanh.

    parts: list of (x, w, g) with
        x: (N, Lp, Cg) float32, channels-last, already zero-padded along L
           (narrow inputs are pre-grouped: g original taps packed on channels)
        w: (Kt, Cg, C_out) float32 weight, grouped to match x
        g: tap stride (== group factor used to build x/w)
    Returns (N, L_out, C_out), or (N, C_out, L_out) if transpose_out.
    """
    N = parts[0][0].shape[0]
    C_out = parts[0][1].shape[2]
    part_meta = []
    for x_p, w_p, g in parts:
        Kt, Cg, co = w_p.shape
        assert co == C_out and x_p.shape[0] == N and x_p.shape[2] == Cg
        assert x_p.shape[1] >= L_out + (Kt - 1) * g
        part_meta.append((Kt, g, Cg))
    b_r = b.reshape(1, C_out).astype(jnp.float32)

    TL = _pick_tile(L_out)
    grid = (N, L_out // TL)

    in_specs = (
        # activation parts: full padded rows per sample, resident across L-tiles
        [pl.BlockSpec((1, x_p.shape[1], x_p.shape[2]), lambda n, j: (n, 0, 0))
         for x_p, _, _ in parts]
        # weights: fetched once, stay resident in VMEM (constant index_map)
        + [pl.BlockSpec(w_p.shape, lambda n, j: (0, 0, 0)) for _, w_p, _ in parts]
        + [pl.BlockSpec((1, C_out), lambda n, j: (0, 0))]
    )
    if transpose_out:
        out_shape = jax.ShapeDtypeStruct((N, C_out, L_out), jnp.float32)
        out_spec = pl.BlockSpec((1, C_out, TL), lambda n, j: (n, 0, j))
    else:
        out_shape = jax.ShapeDtypeStruct((N, L_out, C_out), jnp.float32)
        out_spec = pl.BlockSpec((1, TL, C_out), lambda n, j: (n, j, 0))

    scratch_shapes = tuple(
        pltpu.VMEM((TL + (Kt - 1) * g, Cg), jnp.float32)
        for (Kt, g, Cg) in part_meta) if tanh_in else ()

    kernel = _make_conv_kernel(part_meta, TL, C_out, tanh_in, tanh_out, transpose_out)

    return pl.pallas_call(
        kernel,
        out_shape=out_shape,
        grid_spec=pltpu.PrefetchScalarGridSpec(
            num_scalar_prefetch=0,
            grid=grid,
            in_specs=in_specs,
            out_specs=out_spec,
            scratch_shapes=scratch_shapes),
        compiler_params=pltpu.CompilerParams(
            dimension_semantics=("parallel", "parallel"),
            vmem_limit_bytes=48 * 1024 * 1024),
    )(*[x for x, _, _ in parts], *[w for _, w, _ in parts], b_r)


def _weight_slice(w, c_off, c):
    """PyTorch Conv1d weight (C_out, C_in_tot, K) -> channels-last taps (K, c, C_out)."""
    return jnp.transpose(w[:, c_off:c_off + c, :], (2, 1, 0)).astype(jnp.float32)


def _group_weight(w_kco, G):
    """(K, c, C_out) -> (ceil(K/G), G*c, C_out): pack G consecutive taps on channels."""
    if G == 1:
        return w_kco
    K, c, C_out = w_kco.shape
    Kt = -(-K // G)
    w_pad = jnp.pad(w_kco, ((0, Kt * G - K), (0, 0), (0, 0)))
    return w_pad.reshape(Kt, G * c, C_out)


def _group_input(x, G, Lg):
    """(N, Ls, c) -> (N, Lg, G*c) with out[n, m, g*c + cc] = x[n, m + g, cc]."""
    if G == 1:
        return x[:, :Lg, :]
    return jnp.concatenate([x[:, g:g + Lg, :] for g in range(G)], axis=-1)


def skip_model_forward(x_ncl, w1, b1, w2, b2, w3, b3):
    """x_ncl: (N, 12, L) float32 in PyTorch NCL layout. Returns (N, 8, L)."""
    N, C_in, L = x_ncl.shape
    K = w1.shape[2]                        # 129
    L_pad = L + 2 * PAD
    L_out = L_pad - K + 1                  # == L for this module

    x0 = jnp.transpose(x_ncl, (0, 2, 1)).astype(jnp.float32)   # (N, L, C_in)

    # Tap-group the narrow (C_in=12) input: G=8 taps packed along channels so every
    # MXU matmul for this part has a 96-wide contraction instead of 12, and the tap
    # loop shrinks from 129 to 17. Built once, reused by all three layers.
    G = 128 // C_in
    G = (G // 8) * 8 if G >= 8 else 1      # keep tap offsets sublane-aligned
    Kt = -(-K // G)
    Lg = L_out + (Kt - 1) * G
    pad_after = (Lg + G - 1) - (L + PAD)   # conv zero-pad + rows for the zero taps
    x0_ext = jnp.pad(x0, ((0, 0), (PAD, pad_after), (0, 0)))
    x0g = _group_input(x0_ext, G, Lg)      # (N, Lg, G*C_in)

    pad_l = ((0, 0), (PAD, PAD), (0, 0))

    # layer_1 + tanh :  y1 = tanh(conv1(x0) + b1)
    w1_x0 = _group_weight(_weight_slice(w1, 0, C_in), G)
    y1 = conv1d_layer([(x0g, w1_x0, G)], b1, L_out=L_out,
                      tanh_in=False, tanh_out=True)
    y1p = jnp.pad(y1, pad_l)
    C1 = y1.shape[2]

    # layer_2        :  y2 = conv2(tanh(cat[x0, y1])) + b2   (concat never materialized)
    w2_x0 = _group_weight(_weight_slice(w2, 0, C_in), G)
    w2_y1 = _weight_slice(w2, C_in, C1)
    y2 = conv1d_layer([(x0g, w2_x0, G), (y1p, w2_y1, 1)], b2, L_out=L_out,
                      tanh_in=True, tanh_out=False)
    y2p = jnp.pad(y2, pad_l)
    C2 = y2.shape[2]

    # layer_3        :  out = conv3(tanh(cat[x0, y1, y2])) + b3, written in NCL layout
    w3_x0 = _group_weight(_weight_slice(w3, 0, C_in), G)
    w3_y1 = _weight_slice(w3, C_in, C1)
    w3_y2 = _weight_slice(w3, C_in + C1, C2)
    out = conv1d_layer([(x0g, w3_x0, G), (y1p, w3_y1, 1), (y2p, w3_y2, 1)], b3,
                       L_out=L_out, tanh_in=True, tanh_out=False, transpose_out=True)
    return out


def _reference(x, w1, b1, w2, b2, w3, b3, pad=PAD):
    # pure-JAX mirror of the PyTorch forward (float32)
    dn = ('NCH', 'OIH', 'NCH')
    prec = jax.lax.Precision.HIGHEST

    def conv(inp, w, b):
        y = jax.lax.conv_general_dilated(inp, w, window_strides=(1,),
                                         padding=[(pad, pad)],
                                         dimension_numbers=dn, precision=prec)
        return y + b[None, :, None]

    y = jnp.tanh(conv(x, w1, b1))
    x1 = jnp.concatenate([x, y], axis=1)
    y = conv(jnp.tanh(x1), w2, b2)
    x2 = jnp.concatenate([x1, y], axis=1)
    return conv(jnp.tanh(x2), w3, b3)


if __name__ == "__main__":
    # small shapes consistent with the module (channel structure fixed by skip_model)
    N, L = 2, 16
    C_IN, C_HID, C_OUT, K = 12, 128, 8, 129

    key = jax.random.PRNGKey(0)
    ks = jax.random.split(key, 7)
    x = jax.random.normal(ks[0], (N, C_IN, L), jnp.float32)

    def winit(kk, c_out, c_in):
        return jax.random.normal(kk, (c_out, c_in, K), jnp.float32) / jnp.sqrt(c_in * K)

    w1 = winit(ks[1], C_HID, C_IN)
    b1 = 0.1 * jax.random.normal(ks[2], (C_HID,), jnp.float32)
    w2 = winit(ks[3], C_HID, C_IN + C_HID)
    b2 = 0.1 * jax.random.normal(ks[4], (C_HID,), jnp.float32)
    w3 = winit(ks[5], C_OUT, C_IN + 2 * C_HID)
    b3 = 0.1 * jax.random.normal(ks[6], (C_OUT,), jnp.float32)

    fwd = jax.jit(skip_model_forward)
    out = fwd(x, w1, b1, w2, b2, w3, b3)
    out = jax.block_until_ready(out)

    ref = _reference(x, w1, b1, w2, b2, w3, b3)
    assert out.shape == (N, C_OUT, L), out.shape
    assert jnp.allclose(out, ref, rtol=2e-2, atol=2e-2), \
        f"mismatch vs reference: max|diff|={float(jnp.max(jnp.abs(out - ref)))}"

    print("KERNEL_OK")
</pallas_src>

<mosaic_0001>
module attributes {stable_mosaic.version = 11 : i64} {
  func.func @kernel(%arg0: i32, %arg1: i32, %arg2: memref<1x144x96xf32, #tpu.memory_space<vmem>>, %arg3: memref<17x96x128xf32, #tpu.memory_space<vmem>>, %arg4: memref<1x128xf32, #tpu.memory_space<vmem>>, %arg5: memref<1x16x128xf32, #tpu.memory_space<vmem>>) attributes {dimension_semantics = [#tpu.dimension_semantics<parallel>, #tpu.dimension_semantics<parallel>], iteration_bounds = array<i64: 2, 1>, scalar_prefetch = 0 : i64, scratch_operands = 0 : i64, tpu.core_type = #tpu.core_type<tc>, window_params = [{transform_indices = @transform_0, window_bounds = array<i64: 1, 144, 96>}, {pipeline_mode = #tpu.pipeline_mode<synchronous>, transform_indices = @transform_1, window_bounds = array<i64: 17, 96, 128>}, {pipeline_mode = #tpu.pipeline_mode<synchronous>, transform_indices = @transform_2, window_bounds = array<i64: 1, 128>}, {transform_indices = @transform_3, window_bounds = array<i64: 1, 16, 128>}]} {
    %c16_i32 = arith.constant 16 : i32
    %0 = arith.muli %arg1, %c16_i32 : i32
    %1 = tpu.assume_multiple %0, 8 : i32
    %cst = arith.constant 0.000000e+00 : f32
    %2 = vector.broadcast %cst : f32 to vector<16x128xf32>
    %c0_i32 = arith.constant 0 : i32
    %3 = arith.addi %1, %c0_i32 : i32
    %c0 = arith.constant 0 : index
    %4 = arith.index_cast %3 : i32 to index
    %c0_0 = arith.constant 0 : index
    %5 = vector.load %arg2[%c0, %4, %c0_0] : memref<1x144x96xf32, #tpu.memory_space<vmem>>, vector<1x16x96xf32>
    %6 = vector.shape_cast %5 : vector<1x16x96xf32> to vector<16x96xf32>
    %c0_1 = arith.constant 0 : index
    %c0_2 = arith.constant 0 : index
    %c0_3 = arith.constant 0 : index
    %7 = vector.load %arg3[%c0_1, %c0_2, %c0_3] : memref<17x96x128xf32, #tpu.memory_space<vmem>>, vector<1x96x128xf32>
    %8 = vector.shape_cast %7 : vector<1x96x128xf32> to vector<96x128xf32>
    %cst_4 = arith.constant dense<0.000000e+00> : vector<16x128xf32>
    %9 = tpu.matmul %6, %8, %cst_4 {dimension_numbers = #tpu.dot_dimension_numbers<[1], [0], [0], [1], [0, 0, 1, 1], [], []>} : vector<16x96xf32>, vector<96x128xf32>, vector<16x128xf32> -> vector<16x128xf32>
    %10 = arith.addf %2, %9 : vector<16x128xf32>
    %c8_i32 = arith.constant 8 : i32
    %11 = arith.addi %1, %c8_i32 : i32
    %c0_5 = arith.constant 0 : index
    %12 = arith.index_cast %11 : i32 to index
    %c0_6 = arith.constant 0 : index
    %13 = vector.load %arg2[%c0_5, %12, %c0_6] : memref<1x144x96xf32, #tpu.memory_space<vmem>>, vector<1x16x96xf32>
    %14 = vector.shape_cast %13 : vector<1x16x96xf32> to vector<16x96xf32>
    %c1 = arith.constant 1 : index
    %c0_7 = arith.constant 0 : index
    %c0_8 = arith.constant 0 : index
    %15 = vector.load %arg3[%c1, %c0_7, %c0_8] : memref<17x96x128xf32, #tpu.memory_space<vmem>>, vector<1x96x128xf32>
    %16 = vector.shape_cast %15 : vector<1x96x128xf32> to vector<96x128xf32>
    %cst_9 = arith.constant dense<0.000000e+00> : vector<16x128xf32>
    %17 = tpu.matmul %14, %16, %cst_9 {dimension_numbers = #tpu.dot_dimension_numbers<[1], [0], [0], [1], [0, 0, 1, 1], [], []>} : vector<16x96xf32>, vector<96x128xf32>, vector<16x128xf32> -> vector<16x128xf32>
    %18 = arith.addf %10, %17 : vector<16x128xf32>
    %c16_i32_10 = arith.constant 16 : i32
    %19 = arith.addi %1, %c16_i32_10 : i32
    %c0_11 = arith.constant 0 : index
    %20 = arith.index_cast %19 : i32 to index
    %c0_12 = arith.constant 0 : index
    %21 = vector.load %arg2[%c0_11, %20, %c0_12] : memref<1x144x96xf32, #tpu.memory_space<vmem>>, vector<1x16x96xf32>
    %22 = vector.shape_cast %21 : vector<1x16x96xf32> to vector<16x96xf32>
    %c2 = arith.constant 2 : index
    %c0_13 = arith.constant 0 : index
    %c0_14 = arith.constant 0 : index
    %23 = vector.load %arg3[%c2, %c0_13, %c0_14] : memref<17x96x128xf32, #tpu.memory_space<vmem>>, vector<1x96x128xf32>
    %24 = vector.shape_cast %23 : vector<1x96x128xf32> to vector<96x128xf32>
    %cst_15 = arith.constant dense<0.000000e+00> : vector<16x128xf32>
    %25 = tpu.matmul %22, %24, %cst_15 {dimension_numbers = #tpu.dot_dimension_numbers<[1], [0], [0], [1], [0, 0, 1, 1], [], []>} : vector<16x96xf32>, vector<96x128xf32>, vector<16x128xf32> -> vector<16x128xf32>
    %26 = arith.addf %18, %25 : vector<16x128xf32>
    %c24_i32 = arith.constant 24 : i32
    %27 = arith.addi %1, %c24_i32 : i32
    %c0_16 = arith.constant 0 : index
    %28 = arith.index_cast %27 : i32 to index
    %c0_17 = arith.constant 0 : index
    %29 = vector.load %arg2[%c0_16, %28, %c0_17] : memref<1x144x96xf32, #tpu.memory_space<vmem>>, vector<1x16x96xf32>
    %30 = vector.shape_cast %29 : vector<1x16x96xf32> to vector<16x96xf32>
    %c3 = arith.constant 3 : index
    %c0_18 = arith.constant 0 : index
    %c0_19 = arith.constant 0 : index
    %31 = vector.load %arg3[%c3, %c0_18, %c0_19] : memref<17x96x128xf32, #tpu.memory_space<vmem>>, vector<1x96x128xf32>
    %32 = vector.shape_cast %31 : vector<1x96x128xf32> to vector<96x128xf32>
    %cst_20 = arith.constant dense<0.000000e+00> : vector<16x128xf32>
    %33 = tpu.matmul %30, %32, %cst_20 {dimension_numbers = #tpu.dot_dimension_numbers<[1], [0], [0], [1], [0, 0, 1, 1], [], []>} : vector<16x96xf32>, vector<96x128xf32>, vector<16x128xf32> -> vector<16x128xf32>
    %34 = arith.addf %26, %33 : vector<16x128xf32>
    %c32_i32 = arith.constant 32 : i32
    %35 = arith.addi %1, %c32_i32 : i32
    %c0_21 = arith.constant 0 : index
    %36 = arith.index_cast %35 : i32 to index
    %c0_22 = arith.constant 0 : index
    %37 = vector.load %arg2[%c0_21, %36, %c0_22] : memref<1x144x96xf32, #tpu.memory_space<vmem>>, vector<1x16x96xf32>
    %38 = vector.shape_cast %37 : vector<1x16x96xf32> to vector<16x96xf32>
    %c4 = arith.constant 4 : index
    %c0_23 = arith.constant 0 : index
    %c0_24 = arith.constant 0 : index
    %39 = vector.load %arg3[%c4, %c0_23, %c0_24] : memref<17x96x128xf32, #tpu.memory_space<vmem>>, vector<1x96x128xf32>
    %40 = vector.shape_cast %39 : vector<1x96x128xf32> to vector<96x128xf32>
    %cst_25 = arith.constant dense<0.000000e+00> : vector<16x128xf32>
    %41 = tpu.matmul %38, %40, %cst_25 {dimension_numbers = #tpu.dot_dimension_numbers<[1], [0], [0], [1], [0, 0, 1, 1], [], []>} : vector<16x96xf32>, vector<96x128xf32>, vector<16x128xf32> -> vector<16x128xf32>
    %42 = arith.addf %34, %41 : vector<16x128xf32>
    %c40_i32 = arith.constant 40 : i32
    %43 = arith.addi %1, %c40_i32 : i32
    %c0_26 = arith.constant 0 : index
    %44 = arith.index_cast %43 : i32 to index
    %c0_27 = arith.constant 0 : index
    %45 = vector.load %arg2[%c0_26, %44, %c0_27] : memref<1x144x96xf32, #tpu.memory_space<vmem>>, vector<1x16x96xf32>
    %46 = vector.shape_cast %45 : vector<1x16x96xf32> to vector<16x96xf32>
    %c5 = arith.constant 5 : index
    %c0_28 = arith.constant 0 : index
    %c0_29 = arith.constant 0 : index
    %47 = vector.load %arg3[%c5, %c0_28, %c0_29] : memref<17x96x128xf32, #tpu.memory_space<vmem>>, vector<1x96x128xf32>
    %48 = vector.shape_cast %47 : vector<1x96x128xf32> to vector<96x128xf32>
    %cst_30 = arith.constant dense<0.000000e+00> : vector<16x128xf32>
    %49 = tpu.matmul %46, %48, %cst_30 {dimension_numbers = #tpu.dot_dimension_numbers<[1], [0], [0], [1], [0, 0, 1, 1], [], []>} : vector<16x96xf32>, vector<96x128xf32>, vector<16x128xf32> -> vector<16x128xf32>
    %50 = arith.addf %42, %49 : vector<16x128xf32>
    %c48_i32 = arith.constant 48 : i32
    %51 = arith.addi %1, %c48_i32 : i32
    %c0_31 = arith.constant 0 : index
    %52 = arith.index_cast %51 : i32 to index
    %c0_32 = arith.constant 0 : index
    %53 = vector.load %arg2[%c0_31, %52, %c0_32] : memref<1x144x96xf32, #tpu.memory_space<vmem>>, vector<1x16x96xf32>
    %54 = vector.shape_cast %53 : vector<1x16x96xf32> to vector<16x96xf32>
    %c6 = arith.constant 6 : index
    %c0_33 = arith.constant 0 : index
    %c0_34 = arith.constant 0 : index
    %55 = vector.load %arg3[%c6, %c0_33, %c0_34] : memref<17x96x128xf32, #tpu.memory_space<vmem>>, vector<1x96x128xf32>
    %56 = vector.shape_cast %55 : vector<1x96x128xf32> to vector<96x128xf32>
    %cst_35 = arith.constant dense<0.000000e+00> : vector<16x128xf32>
    %57 = tpu.matmul %54, %56, %cst_35 {dimension_numbers = #tpu.dot_dimension_numbers<[1], [0], [0], [1], [0, 0, 1, 1], [], []>} : vector<16x96xf32>, vector<96x128xf32>, vector<16x128xf32> -> vector<16x128xf32>
    %58 = arith.addf %50, %57 : vector<16x128xf32>
    %c56_i32 = arith.constant 56 : i32
    %59 = arith.addi %1, %c56_i32 : i32
    %c0_36 = arith.constant 0 : index
    %60 = arith.index_cast %59 : i32 to index
    %c0_37 = arith.constant 0 : index
    %61 = vector.load %arg2[%c0_36, %60, %c0_37] : memref<1x144x96xf32, #tpu.memory_space<vmem>>, vector<1x16x96xf32>
    %62 = vector.shape_cast %61 : vector<1x16x96xf32> to vector<16x96xf32>
    %c7 = arith.constant 7 : index
    %c0_38 = arith.constant 0 : index
    %c0_39 = arith.constant 0 : index
    %63 = vector.load %arg3[%c7, %c0_38, %c0_39] : memref<17x96x128xf32, #tpu.memory_space<vmem>>, vector<1x96x128xf32>
    %64 = vector.shape_cast %63 : vector<1x96x128xf32> to vector<96x128xf32>
    %cst_40 = arith.constant dense<0.000000e+00> : vector<16x128xf32>
    %65 = tpu.matmul %62, %64, %cst_40 {dimension_numbers = #tpu.dot_dimension_numbers<[1], [0], [0], [1], [0, 0, 1, 1], [], []>} : vector<16x96xf32>, vector<96x128xf32>, vector<16x128xf32> -> vector<16x128xf32>
    %66 = arith.addf %58, %65 : vector<16x128xf32>
    %c64_i32 = arith.constant 64 : i32
    %67 = arith.addi %1, %c64_i32 : i32
    %c0_41 = arith.constant 0 : index
    %68 = arith.index_cast %67 : i32 to index
    %c0_42 = arith.constant 0 : index
    %69 = vector.load %arg2[%c0_41, %68, %c0_42] : memref<1x144x96xf32, #tpu.memory_space<vmem>>, vector<1x16x96xf32>
    %70 = vector.shape_cast %69 : vector<1x16x96xf32> to vector<16x96xf32>
    %c8 = arith.constant 8 : index
    %c0_43 = arith.constant 0 : index
    %c0_44 = arith.constant 0 : index
    %71 = vector.load %arg3[%c8, %c0_43, %c0_44] : memref<17x96x128xf32, #tpu.memory_space<vmem>>, vector<1x96x128xf32>
    %72 = vector.shape_cast %71 : vector<1x96x128xf32> to vector<96x128xf32>
    %cst_45 = arith.constant dense<0.000000e+00> : vector<16x128xf32>
    %73 = tpu.matmul %70, %72, %cst_45 {dimension_numbers = #tpu.dot_dimension_numbers<[1], [0], [0], [1], [0, 0, 1, 1], [], []>} : vector<16x96xf32>, vector<96x128xf32>, vector<16x128xf32> -> vector<16x128xf32>
    %74 = arith.addf %66, %73 : vector<16x128xf32>
    %c72_i32 = arith.constant 72 : i32
    %75 = arith.addi %1, %c72_i32 : i32
    %c0_46 = arith.constant 0 : index
    %76 = arith.index_cast %75 : i32 to index
    %c0_47 = arith.constant 0 : index
    %77 = vector.load %arg2[%c0_46, %76, %c0_47] : memref<1x144x96xf32, #tpu.memory_space<vmem>>, vector<1x16x96xf32>
    %78 = vector.shape_cast %77 : vector<1x16x96xf32> to vector<16x96xf32>
    %c9 = arith.constant 9 : index
    %c0_48 = arith.constant 0 : index
    %c0_49 = arith.constant 0 : index
    %79 = vector.load %arg3[%c9, %c0_48, %c0_49] : memref<17x96x128xf32, #tpu.memory_space<vmem>>, vector<1x96x128xf32>
    %80 = vector.shape_cast %79 : vector<1x96x128xf32> to vector<96x128xf32>
    %cst_50 = arith.constant dense<0.000000e+00> : vector<16x128xf32>
    %81 = tpu.matmul %78, %80, %cst_50 {dimension_numbers = #tpu.dot_dimension_numbers<[1], [0], [0], [1], [0, 0, 1, 1], [], []>} : vector<16x96xf32>, vector<96x128xf32>, vector<16x128xf32> -> vector<16x128xf32>
    %82 = arith.addf %74, %81 : vector<16x128xf32>
    %c80_i32 = arith.constant 80 : i32
    %83 = arith.addi %1, %c80_i32 : i32
    %c0_51 = arith.constant 0 : index
    %84 = arith.index_cast %83 : i32 to index
    %c0_52 = arith.constant 0 : index
    %85 = vector.load %arg2[%c0_51, %84, %c0_52] : memref<1x144x96xf32, #tpu.memory_space<vmem>>, vector<1x16x96xf32>
    %86 = vector.shape_cast %85 : vector<1x16x96xf32> to vector<16x96xf32>
    %c10 = arith.constant 10 : index
    %c0_53 = arith.constant 0 : index
    %c0_54 = arith.constant 0 : index
    %87 = vector.load %arg3[%c10, %c0_53, %c0_54] : memref<17x96x128xf32, #tpu.memory_space<vmem>>, vector<1x96x128xf32>
    %88 = vector.shape_cast %87 : vector<1x96x128xf32> to vector<96x128xf32>
    %cst_55 = arith.constant dense<0.000000e+00> : vector<16x128xf32>
    %89 = tpu.matmul %86, %88, %cst_55 {dimension_numbers = #tpu.dot_dimension_numbers<[1], [0], [0], [1], [0, 0, 1, 1], [], []>} : vector<16x96xf32>, vector<96x128xf32>, vector<16x128xf32> -> vector<16x128xf32>
    %90 = arith.addf %82, %89 : vector<16x128xf32>
    %c88_i32 = arith.constant 88 : i32
    %91 = arith.addi %1, %c88_i32 : i32
    %c0_56 = arith.constant 0 : index
    %92 = arith.index_cast %91 : i32 to index
    %c0_57 = arith.constant 0 : index
    %93 = vector.load %arg2[%c0_56, %92, %c0_57] : memref<1x144x96xf32, #tpu.memory_space<vmem>>, vector<1x16x96xf32>
    %94 = vector.shape_cast %93 : vector<1x16x96xf32> to vector<16x96xf32>
    %c11 = arith.constant 11 : index
    %c0_58 = arith.constant 0 : index
    %c0_59 = arith.constant 0 : index
    %95 = vector.load %arg3[%c11, %c0_58, %c0_59] : memref<17x96x128xf32, #tpu.memory_space<vmem>>, vector<1x96x128xf32>
    %96 = vector.shape_cast %95 : vector<1x96x128xf32> to vector<96x128xf32>
    %cst_60 = arith.constant dense<0.000000e+00> : vector<16x128xf32>
    %97 = tpu.matmul %94, %96, %cst_60 {dimension_numbers = #tpu.dot_dimension_numbers<[1], [0], [0], [1], [0, 0, 1, 1], [], []>} : vector<16x96xf32>, vector<96x128xf32>, vector<16x128xf32> -> vector<16x128xf32>
    %98 = arith.addf %90, %97 : vector<16x128xf32>
    %c96_i32 = arith.constant 96 : i32
    %99 = arith.addi %1, %c96_i32 : i32
    %c0_61 = arith.constant 0 : index
    %100 = arith.index_cast %99 : i32 to index
    %c0_62 = arith.constant 0 : index
    %101 = vector.load %arg2[%c0_61, %100, %c0_62] : memref<1x144x96xf32, #tpu.memory_space<vmem>>, vector<1x16x96xf32>
    %102 = vector.shape_cast %101 : vector<1x16x96xf32> to vector<16x96xf32>
    %c12 = arith.constant 12 : index
    %c0_63 = arith.constant 0 : index
    %c0_64 = arith.constant 0 : index
    %103 = vector.load %arg3[%c12, %c0_63, %c0_64] : memref<17x96x128xf32, #tpu.memory_space<vmem>>, vector<1x96x128xf32>
    %104 = vector.shape_cast %103 : vector<1x96x128xf32> to vector<96x128xf32>
    %cst_65 = arith.constant dense<0.000000e+00> : vector<16x128xf32>
    %105 = tpu.matmul %102, %104, %cst_65 {dimension_numbers = #tpu.dot_dimension_numbers<[1], [0], [0], [1], [0, 0, 1, 1], [], []>} : vector<16x96xf32>, vector<96x128xf32>, vector<16x128xf32> -> vector<16x128xf32>
    %106 = arith.addf %98, %105 : vector<16x128xf32>
    %c104_i32 = arith.constant 104 : i32
    %107 = arith.addi %1, %c104_i32 : i32
    %c0_66 = arith.constant 0 : index
    %108 = arith.index_cast %107 : i32 to index
    %c0_67 = arith.constant 0 : index
    %109 = vector.load %arg2[%c0_66, %108, %c0_67] : memref<1x144x96xf32, #tpu.memory_space<vmem>>, vector<1x16x96xf32>
    %110 = vector.shape_cast %109 : vector<1x16x96xf32> to vector<16x96xf32>
    %c13 = arith.constant 13 : index
    %c0_68 = arith.constant 0 : index
    %c0_69 = arith.constant 0 : index
    %111 = vector.load %arg3[%c13, %c0_68, %c0_69] : memref<17x96x128xf32, #tpu.memory_space<vmem>>, vector<1x96x128xf32>
    %112 = vector.shape_cast %111 : vector<1x96x128xf32> to vector<96x128xf32>
    %cst_70 = arith.constant dense<0.000000e+00> : vector<16x128xf32>
    %113 = tpu.matmul %110, %112, %cst_70 {dimension_numbers = #tpu.dot_dimension_numbers<[1], [0], [0], [1], [0, 0, 1, 1], [], []>} : vector<16x96xf32>, vector<96x128xf32>, vector<16x128xf32> -> vector<16x128xf32>
    %114 = arith.addf %106, %113 : vector<16x128xf32>
    %c112_i32 = arith.constant 112 : i32
    %115 = arith.addi %1, %c112_i32 : i32
    %c0_71 = arith.constant 0 : index
    %116 = arith.index_cast %115 : i32 to index
    %c0_72 = arith.constant 0 : index
    %117 = vector.load %arg2[%c0_71, %116, %c0_72] : memref<1x144x96xf32, #tpu.memory_space<vmem>>, vector<1x16x96xf32>
    %118 = vector.shape_cast %117 : vector<1x16x96xf32> to vector<16x96xf32>
    %c14 = arith.constant 14 : index
    %c0_73 = arith.constant 0 : index
    %c0_74 = arith.constant 0 : index
    %119 = vector.load %arg3[%c14, %c0_73, %c0_74] : memref<17x96x128xf32, #tpu.memory_space<vmem>>, vector<1x96x128xf32>
    %120 = vector.shape_cast %119 : vector<1x96x128xf32> to vector<96x128xf32>
    %cst_75 = arith.constant dense<0.000000e+00> : vector<16x128xf32>
    %121 = tpu.matmul %118, %120, %cst_75 {dimension_numbers = #tpu.dot_dimension_numbers<[1], [0], [0], [1], [0, 0, 1, 1], [], []>} : vector<16x96xf32>, vector<96x128xf32>, vector<16x128xf32> -> vector<16x128xf32>
    %122 = arith.addf %114, %121 : vector<16x128xf32>
    %c120_i32 = arith.constant 120 : i32
    %123 = arith.addi %1, %c120_i32 : i32
    %c0_76 = arith.constant 0 : index
    %124 = arith.index_cast %123 : i32 to index
    %c0_77 = arith.constant 0 : index
    %125 = vector.load %arg2[%c0_76, %124, %c0_77] : memref<1x144x96xf32, #tpu.memory_space<vmem>>, vector<1x16x96xf32>
    %126 = vector.shape_cast %125 : vector<1x16x96xf32> to vector<16x96xf32>
    %c15 = arith.constant 15 : index
    %c0_78 = arith.constant 0 : index
    %c0_79 = arith.constant 0 : index
    %127 = vector.load %arg3[%c15, %c0_78, %c0_79] : memref<17x96x128xf32, #tpu.memory_space<vmem>>, vector<1x96x128xf32>
    %128 = vector.shape_cast %127 : vector<1x96x128xf32> to vector<96x128xf32>
    %cst_80 = arith.constant dense<0.000000e+00> : vector<16x128xf32>
    %129 = tpu.matmul %126, %128, %cst_80 {dimension_numbers = #tpu.dot_dimension_numbers<[1], [0], [0], [1], [0, 0, 1, 1], [], []>} : vector<16x96xf32>, vector<96x128xf32>, vector<16x128xf32> -> vector<16x128xf32>
    %130 = arith.addf %122, %129 : vector<16x128xf32>
    %c128_i32 = arith.constant 128 : i32
    %131 = arith.addi %1, %c128_i32 : i32
    %c0_81 = arith.constant 0 : index
    %132 = arith.index_cast %131 : i32 to index
    %c0_82 = arith.constant 0 : index
    %133 = vector.load %arg2[%c0_81, %132, %c0_82] : memref<1x144x96xf32, #tpu.memory_space<vmem>>, vector<1x16x96xf32>
    %134 = vector.shape_cast %133 : vector<1x16x96xf32> to vector<16x96xf32>
    %c16 = arith.constant 16 : index
    %c0_83 = arith.constant 0 : index
    %c0_84 = arith.constant 0 : index
    %135 = vector.load %arg3[%c16, %c0_83, %c0_84] : memref<17x96x128xf32, #tpu.memory_space<vmem>>, vector<1x96x128xf32>
    %136 = vector.shape_cast %135 : vector<1x96x128xf32> to vector<96x128xf32>
    %cst_85 = arith.constant dense<0.000000e+00> : vector<16x128xf32>
    %137 = tpu.matmul %134, %136, %cst_85 {dimension_numbers = #tpu.dot_dimension_numbers<[1], [0], [0], [1], [0, 0, 1, 1], [], []>} : vector<16x96xf32>, vector<96x128xf32>, vector<16x128xf32> -> vector<16x128xf32>
    %138 = arith.addf %130, %137 : vector<16x128xf32>
    %c0_86 = arith.constant 0 : index
    %c0_87 = arith.constant 0 : index
    %139 = vector.load %arg4[%c0_86, %c0_87] : memref<1x128xf32, #tpu.memory_space<vmem>>, vector<1x128xf32>
    %140 = vector.broadcast %139 : vector<1x128xf32> to vector<16x128xf32>
    %141 = arith.addf %138, %140 : vector<16x128xf32>
    %142 = math.tanh %141 : vector<16x128xf32>
    %c0_88 = arith.constant 0 : index
    %c0_89 = arith.constant 0 : index
    %c0_90 = arith.constant 0 : index
    %143 = vector.load %arg5[%c0_88, %c0_89, %c0_90] : memref<1x16x128xf32, #tpu.memory_space<vmem>>, vector<1x16x128xf32>
    %144 = vector.shape_cast %143 : vector<1x16x128xf32> to vector<16x128xf32>
    %145 = vector.shape_cast %142 : vector<16x128xf32> to vector<1x16x128xf32>
    tpu.vector_store %arg5[%c0_88, %c0_89, %c0_90], %145 {strides = array<i32>} : memref<1x16x128xf32, #tpu.memory_space<vmem>>, vector<1x16x128xf32>,
    return
  }
  func.func @transform_0(%arg0: i32, %arg1: i32) -> (i32, i32, i32) {
    %c0_i32 = arith.constant 0 : i32
    %c0_i32_0 = arith.constant 0 : i32
    %c0_i32_1 = arith.constant 0 : i32
    return %arg0, %c0_i32, %c0_i32_0 : i32, i32, i32
  }
  func.func @transform_1(%arg0: i32, %arg1: i32) -> (i32, i32, i32) {
    %c0_i32 = arith.constant 0 : i32
    %c0_i32_0 = arith.constant 0 : i32
    %c0_i32_1 = arith.constant 0 : i32
    %c0_i32_2 = arith.constant 0 : i32
    return %c0_i32, %c0_i32_0, %c0_i32_1 : i32, i32, i32
  }
  func.func @transform_2(%arg0: i32, %arg1: i32) -> (i32, i32) {
    %c0_i32 = arith.constant 0 : i32
    %c0_i32_0 = arith.constant 0 : i32
    %c0_i32_1 = arith.constant 0 : i32
    return %c0_i32, %c0_i32_0 : i32, i32
  }
  func.func @transform_3(%arg0: i32, %arg1: i32) -> (i32, i32, i32) {
    %c0_i32 = arith.constant 0 : i32
    %c0_i32_0 = arith.constant 0 : i32
    return %arg0, %arg1, %c0_i32 : i32, i32, i32
  }
}

module attributes {stable_mosaic.version = 11 : i64} {
  func.func @kernel(%arg0: i32, %arg1: i32, %arg2: memref<1x144x96xf32, #tpu.memory_space<vmem>>, %arg3: memref<1x144x128xf32, #tpu.memory_space<vmem>>, %arg4: memref<17x96x128xf32, #tpu.memory_space<vmem>>, %arg5: memref<129x128x128xf32, #tpu.memory_space<vmem>>, %arg6: memref<1x128xf32, #tpu.memory_space<vmem>>, %arg7: memref<1x16x128xf32, #tpu.memory_space<vmem>>, %arg8: memref<144x96xf32, #tpu.memory_space<vmem>>, %arg9: memref<144x128xf32, #tpu.memory_space<vmem>>) attributes {dimension_semantics = [#tpu.dimension_semantics<parallel>, #tpu.dimension_semantics<parallel>], iteration_bounds = array<i64: 2, 1>, scalar_prefetch = 0 : i64, scratch_operands = 2 : i64, tpu.core_type = #tpu.core_type<tc>, window_params = [{transform_indices = @transform_0, window_bounds = array<i64: 1, 144, 96>}, {transform_indices = @transform_1, window_bounds = array<i64: 1, 144, 128>}, {pipeline_mode = #tpu.pipeline_mode<synchronous>, transform_indices = @transform_2, window_bounds = array<i64: 17, 96, 128>}, {pipeline_mode = #tpu.pipeline_mode<synchronous>, transform_indices = @transform_3, window_bounds = array<i64: 129, 128, 128>}, {pipeline_mode = #tpu.pipeline_mode<synchronous>, transform_indices = @transform_4, window_bounds = array<i64: 1, 128>}, {transform_indices = @transform_5, window_bounds = array<i64: 1, 16, 128>}]} {
    %c16_i32 = arith.constant 16 : i32
    %0 = arith.muli %arg1, %c16_i32 : i32
    %1 = tpu.assume_multiple %0, 8 : i32
    %cst = arith.constant 0.000000e+00 : f32
    %2 = vector.broadcast %cst : f32 to vector<16x128xf32>
    %c0 = arith.constant 0 : index
    %3 = arith.index_cast %1 : i32 to index
    %c0_0 = arith.constant 0 : index
    %4 = vector.load %arg2[%c0, %3, %c0_0] : memref<1x144x96xf32, #tpu.memory_space<vmem>>, vector<1x144x96xf32>
    %5 = vector.shape_cast %4 : vector<1x144x96xf32> to vector<144x96xf32>
    %6 = math.tanh %5 : vector<144x96xf32>
    %c0_1 = arith.constant 0 : index
    %c0_2 = arith.constant 0 : index
    %7 = vector.load %arg8[%c0_1, %c0_2] : memref<144x96xf32, #tpu.memory_space<vmem>>, vector<144x96xf32>
    tpu.vector_store %arg8[%c0_1, %c0_2], %6 {strides = array<i32>} : memref<144x96xf32, #tpu.memory_space<vmem>>, vector<144x96xf32>,
    %c0_3 = arith.constant 0 : index
    %c0_4 = arith.constant 0 : index
    %8 = vector.load %arg8[%c0_3, %c0_4] : memref<144x96xf32, #tpu.memory_space<vmem>>, vector<16x96xf32>
    %c0_5 = arith.constant 0 : index
    %c0_6 = arith.constant 0 : index
    %c0_7 = arith.constant 0 : index
    %9 = vector.load %arg4[%c0_5, %c0_6, %c0_7] : memref<17x96x128xf32, #tpu.memory_space<vmem>>, vector<1x96x128xf32>
    %10 = vector.shape_cast %9 : vector<1x96x128xf32> to vector<96x128xf32>
    %cst_8 = arith.constant dense<0.000000e+00> : vector<16x128xf32>
    %11 = tpu.matmul %8, %10, %cst_8 {dimension_numbers = #tpu.dot_dimension_numbers<[1], [0], [0], [1], [0, 0, 1, 1], [], []>} : vector<16x96xf32>, vector<96x128xf32>, vector<16x128xf32> -> vector<16x128xf32>
    %12 = arith.addf %2, %11 : vector<16x128xf32>
    %c8 = arith.constant 8 : index
    %c0_9 = arith.constant 0 : index
    %13 = vector.load %arg8[%c8, %c0_9] : memref<144x96xf32, #tpu.memory_space<vmem>>, vector<16x96xf32>
    %c1 = arith.constant 1 : index
    %c0_10 = arith.constant 0 : index
    %c0_11 = arith.constant 0 : index
    %14 = vector.load %arg4[%c1, %c0_10, %c0_11] : memref<17x96x128xf32, #tpu.memory_space<vmem>>, vector<1x96x128xf32>
    %15 = vector.shape_cast %14 : vector<1x96x128xf32> to vector<96x128xf32>
    %cst_12 = arith.constant dense<0.000000e+00> : vector<16x128xf32>
    %16 = tpu.matmul %13, %15, %cst_12 {dimension_numbers = #tpu.dot_dimension_numbers<[1], [0], [0], [1], [0, 0, 1, 1], [], []>} : vector<16x96xf32>, vector<96x128xf32>, vector<16x128xf32> -> vector<16x128xf32>
    %17 = arith.addf %12, %16 : vector<16x128xf32>
    %c16 = arith.constant 16 : index
    %c0_13 = arith.constant 0 : index
    %18 = vector.load %arg8[%c16, %c0_13] : memref<144x96xf32, #tpu.memory_space<vmem>>, vector<16x96xf32>
    %c2 = arith.constant 2 : index
    %c0_14 = arith.constant 0 : index
    %c0_15 = arith.constant 0 : index
    %19 = vector.load %arg4[%c2, %c0_14, %c0_15] : memref<17x96x128xf32, #tpu.memory_space<vmem>>, vector<1x96x128xf32>
    %20 = vector.shape_cast %19 : vector<1x96x128xf32> to vector<96x128xf32>
    %cst_16 = arith.constant dense<0.000000e+00> : vector<16x128xf32>
    %21 = tpu.matmul %18, %20, %cst_16 {dimension_numbers = #tpu.dot_dimension_numbers<[1], [0], [0], [1], [0, 0, 1, 1], [], []>} : vector<16x96xf32>, vector<96x128xf32>, vector<16x128xf32> -> vector<16x128xf32>
    %22 = arith.addf %17, %21 : vector<16x128xf32>
    %c24 = arith.constant 24 : index
    %c0_17 = arith.constant 0 : index
    %23 = vector.load %arg8[%c24, %c0_17] : memref<144x96xf32, #tpu.memory_space<vmem>>, vector<16x96xf32>
    %c3 = arith.constant 3 : index
    %c0_18 = arith.constant 0 : index
    %c0_19 = arith.constant 0 : index
    %24 = vector.load %arg4[%c3, %c0_18, %c0_19] : memref<17x96x128xf32, #tpu.memory_space<vmem>>, vector<1x96x128xf32>
    %25 = vector.shape_cast %24 : vector<1x96x128xf32> to vector<96x128xf32>
    %cst_20 = arith.constant dense<0.000000e+00> : vector<16x128xf32>
    %26 = tpu.matmul %23, %25, %cst_20 {dimension_numbers = #tpu.dot_dimension_numbers<[1], [0], [0], [1], [0, 0, 1, 1], [], []>} : vector<16x96xf32>, vector<96x128xf32>, vector<16x128xf32> -> vector<16x128xf32>
    %27 = arith.addf %22, %26 : vector<16x128xf32>
    %c32 = arith.constant 32 : index
    %c0_21 = arith.constant 0 : index
    %28 = vector.load %arg8[%c32, %c0_21] : memref<144x96xf32, #tpu.memory_space<vmem>>, vector<16x96xf32>
    %c4 = arith.constant 4 : index
    %c0_22 = arith.constant 0 : index
    %c0_23 = arith.constant 0 : index
    %29 = vector.load %arg4[%c4, %c0_22, %c0_23] : memref<17x96x128xf32, #tpu.memory_space<vmem>>, vector<1x96x128xf32>
    %30 = vector.shape_cast %29 : vector<1x96x128xf32> to vector<96x128xf32>
    %cst_24 = arith.constant dense<0.000000e+00> : vector<16x128xf32>
    %31 = tpu.matmul %28, %30, %cst_24 {dimension_numbers = #tpu.dot_dimension_numbers<[1], [0], [0], [1], [0, 0, 1, 1], [], []>} : vector<16x96xf32>, vector<96x128xf32>, vector<16x128xf32> -> vector<16x128xf32>
    %32 = arith.addf %27, %31 : vector<16x128xf32>
    %c40 = arith.constant 40 : index
    %c0_25 = arith.constant 0 : index
    %33 = vector.load %arg8[%c40, %c0_25] : memref<144x96xf32, #tpu.memory_space<vmem>>, vector<16x96xf32>
    %c5 = arith.constant 5 : index
    %c0_26 = arith.constant 0 : index
    %c0_27 = arith.constant 0 : index
    %34 = vector.load %arg4[%c5, %c0_26, %c0_27] : memref<17x96x128xf32, #tpu.memory_space<vmem>>, vector<1x96x128xf32>
    %35 = vector.shape_cast %34 : vector<1x96x128xf32> to vector<96x128xf32>
    %cst_28 = arith.constant dense<0.000000e+00> : vector<16x128xf32>
    %36 = tpu.matmul %33, %35, %cst_28 {dimension_numbers = #tpu.dot_dimension_numbers<[1], [0], [0], [1], [0, 0, 1, 1], [], []>} : vector<16x96xf32>, vector<96x128xf32>, vector<16x128xf32> -> vector<16x128xf32>
    %37 = arith.addf %32, %36 : vector<16x128xf32>
    %c48 = arith.constant 48 : index
    %c0_29 = arith.constant 0 : index
    %38 = vector.load %arg8[%c48, %c0_29] : memref<144x96xf32, #tpu.memory_space<vmem>>, vector<16x96xf32>
    %c6 = arith.constant 6 : index
    %c0_30 = arith.constant 0 : index
    %c0_31 = arith.constant 0 : index
    %39 = vector.load %arg4[%c6, %c0_30, %c0_31] : memref<17x96x128xf32, #tpu.memory_space<vmem>>, vector<1x96x128xf32>
    %40 = vector.shape_cast %39 : vector<1x96x128xf32> to vector<96x128xf32>
    %cst_32 = arith.constant dense<0.000000e+00> : vector<16x128xf32>
    %41 = tpu.matmul %38, %40, %cst_32 {dimension_numbers = #tpu.dot_dimension_numbers<[1], [0], [0], [1], [0, 0, 1, 1], [], []>} : vector<16x96xf32>, vector<96x128xf32>, vector<16x128xf32> -> vector<16x128xf32>
    %42 = arith.addf %37, %41 : vector<16x128xf32>
    %c56 = arith.constant 56 : index
    %c0_33 = arith.constant 0 : index
    %43 = vector.load %arg8[%c56, %c0_33] : memref<144x96xf32, #tpu.memory_space<vmem>>, vector<16x96xf32>
    %c7 = arith.constant 7 : index
    %c0_34 = arith.constant 0 : index
    %c0_35 = arith.constant 0 : index
    %44 = vector.load %arg4[%c7, %c0_34, %c0_35] : memref<17x96x128xf32, #tpu.memory_space<vmem>>, vector<1x96x128xf32>
    %45 = vector.shape_cast %44 : vector<1x96x128xf32> to vector<96x128xf32>
    %cst_36 = arith.constant dense<0.000000e+00> : vector<16x128xf32>
    %46 = tpu.matmul %43, %45, %cst_36 {dimension_numbers = #tpu.dot_dimension_numbers<[1], [0], [0], [1], [0, 0, 1, 1], [], []>} : vector<16x96xf32>, vector<96x128xf32>, vector<16x128xf32> -> vector<16x128xf32>
    %47 = arith.addf %42, %46 : vector<16x128xf32>
    %c64 = arith.constant 64 : index
    %c0_37 = arith.constant 0 : index
    %48 = vector.load %arg8[%c64, %c0_37] : memref<144x96xf32, #tpu.memory_space<vmem>>, vector<16x96xf32>
    %c8_38 = arith.constant 8 : index
    %c0_39 = arith.constant 0 : index
    %c0_40 = arith.constant 0 : index
    %49 = vector.load %arg4[%c8_38, %c0_39, %c0_40] : memref<17x96x128xf32, #tpu.memory_space<vmem>>, vector<1x96x128xf32>
    %50 = vector.shape_cast %49 : vector<1x96x128xf32> to vector<96x128xf32>
    %cst_41 = arith.constant dense<0.000000e+00> : vector<16x128xf32>
    %51 = tpu.matmul %48, %50, %cst_41 {dimension_numbers = #tpu.dot_dimension_numbers<[1], [0], [0], [1], [0, 0, 1, 1], [], []>} : vector<16x96xf32>, vector<96x128xf32>, vector<16x128xf32> -> vector<16x128xf32>
    %52 = arith.addf %47, %51 : vector<16x128xf32>
    %c72 = arith.constant 72 : index
    %c0_42 = arith.constant 0 : index
    %53 = vector.load %arg8[%c72, %c0_42] : memref<144x96xf32, #tpu.memory_space<vmem>>, vector<16x96xf32>
    %c9 = arith.constant 9 : index
    %c0_43 = arith.constant 0 : index
    %c0_44 = arith.constant 0 : index
    %54 = vector.load %arg4[%c9, %c0_43, %c0_44] : memref<17x96x128xf32, #tpu.memory_space<vmem>>, vector<1x96x128xf32>
    %55 = vector.shape_cast %54 : vector<1x96x128xf32> to vector<96x128xf32>
    %cst_45 = arith.constant dense<0.000000e+00> : vector<16x128xf32>
    %56 = tpu.matmul %53, %55, %cst_45 {dimension_numbers = #tpu.dot_dimension_numbers<[1], [0], [0], [1], [0, 0, 1, 1], [], []>} : vector<16x96xf32>, vector<96x128xf32>, vector<16x128xf32> -> vector<16x128xf32>
    %57 = arith.addf %52, %56 : vector<16x128xf32>
    %c80 = arith.constant 80 : index
    %c0_46 = arith.constant 0 : index
    %58 = vector.load %arg8[%c80, %c0_46] : memref<144x96xf32, #tpu.memory_space<vmem>>, vector<16x96xf32>
    %c10 = arith.constant 10 : index
    %c0_47 = arith.constant 0 : index
    %c0_48 = arith.constant 0 : index
    %59 = vector.load %arg4[%c10, %c0_47, %c0_48] : memref<17x96x128xf32, #tpu.memory_space<vmem>>, vector<1x96x128xf32>
    %60 = vector.shape_cast %59 : vector<1x96x128xf32> to vector<96x128xf32>
    %cst_49 = arith.constant dense<0.000000e+00> : vector<16x128xf32>
    %61 = tpu.matmul %58, %60, %cst_49 {dimension_numbers = #tpu.dot_dimension_numbers<[1], [0], [0], [1], [0, 0, 1, 1], [], []>} : vector<16x96xf32>, vector<96x128xf32>, vector<16x128xf32> -> vector<16x128xf32>
    %62 = arith.addf %57, %61 : vector<16x128xf32>
    %c88 = arith.constant 88 : index
    %c0_50 = arith.constant 0 : index
    %63 = vector.load %arg8[%c88, %c0_50] : memref<144x96xf32, #tpu.memory_space<vmem>>, vector<16x96xf32>
    %c11 = arith.constant 11 : index
    %c0_51 = arith.constant 0 : index
    %c0_52 = arith.constant 0 : index
    %64 = vector.load %arg4[%c11, %c0_51, %c0_52] : memref<17x96x128xf32, #tpu.memory_space<vmem>>, vector<1x96x128xf32>
    %65 = vector.shape_cast %64 : vector<1x96x128xf32> to vector<96x128xf32>
    %cst_53 = arith.constant dense<0.000000e+00> : vector<16x128xf32>
    %66 = tpu.matmul %63, %65, %cst_53 {dimension_numbers = #tpu.dot_dimension_numbers<[1], [0], [0], [1], [0, 0, 1, 1], [], []>} : vector<16x96xf32>, vector<96x128xf32>, vector<16x128xf32> -> vector<16x128xf32>
    %67 = arith.addf %62, %66 : vector<16x128xf32>
    %c96 = arith.constant 96 : index
    %c0_54 = arith.constant 0 : index
    %68 = vector.load %arg8[%c96, %c0_54] : memref<144x96xf32, #tpu.memory_space<vmem>>, vector<16x96xf32>
    %c12 = arith.constant 12 : index
    %c0_55 = arith.constant 0 : index
    %c0_56 = arith.constant 0 : index
    %69 = vector.load %arg4[%c12, %c0_55, %c0_56] : memref<17x96x128xf32, #tpu.memory_space<vmem>>, vector<1x96x128xf32>
    %70 = vector.shape_cast %69 : vector<1x96x128xf32> to vector<96x128xf32>
    %cst_57 = arith.constant dense<0.000000e+00> : vector<16x128xf32>
    %71 = tpu.matmul %68, %70, %cst_57 {dimension_numbers = #tpu.dot_dimension_numbers<[1], [0], [0], [1], [0, 0, 1, 1], [], []>} : vector<16x96xf32>, vector<96x128xf32>, vector<16x128xf32> -> vector<16x128xf32>
    %72 = arith.addf %67, %71 : vector<16x128xf32>
    %c104 = arith.constant 104 : index
    %c0_58 = arith.constant 0 : index
    %73 = vector.load %arg8[%c104, %c0_58] : memref<144x96xf32, #tpu.memory_space<vmem>>, vector<16x96xf32>
    %c13 = arith.constant 13 : index
    %c0_59 = arith.constant 0 : index
    %c0_60 = arith.constant 0 : index
    %74 = vector.load %arg4[%c13, %c0_59, %c0_60] : memref<17x96x128xf32, #tpu.memory_space<vmem>>, vector<1x96x128xf32>
    %75 = vector.shape_cast %74 : vector<1x96x128xf32> to vector<96x128xf32>
    %cst_61 = arith.constant dense<0.000000e+00> : vector<16x128xf32>
    %76 = tpu.matmul %73, %75, %cst_61 {dimension_numbers = #tpu.dot_dimension_numbers<[1], [0], [0], [1], [0, 0, 1, 1], [], []>} : vector<16x96xf32>, vector<96x128xf32>, vector<16x128xf32> -> vector<16x128xf32>
    %77 = arith.addf %72, %76 : vector<16x128xf32>
    %c112 = arith.constant 112 : index
    %c0_62 = arith.constant 0 : index
    %78 = vector.load %arg8[%c112, %c0_62] : memref<144x96xf32, #tpu.memory_space<vmem>>, vector<16x96xf32>
    %c14 = arith.constant 14 : index
    %c0_63 = arith.constant 0 : index
    %c0_64 = arith.constant 0 : index
    %79 = vector.load %arg4[%c14, %c0_63, %c0_64] : memref<17x96x128xf32, #tpu.memory_space<vmem>>, vector<1x96x128xf32>
    %80 = vector.shape_cast %79 : vector<1x96x128xf32> to vector<96x128xf32>
    %cst_65 = arith.constant dense<0.000000e+00> : vector<16x128xf32>
    %81 = tpu.matmul %78, %80, %cst_65 {dimension_numbers = #tpu.dot_dimension_numbers<[1], [0], [0], [1], [0, 0, 1, 1], [], []>} : vector<16x96xf32>, vector<96x128xf32>, vector<16x128xf32> -> vector<16x128xf32>
    %82 = arith.addf %77, %81 : vector<16x128xf32>
    %c120 = arith.constant 120 : index
    %c0_66 = arith.constant 0 : index
    %83 = vector.load %arg8[%c120, %c0_66] : memref<144x96xf32, #tpu.memory_space<vmem>>, vector<16x96xf32>
    %c15 = arith.constant 15 : index
    %c0_67 = arith.constant 0 : index
    %c0_68 = arith.constant 0 : index
    %84 = vector.load %arg4[%c15, %c0_67, %c0_68] : memref<17x96x128xf32, #tpu.memory_space<vmem>>, vector<1x96x128xf32>
    %85 = vector.shape_cast %84 : vector<1x96x128xf32> to vector<96x128xf32>
    %cst_69 = arith.constant dense<0.000000e+00> : vector<16x128xf32>
    %86 = tpu.matmul %83, %85, %cst_69 {dimension_numbers = #tpu.dot_dimension_numbers<[1], [0], [0], [1], [0, 0, 1, 1], [], []>} : vector<16x96xf32>, vector<96x128xf32>, vector<16x128xf32> -> vector<16x128xf32>
    %87 = arith.addf %82, %86 : vector<16x128xf32>
    %c128 = arith.constant 128 : index
    %c0_70 = arith.constant 0 : index
    %88 = vector.load %arg8[%c128, %c0_70] : memref<144x96xf32, #tpu.memory_space<vmem>>, vector<16x96xf32>
    %c16_71 = arith.constant 16 : index
    %c0_72 = arith.constant 0 : index
    %c0_73 = arith.constant 0 : index
    %89 = vector.load %arg4[%c16_71, %c0_72, %c0_73] : memref<17x96x128xf32, #tpu.memory_space<vmem>>, vector<1x96x128xf32>
    %90 = vector.shape_cast %89 : vector<1x96x128xf32> to vector<96x128xf32>
    %cst_74 = arith.constant dense<0.000000e+00> : vector<16x128xf32>
    %91 = tpu.matmul %88, %90, %cst_74 {dimension_numbers = #tpu.dot_dimension_numbers<[1], [0], [0], [1], [0, 0, 1, 1], [], []>} : vector<16x96xf32>, vector<96x128xf32>, vector<16x128xf32> -> vector<16x128xf32>
    %92 = arith.addf %87, %91 : vector<16x128xf32>
    %c0_75 = arith.constant 0 : index
    %93 = arith.index_cast %1 : i32 to index
    %c0_76 = arith.constant 0 : index
    %94 = vector.load %arg3[%c0_75, %93, %c0_76] : memref<1x144x128xf32, #tpu.memory_space<vmem>>, vector<1x144x128xf32>
    %95 = vector.shape_cast %94 : vector<1x144x128xf32> to vector<144x128xf32>
    %96 = math.tanh %95 : vector<144x128xf32>
    %c0_77 = arith.constant 0 : index
    %c0_78 = arith.constant 0 : index
    %97 = vector.load %arg9[%c0_77, %c0_78] : memref<144x128xf32, #tpu.memory_space<vmem>>, vector<144x128xf32>
    tpu.vector_store %arg9[%c0_77, %c0_78], %96 {strides = array<i32>} : memref<144x128xf32, #tpu.memory_space<vmem>>, vector<144x128xf32>,
    %c0_i32 = arith.constant 0 : i32
    %c43_i32 = arith.constant 43 : i32
    %98 = arith.addi %c0_i32, %c43_i32 : i32
    %c1_i32 = arith.constant 1 : i32
    %99 = scf.for %arg10 = %c0_i32 to %98 step %c1_i32 iter_args(%arg11 = %92) -> (vector<16x128xf32>)  : i32 {
      %c3_i32 = arith.constant 3 : i32
      %106 = arith.muli %arg10, %c3_i32 : i32
      %c0_i32_85 = arith.constant 0 : i32
      %107 = arith.addi %106, %c0_i32_85 : i32
      %c1_i32_86 = arith.constant 1 : i32
      %108 = arith.muli %107, %c1_i32_86 : i32
      %109 = arith.index_cast %108 : i32 to index
      %c0_87 = arith.constant 0 : index
      %110 = vector.load %arg9[%109, %c0_87] : memref<144x128xf32, #tpu.memory_space<vmem>>, vector<16x128xf32>
      %111 = arith.index_cast %107 : i32 to index
      %c0_88 = arith.constant 0 : index
      %c0_89 = arith.constant 0 : index
      %112 = vector.load %arg5[%111, %c0_88, %c0_89] : memref<129x128x128xf32, #tpu.memory_space<vmem>>, vector<1x128x128xf32>
      %113 = vector.shape_cast %112 : vector<1x128x128xf32> to vector<128x128xf32>
      %cst_90 = arith.constant dense<0.000000e+00> : vector<16x128xf32>
      %114 = tpu.matmul %110, %113, %cst_90 {dimension_numbers = #tpu.dot_dimension_numbers<[1], [0], [0], [1], [0, 0, 1, 1], [], []>} : vector<16x128xf32>, vector<128x128xf32>, vector<16x128xf32> -> vector<16x128xf32>
      %115 = arith.addf %arg11, %114 : vector<16x128xf32>
      %c3_i32_91 = arith.constant 3 : i32
      %116 = arith.muli %arg10, %c3_i32_91 : i32
      %c1_i32_92 = arith.constant 1 : i32
      %117 = arith.addi %116, %c1_i32_92 : i32
      %c1_i32_93 = arith.constant 1 : i32
      %118 = arith.muli %117, %c1_i32_93 : i32
      %119 = arith.index_cast %118 : i32 to index
      %c0_94 = arith.constant 0 : index
      %120 = vector.load %arg9[%119, %c0_94] : memref<144x128xf32, #tpu.memory_space<vmem>>, vector<16x128xf32>
      %121 = arith.index_cast %117 : i32 to index
      %c0_95 = arith.constant 0 : index
      %c0_96 = arith.constant 0 : index
      %122 = vector.load %arg5[%121, %c0_95, %c0_96] : memref<129x128x128xf32, #tpu.memory_space<vmem>>, vector<1x128x128xf32>
      %123 = vector.shape_cast %122 : vector<1x128x128xf32> to vector<128x128xf32>
      %cst_97 = arith.constant dense<0.000000e+00> : vector<16x128xf32>
      %124 = tpu.matmul %120, %123, %cst_97 {dimension_numbers = #tpu.dot_dimension_numbers<[1], [0], [0], [1], [0, 0, 1, 1], [], []>} : vector<16x128xf32>, vector<128x128xf32>, vector<16x128xf32> -> vector<16x128xf32>
      %125 = arith.addf %115, %124 : vector<16x128xf32>
      %c3_i32_98 = arith.constant 3 : i32
      %126 = arith.muli %arg10, %c3_i32_98 : i32
      %c2_i32 = arith.constant 2 : i32
      %127 = arith.addi %126, %c2_i32 : i32
      %c1_i32_99 = arith.constant 1 : i32
      %128 = arith.muli %127, %c1_i32_99 : i32
      %129 = arith.index_cast %128 : i32 to index
      %c0_100 = arith.constant 0 : index
      %130 = vector.load %arg9[%129, %c0_100] : memref<144x128xf32, #tpu.memory_space<vmem>>, vector<16x128xf32>
      %131 = arith.index_cast %127 : i32 to index
      %c0_101 = arith.constant 0 : index
      %c0_102 = arith.constant 0 : index
      %132 = vector.load %arg5[%131, %c0_101, %c0_102] : memref<129x128x128xf32, #tpu.memory_space<vmem>>, vector<1x128x128xf32>
      %133 = vector.shape_cast %132 : vector<1x128x128xf32> to vector<128x128xf32>
      %cst_103 = arith.constant dense<0.000000e+00> : vector<16x128xf32>
      %134 = tpu.matmul %130, %133, %cst_103 {dimension_numbers = #tpu.dot_dimension_numbers<[1], [0], [0], [1], [0, 0, 1, 1], [], []>} : vector<16x128xf32>, vector<128x128xf32>, vector<16x128xf32> -> vector<16x128xf32>
      %135 = arith.addf %125, %134 : vector<16x128xf32>
      scf.yield %135 : vector<16x128xf32>
    }
    %c43_i32_79 = arith.constant 43 : i32
    %c0_80 = arith.constant 0 : index
    %c0_81 = arith.constant 0 : index
    %100 = vector.load %arg6[%c0_80, %c0_81] : memref<1x128xf32, #tpu.memory_space<vmem>>, vector<1x128xf32>
    %101 = vector.broadcast %100 : vector<1x128xf32> to vector<16x128xf32>
    %102 = arith.addf %99, %101 : vector<16x128xf32>
    %c0_82 = arith.constant 0 : index
    %c0_83 = arith.constant 0 : index
    %c0_84 = arith.constant 0 : index
    %103 = vector.load %arg7[%c0_82, %c0_83, %c0_84] : memref<1x16x128xf32, #tpu.memory_space<vmem>>, vector<1x16x128xf32>
    %104 = vector.shape_cast %103 : vector<1x16x128xf32> to vector<16x128xf32>
    %105 = vector.shape_cast %102 : vector<16x128xf32> to vector<1x16x128xf32>
    tpu.vector_store %arg7[%c0_82, %c0_83, %c0_84], %105 {strides = array<i32>} : memref<1x16x128xf32, #tpu.memory_space<vmem>>, vector<1x16x128xf32>,
    return
  }
  func.func @transform_0(%arg0: i32, %arg1: i32) -> (i32, i32, i32) {
    %c0_i32 = arith.constant 0 : i32
    %c0_i32_0 = arith.constant 0 : i32
    %c0_i32_1 = arith.constant 0 : i32
    return %arg0, %c0_i32, %c0_i32_0 : i32, i32, i32
  }
  func.func @transform_1(%arg0: i32, %arg1: i32) -> (i32, i32, i32) {
    %c0_i32 = arith.constant 0 : i32
    %c0_i32_0 = arith.constant 0 : i32
    %c0_i32_1 = arith.constant 0 : i32
    return %arg0, %c0_i32, %c0_i32_0 : i32, i32, i32
  }
  func.func @transform_2(%arg0: i32, %arg1: i32) -> (i32, i32, i32) {
    %c0_i32 = arith.constant 0 : i32
    %c0_i32_0 = arith.constant 0 : i32
    %c0_i32_1 = arith.constant 0 : i32
    %c0_i32_2 = arith.constant 0 : i32
    return %c0_i32, %c0_i32_0, %c0_i32_1 : i32, i32, i32
  }
  func.func @transform_3(%arg0: i32, %arg1: i32) -> (i32, i32, i32) {
    %c0_i32 = arith.constant 0 : i32
    %c0_i32_0 = arith.constant 0 : i32
    %c0_i32_1 = arith.constant 0 : i32
    %c0_i32_2 = arith.constant 0 : i32
    return %c0_i32, %c0_i32_0, %c0_i32_1 : i32, i32, i32
  }
  func.func @transform_4(%arg0: i32, %arg1: i32) -> (i32, i32) {
    %c0_i32 = arith.constant 0 : i32
    %c0_i32_0 = arith.constant 0 : i32
    %c0_i32_1 = arith.constant 0 : i32
    return %c0_i32, %c0_i32_0 : i32, i32
  }
  func.func @transform_5(%arg0: i32, %arg1: i32) -> (i32, i32, i32) {
    %c0_i32 = arith.constant 0 : i32
    %c0_i32_0 = arith.constant 0 : i32
    return %arg0, %arg1, %c0_i32 : i32, i32, i32
  }
}

module attributes {stable_mosaic.version = 11 : i64} {
  func.func @kernel(%arg0: i32, %arg1: i32, %arg2: memref<1x144x96xf32, #tpu.memory_space<vmem>>, %arg3: memref<1x144x128xf32, #tpu.memory_space<vmem>>, %arg4: memref<1x144x128xf32, #tpu.memory_space<vmem>>, %arg5: memref<17x96x8xf32, #tpu.memory_space<vmem>>, %arg6: memref<129x128x8xf32, #tpu.memory_space<vmem>>, %arg7: memref<129x128x8xf32, #tpu.memory_space<vmem>>, %arg8: memref<1x8xf32, #tpu.memory_space<vmem>>, %arg9: memref<1x8x16xf32, #tpu.memory_space<vmem>>, %arg10: memref<144x96xf32, #tpu.memory_space<vmem>>, %arg11: memref<144x128xf32, #tpu.memory_space<vmem>>, %arg12: memref<144x128xf32, #tpu.memory_space<vmem>>) attributes {dimension_semantics = [#tpu.dimension_semantics<parallel>, #tpu.dimension_semantics<parallel>], iteration_bounds = array<i64: 2, 1>, scalar_prefetch = 0 : i64, scratch_operands = 3 : i64, tpu.core_type = #tpu.core_type<tc>, window_params = [{transform_indices = @transform_0, window_bounds = array<i64: 1, 144, 96>}, {transform_indices = @transform_1, window_bounds = array<i64: 1, 144, 128>}, {transform_indices = @transform_2, window_bounds = array<i64: 1, 144, 128>}, {pipeline_mode = #tpu.pipeline_mode<synchronous>, transform_indices = @transform_3, window_bounds = array<i64: 17, 96, 8>}, {pipeline_mode = #tpu.pipeline_mode<synchronous>, transform_indices = @transform_4, window_bounds = array<i64: 129, 128, 8>}, {pipeline_mode = #tpu.pipeline_mode<synchronous>, transform_indices = @transform_5, window_bounds = array<i64: 129, 128, 8>}, {pipeline_mode = #tpu.pipeline_mode<synchronous>, transform_indices = @transform_6, window_bounds = array<i64: 1, 8>}, {transform_indices = @transform_7, window_bounds = array<i64: 1, 8, 16>}]} {
    %c16_i32 = arith.constant 16 : i32
    %0 = arith.muli %arg1, %c16_i32 : i32
    %1 = tpu.assume_multiple %0, 8 : i32
    %cst = arith.constant 0.000000e+00 : f32
    %2 = vector.broadcast %cst : f32 to vector<16x8xf32>
    %c0 = arith.constant 0 : index
    %3 = arith.index_cast %1 : i32 to index
    %c0_0 = arith.constant 0 : index
    %4 = vector.load %arg2[%c0, %3, %c0_0] : memref<1x144x96xf32, #tpu.memory_space<vmem>>, vector<1x144x96xf32>
    %5 = vector.shape_cast %4 : vector<1x144x96xf32> to vector<144x96xf32>
    %6 = math.tanh %5 : vector<144x96xf32>
    %c0_1 = arith.constant 0 : index
    %c0_2 = arith.constant 0 : index
    %7 = vector.load %arg10[%c0_1, %c0_2] : memref<144x96xf32, #tpu.memory_space<vmem>>, vector<144x96xf32>
    tpu.vector_store %arg10[%c0_1, %c0_2], %6 {strides = array<i32>} : memref<144x96xf32, #tpu.memory_space<vmem>>, vector<144x96xf32>,
    %c0_3 = arith.constant 0 : index
    %c0_4 = arith.constant 0 : index
    %8 = vector.load %arg10[%c0_3, %c0_4] : memref<144x96xf32, #tpu.memory_space<vmem>>, vector<16x96xf32>
    %c0_5 = arith.constant 0 : index
    %c0_6 = arith.constant 0 : index
    %c0_7 = arith.constant 0 : index
    %9 = vector.load %arg5[%c0_5, %c0_6, %c0_7] : memref<17x96x8xf32, #tpu.memory_space<vmem>>, vector<1x96x8xf32>
    %10 = vector.shape_cast %9 : vector<1x96x8xf32> to vector<96x8xf32>
    %cst_8 = arith.constant dense<0.000000e+00> : vector<16x8xf32>
    %11 = tpu.matmul %8, %10, %cst_8 {dimension_numbers = #tpu.dot_dimension_numbers<[1], [0], [0], [1], [0, 0, 1, 1], [], []>} : vector<16x96xf32>, vector<96x8xf32>, vector<16x8xf32> -> vector<16x8xf32>
    %12 = arith.addf %2, %11 : vector<16x8xf32>
    %c8 = arith.constant 8 : index
    %c0_9 = arith.constant 0 : index
    %13 = vector.load %arg10[%c8, %c0_9] : memref<144x96xf32, #tpu.memory_space<vmem>>, vector<16x96xf32>
    %c1 = arith.constant 1 : index
    %c0_10 = arith.constant 0 : index
    %c0_11 = arith.constant 0 : index
    %14 = vector.load %arg5[%c1, %c0_10, %c0_11] : memref<17x96x8xf32, #tpu.memory_space<vmem>>, vector<1x96x8xf32>
    %15 = vector.shape_cast %14 : vector<1x96x8xf32> to vector<96x8xf32>
    %cst_12 = arith.constant dense<0.000000e+00> : vector<16x8xf32>
    %16 = tpu.matmul %13, %15, %cst_12 {dimension_numbers = #tpu.dot_dimension_numbers<[1], [0], [0], [1], [0, 0, 1, 1], [], []>} : vector<16x96xf32>, vector<96x8xf32>, vector<16x8xf32> -> vector<16x8xf32>
    %17 = arith.addf %12, %16 : vector<16x8xf32>
    %c16 = arith.constant 16 : index
    %c0_13 = arith.constant 0 : index
    %18 = vector.load %arg10[%c16, %c0_13] : memref<144x96xf32, #tpu.memory_space<vmem>>, vector<16x96xf32>
    %c2 = arith.constant 2 : index
    %c0_14 = arith.constant 0 : index
    %c0_15 = arith.constant 0 : index
    %19 = vector.load %arg5[%c2, %c0_14, %c0_15] : memref<17x96x8xf32, #tpu.memory_space<vmem>>, vector<1x96x8xf32>
    %20 = vector.shape_cast %19 : vector<1x96x8xf32> to vector<96x8xf32>
    %cst_16 = arith.constant dense<0.000000e+00> : vector<16x8xf32>
    %21 = tpu.matmul %18, %20, %cst_16 {dimension_numbers = #tpu.dot_dimension_numbers<[1], [0], [0], [1], [0, 0, 1, 1], [], []>} : vector<16x96xf32>, vector<96x8xf32>, vector<16x8xf32> -> vector<16x8xf32>
    %22 = arith.addf %17, %21 : vector<16x8xf32>
    %c24 = arith.constant 24 : index
    %c0_17 = arith.constant 0 : index
    %23 = vector.load %arg10[%c24, %c0_17] : memref<144x96xf32, #tpu.memory_space<vmem>>, vector<16x96xf32>
    %c3 = arith.constant 3 : index
    %c0_18 = arith.constant 0 : index
    %c0_19 = arith.constant 0 : index
    %24 = vector.load %arg5[%c3, %c0_18, %c0_19] : memref<17x96x8xf32, #tpu.memory_space<vmem>>, vector<1x96x8xf32>
    %25 = vector.shape_cast %24 : vector<1x96x8xf32> to vector<96x8xf32>
    %cst_20 = arith.constant dense<0.000000e+00> : vector<16x8xf32>
    %26 = tpu.matmul %23, %25, %cst_20 {dimension_numbers = #tpu.dot_dimension_numbers<[1], [0], [0], [1], [0, 0, 1, 1], [], []>} : vector<16x96xf32>, vector<96x8xf32>, vector<16x8xf32> -> vector<16x8xf32>
    %27 = arith.addf %22, %26 : vector<16x8xf32>
    %c32 = arith.constant 32 : index
    %c0_21 = arith.constant 0 : index
    %28 = vector.load %arg10[%c32, %c0_21] : memref<144x96xf32, #tpu.memory_space<vmem>>, vector<16x96xf32>
    %c4 = arith.constant 4 : index
    %c0_22 = arith.constant 0 : index
    %c0_23 = arith.constant 0 : index
    %29 = vector.load %arg5[%c4, %c0_22, %c0_23] : memref<17x96x8xf32, #tpu.memory_space<vmem>>, vector<1x96x8xf32>
    %30 = vector.shape_cast %29 : vector<1x96x8xf32> to vector<96x8xf32>
    %cst_24 = arith.constant dense<0.000000e+00> : vector<16x8xf32>
    %31 = tpu.matmul %28, %30, %cst_24 {dimension_numbers = #tpu.dot_dimension_numbers<[1], [0], [0], [1], [0, 0, 1, 1], [], []>} : vector<16x96xf32>, vector<96x8xf32>, vector<16x8xf32> -> vector<16x8xf32>
    %32 = arith.addf %27, %31 : vector<16x8xf32>
    %c40 = arith.constant 40 : index
    %c0_25 = arith.constant 0 : index
    %33 = vector.load %arg10[%c40, %c0_25] : memref<144x96xf32, #tpu.memory_space<vmem>>, vector<16x96xf32>
    %c5 = arith.constant 5 : index
    %c0_26 = arith.constant 0 : index
    %c0_27 = arith.constant 0 : index
    %34 = vector.load %arg5[%c5, %c0_26, %c0_27] : memref<17x96x8xf32, #tpu.memory_space<vmem>>, vector<1x96x8xf32>
    %35 = vector.shape_cast %34 : vector<1x96x8xf32> to vector<96x8xf32>
    %cst_28 = arith.constant dense<0.000000e+00> : vector<16x8xf32>
    %36 = tpu.matmul %33, %35, %cst_28 {dimension_numbers = #tpu.dot_dimension_numbers<[1], [0], [0], [1], [0, 0, 1, 1], [], []>} : vector<16x96xf32>, vector<96x8xf32>, vector<16x8xf32> -> vector<16x8xf32>
    %37 = arith.addf %32, %36 : vector<16x8xf32>
    %c48 = arith.constant 48 : index
    %c0_29 = arith.constant 0 : index
    %38 = vector.load %arg10[%c48, %c0_29] : memref<144x96xf32, #tpu.memory_space<vmem>>, vector<16x96xf32>
    %c6 = arith.constant 6 : index
    %c0_30 = arith.constant 0 : index
    %c0_31 = arith.constant 0 : index
    %39 = vector.load %arg5[%c6, %c0_30, %c0_31] : memref<17x96x8xf32, #tpu.memory_space<vmem>>, vector<1x96x8xf32>
    %40 = vector.shape_cast %39 : vector<1x96x8xf32> to vector<96x8xf32>
    %cst_32 = arith.constant dense<0.000000e+00> : vector<16x8xf32>
    %41 = tpu.matmul %38, %40, %cst_32 {dimension_numbers = #tpu.dot_dimension_numbers<[1], [0], [0], [1], [0, 0, 1, 1], [], []>} : vector<16x96xf32>, vector<96x8xf32>, vector<16x8xf32> -> vector<16x8xf32>
    %42 = arith.addf %37, %41 : vector<16x8xf32>
    %c56 = arith.constant 56 : index
    %c0_33 = arith.constant 0 : index
    %43 = vector.load %arg10[%c56, %c0_33] : memref<144x96xf32, #tpu.memory_space<vmem>>, vector<16x96xf32>
    %c7 = arith.constant 7 : index
    %c0_34 = arith.constant 0 : index
    %c0_35 = arith.constant 0 : index
    %44 = vector.load %arg5[%c7, %c0_34, %c0_35] : memref<17x96x8xf32, #tpu.memory_space<vmem>>, vector<1x96x8xf32>
    %45 = vector.shape_cast %44 : vector<1x96x8xf32> to vector<96x8xf32>
    %cst_36 = arith.constant dense<0.000000e+00> : vector<16x8xf32>
    %46 = tpu.matmul %43, %45, %cst_36 {dimension_numbers = #tpu.dot_dimension_numbers<[1], [0], [0], [1], [0, 0, 1, 1], [], []>} : vector<16x96xf32>, vector<96x8xf32>, vector<16x8xf32> -> vector<16x8xf32>
    %47 = arith.addf %42, %46 : vector<16x8xf32>
    %c64 = arith.constant 64 : index
    %c0_37 = arith.constant 0 : index
    %48 = vector.load %arg10[%c64, %c0_37] : memref<144x96xf32, #tpu.memory_space<vmem>>, vector<16x96xf32>
    %c8_38 = arith.constant 8 : index
    %c0_39 = arith.constant 0 : index
    %c0_40 = arith.constant 0 : index
    %49 = vector.load %arg5[%c8_38, %c0_39, %c0_40] : memref<17x96x8xf32, #tpu.memory_space<vmem>>, vector<1x96x8xf32>
    %50 = vector.shape_cast %49 : vector<1x96x8xf32> to vector<96x8xf32>
    %cst_41 = arith.constant dense<0.000000e+00> : vector<16x8xf32>
    %51 = tpu.matmul %48, %50, %cst_41 {dimension_numbers = #tpu.dot_dimension_numbers<[1], [0], [0], [1], [0, 0, 1, 1], [], []>} : vector<16x96xf32>, vector<96x8xf32>, vector<16x8xf32> -> vector<16x8xf32>
    %52 = arith.addf %47, %51 : vector<16x8xf32>
    %c72 = arith.constant 72 : index
    %c0_42 = arith.constant 0 : index
    %53 = vector.load %arg10[%c72, %c0_42] : memref<144x96xf32, #tpu.memory_space<vmem>>, vector<16x96xf32>
    %c9 = arith.constant 9 : index
    %c0_43 = arith.constant 0 : index
    %c0_44 = arith.constant 0 : index
    %54 = vector.load %arg5[%c9, %c0_43, %c0_44] : memref<17x96x8xf32, #tpu.memory_space<vmem>>, vector<1x96x8xf32>
    %55 = vector.shape_cast %54 : vector<1x96x8xf32> to vector<96x8xf32>
    %cst_45 = arith.constant dense<0.000000e+00> : vector<16x8xf32>
    %56 = tpu.matmul %53, %55, %cst_45 {dimension_numbers = #tpu.dot_dimension_numbers<[1], [0], [0], [1], [0, 0, 1, 1], [], []>} : vector<16x96xf32>, vector<96x8xf32>, vector<16x8xf32> -> vector<16x8xf32>
    %57 = arith.addf %52, %56 : vector<16x8xf32>
    %c80 = arith.constant 80 : index
    %c0_46 = arith.constant 0 : index
    %58 = vector.load %arg10[%c80, %c0_46] : memref<144x96xf32, #tpu.memory_space<vmem>>, vector<16x96xf32>
    %c10 = arith.constant 10 : index
    %c0_47 = arith.constant 0 : index
    %c0_48 = arith.constant 0 : index
    %59 = vector.load %arg5[%c10, %c0_47, %c0_48] : memref<17x96x8xf32, #tpu.memory_space<vmem>>, vector<1x96x8xf32>
    %60 = vector.shape_cast %59 : vector<1x96x8xf32> to vector<96x8xf32>
    %cst_49 = arith.constant dense<0.000000e+00> : vector<16x8xf32>
    %61 = tpu.matmul %58, %60, %cst_49 {dimension_numbers = #tpu.dot_dimension_numbers<[1], [0], [0], [1], [0, 0, 1, 1], [], []>} : vector<16x96xf32>, vector<96x8xf32>, vector<16x8xf32> -> vector<16x8xf32>
    %62 = arith.addf %57, %61 : vector<16x8xf32>
    %c88 = arith.constant 88 : index
    %c0_50 = arith.constant 0 : index
    %63 = vector.load %arg10[%c88, %c0_50] : memref<144x96xf32, #tpu.memory_space<vmem>>, vector<16x96xf32>
    %c11 = arith.constant 11 : index
    %c0_51 = arith.constant 0 : index
    %c0_52 = arith.constant 0 : index
    %64 = vector.load %arg5[%c11, %c0_51, %c0_52] : memref<17x96x8xf32, #tpu.memory_space<vmem>>, vector<1x96x8xf32>
    %65 = vector.shape_cast %64 : vector<1x96x8xf32> to vector<96x8xf32>
    %cst_53 = arith.constant dense<0.000000e+00> : vector<16x8xf32>
    %66 = tpu.matmul %63, %65, %cst_53 {dimension_numbers = #tpu.dot_dimension_numbers<[1], [0], [0], [1], [0, 0, 1, 1], [], []>} : vector<16x96xf32>, vector<96x8xf32>, vector<16x8xf32> -> vector<16x8xf32>
    %67 = arith.addf %62, %66 : vector<16x8xf32>
    %c96 = arith.constant 96 : index
    %c0_54 = arith.constant 0 : index
    %68 = vector.load %arg10[%c96, %c0_54] : memref<144x96xf32, #tpu.memory_space<vmem>>, vector<16x96xf32>
    %c12 = arith.constant 12 : index
    %c0_55 = arith.constant 0 : index
    %c0_56 = arith.constant 0 : index
    %69 = vector.load %arg5[%c12, %c0_55, %c0_56] : memref<17x96x8xf32, #tpu.memory_space<vmem>>, vector<1x96x8xf32>
    %70 = vector.shape_cast %69 : vector<1x96x8xf32> to vector<96x8xf32>
    %cst_57 = arith.constant dense<0.000000e+00> : vector<16x8xf32>
    %71 = tpu.matmul %68, %70, %cst_57 {dimension_numbers = #tpu.dot_dimension_numbers<[1], [0], [0], [1], [0, 0, 1, 1], [], []>} : vector<16x96xf32>, vector<96x8xf32>, vector<16x8xf32> -> vector<16x8xf32>
    %72 = arith.addf %67, %71 : vector<16x8xf32>
    %c104 = arith.constant 104 : index
    %c0_58 = arith.constant 0 : index
    %73 = vector.load %arg10[%c104, %c0_58] : memref<144x96xf32, #tpu.memory_space<vmem>>, vector<16x96xf32>
    %c13 = arith.constant 13 : index
    %c0_59 = arith.constant 0 : index
    %c0_60 = arith.constant 0 : index
    %74 = vector.load %arg5[%c13, %c0_59, %c0_60] : memref<17x96x8xf32, #tpu.memory_space<vmem>>, vector<1x96x8xf32>
    %75 = vector.shape_cast %74 : vector<1x96x8xf32> to vector<96x8xf32>
    %cst_61 = arith.constant dense<0.000000e+00> : vector<16x8xf32>
    %76 = tpu.matmul %73, %75, %cst_61 {dimension_numbers = #tpu.dot_dimension_numbers<[1], [0], [0], [1], [0, 0, 1, 1], [], []>} : vector<16x96xf32>, vector<96x8xf32>, vector<16x8xf32> -> vector<16x8xf32>
    %77 = arith.addf %72, %76 : vector<16x8xf32>
    %c112 = arith.constant 112 : index
    %c0_62 = arith.constant 0 : index
    %78 = vector.load %arg10[%c112, %c0_62] : memref<144x96xf32, #tpu.memory_space<vmem>>, vector<16x96xf32>
    %c14 = arith.constant 14 : index
    %c0_63 = arith.constant 0 : index
    %c0_64 = arith.constant 0 : index
    %79 = vector.load %arg5[%c14, %c0_63, %c0_64] : memref<17x96x8xf32, #tpu.memory_space<vmem>>, vector<1x96x8xf32>
    %80 = vector.shape_cast %79 : vector<1x96x8xf32> to vector<96x8xf32>
    %cst_65 = arith.constant dense<0.000000e+00> : vector<16x8xf32>
    %81 = tpu.matmul %78, %80, %cst_65 {dimension_numbers = #tpu.dot_dimension_numbers<[1], [0], [0], [1], [0, 0, 1, 1], [], []>} : vector<16x96xf32>, vector<96x8xf32>, vector<16x8xf32> -> vector<16x8xf32>
    %82 = arith.addf %77, %81 : vector<16x8xf32>
    %c120 = arith.constant 120 : index
    %c0_66 = arith.constant 0 : index
    %83 = vector.load %arg10[%c120, %c0_66] : memref<144x96xf32, #tpu.memory_space<vmem>>, vector<16x96xf32>
    %c15 = arith.constant 15 : index
    %c0_67 = arith.constant 0 : index
    %c0_68 = arith.constant 0 : index
    %84 = vector.load %arg5[%c15, %c0_67, %c0_68] : memref<17x96x8xf32, #tpu.memory_space<vmem>>, vector<1x96x8xf32>
    %85 = vector.shape_cast %84 : vector<1x96x8xf32> to vector<96x8xf32>
    %cst_69 = arith.constant dense<0.000000e+00> : vector<16x8xf32>
    %86 = tpu.matmul %83, %85, %cst_69 {dimension_numbers = #tpu.dot_dimension_numbers<[1], [0], [0], [1], [0, 0, 1, 1], [], []>} : vector<16x96xf32>, vector<96x8xf32>, vector<16x8xf32> -> vector<16x8xf32>
    %87 = arith.addf %82, %86 : vector<16x8xf32>
    %c128 = arith.constant 128 : index
    %c0_70 = arith.constant 0 : index
    %88 = vector.load %arg10[%c128, %c0_70] : memref<144x96xf32, #tpu.memory_space<vmem>>, vector<16x96xf32>
    %c16_71 = arith.constant 16 : index
    %c0_72 = arith.constant 0 : index
    %c0_73 = arith.constant 0 : index
    %89 = vector.load %arg5[%c16_71, %c0_72, %c0_73] : memref<17x96x8xf32, #tpu.memory_space<vmem>>, vector<1x96x8xf32>
    %90 = vector.shape_cast %89 : vector<1x96x8xf32> to vector<96x8xf32>
    %cst_74 = arith.constant dense<0.000000e+00> : vector<16x8xf32>
    %91 = tpu.matmul %88, %90, %cst_74 {dimension_numbers = #tpu.dot_dimension_numbers<[1], [0], [0], [1], [0, 0, 1, 1], [], []>} : vector<16x96xf32>, vector<96x8xf32>, vector<16x8xf32> -> vector<16x8xf32>
    %92 = arith.addf %87, %91 : vector<16x8xf32>
    %c0_75 = arith.constant 0 : index
    %93 = arith.index_cast %1 : i32 to index
    %c0_76 = arith.constant 0 : index
    %94 = vector.load %arg3[%c0_75, %93, %c0_76] : memref<1x144x128xf32, #tpu.memory_space<vmem>>, vector<1x144x128xf32>
    %95 = vector.shape_cast %94 : vector<1x144x128xf32> to vector<144x128xf32>
    %96 = math.tanh %95 : vector<144x128xf32>
    %c0_77 = arith.constant 0 : index
    %c0_78 = arith.constant 0 : index
    %97 = vector.load %arg11[%c0_77, %c0_78] : memref<144x128xf32, #tpu.memory_space<vmem>>, vector<144x128xf32>
    tpu.vector_store %arg11[%c0_77, %c0_78], %96 {strides = array<i32>} : memref<144x128xf32, #tpu.memory_space<vmem>>, vector<144x128xf32>,
    %c0_i32 = arith.constant 0 : i32
    %c43_i32 = arith.constant 43 : i32
    %98 = arith.addi %c0_i32, %c43_i32 : i32
    %c1_i32 = arith.constant 1 : i32
    %99 = scf.for %arg13 = %c0_i32 to %98 step %c1_i32 iter_args(%arg14 = %92) -> (vector<16x8xf32>)  : i32 {
      %c3_i32 = arith.constant 3 : i32
      %114 = arith.muli %arg13, %c3_i32 : i32
      %c0_i32_93 = arith.constant 0 : i32
      %115 = arith.addi %114, %c0_i32_93 : i32
      %c1_i32_94 = arith.constant 1 : i32
      %116 = arith.muli %115, %c1_i32_94 : i32
      %117 = arith.index_cast %116 : i32 to index
      %c0_95 = arith.constant 0 : index
      %118 = vector.load %arg11[%117, %c0_95] : memref<144x128xf32, #tpu.memory_space<vmem>>, vector<16x128xf32>
      %119 = arith.index_cast %115 : i32 to index
      %c0_96 = arith.constant 0 : index
      %c0_97 = arith.constant 0 : index
      %120 = vector.load %arg6[%119, %c0_96, %c0_97] : memref<129x128x8xf32, #tpu.memory_space<vmem>>, vector<1x128x8xf32>
      %121 = vector.shape_cast %120 : vector<1x128x8xf32> to vector<128x8xf32>
      %cst_98 = arith.constant dense<0.000000e+00> : vector<16x8xf32>
      %122 = tpu.matmul %118, %121, %cst_98 {dimension_numbers = #tpu.dot_dimension_numbers<[1], [0], [0], [1], [0, 0, 1, 1], [], []>} : vector<16x128xf32>, vector<128x8xf32>, vector<16x8xf32> -> vector<16x8xf32>
      %123 = arith.addf %arg14, %122 : vector<16x8xf32>
      %c3_i32_99 = arith.constant 3 : i32
      %124 = arith.muli %arg13, %c3_i32_99 : i32
      %c1_i32_100 = arith.constant 1 : i32
      %125 = arith.addi %124, %c1_i32_100 : i32
      %c1_i32_101 = arith.constant 1 : i32
      %126 = arith.muli %125, %c1_i32_101 : i32
      %127 = arith.index_cast %126 : i32 to index
      %c0_102 = arith.constant 0 : index
      %128 = vector.load %arg11[%127, %c0_102] : memref<144x128xf32, #tpu.memory_space<vmem>>, vector<16x128xf32>
      %129 = arith.index_cast %125 : i32 to index
      %c0_103 = arith.constant 0 : index
      %c0_104 = arith.constant 0 : index
      %130 = vector.load %arg6[%129, %c0_103, %c0_104] : memref<129x128x8xf32, #tpu.memory_space<vmem>>, vector<1x128x8xf32>
      %131 = vector.shape_cast %130 : vector<1x128x8xf32> to vector<128x8xf32>
      %cst_105 = arith.constant dense<0.000000e+00> : vector<16x8xf32>
      %132 = tpu.matmul %128, %131, %cst_105 {dimension_numbers = #tpu.dot_dimension_numbers<[1], [0], [0], [1], [0, 0, 1, 1], [], []>} : vector<16x128xf32>, vector<128x8xf32>, vector<16x8xf32> -> vector<16x8xf32>
      %133 = arith.addf %123, %132 : vector<16x8xf32>
      %c3_i32_106 = arith.constant 3 : i32
      %134 = arith.muli %arg13, %c3_i32_106 : i32
      %c2_i32 = arith.constant 2 : i32
      %135 = arith.addi %134, %c2_i32 : i32
      %c1_i32_107 = arith.constant 1 : i32
      %136 = arith.muli %135, %c1_i32_107 : i32
      %137 = arith.index_cast %136 : i32 to index
      %c0_108 = arith.constant 0 : index
      %138 = vector.load %arg11[%137, %c0_108] : memref<144x128xf32, #tpu.memory_space<vmem>>, vector<16x128xf32>
      %139 = arith.index_cast %135 : i32 to index
      %c0_109 = arith.constant 0 : index
      %c0_110 = arith.constant 0 : index
      %140 = vector.load %arg6[%139, %c0_109, %c0_110] : memref<129x128x8xf32, #tpu.memory_space<vmem>>, vector<1x128x8xf32>
      %141 = vector.shape_cast %140 : vector<1x128x8xf32> to vector<128x8xf32>
      %cst_111 = arith.constant dense<0.000000e+00> : vector<16x8xf32>
      %142 = tpu.matmul %138, %141, %cst_111 {dimension_numbers = #tpu.dot_dimension_numbers<[1], [0], [0], [1], [0, 0, 1, 1], [], []>} : vector<16x128xf32>, vector<128x8xf32>, vector<16x8xf32> -> vector<16x8xf32>
      %143 = arith.addf %133, %142 : vector<16x8xf32>
      scf.yield %143 : vector<16x8xf32>
    }
    %c43_i32_79 = arith.constant 43 : i32
    %c0_80 = arith.constant 0 : index
    %100 = arith.index_cast %1 : i32 to index
    %c0_81 = arith.constant 0 : index
    %101 = vector.load %arg4[%c0_80, %100, %c0_81] : memref<1x144x128xf32, #tpu.memory_space<vmem>>, vector<1x144x128xf32>
    %102 = vector.shape_cast %101 : vector<1x144x128xf32> to vector<144x128xf32>
    %103 = math.tanh %102 : vector<144x128xf32>
    %c0_82 = arith.constant 0 : index
    %c0_83 = arith.constant 0 : index
    %104 = vector.load %arg12[%c0_82, %c0_83] : memref<144x128xf32, #tpu.memory_space<vmem>>, vector<144x128xf32>
    tpu.vector_store %arg12[%c0_82, %c0_83], %103 {strides = array<i32>} : memref<144x128xf32, #tpu.memory_space<vmem>>, vector<144x128xf32>,
    %c0_i32_84 = arith.constant 0 : i32
    %c43_i32_85 = arith.constant 43 : i32
    %105 = arith.addi %c0_i32_84, %c43_i32_85 : i32
    %c1_i32_86 = arith.constant 1 : i32
    %106 = scf.for %arg13 = %c0_i32_84 to %105 step %c1_i32_86 iter_args(%arg14 = %99) -> (vector<16x8xf32>)  : i32 {
      %c3_i32 = arith.constant 3 : i32
      %114 = arith.muli %arg13, %c3_i32 : i32
      %c0_i32_93 = arith.constant 0 : i32
      %115 = arith.addi %114, %c0_i32_93 : i32
      %c1_i32_94 = arith.constant 1 : i32
      %116 = arith.muli %115, %c1_i32_94 : i32
      %117 = arith.index_cast %116 : i32 to index
      %c0_95 = arith.constant 0 : index
      %118 = vector.load %arg12[%117, %c0_95] : memref<144x128xf32, #tpu.memory_space<vmem>>, vector<16x128xf32>
      %119 = arith.index_cast %115 : i32 to index
      %c0_96 = arith.constant 0 : index
      %c0_97 = arith.constant 0 : index
      %120 = vector.load %arg7[%119, %c0_96, %c0_97] : memref<129x128x8xf32, #tpu.memory_space<vmem>>, vector<1x128x8xf32>
      %121 = vector.shape_cast %120 : vector<1x128x8xf32> to vector<128x8xf32>
      %cst_98 = arith.constant dense<0.000000e+00> : vector<16x8xf32>
      %122 = tpu.matmul %118, %121, %cst_98 {dimension_numbers = #tpu.dot_dimension_numbers<[1], [0], [0], [1], [0, 0, 1, 1], [], []>} : vector<16x128xf32>, vector<128x8xf32>, vector<16x8xf32> -> vector<16x8xf32>
      %123 = arith.addf %arg14, %122 : vector<16x8xf32>
      %c3_i32_99 = arith.constant 3 : i32
      %124 = arith.muli %arg13, %c3_i32_99 : i32
      %c1_i32_100 = arith.constant 1 : i32
      %125 = arith.addi %124, %c1_i32_100 : i32
      %c1_i32_101 = arith.constant 1 : i32
      %126 = arith.muli %125, %c1_i32_101 : i32
      %127 = arith.index_cast %126 : i32 to index
      %c0_102 = arith.constant 0 : index
      %128 = vector.load %arg12[%127, %c0_102] : memref<144x128xf32, #tpu.memory_space<vmem>>, vector<16x128xf32>
      %129 = arith.index_cast %125 : i32 to index
      %c0_103 = arith.constant 0 : index
      %c0_104 = arith.constant 0 : index
      %130 = vector.load %arg7[%129, %c0_103, %c0_104] : memref<129x128x8xf32, #tpu.memory_space<vmem>>, vector<1x128x8xf32>
      %131 = vector.shape_cast %130 : vector<1x128x8xf32> to vector<128x8xf32>
      %cst_105 = arith.constant dense<0.000000e+00> : vector<16x8xf32>
      %132 = tpu.matmul %128, %131, %cst_105 {dimension_numbers = #tpu.dot_dimension_numbers<[1], [0], [0], [1], [0, 0, 1, 1], [], []>} : vector<16x128xf32>, vector<128x8xf32>, vector<16x8xf32> -> vector<16x8xf32>
      %133 = arith.addf %123, %132 : vector<16x8xf32>
      %c3_i32_106 = arith.constant 3 : i32
      %134 = arith.muli %arg13, %c3_i32_106 : i32
      %c2_i32 = arith.constant 2 : i32
      %135 = arith.addi %134, %c2_i32 : i32
      %c1_i32_107 = arith.constant 1 : i32
      %136 = arith.muli %135, %c1_i32_107 : i32
      %137 = arith.index_cast %136 : i32 to index
      %c0_108 = arith.constant 0 : index
      %138 = vector.load %arg12[%137, %c0_108] : memref<144x128xf32, #tpu.memory_space<vmem>>, vector<16x128xf32>
      %139 = arith.index_cast %135 : i32 to index
      %c0_109 = arith.constant 0 : index
      %c0_110 = arith.constant 0 : index
      %140 = vector.load %arg7[%139, %c0_109, %c0_110] : memref<129x128x8xf32, #tpu.memory_space<vmem>>, vector<1x128x8xf32>
      %141 = vector.shape_cast %140 : vector<1x128x8xf32> to vector<128x8xf32>
      %cst_111 = arith.constant dense<0.000000e+00> : vector<16x8xf32>
      %142 = tpu.matmul %138, %141, %cst_111 {dimension_numbers = #tpu.dot_dimension_numbers<[1], [0], [0], [1], [0, 0, 1, 1], [], []>} : vector<16x128xf32>, vector<128x8xf32>, vector<16x8xf32> -> vector<16x8xf32>
      %143 = arith.addf %133, %142 : vector<16x8xf32>
      scf.yield %143 : vector<16x8xf32>
    }
    %c43_i32_87 = arith.constant 43 : i32
    %c0_88 = arith.constant 0 : index
    %c0_89 = arith.constant 0 : index
    %107 = vector.load %arg8[%c0_88, %c0_89] : memref<1x8xf32, #tpu.memory_space<vmem>>, vector<1x8xf32>
    %108 = vector.broadcast %107 : vector<1x8xf32> to vector<16x8xf32>
    %109 = arith.addf %106, %108 : vector<16x8xf32>
    %110 = tpu.transpose %109, [1, 0] : vector<16x8xf32> -> vector<8x16xf32>
    %c0_90 = arith.constant 0 : index
    %c0_91 = arith.constant 0 : index
    %c0_92 = arith.constant 0 : index
    %111 = vector.load %arg9[%c0_90, %c0_91, %c0_92] : memref<1x8x16xf32, #tpu.memory_space<vmem>>, vector<1x8x16xf32>
    %112 = vector.shape_cast %111 : vector<1x8x16xf32> to vector<8x16xf32>
    %113 = vector.shape_cast %110 : vector<8x16xf32> to vector<1x8x16xf32>
    tpu.vector_store %arg9[%c0_90, %c0_91, %c0_92], %113 {strides = array<i32>} : memref<1x8x16xf32, #tpu.memory_space<vmem>>, vector<1x8x16xf32>,
    return
  }
  func.func @transform_0(%arg0: i32, %arg1: i32) -> (i32, i32, i32) {
    %c0_i32 = arith.constant 0 : i32
    %c0_i32_0 = arith.constant 0 : i32
    %c0_i32_1 = arith.constant 0 : i32
    return %arg0, %c0_i32, %c0_i32_0 : i32, i32, i32
  }
  func.func @transform_1(%arg0: i32, %arg1: i32) -> (i32, i32, i32) {
    %c0_i32 = arith.constant 0 : i32
    %c0_i32_0 = arith.constant 0 : i32
    %c0_i32_1 = arith.constant 0 : i32
    return %arg0, %c0_i32, %c0_i32_0 : i32, i32, i32
  }
  func.func @transform_2(%arg0: i32, %arg1: i32) -> (i32, i32, i32) {
    %c0_i32 = arith.constant 0 : i32
    %c0_i32_0 = arith.constant 0 : i32
    %c0_i32_1 = arith.constant 0 : i32
    return %arg0, %c0_i32, %c0_i32_0 : i32, i32, i32
  }
  func.func @transform_3(%arg0: i32, %arg1: i32) -> (i32, i32, i32) {
    %c0_i32 = arith.constant 0 : i32
    %c0_i32_0 = arith.constant 0 : i32
    %c0_i32_1 = arith.constant 0 : i32
    %c0_i32_2 = arith.constant 0 : i32
    return %c0_i32, %c0_i32_0, %c0_i32_1 : i32, i32, i32
  }
  func.func @transform_4(%arg0: i32, %arg1: i32) -> (i32, i32, i32) {
    %c0_i32 = arith.constant 0 : i32
    %c0_i32_0 = arith.constant 0 : i32
    %c0_i32_1 = arith.constant 0 : i32
    %c0_i32_2 = arith.constant 0 : i32
    return %c0_i32, %c0_i32_0, %c0_i32_1 : i32, i32, i32
  }
  func.func @transform_5(%arg0: i32, %arg1: i32) -> (i32, i32, i32) {
    %c0_i32 = arith.constant 0 : i32
    %c0_i32_0 = arith.constant 0 : i32
    %c0_i32_1 = arith.constant 0 : i32
    %c0_i32_2 = arith.constant 0 : i32
    return %c0_i32, %c0_i32_0, %c0_i32_1 : i32, i32, i32
  }
  func.func @transform_6(%arg0: i32, %arg1: i32) -> (i32, i32) {
    %c0_i32 = arith.constant 0 : i32
    %c0_i32_0 = arith.constant 0 : i32
    %c0_i32_1 = arith.constant 0 : i32
    return %c0_i32, %c0_i32_0 : i32, i32
  }
  func.func @transform_7(%arg0: i32, %arg1: i32) -> (i32, i32, i32) {
    %c0_i32 = arith.constant 0 : i32
    %c0_i32_0 = arith.constant 0 : i32
    return %arg0, %c0_i32, %arg1 : i32, i32, i32
  }
}

</mosaic_0001>

<llo_original>
// kernel: skip_model_forward.3
$region0: #{skip_model_forward.3}
  #allocation0 [shape = 'u32[]', space=smem, size = 0x4, offset = 0x4, fixed_abs, tag = 'smem constant byte address 0x4 - core index']
  #allocation1 [shape = 'u32[144,128]{1,0:T(1,128)}', space=vmem, size = 0x12000, scoped, tag = 'internal scratch']
  %s0 = inlined_call_operand.vmem [shape: f32[2,144,96], index: 0, kind: input, shape index: {}]
  %s1 = inlined_call_operand.vmem [shape: f32[17,96,128], index: 1, kind: input, shape index: {}]
  %s2 = inlined_call_operand.hbm [shape: f32[1,128], index: 2, kind: input, shape index: {}]
  %s3 = inlined_call_operand.vmem [shape: f32[2,16,128], index: 3, kind: output, shape index: {}]
  %s4 = sld [smem:[#allocation0]]
  $region49: #{skip_model_forward.3} parent=0
    _
  %s6 = ssub.s32 1, %s4
  %s7 = scalar_select 0, %s6, %s4
  $region1: #{skip_model_forward.3} parent=0
    #allocation2 [shape = 'u8[512]{0}', space=vmem, size = 0x400, scoped, tag = 'input window, operand 2, single buffered']
    #allocation3 [shape = 's32[2]{0}', space=sflag, size = 0x8, scoped, tag = 'scoped memory for skip_model_forward.3']
    %8 = vsyncpa [#allocation3], 0
    loop: start=0, step=1, limit=4
    $region2: #{skip_model_forward.3} parent=1 // loop_pre_header
      _
    $region3: #{skip_model_forward.3} parent=1 // loop_header
      %s10 = sphi 0, %s14
      %p11 = scmp.ge.s32.totalorder %s10, 4
      %s17 = sphi 0, %s29
      %s18 = sphi 0, %s25
      %s19 = sphi 0, %s17
      %s20 = sphi 0, %s18
      %s21 = sphi 0, %s19
      %s22 = sphi 0, %s20
      %s32 = sphi 0, %s34
      %s35 = sphi 0, %s32
      %s36 = sphi 0, %s35
      %s52 = sphi 0, %s36
      %s56 = sphi 0, %s56
      %s58 = sphi 0, %s56
      %s59 = sphi 0, %s58
      %s73 = sphi 0, %s59
      %s77 = sphi 0, %s77
      %s79 = sphi 0, %s77
      %s80 = sphi 0, %s79
      %s94 = sphi 0, %s80
      %s102 = sphi 0, %s104
      %s105 = sphi 0, %s102
      %s106 = sphi 0, %s105
      %s122 = sphi 0, %s106
    $region4: #{skip_model_forward.3} parent=1 // loop_header_branch
      %13 = sbr.rel (%p11) target = $region8
    $region5: #{skip_model_forward.3} parent=1 // loop_body
      %s15 = ssub.s32 %s10, 1
      %s16 = ssub.s32 %s10, 2
      %s23 = sadd.s32 1, %s18
      %p24 = scmp.ge.s32.totalorder %s23, 1
      %s25 = scalar_select %p24, 0, %s23
      %s26 = sadd.s32 1, %s17
      %s27 = scalar_select %p24, %s26, %s17
      %p28 = scmp.ge.s32.totalorder %s27, 2
      %s29 = scalar_select %p28, 0, %s27
      %s30 = ssub.s32 %s17, %s29
      %p31 = scmp.eq.s32.totalorder %s30, 0
      %s33 = sadd.s32 %s32, 1
      %s34 = scalar_select %p31, %s32, %s33
      %p37 = pneg %p31
      %p38 = scmp.eq.s32.totalorder %s10, 1
      %p39 = por %p37, %p38
      %p40 = scmp.ne.s32.totalorder %s32, %s35
      %p41 = scmp.eq.s32.totalorder %s10, 0
      %p42 = por %p40, %p41
      %p43 = scmp.ne.s32.totalorder %s32, %s35
      %p44 = scmp.eq.s32.totalorder %s15, 1
      %p45 = por %p43, %p44
      %p46 = scmp.ne.s32.totalorder %s35, %s36
      %p47 = scmp.eq.s32.totalorder %s15, 0
      %p48 = por %p46, %p47
      %p49 = scmp.ne.s32.totalorder %s35, %s36
      %p50 = scmp.eq.s32.totalorder %s16, 1
      %p51 = por %p49, %p50
      %p53 = scmp.ne.s32.totalorder %s36, %s52
      %p54 = scmp.eq.s32.totalorder %s16, 0
      %p55 = por %p53, %p54
      %s57 = sadd.s32 %s56, 1
      %p60 = scmp.eq.s32.totalorder %s10, 1
      %p61 = scmp.ne.s32.totalorder %s56, %s58
      %p62 = scmp.eq.s32.totalorder %s10, 0
      %p63 = por %p61, %p62
      %p64 = scmp.ne.s32.totalorder %s56, %s58
      %p65 = scmp.eq.s32.totalorder %s15, 1
      %p66 = por %p64, %p65
      %p67 = scmp.ne.s32.totalorder %s58, %s59
      %p68 = scmp.eq.s32.totalorder %s15, 0
      %p69 = por %p67, %p68
      %p70 = scmp.ne.s32.totalorder %s58, %s59
      %p71 = scmp.eq.s32.totalorder %s16, 1
      %p72 = por %p70, %p71
      %p74 = scmp.ne.s32.totalorder %s59, %s73
      %p75 = scmp.eq.s32.totalorder %s16, 0
      %p76 = por %p74, %p75
      %s78 = sadd.s32 %s77, 1
      %p81 = scmp.eq.s32.totalorder %s10, 1
      %p82 = scmp.ne.s32.totalorder %s77, %s79
      %p83 = scmp.eq.s32.totalorder %s10, 0
      %p84 = por %p82, %p83
      %p85 = scmp.ne.s32.totalorder %s77, %s79
      %p86 = scmp.eq.s32.totalorder %s15, 1
      %p87 = por %p85, %p86
      %p88 = scmp.ne.s32.totalorder %s79, %s80
      %p89 = scmp.eq.s32.totalorder %s15, 0
      %p90 = por %p88, %p89
      %p91 = scmp.ne.s32.totalorder %s79, %s80
      %p92 = scmp.eq.s32.totalorder %s16, 1
      %p93 = por %p91, %p92
      %p95 = scmp.ne.s32.totalorder %s80, %s94
      %p96 = scmp.eq.s32.totalorder %s16, 0
      %p97 = por %p95, %p96
      %s98 = ssub.s32 %s17, %s29
      %s99 = ssub.s32 %s18, %s25
      %s100 = sor.u32 %s98, %s99
      %p101 = scmp.eq.s32.totalorder %s100, 0
      %s103 = sadd.s32 %s102, 1
      %s104 = scalar_select %p101, %s102, %s103
      %p107 = pneg %p101
      %p108 = scmp.eq.s32.totalorder %s10, 1
      %p109 = por %p107, %p108
      %p110 = scmp.ne.s32.totalorder %s102, %s105
      %p111 = scmp.eq.s32.totalorder %s10, 0
      %p112 = por %p110, %p111
      %p113 = scmp.ne.s32.totalorder %s102, %s105
      %p114 = scmp.eq.s32.totalorder %s15, 1
      %p115 = por %p113, %p114
      %p116 = scmp.ne.s32.totalorder %s105, %s106
      %p117 = scmp.eq.s32.totalorder %s15, 0
      %p118 = por %p116, %p117
      %p119 = scmp.ne.s32.totalorder %s105, %s106
      %p120 = scmp.eq.s32.totalorder %s16, 1
      %p121 = por %p119, %p120
      %p123 = scmp.ne.s32.totalorder %s106, %s122
      %p124 = scmp.eq.s32.totalorder %s16, 0
      %p125 = por %p123, %p124
      %p126 = scmp.le.s32.totalorder 1, %s10
      %p127 = scmp.lt.s32.totalorder %s10, 3
      %p128 = pnand %p126, %p127
      %p129 = pneg %p128
      // Predicated region
      $region9: #{skip_model_forward.3} parent=5 // pred_check
        _
      $region10: #{skip_model_forward.3} parent=5 // pred_check_branch
        %131 = sbr.rel (%p128) target = $region12
      $region11: #{skip_model_forward.3} parent=5 // pred_region
        %s132 = ssub.s32 %s10, 1
        // Predicated region
        $region13: #{skip_model_forward.3} parent=11 // pred_check
          %p133 = pneg %p69
        $region14: #{skip_model_forward.3} parent=11 // pred_check_branch
          %135 = sbr.rel (%p133) target = $region16
        $region15: #{skip_model_forward.3} parent=11 // pred_region
          _
        $region16: #{skip_model_forward.3} parent=11 // pred_fallthru
          _
        // Predicated region
        $region17: #{skip_model_forward.3} parent=11 // pred_check
          %p136 = pneg %p90
        $region18: #{skip_model_forward.3} parent=11 // pred_check_branch
          %138 = sbr.rel (%p136) target = $region20
        $region19: #{skip_model_forward.3} parent=11 // pred_region
          %s140 = ssub.s32 16, 16
          %141 = vsyncadd [#allocation3], %s140
          %s143 = sshll.u32 [#allocation2], 4
          %s144 = int_to_ptr.vmem [resolvable:$true] %s143
          %146 = dma.hbm_to_vmem [thread:$0]  %s2, 16, %s144, [#allocation3]
        $region20: #{skip_model_forward.3} parent=11 // pred_fallthru
          _
      $region12: #{skip_model_forward.3} parent=5 // pred_fallthru
        _
      %p147 = scmp.lt.s32.totalorder %s10, 2
      // Predicated region
      $region21: #{skip_model_forward.3} parent=5 // pred_check
        %p148 = pneg %p147
      $region22: #{skip_model_forward.3} parent=5 // pred_check_branch
        %150 = sbr.rel (%p148) target = $region24
      $region23: #{skip_model_forward.3} parent=5 // pred_region
        // Predicated region
        $region25: #{skip_model_forward.3} parent=23 // pred_check
          %p151 = pneg %p42
        $region26: #{skip_model_forward.3} parent=23 // pred_check_branch
          %153 = sbr.rel (%p151) target = $region28
        $region27: #{skip_model_forward.3} parent=23 // pred_region
          %p154 = scmp.lt.s32.totalorder %s17, 1
          %s155 = scalar_select %p154, %s17, 1
          %s156 = smul.addr %s155, 18
          %s157 = smul.addr %s156, 8
          %s158 = scalar_lea.vmem %s0, %s157
        $region28: #{skip_model_forward.3} parent=23 // pred_fallthru
          _
      $region24: #{skip_model_forward.3} parent=5 // pred_fallthru
        _
      %p159 = scmp.le.s32.totalorder 1, %s10
      %p160 = scmp.lt.s32.totalorder %s10, 3
      %p161 = pnand %p159, %p160
      %p162 = pneg %p161
      // Predicated region
      $region29: #{skip_model_forward.3} parent=5 // pred_check
        _
      $region30: #{skip_model_forward.3} parent=5 // pred_check_branch
        %164 = sbr.rel (%p161) target = $region32
      $region31: #{skip_model_forward.3} parent=5 // pred_region
        %s165 = ssub.s32 %s10, 1
        // Predicated region
        $region33: #{skip_model_forward.3} parent=31 // pred_check
          %p166 = pneg %p90
        $region34: #{skip_model_forward.3} parent=31 // pred_check_branch
          %168 = sbr.rel (%p166) target = $region36
        $region35: #{skip_model_forward.3} parent=31 // pred_region
          %169 = dma.done [#allocation3], 16
        $region36: #{skip_model_forward.3} parent=31 // pred_fallthru
          _
        %p170 = scmp.lt.s32.totalorder %s19, 1
        %s171 = scalar_select %p170, %s19, 1
        %s172 = smul.addr %s171, 18
        %s173 = smul.addr %s172, 8
        %s174 = scalar_lea.vmem %s0, %s173
        %p175 = pneg %p48
        %p176 = pneg %p45
        %p177 = pneg %p69
        %p178 = pneg %p66
        %p179 = pneg %p90
        %p180 = pneg %p87
        %p181 = pneg %p118
        %p182 = pneg %p115
        %s183 = smul.u32 2, %s20
        %p184 = scmp.lt.s32.totalorder %s19, 1
        %s185 = scalar_select %p184, %s19, 1
        %p186 = scmp.lt.s32.totalorder %s183, 1
        %s187 = scalar_select %p186, %s183, 1
        %s188 = smul.addr %s185, 2
        %s189 = sadd.s32 %s187, %s188
        %s190 = smul.addr %s189, 8
        %s191 = scalar_lea.vmem %s3, %s190
        %p192 = scmp.lt.s32.totalorder %s19, 1
        %s193 = scalar_select %p192, %s19, 1
        %s194 = smul.addr %s193, 18
        %s195 = smul.addr %s194, 8
        %s196 = scalar_lea.vmem %s0, %s195
        %s197 = smul.u32 2, %s20
        %p198 = scmp.lt.s32.totalorder %s19, 1
        %s199 = scalar_select %p198, %s19, 1
        %p200 = scmp.lt.s32.totalorder %s197, 1
        %s201 = scalar_select %p200, %s197, 1
        %s202 = smul.addr %s199, 2
        %s203 = sadd.s32 %s201, %s202
        %s204 = smul.addr %s203, 8
        %s205 = scalar_lea.vmem %s3, %s204
        %s206 = smul.u32 2, %s20
        %s207 = smul.u32 %s20, 16
        %s208 = scalar_lea.vmem %s196, %s207
        %v209 = vld [vmem:[%s208] sm:$0xff]
        %v210 = vld [vmem:[%s208 + $0x8] sm:$0xff]
        %v211 = vld [vmem:[%s1] sm:$0xff]
        %v212 = vld [vmem:[%s1 + $0x8] sm:$0xff]
        %v213 = vld [vmem:[%s1 + $0x10] sm:$0xff]
        %v214 = vld [vmem:[%s1 + $0x18] sm:$0xff]
        %v215 = vld [vmem:[%s1 + $0x20] sm:$0xff]
        %v216 = vld [vmem:[%s1 + $0x28] sm:$0xff]
        %v217 = vld [vmem:[%s1 + $0x30] sm:$0xff]
        %v218 = vld [vmem:[%s1 + $0x38] sm:$0xff]
        %v219 = vld [vmem:[%s1 + $0x40] sm:$0xff]
        %v220 = vld [vmem:[%s1 + $0x48] sm:$0xff]
        %v221 = vld [vmem:[%s1 + $0x50] sm:$0xff]
        %v222 = vld [vmem:[%s1 + $0x58] sm:$0xff]
        %s223 = sadd.s32 %s207, 8
        %s224 = scalar_lea.vmem %s196, %s223
        %v225 = vld [vmem:[%s224] sm:$0xff]
        %v226 = vld [vmem:[%s224 + $0x8] sm:$0xff]
        %s227 = scalar_lea.vmem %s1, 96
        %v228 = vld [vmem:[%s227] sm:$0xff]
        %v229 = vld [vmem:[%s227 + $0x8] sm:$0xff]
        %v230 = vld [vmem:[%s227 + $0x10] sm:$0xff]
        %v231 = vld [vmem:[%s227 + $0x18] sm:$0xff]
        %v232 = vld [vmem:[%s227 + $0x20] sm:$0xff]
        %v233 = vld [vmem:[%s227 + $0x28] sm:$0xff]
        %v234 = vld [vmem:[%s227 + $0x30] sm:$0xff]
        %v235 = vld [vmem:[%s227 + $0x38] sm:$0xff]
        %v236 = vld [vmem:[%s227 + $0x40] sm:$0xff]
        %v237 = vld [vmem:[%s227 + $0x48] sm:$0xff]
        %v238 = vld [vmem:[%s227 + $0x50] sm:$0xff]
        %v239 = vld [vmem:[%s227 + $0x58] sm:$0xff]
        %vm240 = vcmask 785408
        %v242 = vsel %vm240, %v225, 0
        %v245 = vsel %vm240, %v226, 0
        %247 = vmatprep.subr.mxu0 0.0
        %248 = vmatpush1.msra.mxu0 0.0
        %249 = vmatprep.subr.mxu0 0.0
        %250 = vmatpush1.msra.mxu0 0.0
        %251 = vmatprep.subr.mxu0 0.0
        %252 = vmatpush1.msra.mxu0 0.0
        %253 = vmatprep.subr.mxu0 0.0
        %254 = vmatpush1.msra.mxu0 0.0
        %255 = vmatprep.subr.mxu0 0.0
        %256 = vmatpush1.msra.mxu0 %v239
        %257 = vmatprep.subr.mxu0 0.0
        %258 = vmatpush1.msra.mxu0 %v238
        %259 = vmatprep.subr.mxu0 0.0
        %260 = vmatpush1.msra.mxu0 %v237
        %261 = vmatprep.subr.mxu0 0.0
        %262 = vmatpush1.msra.mxu0 %v236
        %263 = vmatprep.subr.mxu0 0.0
        %264 = vmatpush1.msra.mxu0 %v235
        %265 = vmatprep.subr.mxu0 0.0
        %266 = vmatpush1.msra.mxu0 %v234
        %267 = vmatprep.subr.mxu0 0.0
        %268 = vmatpush1.msra.mxu0 %v233
        %269 = vmatprep.subr.mxu0 0.0
        %270 = vmatpush1.msra.mxu0 %v232
        %271 = vmatprep.subr.mxu0 0.0
        %272 = vmatpush1.msra.mxu0 %v231
        %273 = vmatprep.subr.mxu0 0.0
        %274 = vmatpush1.msra.mxu0 %v230
        %275 = vmatprep.subr.mxu0 0.0
        %276 = vmatpush1.msra.mxu0 %v229
        %277 = vmatprep.subr.mxu0 0.0
        %278 = vmatpush1.msra.mxu0 %v228
        %279 = vmatprep.subr.mxu0 0.0
        %280 = vmatpush2.msra.mxu0 0.0
        %281 = vmatprep.subr.mxu0 0.0
        %282 = vmatpush2.msra.mxu0 0.0
        %283 = vmatprep.subr.mxu0 0.0
        %284 = vmatpush2.msra.mxu0 0.0
        %285 = vmatprep.subr.mxu0 0.0
        %286 = vmatpush2.msra.mxu0 0.0
        %287 = vmatprep.subr.mxu0 0.0
        %288 = vmatpush2.msra.mxu0 0.0
        %289 = vmatprep.subr.mxu0 0.0
        %290 = vmatpush2.msra.mxu0 0.0
        %291 = vmatprep.subr.mxu0 0.0
        %292 = vmatpush2.msra.mxu0 0.0
        %293 = vmatprep.subr.mxu0 0.0
        %294 = vmatpush2.msra.mxu0 0.0
        %295 = vmatprep.subr.mxu0 0.0
        %296 = vmatpush2.msra.mxu0 0.0
        %297 = vmatprep.subr.mxu0 0.0
        %298 = vmatpush2.msra.mxu0 0.0
        %299 = vmatprep.subr.mxu0 0.0
        %300 = vmatpush2.msra.mxu0 0.0
        %301 = vmatprep.subr.mxu0 0.0
        %302 = vmatpush2.msra.mxu0 0.0
        %303 = vmatprep.subr.mxu0 0.0
        %304 = vmatpush2.msra.mxu0 0.0
        %305 = vmatprep.subr.mxu0 0.0
        %306 = vmatpush2.msra.mxu0 0.0
        %307 = vmatprep.subr.mxu0 0.0
        %308 = vmatpush2.msra.mxu0 0.0
        %309 = vmatprep.subr.mxu0 0.0
        %310 = vmatpush2.msra.mxu0 0.0
        %311 = vmatprep.mubr.f32.mxu0 0.0
        %312 = vmatmul.mubr.f32.gmra.mxu0 %v242
        %v313 = vpop.f32.mrf.mxu0
        %v314 = vadd.f32 0.0, %v313
        %v315 = vpop.f32.mrf.mxu0
        %316 = vmatprep.mubr.f32.mxu0 0.0
        %317 = vmatmul.mubr.f32.gmra.mxu0 %v245
        %v318 = vpop.f32.mrf.mxu0
        %v319 = vadd.f32 0.0, %v318
        %v320 = vpop.f32.mrf.mxu0
        %321 = vdwg.mxu0
        %v323 = vsel %vm240, %v209, 0
        %v326 = vsel %vm240, %v210, 0
        %328 = vmatprep.subr.mxu0 0.0
        %329 = vmatpush1.msra.mxu0 0.0
        %330 = vmatprep.subr.mxu0 0.0
        %331 = vmatpush1.msra.mxu0 0.0
        %332 = vmatprep.subr.mxu0 0.0
        %333 = vmatpush1.msra.mxu0 0.0
        %334 = vmatprep.subr.mxu0 0.0
        %335 = vmatpush1.msra.mxu0 0.0
        %336 = vmatprep.subr.mxu0 0.0
        %337 = vmatpush1.msra.mxu0 %v222
        %338 = vmatprep.subr.mxu0 0.0
        %339 = vmatpush1.msra.mxu0 %v221
        %340 = vmatprep.subr.mxu0 0.0
        %341 = vmatpush1.msra.mxu0 %v220
        %342 = vmatprep.subr.mxu0 0.0
        %343 = vmatpush1.msra.mxu0 %v219
        %344 = vmatprep.subr.mxu0 0.0
        %345 = vmatpush1.msra.mxu0 %v218
        %346 = vmatprep.subr.mxu0 0.0
        %347 = vmatpush1.msra.mxu0 %v217
        %348 = vmatprep.subr.mxu0 0.0
        %349 = vmatpush1.msra.mxu0 %v216
        %350 = vmatprep.subr.mxu0 0.0
        %351 = vmatpush1.msra.mxu0 %v215
        %352 = vmatprep.subr.mxu0 0.0
        %353 = vmatpush1.msra.mxu0 %v214
        %354 = vmatprep.subr.mxu0 0.0
        %355 = vmatpush1.msra.mxu0 %v213
        %356 = vmatprep.subr.mxu0 0.0
        %357 = vmatpush1.msra.mxu0 %v212
        %358 = vmatprep.subr.mxu0 0.0
        %359 = vmatpush1.msra.mxu0 %v211
        %360 = vmatprep.subr.mxu0 0.0
        %361 = vmatpush2.msra.mxu0 0.0
        %362 = vmatprep.subr.mxu0 0.0
        %363 = vmatpush2.msra.mxu0 0.0
        %364 = vmatprep.subr.mxu0 0.0
        %365 = vmatpush2.msra.mxu0 0.0
        %366 = vmatprep.subr.mxu0 0.0
        %367 = vmatpush2.msra.mxu0 0.0
        %368 = vmatprep.subr.mxu0 0.0
        %369 = vmatpush2.msra.mxu0 0.0
        %370 = vmatprep.subr.mxu0 0.0
        %371 = vmatpush2.msra.mxu0 0.0
        %372 = vmatprep.subr.mxu0 0.0
        %373 = vmatpush2.msra.mxu0 0.0
        %374 = vmatprep.subr.mxu0 0.0
        %375 = vmatpush2.msra.mxu0 0.0
        %376 = vmatprep.subr.mxu0 0.0
        %377 = vmatpush2.msra.mxu0 0.0
        %378 = vmatprep.subr.mxu0 0.0
        %379 = vmatpush2.msra.mxu0 0.0
        %380 = vmatprep.subr.mxu0 0.0
        %381 = vmatpush2.msra.mxu0 0.0
        %382 = vmatprep.subr.mxu0 0.0
        %383 = vmatpush2.msra.mxu0 0.0
        %384 = vmatprep.subr.mxu0 0.0
        %385 = vmatpush2.msra.mxu0 0.0
        %386 = vmatprep.subr.mxu0 0.0
        %387 = vmatpush2.msra.mxu0 0.0
        %388 = vmatprep.subr.mxu0 0.0
        %389 = vmatpush2.msra.mxu0 0.0
        %390 = vmatprep.subr.mxu0 0.0
        %391 = vmatpush2.msra.mxu0 0.0
        %392 = vmatprep.mubr.f32.mxu0 0.0
        %393 = vmatmul.mubr.f32.gmra.mxu0 %v323
        %v394 = vpop.f32.mrf.mxu0
        %v395 = vadd.f32 %v314, %v394
        %v396 = vpop.f32.mrf.mxu0
        %397 = vmatprep.mubr.f32.mxu0 0.0
        %398 = vmatmul.mubr.f32.gmra.mxu0 %v326
        %v399 = vpop.f32.mrf.mxu0
        %v400 = vadd.f32 %v319, %v399
        %v401 = vpop.f32.mrf.mxu0
        %402 = vdwg.mxu0
        %s403 = sadd.s32 %s207, 16
        %s404 = scalar_lea.vmem %s196, %s403
        %v405 = vld [vmem:[%s404] sm:$0xff]
        %v406 = vld [vmem:[%s404 + $0x8] sm:$0xff]
        %s407 = scalar_lea.vmem %s1, 192
        %v408 = vld [vmem:[%s407] sm:$0xff]
        %v409 = vld [vmem:[%s407 + $0x8] sm:$0xff]
        %v410 = vld [vmem:[%s407 + $0x10] sm:$0xff]
        %v411 = vld [vmem:[%s407 + $0x18] sm:$0xff]
        %v412 = vld [vmem:[%s407 + $0x20] sm:$0xff]
        %v413 = vld [vmem:[%s407 + $0x28] sm:$0xff]
        %v414 = vld [vmem:[%s407 + $0x30] sm:$0xff]
        %v415 = vld [vmem:[%s407 + $0x38] sm:$0xff]
        %v416 = vld [vmem:[%s407 + $0x40] sm:$0xff]
        %v417 = vld [vmem:[%s407 + $0x48] sm:$0xff]
        %v418 = vld [vmem:[%s407 + $0x50] sm:$0xff]
        %v419 = vld [vmem:[%s407 + $0x58] sm:$0xff]
        %v421 = vsel %vm240, %v405, 0
        %v424 = vsel %vm240, %v406, 0
        %426 = vmatprep.subr.mxu0 0.0
        %427 = vmatpush1.msra.mxu0 0.0
        %428 = vmatprep.subr.mxu0 0.0
        %429 = vmatpush1.msra.mxu0 0.0
        %430 = vmatprep.subr.mxu0 0.0
        %431 = vmatpush1.msra.mxu0 0.0
        %432 = vmatprep.subr.mxu0 0.0
        %433 = vmatpush1.msra.mxu0 0.0
        %434 = vmatprep.subr.mxu0 0.0
        %435 = vmatpush1.msra.mxu0 %v419
        %436 = vmatprep.subr.mxu0 0.0
        %437 = vmatpush1.msra.mxu0 %v418
        %438 = vmatprep.subr.mxu0 0.0
        %439 = vmatpush1.msra.mxu0 %v417
        %440 = vmatprep.subr.mxu0 0.0
        %441 = vmatpush1.msra.mxu0 %v416
        %442 = vmatprep.subr.mxu0 0.0
        %443 = vmatpush1.msra.mxu0 %v415
        %444 = vmatprep.subr.mxu0 0.0
        %445 = vmatpush1.msra.mxu0 %v414
        %446 = vmatprep.subr.mxu0 0.0
        %447 = vmatpush1.msra.mxu0 %v413
        %448 = vmatprep.subr.mxu0 0.0
        %449 = vmatpush1.msra.mxu0 %v412
        %450 = vmatprep.subr.mxu0 0.0
        %451 = vmatpush1.msra.mxu0 %v411
        %452 = vmatprep.subr.mxu0 0.0
        %453 = vmatpush1.msra.mxu0 %v410
        %454 = vmatprep.subr.mxu0 0.0
        %455 = vmatpush1.msra.mxu0 %v409
        %456 = vmatprep.subr.mxu0 0.0
        %457 = vmatpush1.msra.mxu0 %v408
        %458 = vmatprep.subr.mxu0 0.0
        %459 = vmatpush2.msra.mxu0 0.0
        %460 = vmatprep.subr.mxu0 0.0
        %461 = vmatpush2.msra.mxu0 0.0
        %462 = vmatprep.subr.mxu0 0.0
        %463 = vmatpush2.msra.mxu0 0.0
        %464 = vmatprep.subr.mxu0 0.0
        %465 = vmatpush2.msra.mxu0 0.0
        %466 = vmatprep.subr.mxu0 0.0
        %467 = vmatpush2.msra.mxu0 0.0
        %468 = vmatprep.subr.mxu0 0.0
        %469 = vmatpush2.msra.mxu0 0.0
        %470 = vmatprep.subr.mxu0 0.0
        %471 = vmatpush2.msra.mxu0 0.0
        %472 = vmatprep.subr.mxu0 0.0
        %473 = vmatpush2.msra.mxu0 0.0
        %474 = vmatprep.subr.mxu0 0.0
        %475 = vmatpush2.msra.mxu0 0.0
        %476 = vmatprep.subr.mxu0 0.0
        %477 = vmatpush2.msra.mxu0 0.0
        %478 = vmatprep.subr.mxu0 0.0
        %479 = vmatpush2.msra.mxu0 0.0
        %480 = vmatprep.subr.mxu0 0.0
        %481 = vmatpush2.msra.mxu0 0.0
        %482 = vmatprep.subr.mxu0 0.0
        %483 = vmatpush2.msra.mxu0 0.0
        %484 = vmatprep.subr.mxu0 0.0
        %485 = vmatpush2.msra.mxu0 0.0
        %486 = vmatprep.subr.mxu0 0.0
        %487 = vmatpush2.msra.mxu0 0.0
        %488 = vmatprep.subr.mxu0 0.0
        %489 = vmatpush2.msra.mxu0 0.0
        %490 = vmatprep.mubr.f32.mxu0 0.0
        %491 = vmatmul.mubr.f32.gmra.mxu0 %v421
        %v492 = vpop.f32.mrf.mxu0
        %v493 = vadd.f32 0.0, %v492
        %v494 = vpop.f32.mrf.mxu0
        %495 = vmatprep.mubr.f32.mxu0 0.0
        %496 = vmatmul.mubr.f32.gmra.mxu0 %v424
        %v497 = vpop.f32.mrf.mxu0
        %v498 = vadd.f32 0.0, %v497
        %v499 = vpop.f32.mrf.mxu0
        %500 = vdwg.mxu0
        %v501 = vadd.f32 %v395, %v493
        %v502 = vadd.f32 %v400, %v498
        %s503 = sadd.s32 %s207, 24
        %s504 = scalar_lea.vmem %s196, %s503
        %v505 = vld [vmem:[%s504] sm:$0xff]
        %v506 = vld [vmem:[%s504 + $0x8] sm:$0xff]
        %s507 = scalar_lea.vmem %s1, 288
        %v508 = vld [vmem:[%s507] sm:$0xff]
        %v509 = vld [vmem:[%s507 + $0x8] sm:$0xff]
        %v510 = vld [vmem:[%s507 + $0x10] sm:$0xff]
        %v511 = vld [vmem:[%s507 + $0x18] sm:$0xff]
        %v512 = vld [vmem:[%s507 + $0x20] sm:$0xff]
        %v513 = vld [vmem:[%s507 + $0x28] sm:$0xff]
        %v514 = vld [vmem:[%s507 + $0x30] sm:$0xff]
        %v515 = vld [vmem:[%s507 + $0x38] sm:$0xff]
        %v516 = vld [vmem:[%s507 + $0x40] sm:$0xff]
        %v517 = vld [vmem:[%s507 + $0x48] sm:$0xff]
        %v518 = vld [vmem:[%s507 + $0x50] sm:$0xff]
        %v519 = vld [vmem:[%s507 + $0x58] sm:$0xff]
        %v521 = vsel %vm240, %v505, 0
        %v524 = vsel %vm240, %v506, 0
        %526 = vmatprep.subr.mxu0 0.0
        %527 = vmatpush1.msra.mxu0 0.0
        %528 = vmatprep.subr.mxu0 0.0
        %529 = vmatpush1.msra.mxu0 0.0
        %530 = vmatprep.subr.mxu0 0.0
        %531 = vmatpush1.msra.mxu0 0.0
        %532 = vmatprep.subr.mxu0 0.0
        %533 = vmatpush1.msra.mxu0 0.0
        %534 = vmatprep.subr.mxu0 0.0
        %535 = vmatpush1.msra.mxu0 %v519
        %536 = vmatprep.subr.mxu0 0.0
        %537 = vmatpush1.msra.mxu0 %v518
        %538 = vmatprep.subr.mxu0 0.0
        %539 = vmatpush1.msra.mxu0 %v517
        %540 = vmatprep.subr.mxu0 0.0
        %541 = vmatpush1.msra.mxu0 %v516
        %542 = vmatprep.subr.mxu0 0.0
        %543 = vmatpush1.msra.mxu0 %v515
        %544 = vmatprep.subr.mxu0 0.0
        %545 = vmatpush1.msra.mxu0 %v514
        %546 = vmatprep.subr.mxu0 0.0
        %547 = vmatpush1.msra.mxu0 %v513
        %548 = vmatprep.subr.mxu0 0.0
        %549 = vmatpush1.msra.mxu0 %v512
        %550 = vmatprep.subr.mxu0 0.0
        %551 = vmatpush1.msra.mxu0 %v511
        %552 = vmatprep.subr.mxu0 0.0
        %553 = vmatpush1.msra.mxu0 %v510
        %554 = vmatprep.subr.mxu0 0.0
        %555 = vmatpush1.msra.mxu0 %v509
        %556 = vmatprep.subr.mxu0 0.0
        %557 = vmatpush1.msra.mxu0 %v508
        %558 = vmatprep.subr.mxu0 0.0
        %559 = vmatpush2.msra.mxu0 0.0
        %560 = vmatprep.subr.mxu0 0.0
        %561 = vmatpush2.msra.mxu0 0.0
        %562 = vmatprep.subr.mxu0 0.0
        %563 = vmatpush2.msra.mxu0 0.0
        %564 = vmatprep.subr.mxu0 0.0
        %565 = vmatpush2.msra.mxu0 0.0
        %566 = vmatprep.subr.mxu0 0.0
        %567 = vmatpush2.msra.mxu0 0.0
        %568 = vmatprep.subr.mxu0 0.0
        %569 = vmatpush2.msra.mxu0 0.0
        %570 = vmatprep.subr.mxu0 0.0
        %571 = vmatpush2.msra.mxu0 0.0
        %572 = vmatprep.subr.mxu0 0.0
        %573 = vmatpush2.msra.mxu0 0.0
        %574 = vmatprep.subr.mxu0 0.0
        %575 = vmatpush2.msra.mxu0 0.0
        %576 = vmatprep.subr.mxu0 0.0
        %577 = vmatpush2.msra.mxu0 0.0
        %578 = vmatprep.subr.mxu0 0.0
        %579 = vmatpush2.msra.mxu0 0.0
        %580 = vmatprep.subr.mxu0 0.0
        %581 = vmatpush2.msra.mxu0 0.0
        %582 = vmatprep.subr.mxu0 0.0
        %583 = vmatpush2.msra.mxu0 0.0
        %584 = vmatprep.subr.mxu0 0.0
        %585 = vmatpush2.msra.mxu0 0.0
        %586 = vmatprep.subr.mxu0 0.0
        %587 = vmatpush2.msra.mxu0 0.0
        %588 = vmatprep.subr.mxu0 0.0
        %589 = vmatpush2.msra.mxu0 0.0
        %590 = vmatprep.mubr.f32.mxu0 0.0
        %591 = vmatmul.mubr.f32.gmra.mxu0 %v521
        %v592 = vpop.f32.mrf.mxu0
        %v593 = vadd.f32 0.0, %v592
        %v594 = vpop.f32.mrf.mxu0
        %595 = vmatprep.mubr.f32.mxu0 0.0
        %596 = vmatmul.mubr.f32.gmra.mxu0 %v524
        %v597 = vpop.f32.mrf.mxu0
        %v598 = vadd.f32 0.0, %v597
        %v599 = vpop.f32.mrf.mxu0
        %600 = vdwg.mxu0
        %v601 = vadd.f32 %v501, %v593
        %v602 = vadd.f32 %v502, %v598
        %s603 = sadd.s32 %s207, 32
        %s604 = scalar_lea.vmem %s196, %s603
        %v605 = vld [vmem:[%s604] sm:$0xff]
        %v606 = vld [vmem:[%s604 + $0x8] sm:$0xff]
        %s607 = scalar_lea.vmem %s1, 384
        %v608 = vld [vmem:[%s607] sm:$0xff]
        %v609 = vld [vmem:[%s607 + $0x8] sm:$0xff]
        %v610 = vld [vmem:[%s607 + $0x10] sm:$0xff]
        %v611 = vld [vmem:[%s607 + $0x18] sm:$0xff]
        %v612 = vld [vmem:[%s607 + $0x20] sm:$0xff]
        %v613 = vld [vmem:[%s607 + $0x28] sm:$0xff]
        %v614 = vld [vmem:[%s607 + $0x30] sm:$0xff]
        %v615 = vld [vmem:[%s607 + $0x38] sm:$0xff]
        %v616 = vld [vmem:[%s607 + $0x40] sm:$0xff]
        %v617 = vld [vmem:[%s607 + $0x48] sm:$0xff]
        %v618 = vld [vmem:[%s607 + $0x50] sm:$0xff]
        %v619 = vld [vmem:[%s607 + $0x58] sm:$0xff]
        %v621 = vsel %vm240, %v605, 0
        %v624 = vsel %vm240, %v606, 0
        %626 = vmatprep.subr.mxu0 0.0
        %627 = vmatpush1.msra.mxu0 0.0
        %628 = vmatprep.subr.mxu0 0.0
        %629 = vmatpush1.msra.mxu0 0.0
        %630 = vmatprep.subr.mxu0 0.0
        %631 = vmatpush1.msra.mxu0 0.0
        %632 = vmatprep.subr.mxu0 0.0
        %633 = vmatpush1.msra.mxu0 0.0
        %634 = vmatprep.subr.mxu0 0.0
        %635 = vmatpush1.msra.mxu0 %v619
        %636 = vmatprep.subr.mxu0 0.0
        %637 = vmatpush1.msra.mxu0 %v618
        %638 = vmatprep.subr.mxu0 0.0
        %639 = vmatpush1.msra.mxu0 %v617
        %640 = vmatprep.subr.mxu0 0.0
        %641 = vmatpush1.msra.mxu0 %v616
        %642 = vmatprep.subr.mxu0 0.0
        %643 = vmatpush1.msra.mxu0 %v615
        %644 = vmatprep.subr.mxu0 0.0
        %645 = vmatpush1.msra.mxu0 %v614
        %646 = vmatprep.subr.mxu0 0.0
        %647 = vmatpush1.msra.mxu0 %v613
        %648 = vmatprep.subr.mxu0 0.0
        %649 = vmatpush1.msra.mxu0 %v612
        %650 = vmatprep.subr.mxu0 0.0
        %651 = vmatpush1.msra.mxu0 %v611
        %652 = vmatprep.subr.mxu0 0.0
        %653 = vmatpush1.msra.mxu0 %v610
        %654 = vmatprep.subr.mxu0 0.0
        %655 = vmatpush1.msra.mxu0 %v609
        %656 = vmatprep.subr.mxu0 0.0
        %657 = vmatpush1.msra.mxu0 %v608
        %658 = vmatprep.subr.mxu0 0.0
        %659 = vmatpush2.msra.mxu0 0.0
        %660 = vmatprep.subr.mxu0 0.0
        %661 = vmatpush2.msra.mxu0 0.0
        %662 = vmatprep.subr.mxu0 0.0
        %663 = vmatpush2.msra.mxu0 0.0
        %664 = vmatprep.subr.mxu0 0.0
        %665 = vmatpush2.msra.mxu0 0.0
        %666 = vmatprep.subr.mxu0 0.0
        %667 = vmatpush2.msra.mxu0 0.0
        %668 = vmatprep.subr.mxu0 0.0
        %669 = vmatpush2.msra.mxu0 0.0
        %670 = vmatprep.subr.mxu0 0.0
        %671 = vmatpush2.msra.mxu0 0.0
        %672 = vmatprep.subr.mxu0 0.0
        %673 = vmatpush2.msra.mxu0 0.0
        %674 = vmatprep.subr.mxu0 0.0
        %675 = vmatpush2.msra.mxu0 0.0
        %676 = vmatprep.subr.mxu0 0.0
        %677 = vmatpush2.msra.mxu0 0.0
        %678 = vmatprep.subr.mxu0 0.0
        %679 = vmatpush2.msra.mxu0 0.0
        %680 = vmatprep.subr.mxu0 0.0
        %681 = vmatpush2.msra.mxu0 0.0
        %682 = vmatprep.subr.mxu0 0.0
        %683 = vmatpush2.msra.mxu0 0.0
        %684 = vmatprep.subr.mxu0 0.0
        %685 = vmatpush2.msra.mxu0 0.0
        %686 = vmatprep.subr.mxu0 0.0
        %687 = vmatpush2.msra.mxu0 0.0
        %688 = vmatprep.subr.mxu0 0.0
        %689 = vmatpush2.msra.mxu0 0.0
        %690 = vmatprep.mubr.f32.mxu0 0.0
        %691 = vmatmul.mubr.f32.gmra.mxu0 %v621
        %v692 = vpop.f32.mrf.mxu0
        %v693 = vadd.f32 0.0, %v692
        %v694 = vpop.f32.mrf.mxu0
        %695 = vmatprep.mubr.f32.mxu0 0.0
        %696 = vmatmul.mubr.f32.gmra.mxu0 %v624
        %v697 = vpop.f32.mrf.mxu0
        %v698 = vadd.f32 0.0, %v697
        %v699 = vpop.f32.mrf.mxu0
        %700 = vdwg.mxu0
        %v701 = vadd.f32 %v601, %v693
        %v702 = vadd.f32 %v602, %v698
        %s703 = sadd.s32 %s207, 40
        %s704 = scalar_lea.vmem %s196, %s703
        %v705 = vld [vmem:[%s704] sm:$0xff]
        %v706 = vld [vmem:[%s704 + $0x8] sm:$0xff]
        %s707 = scalar_lea.vmem %s1, 480
        %v708 = vld [vmem:[%s707] sm:$0xff]
        %v709 = vld [vmem:[%s707 + $0x8] sm:$0xff]
        %v710 = vld [vmem:[%s707 + $0x10] sm:$0xff]
        %v711 = vld [vmem:[%s707 + $0x18] sm:$0xff]
        %v712 = vld [vmem:[%s707 + $0x20] sm:$0xff]
        %v713 = vld [vmem:[%s707 + $0x28] sm:$0xff]
        %v714 = vld [vmem:[%s707 + $0x30] sm:$0xff]
        %v715 = vld [vmem:[%s707 + $0x38] sm:$0xff]
        %v716 = vld [vmem:[%s707 + $0x40] sm:$0xff]
        %v717 = vld [vmem:[%s707 + $0x48] sm:$0xff]
        %v718 = vld [vmem:[%s707 + $0x50] sm:$0xff]
        %v719 = vld [vmem:[%s707 + $0x58] sm:$0xff]
        %v721 = vsel %vm240, %v705, 0
        %v724 = vsel %vm240, %v706, 0
        %726 = vmatprep.subr.mxu0 0.0
        %727 = vmatpush1.msra.mxu0 0.0
        %728 = vmatprep.subr.mxu0 0.0
        %729 = vmatpush1.msra.mxu0 0.0
        %730 = vmatprep.subr.mxu0 0.0
        %731 = vmatpush1.msra.mxu0 0.0
        %732 = vmatprep.subr.mxu0 0.0
        %733 = vmatpush1.msra.mxu0 0.0
        %734 = vmatprep.subr.mxu0 0.0
        %735 = vmatpush1.msra.mxu0 %v719
        %736 = vmatprep.subr.mxu0 0.0
        %737 = vmatpush1.msra.mxu0 %v718
        %738 = vmatprep.subr.mxu0 0.0
        %739 = vmatpush1.msra.mxu0 %v717
        %740 = vmatprep.subr.mxu0 0.0
        %741 = vmatpush1.msra.mxu0 %v716
        %742 = vmatprep.subr.mxu0 0.0
        %743 = vmatpush1.msra.mxu0 %v715
        %744 = vmatprep.subr.mxu0 0.0
        %745 = vmatpush1.msra.mxu0 %v714
        %746 = vmatprep.subr.mxu0 0.0
        %747 = vmatpush1.msra.mxu0 %v713
        %748 = vmatprep.subr.mxu0 0.0
        %749 = vmatpush1.msra.mxu0 %v712
        %750 = vmatprep.subr.mxu0 0.0
        %751 = vmatpush1.msra.mxu0 %v711
        %752 = vmatprep.subr.mxu0 0.0
        %753 = vmatpush1.msra.mxu0 %v710
        %754 = vmatprep.subr.mxu0 0.0
        %755 = vmatpush1.msra.mxu0 %v709
        %756 = vmatprep.subr.mxu0 0.0
        %757 = vmatpush1.msra.mxu0 %v708
        %758 = vmatprep.subr.mxu0 0.0
        %759 = vmatpush2.msra.mxu0 0.0
        %760 = vmatprep.subr.mxu0 0.0
        %761 = vmatpush2.msra.mxu0 0.0
        %762 = vmatprep.subr.mxu0 0.0
        %763 = vmatpush2.msra.mxu0 0.0
        %764 = vmatprep.subr.mxu0 0.0
        %765 = vmatpush2.msra.mxu0 0.0
        %766 = vmatprep.subr.mxu0 0.0
        %767 = vmatpush2.msra.mxu0 0.0
        %768 = vmatprep.subr.mxu0 0.0
        %769 = vmatpush2.msra.mxu0 0.0
        %770 = vmatprep.subr.mxu0 0.0
        %771 = vmatpush2.msra.mxu0 0.0
        %772 = vmatprep.subr.mxu0 0.0
        %773 = vmatpush2.msra.mxu0 0.0
        %774 = vmatprep.subr.mxu0 0.0
        %775 = vmatpush2.msra.mxu0 0.0
        %776 = vmatprep.subr.mxu0 0.0
        %777 = vmatpush2.msra.mxu0 0.0
        %778 = vmatprep.subr.mxu0 0.0
        %779 = vmatpush2.msra.mxu0 0.0
        %780 = vmatprep.subr.mxu0 0.0
        %781 = vmatpush2.msra.mxu0 0.0
        %782 = vmatprep.subr.mxu0 0.0
        %783 = vmatpush2.msra.mxu0 0.0
        %784 = vmatprep.subr.mxu0 0.0
        %785 = vmatpush2.msra.mxu0 0.0
        %786 = vmatprep.subr.mxu0 0.0
        %787 = vmatpush2.msra.mxu0 0.0
        %788 = vmatprep.subr.mxu0 0.0
        %789 = vmatpush2.msra.mxu0 0.0
        %790 = vmatprep.mubr.f32.mxu0 0.0
        %791 = vmatmul.mubr.f32.gmra.mxu0 %v721
        %v792 = vpop.f32.mrf.mxu0
        %v793 = vadd.f32 0.0, %v792
        %v794 = vpop.f32.mrf.mxu0
        %795 = vmatprep.mubr.f32.mxu0 0.0
        %796 = vmatmul.mubr.f32.gmra.mxu0 %v724
        %v797 = vpop.f32.mrf.mxu0
        %v798 = vadd.f32 0.0, %v797
        %v799 = vpop.f32.mrf.mxu0
        %800 = vdwg.mxu0
        %v801 = vadd.f32 %v701, %v793
        %v802 = vadd.f32 %v702, %v798
        %s803 = sadd.s32 %s207, 48
        %s804 = scalar_lea.vmem %s196, %s803
        %v805 = vld [vmem:[%s804] sm:$0xff]
        %v806 = vld [vmem:[%s804 + $0x8] sm:$0xff]
        %s807 = scalar_lea.vmem %s1, 576
        %v808 = vld [vmem:[%s807] sm:$0xff]
        %v809 = vld [vmem:[%s807 + $0x8] sm:$0xff]
        %v810 = vld [vmem:[%s807 + $0x10] sm:$0xff]
        %v811 = vld [vmem:[%s807 + $0x18] sm:$0xff]
        %v812 = vld [vmem:[%s807 + $0x20] sm:$0xff]
        %v813 = vld [vmem:[%s807 + $0x28] sm:$0xff]
        %v814 = vld [vmem:[%s807 + $0x30] sm:$0xff]
        %v815 = vld [vmem:[%s807 + $0x38] sm:$0xff]
        %v816 = vld [vmem:[%s807 + $0x40] sm:$0xff]
        %v817 = vld [vmem:[%s807 + $0x48] sm:$0xff]
        %v818 = vld [vmem:[%s807 + $0x50] sm:$0xff]
        %v819 = vld [vmem:[%s807 + $0x58] sm:$0xff]
        %v821 = vsel %vm240, %v805, 0
        %v824 = vsel %vm240, %v806, 0
        %826 = vmatprep.subr.mxu0 0.0
        %827 = vmatpush1.msra.mxu0 0.0
        %828 = vmatprep.subr.mxu0 0.0
        %829 = vmatpush1.msra.mxu0 0.0
        %830 = vmatprep.subr.mxu0 0.0
        %831 = vmatpush1.msra.mxu0 0.0
        %832 = vmatprep.subr.mxu0 0.0
        %833 = vmatpush1.msra.mxu0 0.0
        %834 = vmatprep.subr.mxu0 0.0
        %835 = vmatpush1.msra.mxu0 %v819
        %836 = vmatprep.subr.mxu0 0.0
        %837 = vmatpush1.msra.mxu0 %v818
        %838 = vmatprep.subr.mxu0 0.0
        %839 = vmatpush1.msra.mxu0 %v817
        %840 = vmatprep.subr.mxu0 0.0
        %841 = vmatpush1.msra.mxu0 %v816
        %842 = vmatprep.subr.mxu0 0.0
        %843 = vmatpush1.msra.mxu0 %v815
        %844 = vmatprep.subr.mxu0 0.0
        %845 = vmatpush1.msra.mxu0 %v814
        %846 = vmatprep.subr.mxu0 0.0
        %847 = vmatpush1.msra.mxu0 %v813
        %848 = vmatprep.subr.mxu0 0.0
        %849 = vmatpush1.msra.mxu0 %v812
        %850 = vmatprep.subr.mxu0 0.0
        %851 = vmatpush1.msra.mxu0 %v811
        %852 = vmatprep.subr.mxu0 0.0
        %853 = vmatpush1.msra.mxu0 %v810
        %854 = vmatprep.subr.mxu0 0.0
        %855 = vmatpush1.msra.mxu0 %v809
        %856 = vmatprep.subr.mxu0 0.0
        %857 = vmatpush1.msra.mxu0 %v808
        %858 = vmatprep.subr.mxu0 0.0
        %859 = vmatpush2.msra.mxu0 0.0
        %860 = vmatprep.subr.mxu0 0.0
        %861 = vmatpush2.msra.mxu0 0.0
        %862 = vmatprep.subr.mxu0 0.0
        %863 = vmatpush2.msra.mxu0 0.0
        %864 = vmatprep.subr.mxu0 0.0
        %865 = vmatpush2.msra.mxu0 0.0
        %866 = vmatprep.subr.mxu0 0.0
        %867 = vmatpush2.msra.mxu0 0.0
        %868 = vmatprep.subr.mxu0 0.0
        %869 = vmatpush2.msra.mxu0 0.0
        %870 = vmatprep.subr.mxu0 0.0
        %871 = vmatpush2.msra.mxu0 0.0
        %872 = vmatprep.subr.mxu0 0.0
        %873 = vmatpush2.msra.mxu0 0.0
        %874 = vmatprep.subr.mxu0 0.0
        %875 = vmatpush2.msra.mxu0 0.0
        %876 = vmatprep.subr.mxu0 0.0
        %877 = vmatpush2.msra.mxu0 0.0
        %878 = vmatprep.subr.mxu0 0.0
        %879 = vmatpush2.msra.mxu0 0.0
        %880 = vmatprep.subr.mxu0 0.0
        %881 = vmatpush2.msra.mxu0 0.0
        %882 = vmatprep.subr.mxu0 0.0
        %883 = vmatpush2.msra.mxu0 0.0
        %884 = vmatprep.subr.mxu0 0.0
        %885 = vmatpush2.msra.mxu0 0.0
        %886 = vmatprep.subr.mxu0 0.0
        %887 = vmatpush2.msra.mxu0 0.0
        %888 = vmatprep.subr.mxu0 0.0
        %889 = vmatpush2.msra.mxu0 0.0
        %890 = vmatprep.mubr.f32.mxu0 0.0
        %891 = vmatmul.mubr.f32.gmra.mxu0 %v821
        %v892 = vpop.f32.mrf.mxu0
        %v893 = vadd.f32 0.0, %v892
        %v894 = vpop.f32.mrf.mxu0
        %895 = vmatprep.mubr.f32.mxu0 0.0
        %896 = vmatmul.mubr.f32.gmra.mxu0 %v824
        %v897 = vpop.f32.mrf.mxu0
        %v898 = vadd.f32 0.0, %v897
        %v899 = vpop.f32.mrf.mxu0
        %900 = vdwg.mxu0
        %v901 = vadd.f32 %v801, %v893
        %v902 = vadd.f32 %v802, %v898
        %s903 = sadd.s32 %s207, 56
        %s904 = scalar_lea.vmem %s196, %s903
        %v905 = vld [vmem:[%s904] sm:$0xff]
        %v906 = vld [vmem:[%s904 + $0x8] sm:$0xff]
        %s907 = scalar_lea.vmem %s1, 672
        %v908 = vld [vmem:[%s907] sm:$0xff]
        %v909 = vld [vmem:[%s907 + $0x8] sm:$0xff]
        %v910 = vld [vmem:[%s907 + $0x10] sm:$0xff]
        %v911 = vld [vmem:[%s907 + $0x18] sm:$0xff]
        %v912 = vld [vmem:[%s907 + $0x20] sm:$0xff]
        %v913 = vld [vmem:[%s907 + $0x28] sm:$0xff]
        %v914 = vld [vmem:[%s907 + $0x30] sm:$0xff]
        %v915 = vld [vmem:[%s907 + $0x38] sm:$0xff]
        %v916 = vld [vmem:[%s907 + $0x40] sm:$0xff]
        %v917 = vld [vmem:[%s907 + $0x48] sm:$0xff]
        %v918 = vld [vmem:[%s907 + $0x50] sm:$0xff]
        %v919 = vld [vmem:[%s907 + $0x58] sm:$0xff]
        %v921 = vsel %vm240, %v905, 0
        %v924 = vsel %vm240, %v906, 0
        %926 = vmatprep.subr.mxu0 0.0
        %927 = vmatpush1.msra.mxu0 0.0
        %928 = vmatprep.subr.mxu0 0.0
        %929 = vmatpush1.msra.mxu0 0.0
        %930 = vmatprep.subr.mxu0 0.0
        %931 = vmatpush1.msra.mxu0 0.0
        %932 = vmatprep.subr.mxu0 0.0
        %933 = vmatpush1.msra.mxu0 0.0
        %934 = vmatprep.subr.mxu0 0.0
        %935 = vmatpush1.msra.mxu0 %v919
        %936 = vmatprep.subr.mxu0 0.0
        %937 = vmatpush1.msra.mxu0 %v918
        %938 = vmatprep.subr.mxu0 0.0
        %939 = vmatpush1.msra.mxu0 %v917
        %940 = vmatprep.subr.mxu0 0.0
        %941 = vmatpush1.msra.mxu0 %v916
        %942 = vmatprep.subr.mxu0 0.0
        %943 = vmatpush1.msra.mxu0 %v915
        %944 = vmatprep.subr.mxu0 0.0
        %945 = vmatpush1.msra.mxu0 %v914
        %946 = vmatprep.subr.mxu0 0.0
        %947 = vmatpush1.msra.mxu0 %v913
        %948 = vmatprep.subr.mxu0 0.0
        %949 = vmatpush1.msra.mxu0 %v912
        %950 = vmatprep.subr.mxu0 0.0
        %951 = vmatpush1.msra.mxu0 %v911
        %952 = vmatprep.subr.mxu0 0.0
        %953 = vmatpush1.msra.mxu0 %v910
        %954 = vmatprep.subr.mxu0 0.0
        %955 = vmatpush1.msra.mxu0 %v909
        %956 = vmatprep.subr.mxu0 0.0
        %957 = vmatpush1.msra.mxu0 %v908
        %958 = vmatprep.subr.mxu0 0.0
        %959 = vmatpush2.msra.mxu0 0.0
        %960 = vmatprep.subr.mxu0 0.0
        %961 = vmatpush2.msra.mxu0 0.0
        %962 = vmatprep.subr.mxu0 0.0
        %963 = vmatpush2.msra.mxu0 0.0
        %964 = vmatprep.subr.mxu0 0.0
        %965 = vmatpush2.msra.mxu0 0.0
        %966 = vmatprep.subr.mxu0 0.0
        %967 = vmatpush2.msra.mxu0 0.0
        %968 = vmatprep.subr.mxu0 0.0
        %969 = vmatpush2.msra.mxu0 0.0
        %970 = vmatprep.subr.mxu0 0.0
        %971 = vmatpush2.msra.mxu0 0.0
        %972 = vmatprep.subr.mxu0 0.0
        %973 = vmatpush2.msra.mxu0 0.0
        %974 = vmatprep.subr.mxu0 0.0
        %975 = vmatpush2.msra.mxu0 0.0
        %976 = vmatprep.subr.mxu0 0.0
        %977 = vmatpush2.msra.mxu0 0.0
        %978 = vmatprep.subr.mxu0 0.0
        %979 = vmatpush2.msra.mxu0 0.0
        %980 = vmatprep.subr.mxu0 0.0
        %981 = vmatpush2.msra.mxu0 0.0
        %982 = vmatprep.subr.mxu0 0.0
        %983 = vmatpush2.msra.mxu0 0.0
        %984 = vmatprep.subr.mxu0 0.0
        %985 = vmatpush2.msra.mxu0 0.0
        %986 = vmatprep.subr.mxu0 0.0
        %987 = vmatpush2.msra.mxu0 0.0
        %988 = vmatprep.subr.mxu0 0.0
        %989 = vmatpush2.msra.mxu0 0.0
        %990 = vmatprep.mubr.f32.mxu0 0.0
        %991 = vmatmul.mubr.f32.gmra.mxu0 %v921
        %v992 = vpop.f32.mrf.mxu0
        %v993 = vadd.f32 0.0, %v992
        %v994 = vpop.f32.mrf.mxu0
        %995 = vmatprep.mubr.f32.mxu0 0.0
        %996 = vmatmul.mubr.f32.gmra.mxu0 %v924
        %v997 = vpop.f32.mrf.mxu0
        %v998 = vadd.f32 0.0, %v997
        %v999 = vpop.f32.mrf.mxu0
        %1000 = vdwg.mxu0
        %v1001 = vadd.f32 %v901, %v993
        %v1002 = vadd.f32 %v902, %v998
        %s1003 = sadd.s32 %s207, 64
        %s1004 = scalar_lea.vmem %s196, %s1003
        %v1005 = vld [vmem:[%s1004] sm:$0xff]
        %v1006 = vld [vmem:[%s1004 + $0x8] sm:$0xff]
        %s1007 = scalar_lea.vmem %s1, 768
        %v1008 = vld [vmem:[%s1007] sm:$0xff]
        %v1009 = vld [vmem:[%s1007 + $0x8] sm:$0xff]
        %v1010 = vld [vmem:[%s1007 + $0x10] sm:$0xff]
        %v1011 = vld [vmem:[%s1007 + $0x18] sm:$0xff]
        %v1012 = vld [vmem:[%s1007 + $0x20] sm:$0xff]
        %v1013 = vld [vmem:[%s1007 + $0x28] sm:$0xff]
        %v1014 = vld [vmem:[%s1007 + $0x30] sm:$0xff]
        %v1015 = vld [vmem:[%s1007 + $0x38] sm:$0xff]
        %v1016 = vld [vmem:[%s1007 + $0x40] sm:$0xff]
        %v1017 = vld [vmem:[%s1007 + $0x48] sm:$0xff]
        %v1018 = vld [vmem:[%s1007 + $0x50] sm:$0xff]
        %v1019 = vld [vmem:[%s1007 + $0x58] sm:$0xff]
        %v1021 = vsel %vm240, %v1005, 0
        %v1024 = vsel %vm240, %v1006, 0
        %1026 = vmatprep.subr.mxu0 0.0
        %1027 = vmatpush1.msra.mxu0 0.0
        %1028 = vmatprep.subr.mxu0 0.0
        %1029 = vmatpush1.msra.mxu0 0.0
        %1030 = vmatprep.subr.mxu0 0.0
        %1031 = vmatpush1.msra.mxu0 0.0
        %1032 = vmatprep.subr.mxu0 0.0
        %1033 = vmatpush1.msra.mxu0 0.0
        %1034 = vmatprep.subr.mxu0 0.0
        %1035 = vmatpush1.msra.mxu0 %v1019
        %1036 = vmatprep.subr.mxu0 0.0
        %1037 = vmatpush1.msra.mxu0 %v1018
        %1038 = vmatprep.subr.mxu0 0.0
        %1039 = vmatpush1.msra.mxu0 %v1017
        %1040 = vmatprep.subr.mxu0 0.0
        %1041 = vmatpush1.msra.mxu0 %v1016
        %1042 = vmatprep.subr.mxu0 0.0
        %1043 = vmatpush1.msra.mxu0 %v1015
        %1044 = vmatprep.subr.mxu0 0.0
        %1045 = vmatpush1.msra.mxu0 %v1014
        %1046 = vmatprep.subr.mxu0 0.0
        %1047 = vmatpush1.msra.mxu0 %v1013
        %1048 = vmatprep.subr.mxu0 0.0
        %1049 = vmatpush1.msra.mxu0 %v1012
        %1050 = vmatprep.subr.mxu0 0.0
        %1051 = vmatpush1.msra.mxu0 %v1011
        %1052 = vmatprep.subr.mxu0 0.0
        %1053 = vmatpush1.msra.mxu0 %v1010
        %1054 = vmatprep.subr.mxu0 0.0
        %1055 = vmatpush1.msra.mxu0 %v1009
        %1056 = vmatprep.subr.mxu0 0.0
        %1057 = vmatpush1.msra.mxu0 %v1008
        %1058 = vmatprep.subr.mxu0 0.0
        %1059 = vmatpush2.msra.mxu0 0.0
        %1060 = vmatprep.subr.mxu0 0.0
        %1061 = vmatpush2.msra.mxu0 0.0
        %1062 = vmatprep.subr.mxu0 0.0
        %1063 = vmatpush2.msra.mxu0 0.0
        %1064 = vmatprep.subr.mxu0 0.0
        %1065 = vmatpush2.msra.mxu0 0.0
        %1066 = vmatprep.subr.mxu0 0.0
        %1067 = vmatpush2.msra.mxu0 0.0
        %1068 = vmatprep.subr.mxu0 0.0
        %1069 = vmatpush2.msra.mxu0 0.0
        %1070 = vmatprep.subr.mxu0 0.0
        %1071 = vmatpush2.msra.mxu0 0.0
        %1072 = vmatprep.subr.mxu0 0.0
        %1073 = vmatpush2.msra.mxu0 0.0
        %1074 = vmatprep.subr.mxu0 0.0
        %1075 = vmatpush2.msra.mxu0 0.0
        %1076 = vmatprep.subr.mxu0 0.0
        %1077 = vmatpush2.msra.mxu0 0.0
        %1078 = vmatprep.subr.mxu0 0.0
        %1079 = vmatpush2.msra.mxu0 0.0
        %1080 = vmatprep.subr.mxu0 0.0
        %1081 = vmatpush2.msra.mxu0 0.0
        %1082 = vmatprep.subr.mxu0 0.0
        %1083 = vmatpush2.msra.mxu0 0.0
        %1084 = vmatprep.subr.mxu0 0.0
        %1085 = vmatpush2.msra.mxu0 0.0
        %1086 = vmatprep.subr.mxu0 0.0
        %1087 = vmatpush2.msra.mxu0 0.0
        %1088 = vmatprep.subr.mxu0 0.0
        %1089 = vmatpush2.msra.mxu0 0.0
        %1090 = vmatprep.mubr.f32.mxu0 0.0
        %1091 = vmatmul.mubr.f32.gmra.mxu0 %v1021
        %v1092 = vpop.f32.mrf.mxu0
        %v1093 = vadd.f32 0.0, %v1092
        %v1094 = vpop.f32.mrf.mxu0
        %1095 = vmatprep.mubr.f32.mxu0 0.0
        %1096 = vmatmul.mubr.f32.gmra.mxu0 %v1024
        %v1097 = vpop.f32.mrf.mxu0
        %v1098 = vadd.f32 0.0, %v1097
        %v1099 = vpop.f32.mrf.mxu0
        %1100 = vdwg.mxu0
        %v1101 = vadd.f32 %v1001, %v1093
        %v1102 = vadd.f32 %v1002, %v1098
        %s1103 = sadd.s32 %s207, 72
        %s1104 = scalar_lea.vmem %s196, %s1103
        %v1105 = vld [vmem:[%s1104] sm:$0xff]
        %v1106 = vld [vmem:[%s1104 + $0x8] sm:$0xff]
        %s1107 = scalar_lea.vmem %s1, 864
        %v1108 = vld [vmem:[%s1107] sm:$0xff]
        %v1109 = vld [vmem:[%s1107 + $0x8] sm:$0xff]
        %v1110 = vld [vmem:[%s1107 + $0x10] sm:$0xff]
        %v1111 = vld [vmem:[%s1107 + $0x18] sm:$0xff]
        %v1112 = vld [vmem:[%s1107 + $0x20] sm:$0xff]
        %v1113 = vld [vmem:[%s1107 + $0x28] sm:$0xff]
        %v1114 = vld [vmem:[%s1107 + $0x30] sm:$0xff]
        %v1115 = vld [vmem:[%s1107 + $0x38] sm:$0xff]
        %v1116 = vld [vmem:[%s1107 + $0x40] sm:$0xff]
        %v1117 = vld [vmem:[%s1107 + $0x48] sm:$0xff]
        %v1118 = vld [vmem:[%s1107 + $0x50] sm:$0xff]
        %v1119 = vld [vmem:[%s1107 + $0x58] sm:$0xff]
        %v1121 = vsel %vm240, %v1105, 0
        %v1124 = vsel %vm240, %v1106, 0
        %1126 = vmatprep.subr.mxu0 0.0
        %1127 = vmatpush1.msra.mxu0 0.0
        %1128 = vmatprep.subr.mxu0 0.0
        %1129 = vmatpush1.msra.mxu0 0.0
        %1130 = vmatprep.subr.mxu0 0.0
        %1131 = vmatpush1.msra.mxu0 0.0
        %1132 = vmatprep.subr.mxu0 0.0
        %1133 = vmatpush1.msra.mxu0 0.0
        %1134 = vmatprep.subr.mxu0 0.0
        %1135 = vmatpush1.msra.mxu0 %v1119
        %1136 = vmatprep.subr.mxu0 0.0
        %1137 = vmatpush1.msra.mxu0 %v1118
        %1138 = vmatprep.subr.mxu0 0.0
        %1139 = vmatpush1.msra.mxu0 %v1117
        %1140 = vmatprep.subr.mxu0 0.0
        %1141 = vmatpush1.msra.mxu0 %v1116
        %1142 = vmatprep.subr.mxu0 0.0
        %1143 = vmatpush1.msra.mxu0 %v1115
        %1144 = vmatprep.subr.mxu0 0.0
        %1145 = vmatpush1.msra.mxu0 %v1114
        %1146 = vmatprep.subr.mxu0 0.0
        %1147 = vmatpush1.msra.mxu0 %v1113
        %1148 = vmatprep.subr.mxu0 0.0
        %1149 = vmatpush1.msra.mxu0 %v1112
        %1150 = vmatprep.subr.mxu0 0.0
        %1151 = vmatpush1.msra.mxu0 %v1111
        %1152 = vmatprep.subr.mxu0 0.0
        %1153 = vmatpush1.msra.mxu0 %v1110
        %1154 = vmatprep.subr.mxu0 0.0
        %1155 = vmatpush1.msra.mxu0 %v1109
        %1156 = vmatprep.subr.mxu0 0.0
        %1157 = vmatpush1.msra.mxu0 %v1108
        %1158 = vmatprep.subr.mxu0 0.0
        %1159 = vmatpush2.msra.mxu0 0.0
        %1160 = vmatprep.subr.mxu0 0.0
        %1161 = vmatpush2.msra.mxu0 0.0
        %1162 = vmatprep.subr.mxu0 0.0
        %1163 = vmatpush2.msra.mxu0 0.0
        %1164 = vmatprep.subr.mxu0 0.0
        %1165 = vmatpush2.msra.mxu0 0.0
        %1166 = vmatprep.subr.mxu0 0.0
        %1167 = vmatpush2.msra.mxu0 0.0
        %1168 = vmatprep.subr.mxu0 0.0
        %1169 = vmatpush2.msra.mxu0 0.0
        %1170 = vmatprep.subr.mxu0 0.0
        %1171 = vmatpush2.msra.mxu0 0.0
        %1172 = vmatprep.subr.mxu0 0.0
        %1173 = vmatpush2.msra.mxu0 0.0
        %1174 = vmatprep.subr.mxu0 0.0
        %1175 = vmatpush2.msra.mxu0 0.0
        %1176 = vmatprep.subr.mxu0 0.0
        %1177 = vmatpush2.msra.mxu0 0.0
        %1178 = vmatprep.subr.mxu0 0.0
        %1179 = vmatpush2.msra.mxu0 0.0
        %1180 = vmatprep.subr.mxu0 0.0
        %1181 = vmatpush2.msra.mxu0 0.0
        %1182 = vmatprep.subr.mxu0 0.0
        %1183 = vmatpush2.msra.mxu0 0.0
        %1184 = vmatprep.subr.mxu0 0.0
        %1185 = vmatpush2.msra.mxu0 0.0
        %1186 = vmatprep.subr.mxu0 0.0
        %1187 = vmatpush2.msra.mxu0 0.0
        %1188 = vmatprep.subr.mxu0 0.0
        %1189 = vmatpush2.msra.mxu0 0.0
        %1190 = vmatprep.mubr.f32.mxu0 0.0
        %1191 = vmatmul.mubr.f32.gmra.mxu0 %v1121
        %v1192 = vpop.f32.mrf.mxu0
        %v1193 = vadd.f32 0.0, %v1192
        %v1194 = vpop.f32.mrf.mxu0
        %1195 = vmatprep.mubr.f32.mxu0 0.0
        %1196 = vmatmul.mubr.f32.gmra.mxu0 %v1124
        %v1197 = vpop.f32.mrf.mxu0
        %v1198 = vadd.f32 0.0, %v1197
        %v1199 = vpop.f32.mrf.mxu0
        %1200 = vdwg.mxu0
        %v1201 = vadd.f32 %v1101, %v1193
        %v1202 = vadd.f32 %v1102, %v1198
        %s1203 = sadd.s32 %s207, 80
        %s1204 = scalar_lea.vmem %s196, %s1203
        %v1205 = vld [vmem:[%s1204] sm:$0xff]
        %v1206 = vld [vmem:[%s1204 + $0x8] sm:$0xff]
        %s1207 = scalar_lea.vmem %s1, 960
        %v1208 = vld [vmem:[%s1207] sm:$0xff]
        %v1209 = vld [vmem:[%s1207 + $0x8] sm:$0xff]
        %v1210 = vld [vmem:[%s1207 + $0x10] sm:$0xff]
        %v1211 = vld [vmem:[%s1207 + $0x18] sm:$0xff]
        %v1212 = vld [vmem:[%s1207 + $0x20] sm:$0xff]
        %v1213 = vld [vmem:[%s1207 + $0x28] sm:$0xff]
        %v1214 = vld [vmem:[%s1207 + $0x30] sm:$0xff]
        %v1215 = vld [vmem:[%s1207 + $0x38] sm:$0xff]
        %v1216 = vld [vmem:[%s1207 + $0x40] sm:$0xff]
        %v1217 = vld [vmem:[%s1207 + $0x48] sm:$0xff]
        %v1218 = vld [vmem:[%s1207 + $0x50] sm:$0xff]
        %v1219 = vld [vmem:[%s1207 + $0x58] sm:$0xff]
        %v1221 = vsel %vm240, %v1205, 0
        %v1224 = vsel %vm240, %v1206, 0
        %1226 = vmatprep.subr.mxu0 0.0
        %1227 = vmatpush1.msra.mxu0 0.0
        %1228 = vmatprep.subr.mxu0 0.0
        %1229 = vmatpush1.msra.mxu0 0.0
        %1230 = vmatprep.subr.mxu0 0.0
        %1231 = vmatpush1.msra.mxu0 0.0
        %1232 = vmatprep.subr.mxu0 0.0
        %1233 = vmatpush1.msra.mxu0 0.0
        %1234 = vmatprep.subr.mxu0 0.0
        %1235 = vmatpush1.msra.mxu0 %v1219
        %1236 = vmatprep.subr.mxu0 0.0
        %1237 = vmatpush1.msra.mxu0 %v1218
        %1238 = vmatprep.subr.mxu0 0.0
        %1239 = vmatpush1.msra.mxu0 %v1217
        %1240 = vmatprep.subr.mxu0 0.0
        %1241 = vmatpush1.msra.mxu0 %v1216
        %1242 = vmatprep.subr.mxu0 0.0
        %1243 = vmatpush1.msra.mxu0 %v1215
        %1244 = vmatprep.subr.mxu0 0.0
        %1245 = vmatpush1.msra.mxu0 %v1214
        %1246 = vmatprep.subr.mxu0 0.0
        %1247 = vmatpush1.msra.mxu0 %v1213
        %1248 = vmatprep.subr.mxu0 0.0
        %1249 = vmatpush1.msra.mxu0 %v1212
        %1250 = vmatprep.subr.mxu0 0.0
        %1251 = vmatpush1.msra.mxu0 %v1211
        %1252 = vmatprep.subr.mxu0 0.0
        %1253 = vmatpush1.msra.mxu0 %v1210
        %1254 = vmatprep.subr.mxu0 0.0
        %1255 = vmatpush1.msra.mxu0 %v1209
        %1256 = vmatprep.subr.mxu0 0.0
        %1257 = vmatpush1.msra.mxu0 %v1208
        %1258 = vmatprep.subr.mxu0 0.0
        %1259 = vmatpush2.msra.mxu0 0.0
        %1260 = vmatprep.subr.mxu0 0.0
        %1261 = vmatpush2.msra.mxu0 0.0
        %1262 = vmatprep.subr.mxu0 0.0
        %1263 = vmatpush2.msra.mxu0 0.0
        %1264 = vmatprep.subr.mxu0 0.0
        %1265 = vmatpush2.msra.mxu0 0.0
        %1266 = vmatprep.subr.mxu0 0.0
        %1267 = vmatpush2.msra.mxu0 0.0
        %1268 = vmatprep.subr.mxu0 0.0
        %1269 = vmatpush2.msra.mxu0 0.0
        %1270 = vmatprep.subr.mxu0 0.0
        %1271 = vmatpush2.msra.mxu0 0.0
        %1272 = vmatprep.subr.mxu0 0.0
        %1273 = vmatpush2.msra.mxu0 0.0
        %1274 = vmatprep.subr.mxu0 0.0
        %1275 = vmatpush2.msra.mxu0 0.0
        %1276 = vmatprep.subr.mxu0 0.0
        %1277 = vmatpush2.msra.mxu0 0.0
        %1278 = vmatprep.subr.mxu0 0.0
        %1279 = vmatpush2.msra.mxu0 0.0
        %1280 = vmatprep.subr.mxu0 0.0
        %1281 = vmatpush2.msra.mxu0 0.0
        %1282 = vmatprep.subr.mxu0 0.0
        %1283 = vmatpush2.msra.mxu0 0.0
        %1284 = vmatprep.subr.mxu0 0.0
        %1285 = vmatpush2.msra.mxu0 0.0
        %1286 = vmatprep.subr.mxu0 0.0
        %1287 = vmatpush2.msra.mxu0 0.0
        %1288 = vmatprep.subr.mxu0 0.0
        %1289 = vmatpush2.msra.mxu0 0.0
        %1290 = vmatprep.mubr.f32.mxu0 0.0
        %1291 = vmatmul.mubr.f32.gmra.mxu0 %v1221
        %v1292 = vpop.f32.mrf.mxu0
        %v1293 = vadd.f32 0.0, %v1292
        %v1294 = vpop.f32.mrf.mxu0
        %1295 = vmatprep.mubr.f32.mxu0 0.0
        %1296 = vmatmul.mubr.f32.gmra.mxu0 %v1224
        %v1297 = vpop.f32.mrf.mxu0
        %v1298 = vadd.f32 0.0, %v1297
        %v1299 = vpop.f32.mrf.mxu0
        %1300 = vdwg.mxu0
        %v1301 = vadd.f32 %v1201, %v1293
        %v1302 = vadd.f32 %v1202, %v1298
        %s1303 = sadd.s32 %s207, 88
        %s1304 = scalar_lea.vmem %s196, %s1303
        %v1305 = vld [vmem:[%s1304] sm:$0xff]
        %v1306 = vld [vmem:[%s1304 + $0x8] sm:$0xff]
        %s1307 = scalar_lea.vmem %s1, 1056
        %v1308 = vld [vmem:[%s1307] sm:$0xff]
        %v1309 = vld [vmem:[%s1307 + $0x8] sm:$0xff]
        %v1310 = vld [vmem:[%s1307 + $0x10] sm:$0xff]
        %v1311 = vld [vmem:[%s1307 + $0x18] sm:$0xff]
        %v1312 = vld [vmem:[%s1307 + $0x20] sm:$0xff]
        %v1313 = vld [vmem:[%s1307 + $0x28] sm:$0xff]
        %v1314 = vld [vmem:[%s1307 + $0x30] sm:$0xff]
        %v1315 = vld [vmem:[%s1307 + $0x38] sm:$0xff]
        %v1316 = vld [vmem:[%s1307 + $0x40] sm:$0xff]
        %v1317 = vld [vmem:[%s1307 + $0x48] sm:$0xff]
        %v1318 = vld [vmem:[%s1307 + $0x50] sm:$0xff]
        %v1319 = vld [vmem:[%s1307 + $0x58] sm:$0xff]
        %v1321 = vsel %vm240, %v1305, 0
        %v1324 = vsel %vm240, %v1306, 0
        %1326 = vmatprep.subr.mxu0 0.0
        %1327 = vmatpush1.msra.mxu0 0.0
        %1328 = vmatprep.subr.mxu0 0.0
        %1329 = vmatpush1.msra.mxu0 0.0
        %1330 = vmatprep.subr.mxu0 0.0
        %1331 = vmatpush1.msra.mxu0 0.0
        %1332 = vmatprep.subr.mxu0 0.0
        %1333 = vmatpush1.msra.mxu0 0.0
        %1334 = vmatprep.subr.mxu0 0.0
        %1335 = vmatpush1.msra.mxu0 %v1319
        %1336 = vmatprep.subr.mxu0 0.0
        %1337 = vmatpush1.msra.mxu0 %v1318
        %1338 = vmatprep.subr.mxu0 0.0
        %1339 = vmatpush1.msra.mxu0 %v1317
        %1340 = vmatprep.subr.mxu0 0.0
        %1341 = vmatpush1.msra.mxu0 %v1316
        %1342 = vmatprep.subr.mxu0 0.0
        %1343 = vmatpush1.msra.mxu0 %v1315
        %1344 = vmatprep.subr.mxu0 0.0
        %1345 = vmatpush1.msra.mxu0 %v1314
        %1346 = vmatprep.subr.mxu0 0.0
        %1347 = vmatpush1.msra.mxu0 %v1313
        %1348 = vmatprep.subr.mxu0 0.0
        %1349 = vmatpush1.msra.mxu0 %v1312
        %1350 = vmatprep.subr.mxu0 0.0
        %1351 = vmatpush1.msra.mxu0 %v1311
        %1352 = vmatprep.subr.mxu0 0.0
        %1353 = vmatpush1.msra.mxu0 %v1310
        %1354 = vmatprep.subr.mxu0 0.0
        %1355 = vmatpush1.msra.mxu0 %v1309
        %1356 = vmatprep.subr.mxu0 0.0
        %1357 = vmatpush1.msra.mxu0 %v1308
        %1358 = vmatprep.subr.mxu0 0.0
        %1359 = vmatpush2.msra.mxu0 0.0
        %1360 = vmatprep.subr.mxu0 0.0
        %1361 = vmatpush2.msra.mxu0 0.0
        %1362 = vmatprep.subr.mxu0 0.0
        %1363 = vmatpush2.msra.mxu0 0.0
        %1364 = vmatprep.subr.mxu0 0.0
        %1365 = vmatpush2.msra.mxu0 0.0
        %1366 = vmatprep.subr.mxu0 0.0
        %1367 = vmatpush2.msra.mxu0 0.0
        %1368 = vmatprep.subr.mxu0 0.0
        %1369 = vmatpush2.msra.mxu0 0.0
        %1370 = vmatprep.subr.mxu0 0.0
        %1371 = vmatpush2.msra.mxu0 0.0
        %1372 = vmatprep.subr.mxu0 0.0
        %1373 = vmatpush2.msra.mxu0 0.0
        %1374 = vmatprep.subr.mxu0 0.0
        %1375 = vmatpush2.msra.mxu0 0.0
        %1376 = vmatprep.subr.mxu0 0.0
        %1377 = vmatpush2.msra.mxu0 0.0
        %1378 = vmatprep.subr.mxu0 0.0
        %1379 = vmatpush2.msra.mxu0 0.0
        %1380 = vmatprep.subr.mxu0 0.0
        %1381 = vmatpush2.msra.mxu0 0.0
        %1382 = vmatprep.subr.mxu0 0.0
        %1383 = vmatpush2.msra.mxu0 0.0
        %1384 = vmatprep.subr.mxu0 0.0
        %1385 = vmatpush2.msra.mxu0 0.0
        %1386 = vmatprep.subr.mxu0 0.0
        %1387 = vmatpush2.msra.mxu0 0.0
        %1388 = vmatprep.subr.mxu0 0.0
        %1389 = vmatpush2.msra.mxu0 0.0
        %1390 = vmatprep.mubr.f32.mxu0 0.0
        %1391 = vmatmul.mubr.f32.gmra.mxu0 %v1321
        %v1392 = vpop.f32.mrf.mxu0
        %v1393 = vadd.f32 0.0, %v1392
        %v1394 = vpop.f32.mrf.mxu0
        %1395 = vmatprep.mubr.f32.mxu0 0.0
        %1396 = vmatmul.mubr.f32.gmra.mxu0 %v1324
        %v1397 = vpop.f32.mrf.mxu0
        %v1398 = vadd.f32 0.0, %v1397
        %v1399 = vpop.f32.mrf.mxu0
        %1400 = vdwg.mxu0
        %v1401 = vadd.f32 %v1301, %v1393
        %v1402 = vadd.f32 %v1302, %v1398
        %s1403 = sadd.s32 %s207, 96
        %s1404 = scalar_lea.vmem %s196, %s1403
        %v1405 = vld [vmem:[%s1404] sm:$0xff]
        %v1406 = vld [vmem:[%s1404 + $0x8] sm:$0xff]
        %s1407 = scalar_lea.vmem %s1, 1152
        %v1408 = vld [vmem:[%s1407] sm:$0xff]
        %v1409 = vld [vmem:[%s1407 + $0x8] sm:$0xff]
        %v1410 = vld [vmem:[%s1407 + $0x10] sm:$0xff]
        %v1411 = vld [vmem:[%s1407 + $0x18] sm:$0xff]
        %v1412 = vld [vmem:[%s1407 + $0x20] sm:$0xff]
        %v1413 = vld [vmem:[%s1407 + $0x28] sm:$0xff]
        %v1414 = vld [vmem:[%s1407 + $0x30] sm:$0xff]
        %v1415 = vld [vmem:[%s1407 + $0x38] sm:$0xff]
        %v1416 = vld [vmem:[%s1407 + $0x40] sm:$0xff]
        %v1417 = vld [vmem:[%s1407 + $0x48] sm:$0xff]
        %v1418 = vld [vmem:[%s1407 + $0x50] sm:$0xff]
        %v1419 = vld [vmem:[%s1407 + $0x58] sm:$0xff]
        %v1421 = vsel %vm240, %v1405, 0
        %v1424 = vsel %vm240, %v1406, 0
        %1426 = vmatprep.subr.mxu0 0.0
        %1427 = vmatpush1.msra.mxu0 0.0
        %1428 = vmatprep.subr.mxu0 0.0
        %1429 = vmatpush1.msra.mxu0 0.0
        %1430 = vmatprep.subr.mxu0 0.0
        %1431 = vmatpush1.msra.mxu0 0.0
        %1432 = vmatprep.subr.mxu0 0.0
        %1433 = vmatpush1.msra.mxu0 0.0
        %1434 = vmatprep.subr.mxu0 0.0
        %1435 = vmatpush1.msra.mxu0 %v1419
        %1436 = vmatprep.subr.mxu0 0.0
        %1437 = vmatpush1.msra.mxu0 %v1418
        %1438 = vmatprep.subr.mxu0 0.0
        %1439 = vmatpush1.msra.mxu0 %v1417
        %1440 = vmatprep.subr.mxu0 0.0
        %1441 = vmatpush1.msra.mxu0 %v1416
        %1442 = vmatprep.subr.mxu0 0.0
        %1443 = vmatpush1.msra.mxu0 %v1415
        %1444 = vmatprep.subr.mxu0 0.0
        %1445 = vmatpush1.msra.mxu0 %v1414
        %1446 = vmatprep.subr.mxu0 0.0
        %1447 = vmatpush1.msra.mxu0 %v1413
        %1448 = vmatprep.subr.mxu0 0.0
        %1449 = vmatpush1.msra.mxu0 %v1412
        %1450 = vmatprep.subr.mxu0 0.0
        %1451 = vmatpush1.msra.mxu0 %v1411
        %1452 = vmatprep.subr.mxu0 0.0
        %1453 = vmatpush1.msra.mxu0 %v1410
        %1454 = vmatprep.subr.mxu0 0.0
        %1455 = vmatpush1.msra.mxu0 %v1409
        %1456 = vmatprep.subr.mxu0 0.0
        %1457 = vmatpush1.msra.mxu0 %v1408
        %1458 = vmatprep.subr.mxu0 0.0
        %1459 = vmatpush2.msra.mxu0 0.0
        %1460 = vmatprep.subr.mxu0 0.0
        %1461 = vmatpush2.msra.mxu0 0.0
        %1462 = vmatprep.subr.mxu0 0.0
        %1463 = vmatpush2.msra.mxu0 0.0
        %1464 = vmatprep.subr.mxu0 0.0
        %1465 = vmatpush2.msra.mxu0 0.0
        %1466 = vmatprep.subr.mxu0 0.0
        %1467 = vmatpush2.msra.mxu0 0.0
        %1468 = vmatprep.subr.mxu0 0.0
        %1469 = vmatpush2.msra.mxu0 0.0
        %1470 = vmatprep.subr.mxu0 0.0
        %1471 = vmatpush2.msra.mxu0 0.0
        %1472 = vmatprep.subr.mxu0 0.0
        %1473 = vmatpush2.msra.mxu0 0.0
        %1474 = vmatprep.subr.mxu0 0.0
        %1475 = vmatpush2.msra.mxu0 0.0
        %1476 = vmatprep.subr.mxu0 0.0
        %1477 = vmatpush2.msra.mxu0 0.0
        %1478 = vmatprep.subr.mxu0 0.0
        %1479 = vmatpush2.msra.mxu0 0.0
        %1480 = vmatprep.subr.mxu0 0.0
        %1481 = vmatpush2.msra.mxu0 0.0
        %1482 = vmatprep.subr.mxu0 0.0
        %1483 = vmatpush2.msra.mxu0 0.0
        %1484 = vmatprep.subr.mxu0 0.0
        %1485 = vmatpush2.msra.mxu0 0.0
        %1486 = vmatprep.subr.mxu0 0.0
        %1487 = vmatpush2.msra.mxu0 0.0
        %1488 = vmatprep.subr.mxu0 0.0
        %1489 = vmatpush2.msra.mxu0 0.0
        %1490 = vmatprep.mubr.f32.mxu0 0.0
        %1491 = vmatmul.mubr.f32.gmra.mxu0 %v1421
        %v1492 = vpop.f32.mrf.mxu0
        %v1493 = vadd.f32 0.0, %v1492
        %v1494 = vpop.f32.mrf.mxu0
        %1495 = vmatprep.mubr.f32.mxu0 0.0
        %1496 = vmatmul.mubr.f32.gmra.mxu0 %v1424
        %v1497 = vpop.f32.mrf.mxu0
        %v1498 = vadd.f32 0.0, %v1497
        %v1499 = vpop.f32.mrf.mxu0
        %1500 = vdwg.mxu0
        %v1501 = vadd.f32 %v1401, %v1493
        %v1502 = vadd.f32 %v1402, %v1498
        %s1503 = sadd.s32 %s207, 104
        %s1504 = scalar_lea.vmem %s196, %s1503
        %v1505 = vld [vmem:[%s1504] sm:$0xff]
        %v1506 = vld [vmem:[%s1504 + $0x8] sm:$0xff]
        %s1507 = scalar_lea.vmem %s1, 1248
        %v1508 = vld [vmem:[%s1507] sm:$0xff]
        %v1509 = vld [vmem:[%s1507 + $0x8] sm:$0xff]
        %v1510 = vld [vmem:[%s1507 + $0x10] sm:$0xff]
        %v1511 = vld [vmem:[%s1507 + $0x18] sm:$0xff]
        %v1512 = vld [vmem:[%s1507 + $0x20] sm:$0xff]
        %v1513 = vld [vmem:[%s1507 + $0x28] sm:$0xff]
        %v1514 = vld [vmem:[%s1507 + $0x30] sm:$0xff]
        %v1515 = vld [vmem:[%s1507 + $0x38] sm:$0xff]
        %v1516 = vld [vmem:[%s1507 + $0x40] sm:$0xff]
        %v1517 = vld [vmem:[%s1507 + $0x48] sm:$0xff]
        %v1518 = vld [vmem:[%s1507 + $0x50] sm:$0xff]
        %v1519 = vld [vmem:[%s1507 + $0x58] sm:$0xff]
        %v1521 = vsel %vm240, %v1505, 0
        %v1524 = vsel %vm240, %v1506, 0
        %1526 = vmatprep.subr.mxu0 0.0
        %1527 = vmatpush1.msra.mxu0 0.0
        %1528 = vmatprep.subr.mxu0 0.0
        %1529 = vmatpush1.msra.mxu0 0.0
        %1530 = vmatprep.subr.mxu0 0.0
        %1531 = vmatpush1.msra.mxu0 0.0
        %1532 = vmatprep.subr.mxu0 0.0
        %1533 = vmatpush1.msra.mxu0 0.0
        %1534 = vmatprep.subr.mxu0 0.0
        %1535 = vmatpush1.msra.mxu0 %v1519
        %1536 = vmatprep.subr.mxu0 0.0
        %1537 = vmatpush1.msra.mxu0 %v1518
        %1538 = vmatprep.subr.mxu0 0.0
        %1539 = vmatpush1.msra.mxu0 %v1517
        %1540 = vmatprep.subr.mxu0 0.0
        %1541 = vmatpush1.msra.mxu0 %v1516
        %1542 = vmatprep.subr.mxu0 0.0
        %1543 = vmatpush1.msra.mxu0 %v1515
        %1544 = vmatprep.subr.mxu0 0.0
        %1545 = vmatpush1.msra.mxu0 %v1514
        %1546 = vmatprep.subr.mxu0 0.0
        %1547 = vmatpush1.msra.mxu0 %v1513
        %1548 = vmatprep.subr.mxu0 0.0
        %1549 = vmatpush1.msra.mxu0 %v1512
        %1550 = vmatprep.subr.mxu0 0.0
        %1551 = vmatpush1.msra.mxu0 %v1511
        %1552 = vmatprep.subr.mxu0 0.0
        %1553 = vmatpush1.msra.mxu0 %v1510
        %1554 = vmatprep.subr.mxu0 0.0
        %1555 = vmatpush1.msra.mxu0 %v1509
        %1556 = vmatprep.subr.mxu0 0.0
        %1557 = vmatpush1.msra.mxu0 %v1508
        %1558 = vmatprep.subr.mxu0 0.0
        %1559 = vmatpush2.msra.mxu0 0.0
        %1560 = vmatprep.subr.mxu0 0.0
        %1561 = vmatpush2.msra.mxu0 0.0
        %1562 = vmatprep.subr.mxu0 0.0
        %1563 = vmatpush2.msra.mxu0 0.0
        %1564 = vmatprep.subr.mxu0 0.0
        %1565 = vmatpush2.msra.mxu0 0.0
        %1566 = vmatprep.subr.mxu0 0.0
        %1567 = vmatpush2.msra.mxu0 0.0
        %1568 = vmatprep.subr.mxu0 0.0
        %1569 = vmatpush2.msra.mxu0 0.0
        %1570 = vmatprep.subr.mxu0 0.0
        %1571 = vmatpush2.msra.mxu0 0.0
        %1572 = vmatprep.subr.mxu0 0.0
        %1573 = vmatpush2.msra.mxu0 0.0
        %1574 = vmatprep.subr.mxu0 0.0
        %1575 = vmatpush2.msra.mxu0 0.0
        %1576 = vmatprep.subr.mxu0 0.0
        %1577 = vmatpush2.msra.mxu0 0.0
        %1578 = vmatprep.subr.mxu0 0.0
        %1579 = vmatpush2.msra.mxu0 0.0
        %1580 = vmatprep.subr.mxu0 0.0
        %1581 = vmatpush2.msra.mxu0 0.0
        %1582 = vmatprep.subr.mxu0 0.0
        %1583 = vmatpush2.msra.mxu0 0.0
        %1584 = vmatprep.subr.mxu0 0.0
        %1585 = vmatpush2.msra.mxu0 0.0
        %1586 = vmatprep.subr.mxu0 0.0
        %1587 = vmatpush2.msra.mxu0 0.0
        %1588 = vmatprep.subr.mxu0 0.0
        %1589 = vmatpush2.msra.mxu0 0.0
        %1590 = vmatprep.mubr.f32.mxu0 0.0
        %1591 = vmatmul.mubr.f32.gmra.mxu0 %v1521
        %v1592 = vpop.f32.mrf.mxu0
        %v1593 = vadd.f32 0.0, %v1592
        %v1594 = vpop.f32.mrf.mxu0
        %1595 = vmatprep.mubr.f32.mxu0 0.0
        %1596 = vmatmul.mubr.f32.gmra.mxu0 %v1524
        %v1597 = vpop.f32.mrf.mxu0
        %v1598 = vadd.f32 0.0, %v1597
        %v1599 = vpop.f32.mrf.mxu0
        %1600 = vdwg.mxu0
        %v1601 = vadd.f32 %v1501, %v1593
        %v1602 = vadd.f32 %v1502, %v1598
        %s1603 = sadd.s32 %s207, 112
        %s1604 = scalar_lea.vmem %s196, %s1603
        %v1605 = vld [vmem:[%s1604] sm:$0xff]
        %v1606 = vld [vmem:[%s1604 + $0x8] sm:$0xff]
        %s1607 = scalar_lea.vmem %s1, 1344
        %v1608 = vld [vmem:[%s1607] sm:$0xff]
        %v1609 = vld [vmem:[%s1607 + $0x8] sm:$0xff]
        %v1610 = vld [vmem:[%s1607 + $0x10] sm:$0xff]
        %v1611 = vld [vmem:[%s1607 + $0x18] sm:$0xff]
        %v1612 = vld [vmem:[%s1607 + $0x20] sm:$0xff]
        %v1613 = vld [vmem:[%s1607 + $0x28] sm:$0xff]
        %v1614 = vld [vmem:[%s1607 + $0x30] sm:$0xff]
        %v1615 = vld [vmem:[%s1607 + $0x38] sm:$0xff]
        %v1616 = vld [vmem:[%s1607 + $0x40] sm:$0xff]
        %v1617 = vld [vmem:[%s1607 + $0x48] sm:$0xff]
        %v1618 = vld [vmem:[%s1607 + $0x50] sm:$0xff]
        %v1619 = vld [vmem:[%s1607 + $0x58] sm:$0xff]
        %v1621 = vsel %vm240, %v1605, 0
        %v1624 = vsel %vm240, %v1606, 0
        %1626 = vmatprep.subr.mxu0 0.0
        %1627 = vmatpush1.msra.mxu0 0.0
        %1628 = vmatprep.subr.mxu0 0.0
        %1629 = vmatpush1.msra.mxu0 0.0
        %1630 = vmatprep.subr.mxu0 0.0
        %1631 = vmatpush1.msra.mxu0 0.0
        %1632 = vmatprep.subr.mxu0 0.0
        %1633 = vmatpush1.msra.mxu0 0.0
        %1634 = vmatprep.subr.mxu0 0.0
        %1635 = vmatpush1.msra.mxu0 %v1619
        %1636 = vmatprep.subr.mxu0 0.0
        %1637 = vmatpush1.msra.mxu0 %v1618
        %1638 = vmatprep.subr.mxu0 0.0
        %1639 = vmatpush1.msra.mxu0 %v1617
        %1640 = vmatprep.subr.mxu0 0.0
        %1641 = vmatpush1.msra.mxu0 %v1616
        %1642 = vmatprep.subr.mxu0 0.0
        %1643 = vmatpush1.msra.mxu0 %v1615
        %1644 = vmatprep.subr.mxu0 0.0
        %1645 = vmatpush1.msra.mxu0 %v1614
        %1646 = vmatprep.subr.mxu0 0.0
        %1647 = vmatpush1.msra.mxu0 %v1613
        %1648 = vmatprep.subr.mxu0 0.0
        %1649 = vmatpush1.msra.mxu0 %v1612
        %1650 = vmatprep.subr.mxu0 0.0
        %1651 = vmatpush1.msra.mxu0 %v1611
        %1652 = vmatprep.subr.mxu0 0.0
        %1653 = vmatpush1.msra.mxu0 %v1610
        %1654 = vmatprep.subr.mxu0 0.0
        %1655 = vmatpush1.msra.mxu0 %v1609
        %1656 = vmatprep.subr.mxu0 0.0
        %1657 = vmatpush1.msra.mxu0 %v1608
        %1658 = vmatprep.subr.mxu0 0.0
        %1659 = vmatpush2.msra.mxu0 0.0
        %1660 = vmatprep.subr.mxu0 0.0
        %1661 = vmatpush2.msra.mxu0 0.0
        %1662 = vmatprep.subr.mxu0 0.0
        %1663 = vmatpush2.msra.mxu0 0.0
        %1664 = vmatprep.subr.mxu0 0.0
        %1665 = vmatpush2.msra.mxu0 0.0
        %1666 = vmatprep.subr.mxu0 0.0
        %1667 = vmatpush2.msra.mxu0 0.0
        %1668 = vmatprep.subr.mxu0 0.0
        %1669 = vmatpush2.msra.mxu0 0.0
        %1670 = vmatprep.subr.mxu0 0.0
        %1671 = vmatpush2.msra.mxu0 0.0
        %1672 = vmatprep.subr.mxu0 0.0
        %1673 = vmatpush2.msra.mxu0 0.0
        %1674 = vmatprep.subr.mxu0 0.0
        %1675 = vmatpush2.msra.mxu0 0.0
        %1676 = vmatprep.subr.mxu0 0.0
        %1677 = vmatpush2.msra.mxu0 0.0
        %1678 = vmatprep.subr.mxu0 0.0
        %1679 = vmatpush2.msra.mxu0 0.0
        %1680 = vmatprep.subr.mxu0 0.0
        %1681 = vmatpush2.msra.mxu0 0.0
        %1682 = vmatprep.subr.mxu0 0.0
        %1683 = vmatpush2.msra.mxu0 0.0
        %1684 = vmatprep.subr.mxu0 0.0
        %1685 = vmatpush2.msra.mxu0 0.0
        %1686 = vmatprep.subr.mxu0 0.0
        %1687 = vmatpush2.msra.mxu0 0.0
        %1688 = vmatprep.subr.mxu0 0.0
        %1689 = vmatpush2.msra.mxu0 0.0
        %1690 = vmatprep.mubr.f32.mxu0 0.0
        %1691 = vmatmul.mubr.f32.gmra.mxu0 %v1621
        %v1692 = vpop.f32.mrf.mxu0
        %v1693 = vadd.f32 0.0, %v1692
        %v1694 = vpop.f32.mrf.mxu0
        %1695 = vmatprep.mubr.f32.mxu0 0.0
        %1696 = vmatmul.mubr.f32.gmra.mxu0 %v1624
        %v1697 = vpop.f32.mrf.mxu0
        %v1698 = vadd.f32 0.0, %v1697
        %v1699 = vpop.f32.mrf.mxu0
        %1700 = vdwg.mxu0
        %v1701 = vadd.f32 %v1601, %v1693
        %v1702 = vadd.f32 %v1602, %v1698
        %s1703 = sadd.s32 %s207, 120
        %s1704 = scalar_lea.vmem %s196, %s1703
        %v1705 = vld [vmem:[%s1704] sm:$0xff]
        %v1706 = vld [vmem:[%s1704 + $0x8] sm:$0xff]
        %s1707 = scalar_lea.vmem %s1, 1440
        %v1708 = vld [vmem:[%s1707] sm:$0xff]
        %v1709 = vld [vmem:[%s1707 + $0x8] sm:$0xff]
        %v1710 = vld [vmem:[%s1707 + $0x10] sm:$0xff]
        %v1711 = vld [vmem:[%s1707 + $0x18] sm:$0xff]
        %v1712 = vld [vmem:[%s1707 + $0x20] sm:$0xff]
        %v1713 = vld [vmem:[%s1707 + $0x28] sm:$0xff]
        %v1714 = vld [vmem:[%s1707 + $0x30] sm:$0xff]
        %v1715 = vld [vmem:[%s1707 + $0x38] sm:$0xff]
        %v1716 = vld [vmem:[%s1707 + $0x40] sm:$0xff]
        %v1717 = vld [vmem:[%s1707 + $0x48] sm:$0xff]
        %v1718 = vld [vmem:[%s1707 + $0x50] sm:$0xff]
        %v1719 = vld [vmem:[%s1707 + $0x58] sm:$0xff]
        %v1721 = vsel %vm240, %v1705, 0
        %v1724 = vsel %vm240, %v1706, 0
        %1726 = vmatprep.subr.mxu0 0.0
        %1727 = vmatpush1.msra.mxu0 0.0
        %1728 = vmatprep.subr.mxu0 0.0
        %1729 = vmatpush1.msra.mxu0 0.0
        %1730 = vmatprep.subr.mxu0 0.0
        %1731 = vmatpush1.msra.mxu0 0.0
        %1732 = vmatprep.subr.mxu0 0.0
        %1733 = vmatpush1.msra.mxu0 0.0
        %1734 = vmatprep.subr.mxu0 0.0
        %1735 = vmatpush1.msra.mxu0 %v1719
        %1736 = vmatprep.subr.mxu0 0.0
        %1737 = vmatpush1.msra.mxu0 %v1718
        %1738 = vmatprep.subr.mxu0 0.0
        %1739 = vmatpush1.msra.mxu0 %v1717
        %1740 = vmatprep.subr.mxu0 0.0
        %1741 = vmatpush1.msra.mxu0 %v1716
        %1742 = vmatprep.subr.mxu0 0.0
        %1743 = vmatpush1.msra.mxu0 %v1715
        %1744 = vmatprep.subr.mxu0 0.0
        %1745 = vmatpush1.msra.mxu0 %v1714
        %1746 = vmatprep.subr.mxu0 0.0
        %1747 = vmatpush1.msra.mxu0 %v1713
        %1748 = vmatprep.subr.mxu0 0.0
        %1749 = vmatpush1.msra.mxu0 %v1712
        %1750 = vmatprep.subr.mxu0 0.0
        %1751 = vmatpush1.msra.mxu0 %v1711
        %1752 = vmatprep.subr.mxu0 0.0
        %1753 = vmatpush1.msra.mxu0 %v1710
        %1754 = vmatprep.subr.mxu0 0.0
        %1755 = vmatpush1.msra.mxu0 %v1709
        %1756 = vmatprep.subr.mxu0 0.0
        %1757 = vmatpush1.msra.mxu0 %v1708
        %1758 = vmatprep.subr.mxu0 0.0
        %1759 = vmatpush2.msra.mxu0 0.0
        %1760 = vmatprep.subr.mxu0 0.0
        %1761 = vmatpush2.msra.mxu0 0.0
        %1762 = vmatprep.subr.mxu0 0.0
        %1763 = vmatpush2.msra.mxu0 0.0
        %1764 = vmatprep.subr.mxu0 0.0
        %1765 = vmatpush2.msra.mxu0 0.0
        %1766 = vmatprep.subr.mxu0 0.0
        %1767 = vmatpush2.msra.mxu0 0.0
        %1768 = vmatprep.subr.mxu0 0.0
        %1769 = vmatpush2.msra.mxu0 0.0
        %1770 = vmatprep.subr.mxu0 0.0
        %1771 = vmatpush2.msra.mxu0 0.0
        %1772 = vmatprep.subr.mxu0 0.0
        %1773 = vmatpush2.msra.mxu0 0.0
        %1774 = vmatprep.subr.mxu0 0.0
        %1775 = vmatpush2.msra.mxu0 0.0
        %1776 = vmatprep.subr.mxu0 0.0
        %1777 = vmatpush2.msra.mxu0 0.0
        %1778 = vmatprep.subr.mxu0 0.0
        %1779 = vmatpush2.msra.mxu0 0.0
        %1780 = vmatprep.subr.mxu0 0.0
        %1781 = vmatpush2.msra.mxu0 0.0
        %1782 = vmatprep.subr.mxu0 0.0
        %1783 = vmatpush2.msra.mxu0 0.0
        %1784 = vmatprep.subr.mxu0 0.0
        %1785 = vmatpush2.msra.mxu0 0.0
        %1786 = vmatprep.subr.mxu0 0.0
        %1787 = vmatpush2.msra.mxu0 0.0
        %1788 = vmatprep.subr.mxu0 0.0
        %1789 = vmatpush2.msra.mxu0 0.0
        %1790 = vmatprep.mubr.f32.mxu0 0.0
        %1791 = vmatmul.mubr.f32.gmra.mxu0 %v1721
        %v1792 = vpop.f32.mrf.mxu0
        %v1793 = vadd.f32 0.0, %v1792
        %v1794 = vpop.f32.mrf.mxu0
        %1795 = vmatprep.mubr.f32.mxu0 0.0
        %1796 = vmatmul.mubr.f32.gmra.mxu0 %v1724
        %v1797 = vpop.f32.mrf.mxu0
        %v1798 = vadd.f32 0.0, %v1797
        %v1799 = vpop.f32.mrf.mxu0
        %1800 = vdwg.mxu0
        %v1801 = vadd.f32 %v1701, %v1793
        %v1802 = vadd.f32 %v1702, %v1798
        %s1803 = sadd.s32 %s207, 128
        %s1804 = scalar_lea.vmem %s196, %s1803
        %v1805 = vld [vmem:[%s1804] sm:$0xff]
        %v1806 = vld [vmem:[%s1804 + $0x8] sm:$0xff]
        %s1807 = scalar_lea.vmem %s1, 1536
        %v1808 = vld [vmem:[%s1807] sm:$0xff]
        %v1809 = vld [vmem:[%s1807 + $0x8] sm:$0xff]
        %v1810 = vld [vmem:[%s1807 + $0x10] sm:$0xff]
        %v1811 = vld [vmem:[%s1807 + $0x18] sm:$0xff]
        %v1812 = vld [vmem:[%s1807 + $0x20] sm:$0xff]
        %v1813 = vld [vmem:[%s1807 + $0x28] sm:$0xff]
        %v1814 = vld [vmem:[%s1807 + $0x30] sm:$0xff]
        %v1815 = vld [vmem:[%s1807 + $0x38] sm:$0xff]
        %v1816 = vld [vmem:[%s1807 + $0x40] sm:$0xff]
        %v1817 = vld [vmem:[%s1807 + $0x48] sm:$0xff]
        %v1818 = vld [vmem:[%s1807 + $0x50] sm:$0xff]
        %v1819 = vld [vmem:[%s1807 + $0x58] sm:$0xff]
        %v1821 = vsel %vm240, %v1805, 0
        %v1824 = vsel %vm240, %v1806, 0
        %1826 = vmatprep.subr.mxu0 0.0
        %1827 = vmatpush1.msra.mxu0 0.0
        %1828 = vmatprep.subr.mxu0 0.0
        %1829 = vmatpush1.msra.mxu0 0.0
        %1830 = vmatprep.subr.mxu0 0.0
        %1831 = vmatpush1.msra.mxu0 0.0
        %1832 = vmatprep.subr.mxu0 0.0
        %1833 = vmatpush1.msra.mxu0 0.0
        %1834 = vmatprep.subr.mxu0 0.0
        %1835 = vmatpush1.msra.mxu0 %v1819
        %1836 = vmatprep.subr.mxu0 0.0
        %1837 = vmatpush1.msra.mxu0 %v1818
        %1838 = vmatprep.subr.mxu0 0.0
        %1839 = vmatpush1.msra.mxu0 %v1817
        %1840 = vmatprep.subr.mxu0 0.0
        %1841 = vmatpush1.msra.mxu0 %v1816
        %1842 = vmatprep.subr.mxu0 0.0
        %1843 = vmatpush1.msra.mxu0 %v1815
        %1844 = vmatprep.subr.mxu0 0.0
        %1845 = vmatpush1.msra.mxu0 %v1814
        %1846 = vmatprep.subr.mxu0 0.0
        %1847 = vmatpush1.msra.mxu0 %v1813
        %1848 = vmatprep.subr.mxu0 0.0
        %1849 = vmatpush1.msra.mxu0 %v1812
        %1850 = vmatprep.subr.mxu0 0.0
        %1851 = vmatpush1.msra.mxu0 %v1811
        %1852 = vmatprep.subr.mxu0 0.0
        %1853 = vmatpush1.msra.mxu0 %v1810
        %1854 = vmatprep.subr.mxu0 0.0
        %1855 = vmatpush1.msra.mxu0 %v1809
        %1856 = vmatprep.subr.mxu0 0.0
        %1857 = vmatpush1.msra.mxu0 %v1808
        %1858 = vmatprep.subr.mxu0 0.0
        %1859 = vmatpush2.msra.mxu0 0.0
        %1860 = vmatprep.subr.mxu0 0.0
        %1861 = vmatpush2.msra.mxu0 0.0
        %1862 = vmatprep.subr.mxu0 0.0
        %1863 = vmatpush2.msra.mxu0 0.0
        %1864 = vmatprep.subr.mxu0 0.0
        %1865 = vmatpush2.msra.mxu0 0.0
        %1866 = vmatprep.subr.mxu0 0.0
        %1867 = vmatpush2.msra.mxu0 0.0
        %1868 = vmatprep.subr.mxu0 0.0
        %1869 = vmatpush2.msra.mxu0 0.0
        %1870 = vmatprep.subr.mxu0 0.0
        %1871 = vmatpush2.msra.mxu0 0.0
        %1872 = vmatprep.subr.mxu0 0.0
        %1873 = vmatpush2.msra.mxu0 0.0
        %1874 = vmatprep.subr.mxu0 0.0
        %1875 = vmatpush2.msra.mxu0 0.0
        %1876 = vmatprep.subr.mxu0 0.0
        %1877 = vmatpush2.msra.mxu0 0.0
        %1878 = vmatprep.subr.mxu0 0.0
        %1879 = vmatpush2.msra.mxu0 0.0
        %1880 = vmatprep.subr.mxu0 0.0
        %1881 = vmatpush2.msra.mxu0 0.0
        %1882 = vmatprep.subr.mxu0 0.0
        %1883 = vmatpush2.msra.mxu0 0.0
        %1884 = vmatprep.subr.mxu0 0.0
        %1885 = vmatpush2.msra.mxu0 0.0
        %1886 = vmatprep.subr.mxu0 0.0
        %1887 = vmatpush2.msra.mxu0 0.0
        %1888 = vmatprep.subr.mxu0 0.0
        %1889 = vmatpush2.msra.mxu0 0.0
        %1890 = vmatprep.mubr.f32.mxu0 0.0
        %1891 = vmatmul.mubr.f32.gmra.mxu0 %v1821
        %v1892 = vpop.f32.mrf.mxu0
        %v1893 = vadd.f32 0.0, %v1892
        %v1894 = vpop.f32.mrf.mxu0
        %1895 = vmatprep.mubr.f32.mxu0 0.0
        %1896 = vmatmul.mubr.f32.gmra.mxu0 %v1824
        %v1897 = vpop.f32.mrf.mxu0
        %v1898 = vadd.f32 0.0, %v1897
        %v1899 = vpop.f32.mrf.mxu0
        %1900 = vdwg.mxu0
        %v1901 = vadd.f32 %v1801, %v1893
        %v1902 = vadd.f32 %v1802, %v1898
        %v1903 = vld [vmem:[#allocation2] sm:$0x1]
        %v1905 = vlaneseq
        %v1906 = vshrl.u32 %v1905, 7
        %v1907 = vsub.s32 0, %v1906
        %v1908 = vrot.slane %v1903, %v1907
        %v1910 = vadd.f32 %v1901, %v1908
        %v1911 = vadd.f32 %v1902, %v1908
        %v1912 = vtanh.pop %v1910
        %v1913 = vtanh.pop %v1911
        %1914 = vst [vmem:[%s205] sm:$0xff] %v1912
        %1915 = vst [vmem:[%s205 + $0x8] sm:$0xff] %v1913
        %s1916 = smul.u32 2, %s20
        %p1917 = scmp.lt.s32.totalorder %s19, 1
        %s1918 = scalar_select %p1917, %s19, 1
        %p1919 = scmp.lt.s32.totalorder %s1916, 1
        %s1920 = scalar_select %p1919, %s1916, 1
        %s1921 = smul.addr %s1918, 2
        %s1922 = sadd.s32 %s1920, %s1921
        %s1923 = smul.addr %s1922, 8
        %s1924 = scalar_lea.vmem %s3, %s1923
        // Predicated region
        $region37: #{skip_model_forward.3} parent=31 // pred_check
          %p1925 = pneg %p115
        $region38: #{skip_model_forward.3} parent=31 // pred_check_branch
          %1927 = sbr.rel (%p1925) target = $region40
        $region39: #{skip_model_forward.3} parent=31 // pred_region
          %s1928 = smul.u32 2, %s20
        $region40: #{skip_model_forward.3} parent=31 // pred_fallthru
          _
      $region32: #{skip_model_forward.3} parent=5 // pred_fallthru
        _
      %p1929 = scmp.le.s32.totalorder 2, %s10
      // Predicated region
      $region41: #{skip_model_forward.3} parent=5 // pred_check
        %p1930 = pneg %p1929
      $region42: #{skip_model_forward.3} parent=5 // pred_check_branch
        %1932 = sbr.rel (%p1930) target = $region44
      $region43: #{skip_model_forward.3} parent=5 // pred_region
        %s1933 = ssub.s32 %s10, 2
        // Predicated region
        $region45: #{skip_model_forward.3} parent=43 // pred_check
          %p1934 = pneg %p121
        $region46: #{skip_model_forward.3} parent=43 // pred_check_branch
          %1936 = sbr.rel (%p1934) target = $region48
        $region47: #{skip_model_forward.3} parent=43 // pred_region
          %s1937 = smul.u32 2, %s22
          %p1938 = scmp.lt.s32.totalorder %s21, 1
          %s1939 = scalar_select %p1938, %s21, 1
          %p1940 = scmp.lt.s32.totalorder %s1937, 1
          %s1941 = scalar_select %p1940, %s1937, 1
          %s1942 = smul.addr %s1939, 2
          %s1943 = sadd.s32 %s1941, %s1942
          %s1944 = smul.addr %s1943, 8
          %s1945 = scalar_lea.vmem %s3, %s1944
        $region48: #{skip_model_forward.3} parent=43 // pred_fallthru
          _
      $region44: #{skip_model_forward.3} parent=5 // pred_fallthru
        _
    $region6: #{skip_model_forward.3} parent=1 // loop_footer
      %s14 = sadd.s32 1, %s10
    $region7: #{skip_model_forward.3} parent=1 // loop_footer_branch
      %9 = sbr.rel target = $region3
    $region8: #{skip_model_forward.3} parent=1 // loop_exit
      _
    %1946 = vsyncpa [#allocation3], 1
    %s1947 = scalar_lea.sflag [#allocation3], 1
    %1948 = vsyncpa %s1947, 1

// kernel: skip_model_forward.4
$region0: #{skip_model_forward.4}
  #allocation0 [shape = 'u32[]', space=smem, size = 0x4, offset = 0x4, fixed_abs, tag = 'smem constant byte address 0x4 - core index']
  #allocation1 [shape = 'u32[144,128]{1,0:T(1,128)}', space=vmem, size = 0x12000, scoped, tag = 'internal scratch']
  #allocation2 [shape = 'f32[144,96]{1,0:T(8,128)}', space=vmem, size = 0x12000, scoped, tag = 'scratch operand']
  #allocation3 [shape = 'f32[144,128]{1,0:T(8,128)}', space=vmem, size = 0x12000, scoped, tag = 'scratch operand']
  %s0 = inlined_call_operand.vmem [shape: f32[2,144,96], index: 0, kind: input, shape index: {}]
  %s1 = inlined_call_operand.vmem [shape: f32[2,144,128], index: 1, kind: input, shape index: {}]
  %s2 = inlined_call_operand.vmem [shape: f32[17,96,128], index: 2, kind: input, shape index: {}]
  %s3 = inlined_call_operand.vmem [shape: f32[129,128,128], index: 3, kind: input, shape index: {}]
  %s4 = inlined_call_operand.vmem [shape: f32[1,128], index: 4, kind: input, shape index: {}]
  %s5 = inlined_call_operand.vmem [shape: f32[2,16,128], index: 5, kind: output, shape index: {}]
  %s6 = sld [smem:[#allocation0]]
  $region60: #{skip_model_forward.4} parent=0
    _
  %s8 = ssub.s32 1, %s6
  %s9 = scalar_select 0, %s8, %s6
  loop: start=0, step=1, limit=4
  $region2: #{skip_model_forward.4} parent=0 // loop_pre_header
    _
  $region3: #{skip_model_forward.4} parent=0 // loop_header
    %s11 = sphi 0, %s15
    %p12 = scmp.ge.s32.totalorder %s11, 4
    %s18 = sphi 0, %s30
    %s19 = sphi 0, %s26
    %s20 = sphi 0, %s18
    %s21 = sphi 0, %s19
    %s22 = sphi 0, %s20
    %s23 = sphi 0, %s21
    %s33 = sphi 0, %s35
    %s36 = sphi 0, %s33
    %s37 = sphi 0, %s36
    %s53 = sphi 0, %s37
    %s59 = sphi 0, %s61
    %s62 = sphi 0, %s59
    %s63 = sphi 0, %s62
    %s79 = sphi 0, %s63
    %s83 = sphi 0, %s83
    %s85 = sphi 0, %s83
    %s86 = sphi 0, %s85
    %s100 = sphi 0, %s86
    %s104 = sphi 0, %s104
    %s106 = sphi 0, %s104
    %s107 = sphi 0, %s106
    %s121 = sphi 0, %s107
    %s125 = sphi 0, %s125
    %s127 = sphi 0, %s125
    %s128 = sphi 0, %s127
    %s142 = sphi 0, %s128
    %s150 = sphi 0, %s152
    %s153 = sphi 0, %s150
    %s154 = sphi 0, %s153
    %s170 = sphi 0, %s154
  $region4: #{skip_model_forward.4} parent=0 // loop_header_branch
    %14 = sbr.rel (%p12) target = $region8
  $region5: #{skip_model_forward.4} parent=0 // loop_body
    %s16 = ssub.s32 %s11, 1
    %s17 = ssub.s32 %s11, 2
    %s24 = sadd.s32 1, %s19
    %p25 = scmp.ge.s32.totalorder %s24, 1
    %s26 = scalar_select %p25, 0, %s24
    %s27 = sadd.s32 1, %s18
    %s28 = scalar_select %p25, %s27, %s18
    %p29 = scmp.ge.s32.totalorder %s28, 2
    %s30 = scalar_select %p29, 0, %s28
    %s31 = ssub.s32 %s18, %s30
    %p32 = scmp.eq.s32.totalorder %s31, 0
    %s34 = sadd.s32 %s33, 1
    %s35 = scalar_select %p32, %s33, %s34
    %p38 = pneg %p32
    %p39 = scmp.eq.s32.totalorder %s11, 1
    %p40 = por %p38, %p39
    %p41 = scmp.ne.s32.totalorder %s33, %s36
    %p42 = scmp.eq.s32.totalorder %s11, 0
    %p43 = por %p41, %p42
    %p44 = scmp.ne.s32.totalorder %s33, %s36
    %p45 = scmp.eq.s32.totalorder %s16, 1
    %p46 = por %p44, %p45
    %p47 = scmp.ne.s32.totalorder %s36, %s37
    %p48 = scmp.eq.s32.totalorder %s16, 0
    %p49 = por %p47, %p48
    %p50 = scmp.ne.s32.totalorder %s36, %s37
    %p51 = scmp.eq.s32.totalorder %s17, 1
    %p52 = por %p50, %p51
    %p54 = scmp.ne.s32.totalorder %s37, %s53
    %p55 = scmp.eq.s32.totalorder %s17, 0
    %p56 = por %p54, %p55
    %s57 = ssub.s32 %s18, %s30
    %p58 = scmp.eq.s32.totalorder %s57, 0
    %s60 = sadd.s32 %s59, 1
    %s61 = scalar_select %p58, %s59, %s60
    %p64 = pneg %p58
    %p65 = scmp.eq.s32.totalorder %s11, 1
    %p66 = por %p64, %p65
    %p67 = scmp.ne.s32.totalorder %s59, %s62
    %p68 = scmp.eq.s32.totalorder %s11, 0
    %p69 = por %p67, %p68
    %p70 = scmp.ne.s32.totalorder %s59, %s62
    %p71 = scmp.eq.s32.totalorder %s16, 1
    %p72 = por %p70, %p71
    %p73 = scmp.ne.s32.totalorder %s62, %s63
    %p74 = scmp.eq.s32.totalorder %s16, 0
    %p75 = por %p73, %p74
    %p76 = scmp.ne.s32.totalorder %s62, %s63
    %p77 = scmp.eq.s32.totalorder %s17, 1
    %p78 = por %p76, %p77
    %p80 = scmp.ne.s32.totalorder %s63, %s79
    %p81 = scmp.eq.s32.totalorder %s17, 0
    %p82 = por %p80, %p81
    %s84 = sadd.s32 %s83, 1
    %p87 = scmp.eq.s32.totalorder %s11, 1
    %p88 = scmp.ne.s32.totalorder %s83, %s85
    %p89 = scmp.eq.s32.totalorder %s11, 0
    %p90 = por %p88, %p89
    %p91 = scmp.ne.s32.totalorder %s83, %s85
    %p92 = scmp.eq.s32.totalorder %s16, 1
    %p93 = por %p91, %p92
    %p94 = scmp.ne.s32.totalorder %s85, %s86
    %p95 = scmp.eq.s32.totalorder %s16, 0
    %p96 = por %p94, %p95
    %p97 = scmp.ne.s32.totalorder %s85, %s86
    %p98 = scmp.eq.s32.totalorder %s17, 1
    %p99 = por %p97, %p98
    %p101 = scmp.ne.s32.totalorder %s86, %s100
    %p102 = scmp.eq.s32.totalorder %s17, 0
    %p103 = por %p101, %p102
    %s105 = sadd.s32 %s104, 1
    %p108 = scmp.eq.s32.totalorder %s11, 1
    %p109 = scmp.ne.s32.totalorder %s104, %s106
    %p110 = scmp.eq.s32.totalorder %s11, 0
    %p111 = por %p109, %p110
    %p112 = scmp.ne.s32.totalorder %s104, %s106
    %p113 = scmp.eq.s32.totalorder %s16, 1
    %p114 = por %p112, %p113
    %p115 = scmp.ne.s32.totalorder %s106, %s107
    %p116 = scmp.eq.s32.totalorder %s16, 0
    %p117 = por %p115, %p116
    %p118 = scmp.ne.s32.totalorder %s106, %s107
    %p119 = scmp.eq.s32.totalorder %s17, 1
    %p120 = por %p118, %p119
    %p122 = scmp.ne.s32.totalorder %s107, %s121
    %p123 = scmp.eq.s32.totalorder %s17, 0
    %p124 = por %p122, %p123
    %s126 = sadd.s32 %s125, 1
    %p129 = scmp.eq.s32.totalorder %s11, 1
    %p130 = scmp.ne.s32.totalorder %s125, %s127
    %p131 = scmp.eq.s32.totalorder %s11, 0
    %p132 = por %p130, %p131
    %p133 = scmp.ne.s32.totalorder %s125, %s127
    %p134 = scmp.eq.s32.totalorder %s16, 1
    %p135 = por %p133, %p134
    %p136 = scmp.ne.s32.totalorder %s127, %s128
    %p137 = scmp.eq.s32.totalorder %s16, 0
    %p138 = por %p136, %p137
    %p139 = scmp.ne.s32.totalorder %s127, %s128
    %p140 = scmp.eq.s32.totalorder %s17, 1
    %p141 = por %p139, %p140
    %p143 = scmp.ne.s32.totalorder %s128, %s142
    %p144 = scmp.eq.s32.totalorder %s17, 0
    %p145 = por %p143, %p144
    %s146 = ssub.s32 %s18, %s30
    %s147 = ssub.s32 %s19, %s26
    %s148 = sor.u32 %s146, %s147
    %p149 = scmp.eq.s32.totalorder %s148, 0
    %s151 = sadd.s32 %s150, 1
    %s152 = scalar_select %p149, %s150, %s151
    %p155 = pneg %p149
    %p156 = scmp.eq.s32.totalorder %s11, 1
    %p157 = por %p155, %p156
    %p158 = scmp.ne.s32.totalorder %s150, %s153
    %p159 = scmp.eq.s32.totalorder %s11, 0
    %p160 = por %p158, %p159
    %p161 = scmp.ne.s32.totalorder %s150, %s153
    %p162 = scmp.eq.s32.totalorder %s16, 1
    %p163 = por %p161, %p162
    %p164 = scmp.ne.s32.totalorder %s153, %s154
    %p165 = scmp.eq.s32.totalorder %s16, 0
    %p166 = por %p164, %p165
    %p167 = scmp.ne.s32.totalorder %s153, %s154
    %p168 = scmp.eq.s32.totalorder %s17, 1
    %p169 = por %p167, %p168
    %p171 = scmp.ne.s32.totalorder %s154, %s170
    %p172 = scmp.eq.s32.totalorder %s17, 0
    %p173 = por %p171, %p172
    %p174 = scmp.le.s32.totalorder 1, %s11
    %p175 = scmp.lt.s32.totalorder %s11, 3
    %p176 = pnand %p174, %p175
    %p177 = pneg %p176
    // Predicated region
    $region9: #{skip_model_forward.4} parent=5 // pred_check
      _
    $region10: #{skip_model_forward.4} parent=5 // pred_check_branch
      %179 = sbr.rel (%p176) target = $region12
    $region11: #{skip_model_forward.4} parent=5 // pred_region
      %s180 = ssub.s32 %s11, 1
      // Predicated region
      $region13: #{skip_model_forward.4} parent=11 // pred_check
        %p181 = pneg %p96
      $region14: #{skip_model_forward.4} parent=11 // pred_check_branch
        %183 = sbr.rel (%p181) target = $region16
      $region15: #{skip_model_forward.4} parent=11 // pred_region
        _
      $region16: #{skip_model_forward.4} parent=11 // pred_fallthru
        _
      // Predicated region
      $region17: #{skip_model_forward.4} parent=11 // pred_check
        %p184 = pneg %p117
      $region18: #{skip_model_forward.4} parent=11 // pred_check_branch
        %186 = sbr.rel (%p184) target = $region20
      $region19: #{skip_model_forward.4} parent=11 // pred_region
        _
      $region20: #{skip_model_forward.4} parent=11 // pred_fallthru
        _
      // Predicated region
      $region21: #{skip_model_forward.4} parent=11 // pred_check
        %p187 = pneg %p138
      $region22: #{skip_model_forward.4} parent=11 // pred_check_branch
        %189 = sbr.rel (%p187) target = $region24
      $region23: #{skip_model_forward.4} parent=11 // pred_region
        _
      $region24: #{skip_model_forward.4} parent=11 // pred_fallthru
        _
    $region12: #{skip_model_forward.4} parent=5 // pred_fallthru
      _
    %p190 = scmp.lt.s32.totalorder %s11, 2
    // Predicated region
    $region25: #{skip_model_forward.4} parent=5 // pred_check
      %p191 = pneg %p190
    $region26: #{skip_model_forward.4} parent=5 // pred_check_branch
      %193 = sbr.rel (%p191) target = $region28
    $region27: #{skip_model_forward.4} parent=5 // pred_region
      // Predicated region
      $region29: #{skip_model_forward.4} parent=27 // pred_check
        %p194 = pneg %p43
      $region30: #{skip_model_forward.4} parent=27 // pred_check_branch
        %196 = sbr.rel (%p194) target = $region32
      $region31: #{skip_model_forward.4} parent=27 // pred_region
        %p197 = scmp.lt.s32.totalorder %s18, 1
        %s198 = scalar_select %p197, %s18, 1
        %s199 = smul.addr %s198, 18
        %s200 = smul.addr %s199, 8
        %s201 = scalar_lea.vmem %s0, %s200
      $region32: #{skip_model_forward.4} parent=27 // pred_fallthru
        _
      // Predicated region
      $region33: #{skip_model_forward.4} parent=27 // pred_check
        %p202 = pneg %p69
      $region34: #{skip_model_forward.4} parent=27 // pred_check_branch
        %204 = sbr.rel (%p202) target = $region36
      $region35: #{skip_model_forward.4} parent=27 // pred_region
        %p205 = scmp.lt.s32.totalorder %s18, 1
        %s206 = scalar_select %p205, %s18, 1
        %s207 = smul.addr %s206, 18
        %s208 = smul.addr %s207, 8
        %s209 = scalar_lea.vmem %s1, %s208
      $region36: #{skip_model_forward.4} parent=27 // pred_fallthru
        _
    $region28: #{skip_model_forward.4} parent=5 // pred_fallthru
      _
    %p210 = scmp.le.s32.totalorder 1, %s11
    %p211 = scmp.lt.s32.totalorder %s11, 3
    %p212 = pnand %p210, %p211
    %p213 = pneg %p212
    // Predicated region
    $region37: #{skip_model_forward.4} parent=5 // pred_check
      _
    $region38: #{skip_model_forward.4} parent=5 // pred_check_branch
      %215 = sbr.rel (%p212) target = $region40
    $region39: #{skip_model_forward.4} parent=5 // pred_region
      %s216 = ssub.s32 %s11, 1
      %p217 = scmp.lt.s32.totalorder %s20, 1
      %s218 = scalar_select %p217, %s20, 1
      %s219 = smul.addr %s218, 18
      %s220 = smul.addr %s219, 8
      %s221 = scalar_lea.vmem %s0, %s220
      %p222 = pneg %p49
      %p223 = pneg %p46
      %p224 = scmp.lt.s32.totalorder %s20, 1
      %s225 = scalar_select %p224, %s20, 1
      %s226 = smul.addr %s225, 18
      %s227 = smul.addr %s226, 8
      %s228 = scalar_lea.vmem %s1, %s227
      %p229 = pneg %p75
      %p230 = pneg %p72
      %p231 = pneg %p96
      %p232 = pneg %p93
      %p233 = pneg %p117
      %p234 = pneg %p114
      %p235 = pneg %p138
      %p236 = pneg %p135
      %p237 = pneg %p166
      %p238 = pneg %p163
      %s239 = smul.u32 2, %s21
      %p240 = scmp.lt.s32.totalorder %s20, 1
      %s241 = scalar_select %p240, %s20, 1
      %p242 = scmp.lt.s32.totalorder %s239, 1
      %s243 = scalar_select %p242, %s239, 1
      %s244 = smul.addr %s241, 2
      %s245 = sadd.s32 %s243, %s244
      %s246 = smul.addr %s245, 8
      %s247 = scalar_lea.vmem %s5, %s246
      %p248 = scmp.lt.s32.totalorder %s20, 1
      %s249 = scalar_select %p248, %s20, 1
      %s250 = smul.addr %s249, 18
      %s251 = smul.addr %s250, 8
      %s252 = scalar_lea.vmem %s0, %s251
      %p253 = scmp.lt.s32.totalorder %s20, 1
      %s254 = scalar_select %p253, %s20, 1
      %s255 = smul.addr %s254, 18
      %s256 = smul.addr %s255, 8
      %s257 = scalar_lea.vmem %s1, %s256
      %s258 = smul.u32 2, %s21
      %p259 = scmp.lt.s32.totalorder %s20, 1
      %s260 = scalar_select %p259, %s20, 1
      %p261 = scmp.lt.s32.totalorder %s258, 1
      %s262 = scalar_select %p261, %s258, 1
      %s263 = smul.addr %s260, 2
      %s264 = sadd.s32 %s262, %s263
      %s265 = smul.addr %s264, 8
      %s266 = scalar_lea.vmem %s5, %s265
      %s267 = smul.u32 2, %s21
      %s268 = smul.u32 %s21, 16
      %s269 = scalar_lea.vmem %s252, %s268
      %v270 = vld [vmem:[%s269] sm:$0xff]
      %v271 = vld [vmem:[%s269 + $0x8] sm:$0xff]
      %v272 = vld [vmem:[%s269 + $0x10] sm:$0xff]
      %v273 = vld [vmem:[%s269 + $0x18] sm:$0xff]
      %v274 = vld [vmem:[%s269 + $0x20] sm:$0xff]
      %v275 = vld [vmem:[%s269 + $0x28] sm:$0xff]
      %v276 = vld [vmem:[%s269 + $0x30] sm:$0xff]
      %v277 = vld [vmem:[%s269 + $0x38] sm:$0xff]
      %v278 = vld [vmem:[%s269 + $0x40] sm:$0xff]
      %v279 = vld [vmem:[%s269 + $0x48] sm:$0xff]
      %v280 = vld [vmem:[%s269 + $0x50] sm:$0xff]
      %v281 = vld [vmem:[%s269 + $0x58] sm:$0xff]
      %v282 = vld [vmem:[%s269 + $0x60] sm:$0xff]
      %v283 = vld [vmem:[%s269 + $0x68] sm:$0xff]
      %v284 = vld [vmem:[%s269 + $0x70] sm:$0xff]
      %v285 = vld [vmem:[%s269 + $0x78] sm:$0xff]
      %v286 = vld [vmem:[%s269 + $0x80] sm:$0xff]
      %v287 = vld [vmem:[%s269 + $0x88] sm:$0xff]
      %v288 = vtanh.pop %v270
      %v289 = vtanh.pop %v271
      %v290 = vtanh.pop %v272
      %v291 = vtanh.pop %v273
      %v292 = vtanh.pop %v274
      %v293 = vtanh.pop %v275
      %v294 = vtanh.pop %v276
      %v295 = vtanh.pop %v277
      %v296 = vtanh.pop %v278
      %v297 = vtanh.pop %v279
      %v298 = vtanh.pop %v280
      %v299 = vtanh.pop %v281
      %v300 = vtanh.pop %v282
      %v301 = vtanh.pop %v283
      %v302 = vtanh.pop %v284
      %v303 = vtanh.pop %v285
      %v304 = vtanh.pop %v286
      %v305 = vtanh.pop %v287
      %vm306 = vcmask 785408
      %307 = vst.msk [vmem:[#allocation2] sm:$0xff] %vm306, %v288
      %308 = vst.msk [vmem:[#allocation2 + $0x8] sm:$0xff] %vm306, %v289
      %309 = vst.msk [vmem:[#allocation2 + $0x10] sm:$0xff] %vm306, %v290
      %310 = vst.msk [vmem:[#allocation2 + $0x18] sm:$0xff] %vm306, %v291
      %311 = vst.msk [vmem:[#allocation2 + $0x20] sm:$0xff] %vm306, %v292
      %312 = vst.msk [vmem:[#allocation2 + $0x28] sm:$0xff] %vm306, %v293
      %313 = vst.msk [vmem:[#allocation2 + $0x30] sm:$0xff] %vm306, %v294
      %314 = vst.msk [vmem:[#allocation2 + $0x38] sm:$0xff] %vm306, %v295
      %315 = vst.msk [vmem:[#allocation2 + $0x40] sm:$0xff] %vm306, %v296
      %316 = vst.msk [vmem:[#allocation2 + $0x48] sm:$0xff] %vm306, %v297
      %317 = vst.msk [vmem:[#allocation2 + $0x50] sm:$0xff] %vm306, %v298
      %318 = vst.msk [vmem:[#allocation2 + $0x58] sm:$0xff] %vm306, %v299
      %319 = vst.msk [vmem:[#allocation2 + $0x60] sm:$0xff] %vm306, %v300
      %320 = vst.msk [vmem:[#allocation2 + $0x68] sm:$0xff] %vm306, %v301
      %321 = vst.msk [vmem:[#allocation2 + $0x70] sm:$0xff] %vm306, %v302
      %322 = vst.msk [vmem:[#allocation2 + $0x78] sm:$0xff] %vm306, %v303
      %323 = vst.msk [vmem:[#allocation2 + $0x80] sm:$0xff] %vm306, %v304
      %324 = vst.msk [vmem:[#allocation2 + $0x88] sm:$0xff] %vm306, %v305
      %v325 = vld [vmem:[#allocation2] sm:$0xff]
      %v326 = vld [vmem:[#allocation2 + $0x8] sm:$0xff]
      %v327 = vld [vmem:[%s2] sm:$0xff]
      %v328 = vld [vmem:[%s2 + $0x8] sm:$0xff]
      %v329 = vld [vmem:[%s2 + $0x10] sm:$0xff]
      %v330 = vld [vmem:[%s2 + $0x18] sm:$0xff]
      %v331 = vld [vmem:[%s2 + $0x20] sm:$0xff]
      %v332 = vld [vmem:[%s2 + $0x28] sm:$0xff]
      %v333 = vld [vmem:[%s2 + $0x30] sm:$0xff]
      %v334 = vld [vmem:[%s2 + $0x38] sm:$0xff]
      %v335 = vld [vmem:[%s2 + $0x40] sm:$0xff]
      %v336 = vld [vmem:[%s2 + $0x48] sm:$0xff]
      %v337 = vld [vmem:[%s2 + $0x50] sm:$0xff]
      %v338 = vld [vmem:[%s2 + $0x58] sm:$0xff]
      %v339 = vld [vmem:[#allocation2 + $0x10] sm:$0xff]
      %s340 = scalar_lea.vmem %s2, 96
      %v341 = vld [vmem:[%s340] sm:$0xff]
      %v342 = vld [vmem:[%s340 + $0x8] sm:$0xff]
      %v343 = vld [vmem:[%s340 + $0x10] sm:$0xff]
      %v344 = vld [vmem:[%s340 + $0x18] sm:$0xff]
      %v345 = vld [vmem:[%s340 + $0x20] sm:$0xff]
      %v346 = vld [vmem:[%s340 + $0x28] sm:$0xff]
      %v347 = vld [vmem:[%s340 + $0x30] sm:$0xff]
      %v348 = vld [vmem:[%s340 + $0x38] sm:$0xff]
      %v349 = vld [vmem:[%s340 + $0x40] sm:$0xff]
      %v350 = vld [vmem:[%s340 + $0x48] sm:$0xff]
      %v351 = vld [vmem:[%s340 + $0x50] sm:$0xff]
      %v352 = vld [vmem:[%s340 + $0x58] sm:$0xff]
      %v354 = vsel %vm306, %v326, 0
      %v357 = vsel %vm306, %v339, 0
      %359 = vmatprep.subr.mxu0 0.0
      %360 = vmatpush1.msra.mxu0 0.0
      %361 = vmatprep.subr.mxu0 0.0
      %362 = vmatpush1.msra.mxu0 0.0
      %363 = vmatprep.subr.mxu0 0.0
      %364 = vmatpush1.msra.mxu0 0.0
      %365 = vmatprep.subr.mxu0 0.0
      %366 = vmatpush1.msra.mxu0 0.0
      %367 = vmatprep.subr.mxu0 0.0
      %368 = vmatpush1.msra.mxu0 %v352
      %369 = vmatprep.subr.mxu0 0.0
      %370 = vmatpush1.msra.mxu0 %v351
      %371 = vmatprep.subr.mxu0 0.0
      %372 = vmatpush1.msra.mxu0 %v350
      %373 = vmatprep.subr.mxu0 0.0
      %374 = vmatpush1.msra.mxu0 %v349
      %375 = vmatprep.subr.mxu0 0.0
      %376 = vmatpush1.msra.mxu0 %v348
      %377 = vmatprep.subr.mxu0 0.0
      %378 = vmatpush1.msra.mxu0 %v347
      %379 = vmatprep.subr.mxu0 0.0
      %380 = vmatpush1.msra.mxu0 %v346
      %381 = vmatprep.subr.mxu0 0.0
      %382 = vmatpush1.msra.mxu0 %v345
      %383 = vmatprep.subr.mxu0 0.0
      %384 = vmatpush1.msra.mxu0 %v344
      %385 = vmatprep.subr.mxu0 0.0
      %386 = vmatpush1.msra.mxu0 %v343
      %387 = vmatprep.subr.mxu0 0.0
      %388 = vmatpush1.msra.mxu0 %v342
      %389 = vmatprep.subr.mxu0 0.0
      %390 = vmatpush1.msra.mxu0 %v341
      %391 = vmatprep.subr.mxu0 0.0
      %392 = vmatpush2.msra.mxu0 0.0
      %393 = vmatprep.subr.mxu0 0.0
      %394 = vmatpush2.msra.mxu0 0.0
      %395 = vmatprep.subr.mxu0 0.0
      %396 = vmatpush2.msra.mxu0 0.0
      %397 = vmatprep.subr.mxu0 0.0
      %398 = vmatpush2.msra.mxu0 0.0
      %399 = vmatprep.subr.mxu0 0.0
      %400 = vmatpush2.msra.mxu0 0.0
      %401 = vmatprep.subr.mxu0 0.0
      %402 = vmatpush2.msra.mxu0 0.0
      %403 = vmatprep.subr.mxu0 0.0
      %404 = vmatpush2.msra.mxu0 0.0
      %405 = vmatprep.subr.mxu0 0.0
      %406 = vmatpush2.msra.mxu0 0.0
      %407 = vmatprep.subr.mxu0 0.0
      %408 = vmatpush2.msra.mxu0 0.0
      %409 = vmatprep.subr.mxu0 0.0
      %410 = vmatpush2.msra.mxu0 0.0
      %411 = vmatprep.subr.mxu0 0.0
      %412 = vmatpush2.msra.mxu0 0.0
      %413 = vmatprep.subr.mxu0 0.0
      %414 = vmatpush2.msra.mxu0 0.0
      %415 = vmatprep.subr.mxu0 0.0
      %416 = vmatpush2.msra.mxu0 0.0
      %417 = vmatprep.subr.mxu0 0.0
      %418 = vmatpush2.msra.mxu0 0.0
      %419 = vmatprep.subr.mxu0 0.0
      %420 = vmatpush2.msra.mxu0 0.0
      %421 = vmatprep.subr.mxu0 0.0
      %422 = vmatpush2.msra.mxu0 0.0
      %423 = vmatprep.mubr.f32.mxu0 0.0
      %424 = vmatmul.mubr.f32.gmra.mxu0 %v354
      %v425 = vpop.f32.mrf.mxu0
      %v426 = vadd.f32 0.0, %v425
      %v427 = vpop.f32.mrf.mxu0
      %428 = vmatprep.mubr.f32.mxu0 0.0
      %429 = vmatmul.mubr.f32.gmra.mxu0 %v357
      %v430 = vpop.f32.mrf.mxu0
      %v431 = vadd.f32 0.0, %v430
      %v432 = vpop.f32.mrf.mxu0
      %433 = vdwg.mxu0
      %v435 = vsel %vm306, %v325, 0
      %437 = vmatprep.subr.mxu0 0.0
      %438 = vmatpush1.msra.mxu0 0.0
      %439 = vmatprep.subr.mxu0 0.0
      %440 = vmatpush1.msra.mxu0 0.0
      %441 = vmatprep.subr.mxu0 0.0
      %442 = vmatpush1.msra.mxu0 0.0
      %443 = vmatprep.subr.mxu0 0.0
      %444 = vmatpush1.msra.mxu0 0.0
      %445 = vmatprep.subr.mxu0 0.0
      %446 = vmatpush1.msra.mxu0 %v338
      %447 = vmatprep.subr.mxu0 0.0
      %448 = vmatpush1.msra.mxu0 %v337
      %449 = vmatprep.subr.mxu0 0.0
      %450 = vmatpush1.msra.mxu0 %v336
      %451 = vmatprep.subr.mxu0 0.0
      %452 = vmatpush1.msra.mxu0 %v335
      %453 = vmatprep.subr.mxu0 0.0
      %454 = vmatpush1.msra.mxu0 %v334
      %455 = vmatprep.subr.mxu0 0.0
      %456 = vmatpush1.msra.mxu0 %v333
      %457 = vmatprep.subr.mxu0 0.0
      %458 = vmatpush1.msra.mxu0 %v332
      %459 = vmatprep.subr.mxu0 0.0
      %460 = vmatpush1.msra.mxu0 %v331
      %461 = vmatprep.subr.mxu0 0.0
      %462 = vmatpush1.msra.mxu0 %v330
      %463 = vmatprep.subr.mxu0 0.0
      %464 = vmatpush1.msra.mxu0 %v329
      %465 = vmatprep.subr.mxu0 0.0
      %466 = vmatpush1.msra.mxu0 %v328
      %467 = vmatprep.subr.mxu0 0.0
      %468 = vmatpush1.msra.mxu0 %v327
      %469 = vmatprep.subr.mxu0 0.0
      %470 = vmatpush2.msra.mxu0 0.0
      %471 = vmatprep.subr.mxu0 0.0
      %472 = vmatpush2.msra.mxu0 0.0
      %473 = vmatprep.subr.mxu0 0.0
      %474 = vmatpush2.msra.mxu0 0.0
      %475 = vmatprep.subr.mxu0 0.0
      %476 = vmatpush2.msra.mxu0 0.0
      %477 = vmatprep.subr.mxu0 0.0
      %478 = vmatpush2.msra.mxu0 0.0
      %479 = vmatprep.subr.mxu0 0.0
      %480 = vmatpush2.msra.mxu0 0.0
      %481 = vmatprep.subr.mxu0 0.0
      %482 = vmatpush2.msra.mxu0 0.0
      %483 = vmatprep.subr.mxu0 0.0
      %484 = vmatpush2.msra.mxu0 0.0
      %485 = vmatprep.subr.mxu0 0.0
      %486 = vmatpush2.msra.mxu0 0.0
      %487 = vmatprep.subr.mxu0 0.0
      %488 = vmatpush2.msra.mxu0 0.0
      %489 = vmatprep.subr.mxu0 0.0
      %490 = vmatpush2.msra.mxu0 0.0
      %491 = vmatprep.subr.mxu0 0.0
      %492 = vmatpush2.msra.mxu0 0.0
      %493 = vmatprep.subr.mxu0 0.0
      %494 = vmatpush2.msra.mxu0 0.0
      %495 = vmatprep.subr.mxu0 0.0
      %496 = vmatpush2.msra.mxu0 0.0
      %497 = vmatprep.subr.mxu0 0.0
      %498 = vmatpush2.msra.mxu0 0.0
      %499 = vmatprep.subr.mxu0 0.0
      %500 = vmatpush2.msra.mxu0 0.0
      %501 = vmatprep.mubr.f32.mxu0 0.0
      %502 = vmatmul.mubr.f32.gmra.mxu0 %v435
      %v503 = vpop.f32.mrf.mxu0
      %v504 = vadd.f32 %v426, %v503
      %v505 = vpop.f32.mrf.mxu0
      %506 = vmatprep.mubr.f32.mxu0 0.0
      %507 = vmatmul.mubr.f32.gmra.mxu0 %v354
      %v508 = vpop.f32.mrf.mxu0
      %v509 = vadd.f32 %v431, %v508
      %v510 = vpop.f32.mrf.mxu0
      %511 = vdwg.mxu0
      %v512 = vld [vmem:[#allocation2 + $0x10] sm:$0xff]
      %v513 = vld [vmem:[#allocation2 + $0x18] sm:$0xff]
      %s514 = scalar_lea.vmem %s2, 192
      %v515 = vld [vmem:[%s514] sm:$0xff]
      %v516 = vld [vmem:[%s514 + $0x8] sm:$0xff]
      %v517 = vld [vmem:[%s514 + $0x10] sm:$0xff]
      %v518 = vld [vmem:[%s514 + $0x18] sm:$0xff]
      %v519 = vld [vmem:[%s514 + $0x20] sm:$0xff]
      %v520 = vld [vmem:[%s514 + $0x28] sm:$0xff]
      %v521 = vld [vmem:[%s514 + $0x30] sm:$0xff]
      %v522 = vld [vmem:[%s514 + $0x38] sm:$0xff]
      %v523 = vld [vmem:[%s514 + $0x40] sm:$0xff]
      %v524 = vld [vmem:[%s514 + $0x48] sm:$0xff]
      %v525 = vld [vmem:[%s514 + $0x50] sm:$0xff]
      %v526 = vld [vmem:[%s514 + $0x58] sm:$0xff]
      %v528 = vsel %vm306, %v512, 0
      %v531 = vsel %vm306, %v513, 0
      %533 = vmatprep.subr.mxu0 0.0
      %534 = vmatpush1.msra.mxu0 0.0
      %535 = vmatprep.subr.mxu0 0.0
      %536 = vmatpush1.msra.mxu0 0.0
      %537 = vmatprep.subr.mxu0 0.0
      %538 = vmatpush1.msra.mxu0 0.0
      %539 = vmatprep.subr.mxu0 0.0
      %540 = vmatpush1.msra.mxu0 0.0
      %541 = vmatprep.subr.mxu0 0.0
      %542 = vmatpush1.msra.mxu0 %v526
      %543 = vmatprep.subr.mxu0 0.0
      %544 = vmatpush1.msra.mxu0 %v525
      %545 = vmatprep.subr.mxu0 0.0
      %546 = vmatpush1.msra.mxu0 %v524
      %547 = vmatprep.subr.mxu0 0.0
      %548 = vmatpush1.msra.mxu0 %v523
      %549 = vmatprep.subr.mxu0 0.0
      %550 = vmatpush1.msra.mxu0 %v522
      %551 = vmatprep.subr.mxu0 0.0
      %552 = vmatpush1.msra.mxu0 %v521
      %553 = vmatprep.subr.mxu0 0.0
      %554 = vmatpush1.msra.mxu0 %v520
      %555 = vmatprep.subr.mxu0 0.0
      %556 = vmatpush1.msra.mxu0 %v519
      %557 = vmatprep.subr.mxu0 0.0
      %558 = vmatpush1.msra.mxu0 %v518
      %559 = vmatprep.subr.mxu0 0.0
      %560 = vmatpush1.msra.mxu0 %v517
      %561 = vmatprep.subr.mxu0 0.0
      %562 = vmatpush1.msra.mxu0 %v516
      %563 = vmatprep.subr.mxu0 0.0
      %564 = vmatpush1.msra.mxu0 %v515
      %565 = vmatprep.subr.mxu0 0.0
      %566 = vmatpush2.msra.mxu0 0.0
      %567 = vmatprep.subr.mxu0 0.0
      %568 = vmatpush2.msra.mxu0 0.0
      %569 = vmatprep.subr.mxu0 0.0
      %570 = vmatpush2.msra.mxu0 0.0
      %571 = vmatprep.subr.mxu0 0.0
      %572 = vmatpush2.msra.mxu0 0.0
      %573 = vmatprep.subr.mxu0 0.0
      %574 = vmatpush2.msra.mxu0 0.0
      %575 = vmatprep.subr.mxu0 0.0
      %576 = vmatpush2.msra.mxu0 0.0
      %577 = vmatprep.subr.mxu0 0.0
      %578 = vmatpush2.msra.mxu0 0.0
      %579 = vmatprep.subr.mxu0 0.0
      %580 = vmatpush2.msra.mxu0 0.0
      %581 = vmatprep.subr.mxu0 0.0
      %582 = vmatpush2.msra.mxu0 0.0
      %583 = vmatprep.subr.mxu0 0.0
      %584 = vmatpush2.msra.mxu0 0.0
      %585 = vmatprep.subr.mxu0 0.0
      %586 = vmatpush2.msra.mxu0 0.0
      %587 = vmatprep.subr.mxu0 0.0
      %588 = vmatpush2.msra.mxu0 0.0
      %589 = vmatprep.subr.mxu0 0.0
      %590 = vmatpush2.msra.mxu0 0.0
      %591 = vmatprep.subr.mxu0 0.0
      %592 = vmatpush2.msra.mxu0 0.0
      %593 = vmatprep.subr.mxu0 0.0
      %594 = vmatpush2.msra.mxu0 0.0
      %595 = vmatprep.subr.mxu0 0.0
      %596 = vmatpush2.msra.mxu0 0.0
      %597 = vmatprep.mubr.f32.mxu0 0.0
      %598 = vmatmul.mubr.f32.gmra.mxu0 %v528
      %v599 = vpop.f32.mrf.mxu0
      %v600 = vadd.f32 0.0, %v599
      %v601 = vpop.f32.mrf.mxu0
      %602 = vmatprep.mubr.f32.mxu0 0.0
      %603 = vmatmul.mubr.f32.gmra.mxu0 %v531
      %v604 = vpop.f32.mrf.mxu0
      %v605 = vadd.f32 0.0, %v604
      %v606 = vpop.f32.mrf.mxu0
      %607 = vdwg.mxu0
      %v608 = vadd.f32 %v504, %v600
      %v609 = vadd.f32 %v509, %v605
      %v610 = vld [vmem:[#allocation2 + $0x18] sm:$0xff]
      %v611 = vld [vmem:[#allocation2 + $0x20] sm:$0xff]
      %s612 = scalar_lea.vmem %s2, 288
      %v613 = vld [vmem:[%s612] sm:$0xff]
      %v614 = vld [vmem:[%s612 + $0x8] sm:$0xff]
      %v615 = vld [vmem:[%s612 + $0x10] sm:$0xff]
      %v616 = vld [vmem:[%s612 + $0x18] sm:$0xff]
      %v617 = vld [vmem:[%s612 + $0x20] sm:$0xff]
      %v618 = vld [vmem:[%s612 + $0x28] sm:$0xff]
      %v619 = vld [vmem:[%s612 + $0x30] sm:$0xff]
      %v620 = vld [vmem:[%s612 + $0x38] sm:$0xff]
      %v621 = vld [vmem:[%s612 + $0x40] sm:$0xff]
      %v622 = vld [vmem:[%s612 + $0x48] sm:$0xff]
      %v623 = vld [vmem:[%s612 + $0x50] sm:$0xff]
      %v624 = vld [vmem:[%s612 + $0x58] sm:$0xff]
      %v626 = vsel %vm306, %v610, 0
      %v629 = vsel %vm306, %v611, 0
      %631 = vmatprep.subr.mxu0 0.0
      %632 = vmatpush1.msra.mxu0 0.0
      %633 = vmatprep.subr.mxu0 0.0
      %634 = vmatpush1.msra.mxu0 0.0
      %635 = vmatprep.subr.mxu0 0.0
      %636 = vmatpush1.msra.mxu0 0.0
      %637 = vmatprep.subr.mxu0 0.0
      %638 = vmatpush1.msra.mxu0 0.0
      %639 = vmatprep.subr.mxu0 0.0
      %640 = vmatpush1.msra.mxu0 %v624
      %641 = vmatprep.subr.mxu0 0.0
      %642 = vmatpush1.msra.mxu0 %v623
      %643 = vmatprep.subr.mxu0 0.0
      %644 = vmatpush1.msra.mxu0 %v622
      %645 = vmatprep.subr.mxu0 0.0
      %646 = vmatpush1.msra.mxu0 %v621
      %647 = vmatprep.subr.mxu0 0.0
      %648 = vmatpush1.msra.mxu0 %v620
      %649 = vmatprep.subr.mxu0 0.0
      %650 = vmatpush1.msra.mxu0 %v619
      %651 = vmatprep.subr.mxu0 0.0
      %652 = vmatpush1.msra.mxu0 %v618
      %653 = vmatprep.subr.mxu0 0.0
      %654 = vmatpush1.msra.mxu0 %v617
      %655 = vmatprep.subr.mxu0 0.0
      %656 = vmatpush1.msra.mxu0 %v616
      %657 = vmatprep.subr.mxu0 0.0
      %658 = vmatpush1.msra.mxu0 %v615
      %659 = vmatprep.subr.mxu0 0.0
      %660 = vmatpush1.msra.mxu0 %v614
      %661 = vmatprep.subr.mxu0 0.0
      %662 = vmatpush1.msra.mxu0 %v613
      %663 = vmatprep.subr.mxu0 0.0
      %664 = vmatpush2.msra.mxu0 0.0
      %665 = vmatprep.subr.mxu0 0.0
      %666 = vmatpush2.msra.mxu0 0.0
      %667 = vmatprep.subr.mxu0 0.0
      %668 = vmatpush2.msra.mxu0 0.0
      %669 = vmatprep.subr.mxu0 0.0
      %670 = vmatpush2.msra.mxu0 0.0
      %671 = vmatprep.subr.mxu0 0.0
      %672 = vmatpush2.msra.mxu0 0.0
      %673 = vmatprep.subr.mxu0 0.0
      %674 = vmatpush2.msra.mxu0 0.0
      %675 = vmatprep.subr.mxu0 0.0
      %676 = vmatpush2.msra.mxu0 0.0
      %677 = vmatprep.subr.mxu0 0.0
      %678 = vmatpush2.msra.mxu0 0.0
      %679 = vmatprep.subr.mxu0 0.0
      %680 = vmatpush2.msra.mxu0 0.0
      %681 = vmatprep.subr.mxu0 0.0
      %682 = vmatpush2.msra.mxu0 0.0
      %683 = vmatprep.subr.mxu0 0.0
      %684 = vmatpush2.msra.mxu0 0.0
      %685 = vmatprep.subr.mxu0 0.0
      %686 = vmatpush2.msra.mxu0 0.0
      %687 = vmatprep.subr.mxu0 0.0
      %688 = vmatpush2.msra.mxu0 0.0
      %689 = vmatprep.subr.mxu0 0.0
      %690 = vmatpush2.msra.mxu0 0.0
      %691 = vmatprep.subr.mxu0 0.0
      %692 = vmatpush2.msra.mxu0 0.0
      %693 = vmatprep.subr.mxu0 0.0
      %694 = vmatpush2.msra.mxu0 0.0
      %695 = vmatprep.mubr.f32.mxu0 0.0
      %696 = vmatmul.mubr.f32.gmra.mxu0 %v626
      %v697 = vpop.f32.mrf.mxu0
      %v698 = vadd.f32 0.0, %v697
      %v699 = vpop.f32.mrf.mxu0
      %700 = vmatprep.mubr.f32.mxu0 0.0
      %701 = vmatmul.mubr.f32.gmra.mxu0 %v629
      %v702 = vpop.f32.mrf.mxu0
      %v703 = vadd.f32 0.0, %v702
      %v704 = vpop.f32.mrf.mxu0
      %705 = vdwg.mxu0
      %v706 = vadd.f32 %v608, %v698
      %v707 = vadd.f32 %v609, %v703
      %v708 = vld [vmem:[#allocation2 + $0x20] sm:$0xff]
      %v709 = vld [vmem:[#allocation2 + $0x28] sm:$0xff]
      %s710 = scalar_lea.vmem %s2, 384
      %v711 = vld [vmem:[%s710] sm:$0xff]
      %v712 = vld [vmem:[%s710 + $0x8] sm:$0xff]
      %v713 = vld [vmem:[%s710 + $0x10] sm:$0xff]
      %v714 = vld [vmem:[%s710 + $0x18] sm:$0xff]
      %v715 = vld [vmem:[%s710 + $0x20] sm:$0xff]
      %v716 = vld [vmem:[%s710 + $0x28] sm:$0xff]
      %v717 = vld [vmem:[%s710 + $0x30] sm:$0xff]
      %v718 = vld [vmem:[%s710 + $0x38] sm:$0xff]
      %v719 = vld [vmem:[%s710 + $0x40] sm:$0xff]
      %v720 = vld [vmem:[%s710 + $0x48] sm:$0xff]
      %v721 = vld [vmem:[%s710 + $0x50] sm:$0xff]
      %v722 = vld [vmem:[%s710 + $0x58] sm:$0xff]
      %v724 = vsel %vm306, %v708, 0
      %v727 = vsel %vm306, %v709, 0
      %729 = vmatprep.subr.mxu0 0.0
      %730 = vmatpush1.msra.mxu0 0.0
      %731 = vmatprep.subr.mxu0 0.0
      %732 = vmatpush1.msra.mxu0 0.0
      %733 = vmatprep.subr.mxu0 0.0
      %734 = vmatpush1.msra.mxu0 0.0
      %735 = vmatprep.subr.mxu0 0.0
      %736 = vmatpush1.msra.mxu0 0.0
      %737 = vmatprep.subr.mxu0 0.0
      %738 = vmatpush1.msra.mxu0 %v722
      %739 = vmatprep.subr.mxu0 0.0
      %740 = vmatpush1.msra.mxu0 %v721
      %741 = vmatprep.subr.mxu0 0.0
      %742 = vmatpush1.msra.mxu0 %v720
      %743 = vmatprep.subr.mxu0 0.0
      %744 = vmatpush1.msra.mxu0 %v719
      %745 = vmatprep.subr.mxu0 0.0
      %746 = vmatpush1.msra.mxu0 %v718
      %747 = vmatprep.subr.mxu0 0.0
      %748 = vmatpush1.msra.mxu0 %v717
      %749 = vmatprep.subr.mxu0 0.0
      %750 = vmatpush1.msra.mxu0 %v716
      %751 = vmatprep.subr.mxu0 0.0
      %752 = vmatpush1.msra.mxu0 %v715
      %753 = vmatprep.subr.mxu0 0.0
      %754 = vmatpush1.msra.mxu0 %v714
      %755 = vmatprep.subr.mxu0 0.0
      %756 = vmatpush1.msra.mxu0 %v713
      %757 = vmatprep.subr.mxu0 0.0
      %758 = vmatpush1.msra.mxu0 %v712
      %759 = vmatprep.subr.mxu0 0.0
      %760 = vmatpush1.msra.mxu0 %v711
      %761 = vmatprep.subr.mxu0 0.0
      %762 = vmatpush2.msra.mxu0 0.0
      %763 = vmatprep.subr.mxu0 0.0
      %764 = vmatpush2.msra.mxu0 0.0
      %765 = vmatprep.subr.mxu0 0.0
      %766 = vmatpush2.msra.mxu0 0.0
      %767 = vmatprep.subr.mxu0 0.0
      %768 = vmatpush2.msra.mxu0 0.0
      %769 = vmatprep.subr.mxu0 0.0
      %770 = vmatpush2.msra.mxu0 0.0
      %771 = vmatprep.subr.mxu0 0.0
      %772 = vmatpush2.msra.mxu0 0.0
      %773 = vmatprep.subr.mxu0 0.0
      %774 = vmatpush2.msra.mxu0 0.0
      %775 = vmatprep.subr.mxu0 0.0
      %776 = vmatpush2.msra.mxu0 0.0
      %777 = vmatprep.subr.mxu0 0.0
      %778 = vmatpush2.msra.mxu0 0.0
      %779 = vmatprep.subr.mxu0 0.0
      %780 = vmatpush2.msra.mxu0 0.0
      %781 = vmatprep.subr.mxu0 0.0
      %782 = vmatpush2.msra.mxu0 0.0
      %783 = vmatprep.subr.mxu0 0.0
      %784 = vmatpush2.msra.mxu0 0.0
      %785 = vmatprep.subr.mxu0 0.0
      %786 = vmatpush2.msra.mxu0 0.0
      %787 = vmatprep.subr.mxu0 0.0
      %788 = vmatpush2.msra.mxu0 0.0
      %789 = vmatprep.subr.mxu0 0.0
      %790 = vmatpush2.msra.mxu0 0.0
      %791 = vmatprep.subr.mxu0 0.0
      %792 = vmatpush2.msra.mxu0 0.0
      %793 = vmatprep.mubr.f32.mxu0 0.0
      %794 = vmatmul.mubr.f32.gmra.mxu0 %v724
      %v795 = vpop.f32.mrf.mxu0
      %v796 = vadd.f32 0.0, %v795
      %v797 = vpop.f32.mrf.mxu0
      %798 = vmatprep.mubr.f32.mxu0 0.0
      %799 = vmatmul.mubr.f32.gmra.mxu0 %v727
      %v800 = vpop.f32.mrf.mxu0
      %v801 = vadd.f32 0.0, %v800
      %v802 = vpop.f32.mrf.mxu0
      %803 = vdwg.mxu0
      %v804 = vadd.f32 %v706, %v796
      %v805 = vadd.f32 %v707, %v801
      %v806 = vld [vmem:[#allocation2 + $0x28] sm:$0xff]
      %v807 = vld [vmem:[#allocation2 + $0x30] sm:$0xff]
      %s808 = scalar_lea.vmem %s2, 480
      %v809 = vld [vmem:[%s808] sm:$0xff]
      %v810 = vld [vmem:[%s808 + $0x8] sm:$0xff]
      %v811 = vld [vmem:[%s808 + $0x10] sm:$0xff]
      %v812 = vld [vmem:[%s808 + $0x18] sm:$0xff]
      %v813 = vld [vmem:[%s808 + $0x20] sm:$0xff]
      %v814 = vld [vmem:[%s808 + $0x28] sm:$0xff]
      %v815 = vld [vmem:[%s808 + $0x30] sm:$0xff]
      %v816 = vld [vmem:[%s808 + $0x38] sm:$0xff]
      %v817 = vld [vmem:[%s808 + $0x40] sm:$0xff]
      %v818 = vld [vmem:[%s808 + $0x48] sm:$0xff]
      %v819 = vld [vmem:[%s808 + $0x50] sm:$0xff]
      %v820 = vld [vmem:[%s808 + $0x58] sm:$0xff]
      %v822 = vsel %vm306, %v806, 0
      %v825 = vsel %vm306, %v807, 0
      %827 = vmatprep.subr.mxu0 0.0
      %828 = vmatpush1.msra.mxu0 0.0
      %829 = vmatprep.subr.mxu0 0.0
      %830 = vmatpush1.msra.mxu0 0.0
      %831 = vmatprep.subr.mxu0 0.0
      %832 = vmatpush1.msra.mxu0 0.0
      %833 = vmatprep.subr.mxu0 0.0
      %834 = vmatpush1.msra.mxu0 0.0
      %835 = vmatprep.subr.mxu0 0.0
      %836 = vmatpush1.msra.mxu0 %v820
      %837 = vmatprep.subr.mxu0 0.0
      %838 = vmatpush1.msra.mxu0 %v819
      %839 = vmatprep.subr.mxu0 0.0
      %840 = vmatpush1.msra.mxu0 %v818
      %841 = vmatprep.subr.mxu0 0.0
      %842 = vmatpush1.msra.mxu0 %v817
      %843 = vmatprep.subr.mxu0 0.0
      %844 = vmatpush1.msra.mxu0 %v816
      %845 = vmatprep.subr.mxu0 0.0
      %846 = vmatpush1.msra.mxu0 %v815
      %847 = vmatprep.subr.mxu0 0.0
      %848 = vmatpush1.msra.mxu0 %v814
      %849 = vmatprep.subr.mxu0 0.0
      %850 = vmatpush1.msra.mxu0 %v813
      %851 = vmatprep.subr.mxu0 0.0
      %852 = vmatpush1.msra.mxu0 %v812
      %853 = vmatprep.subr.mxu0 0.0
      %854 = vmatpush1.msra.mxu0 %v811
      %855 = vmatprep.subr.mxu0 0.0
      %856 = vmatpush1.msra.mxu0 %v810
      %857 = vmatprep.subr.mxu0 0.0
      %858 = vmatpush1.msra.mxu0 %v809
      %859 = vmatprep.subr.mxu0 0.0
      %860 = vmatpush2.msra.mxu0 0.0
      %861 = vmatprep.subr.mxu0 0.0
      %862 = vmatpush2.msra.mxu0 0.0
      %863 = vmatprep.subr.mxu0 0.0
      %864 = vmatpush2.msra.mxu0 0.0
      %865 = vmatprep.subr.mxu0 0.0
      %866 = vmatpush2.msra.mxu0 0.0
      %867 = vmatprep.subr.mxu0 0.0
      %868 = vmatpush2.msra.mxu0 0.0
      %869 = vmatprep.subr.mxu0 0.0
      %870 = vmatpush2.msra.mxu0 0.0
      %871 = vmatprep.subr.mxu0 0.0
      %872 = vmatpush2.msra.mxu0 0.0
      %873 = vmatprep.subr.mxu0 0.0
      %874 = vmatpush2.msra.mxu0 0.0
      %875 = vmatprep.subr.mxu0 0.0
      %876 = vmatpush2.msra.mxu0 0.0
      %877 = vmatprep.subr.mxu0 0.0
      %878 = vmatpush2.msra.mxu0 0.0
      %879 = vmatprep.subr.mxu0 0.0
      %880 = vmatpush2.msra.mxu0 0.0
      %881 = vmatprep.subr.mxu0 0.0
      %882 = vmatpush2.msra.mxu0 0.0
      %883 = vmatprep.subr.mxu0 0.0
      %884 = vmatpush2.msra.mxu0 0.0
      %885 = vmatprep.subr.mxu0 0.0
      %886 = vmatpush2.msra.mxu0 0.0
      %887 = vmatprep.subr.mxu0 0.0
      %888 = vmatpush2.msra.mxu0 0.0
      %889 = vmatprep.subr.mxu0 0.0
      %890 = vmatpush2.msra.mxu0 0.0
      %891 = vmatprep.mubr.f32.mxu0 0.0
      %892 = vmatmul.mubr.f32.gmra.mxu0 %v822
      %v893 = vpop.f32.mrf.mxu0
      %v894 = vadd.f32 0.0, %v893
      %v895 = vpop.f32.mrf.mxu0
      %896 = vmatprep.mubr.f32.mxu0 0.0
      %897 = vmatmul.mubr.f32.gmra.mxu0 %v825
      %v898 = vpop.f32.mrf.mxu0
      %v899 = vadd.f32 0.0, %v898
      %v900 = vpop.f32.mrf.mxu0
      %901 = vdwg.mxu0
      %v902 = vadd.f32 %v804, %v894
      %v903 = vadd.f32 %v805, %v899
      %v904 = vld [vmem:[#allocation2 + $0x30] sm:$0xff]
      %v905 = vld [vmem:[#allocation2 + $0x38] sm:$0xff]
      %s906 = scalar_lea.vmem %s2, 576
      %v907 = vld [vmem:[%s906] sm:$0xff]
      %v908 = vld [vmem:[%s906 + $0x8] sm:$0xff]
      %v909 = vld [vmem:[%s906 + $0x10] sm:$0xff]
      %v910 = vld [vmem:[%s906 + $0x18] sm:$0xff]
      %v911 = vld [vmem:[%s906 + $0x20] sm:$0xff]
      %v912 = vld [vmem:[%s906 + $0x28] sm:$0xff]
      %v913 = vld [vmem:[%s906 + $0x30] sm:$0xff]
      %v914 = vld [vmem:[%s906 + $0x38] sm:$0xff]
      %v915 = vld [vmem:[%s906 + $0x40] sm:$0xff]
      %v916 = vld [vmem:[%s906 + $0x48] sm:$0xff]
      %v917 = vld [vmem:[%s906 + $0x50] sm:$0xff]
      %v918 = vld [vmem:[%s906 + $0x58] sm:$0xff]
      %v920 = vsel %vm306, %v904, 0
      %v923 = vsel %vm306, %v905, 0
      %925 = vmatprep.subr.mxu0 0.0
      %926 = vmatpush1.msra.mxu0 0.0
      %927 = vmatprep.subr.mxu0 0.0
      %928 = vmatpush1.msra.mxu0 0.0
      %929 = vmatprep.subr.mxu0 0.0
      %930 = vmatpush1.msra.mxu0 0.0
      %931 = vmatprep.subr.mxu0 0.0
      %932 = vmatpush1.msra.mxu0 0.0
      %933 = vmatprep.subr.mxu0 0.0
      %934 = vmatpush1.msra.mxu0 %v918
      %935 = vmatprep.subr.mxu0 0.0
      %936 = vmatpush1.msra.mxu0 %v917
      %937 = vmatprep.subr.mxu0 0.0
      %938 = vmatpush1.msra.mxu0 %v916
      %939 = vmatprep.subr.mxu0 0.0
      %940 = vmatpush1.msra.mxu0 %v915
      %941 = vmatprep.subr.mxu0 0.0
      %942 = vmatpush1.msra.mxu0 %v914
      %943 = vmatprep.subr.mxu0 0.0
      %944 = vmatpush1.msra.mxu0 %v913
      %945 = vmatprep.subr.mxu0 0.0
      %946 = vmatpush1.msra.mxu0 %v912
      %947 = vmatprep.subr.mxu0 0.0
      %948 = vmatpush1.msra.mxu0 %v911
      %949 = vmatprep.subr.mxu0 0.0
      %950 = vmatpush1.msra.mxu0 %v910
      %951 = vmatprep.subr.mxu0 0.0
      %952 = vmatpush1.msra.mxu0 %v909
      %953 = vmatprep.subr.mxu0 0.0
      %954 = vmatpush1.msra.mxu0 %v908
      %955 = vmatprep.subr.mxu0 0.0
      %956 = vmatpush1.msra.mxu0 %v907
      %957 = vmatprep.subr.mxu0 0.0
      %958 = vmatpush2.msra.mxu0 0.0
      %959 = vmatprep.subr.mxu0 0.0
      %960 = vmatpush2.msra.mxu0 0.0
      %961 = vmatprep.subr.mxu0 0.0
      %962 = vmatpush2.msra.mxu0 0.0
      %963 = vmatprep.subr.mxu0 0.0
      %964 = vmatpush2.msra.mxu0 0.0
      %965 = vmatprep.subr.mxu0 0.0
      %966 = vmatpush2.msra.mxu0 0.0
      %967 = vmatprep.subr.mxu0 0.0
      %968 = vmatpush2.msra.mxu0 0.0
      %969 = vmatprep.subr.mxu0 0.0
      %970 = vmatpush2.msra.mxu0 0.0
      %971 = vmatprep.subr.mxu0 0.0
      %972 = vmatpush2.msra.mxu0 0.0
      %973 = vmatprep.subr.mxu0 0.0
      %974 = vmatpush2.msra.mxu0 0.0
      %975 = vmatprep.subr.mxu0 0.0
      %976 = vmatpush2.msra.mxu0 0.0
      %977 = vmatprep.subr.mxu0 0.0
      %978 = vmatpush2.msra.mxu0 0.0
      %979 = vmatprep.subr.mxu0 0.0
      %980 = vmatpush2.msra.mxu0 0.0
      %981 = vmatprep.subr.mxu0 0.0
      %982 = vmatpush2.msra.mxu0 0.0
      %983 = vmatprep.subr.mxu0 0.0
      %984 = vmatpush2.msra.mxu0 0.0
      %985 = vmatprep.subr.mxu0 0.0
      %986 = vmatpush2.msra.mxu0 0.0
      %987 = vmatprep.subr.mxu0 0.0
      %988 = vmatpush2.msra.mxu0 0.0
      %989 = vmatprep.mubr.f32.mxu0 0.0
      %990 = vmatmul.mubr.f32.gmra.mxu0 %v920
      %v991 = vpop.f32.mrf.mxu0
      %v992 = vadd.f32 0.0, %v991
      %v993 = vpop.f32.mrf.mxu0
      %994 = vmatprep.mubr.f32.mxu0 0.0
      %995 = vmatmul.mubr.f32.gmra.mxu0 %v923
      %v996 = vpop.f32.mrf.mxu0
      %v997 = vadd.f32 0.0, %v996
      %v998 = vpop.f32.mrf.mxu0
      %999 = vdwg.mxu0
      %v1000 = vadd.f32 %v902, %v992
      %v1001 = vadd.f32 %v903, %v997
      %v1002 = vld [vmem:[#allocation2 + $0x38] sm:$0xff]
      %v1003 = vld [vmem:[#allocation2 + $0x40] sm:$0xff]
      %s1004 = scalar_lea.vmem %s2, 672
      %v1005 = vld [vmem:[%s1004] sm:$0xff]
      %v1006 = vld [vmem:[%s1004 + $0x8] sm:$0xff]
      %v1007 = vld [vmem:[%s1004 + $0x10] sm:$0xff]
      %v1008 = vld [vmem:[%s1004 + $0x18] sm:$0xff]
      %v1009 = vld [vmem:[%s1004 + $0x20] sm:$0xff]
      %v1010 = vld [vmem:[%s1004 + $0x28] sm:$0xff]
      %v1011 = vld [vmem:[%s1004 + $0x30] sm:$0xff]
      %v1012 = vld [vmem:[%s1004 + $0x38] sm:$0xff]
      %v1013 = vld [vmem:[%s1004 + $0x40] sm:$0xff]
      %v1014 = vld [vmem:[%s1004 + $0x48] sm:$0xff]
      %v1015 = vld [vmem:[%s1004 + $0x50] sm:$0xff]
      %v1016 = vld [vmem:[%s1004 + $0x58] sm:$0xff]
      %v1018 = vsel %vm306, %v1002, 0
      %v1021 = vsel %vm306, %v1003, 0
      %1023 = vmatprep.subr.mxu0 0.0
      %1024 = vmatpush1.msra.mxu0 0.0
      %1025 = vmatprep.subr.mxu0 0.0
      %1026 = vmatpush1.msra.mxu0 0.0
      %1027 = vmatprep.subr.mxu0 0.0
      %1028 = vmatpush1.msra.mxu0 0.0
      %1029 = vmatprep.subr.mxu0 0.0
      %1030 = vmatpush1.msra.mxu0 0.0
      %1031 = vmatprep.subr.mxu0 0.0
      %1032 = vmatpush1.msra.mxu0 %v1016
      %1033 = vmatprep.subr.mxu0 0.0
      %1034 = vmatpush1.msra.mxu0 %v1015
      %1035 = vmatprep.subr.mxu0 0.0
      %1036 = vmatpush1.msra.mxu0 %v1014
      %1037 = vmatprep.subr.mxu0 0.0
      %1038 = vmatpush1.msra.mxu0 %v1013
      %1039 = vmatprep.subr.mxu0 0.0
      %1040 = vmatpush1.msra.mxu0 %v1012
      %1041 = vmatprep.subr.mxu0 0.0
      %1042 = vmatpush1.msra.mxu0 %v1011
      %1043 = vmatprep.subr.mxu0 0.0
      %1044 = vmatpush1.msra.mxu0 %v1010
      %1045 = vmatprep.subr.mxu0 0.0
      %1046 = vmatpush1.msra.mxu0 %v1009
      %1047 = vmatprep.subr.mxu0 0.0
      %1048 = vmatpush1.msra.mxu0 %v1008
      %1049 = vmatprep.subr.mxu0 0.0
      %1050 = vmatpush1.msra.mxu0 %v1007
      %1051 = vmatprep.subr.mxu0 0.0
      %1052 = vmatpush1.msra.mxu0 %v1006
      %1053 = vmatprep.subr.mxu0 0.0
      %1054 = vmatpush1.msra.mxu0 %v1005
      %1055 = vmatprep.subr.mxu0 0.0
      %1056 = vmatpush2.msra.mxu0 0.0
      %1057 = vmatprep.subr.mxu0 0.0
      %1058 = vmatpush2.msra.mxu0 0.0
      %1059 = vmatprep.subr.mxu0 0.0
      %1060 = vmatpush2.msra.mxu0 0.0
      %1061 = vmatprep.subr.mxu0 0.0
      %1062 = vmatpush2.msra.mxu0 0.0
      %1063 = vmatprep.subr.mxu0 0.0
      %1064 = vmatpush2.msra.mxu0 0.0
      %1065 = vmatprep.subr.mxu0 0.0
      %1066 = vmatpush2.msra.mxu0 0.0
      %1067 = vmatprep.subr.mxu0 0.0
      %1068 = vmatpush2.msra.mxu0 0.0
      %1069 = vmatprep.subr.mxu0 0.0
      %1070 = vmatpush2.msra.mxu0 0.0
      %1071 = vmatprep.subr.mxu0 0.0
      %1072 = vmatpush2.msra.mxu0 0.0
      %1073 = vmatprep.subr.mxu0 0.0
      %1074 = vmatpush2.msra.mxu0 0.0
      %1075 = vmatprep.subr.mxu0 0.0
      %1076 = vmatpush2.msra.mxu0 0.0
      %1077 = vmatprep.subr.mxu0 0.0
      %1078 = vmatpush2.msra.mxu0 0.0
      %1079 = vmatprep.subr.mxu0 0.0
      %1080 = vmatpush2.msra.mxu0 0.0
      %1081 = vmatprep.subr.mxu0 0.0
      %1082 = vmatpush2.msra.mxu0 0.0
      %1083 = vmatprep.subr.mxu0 0.0
      %1084 = vmatpush2.msra.mxu0 0.0
      %1085 = vmatprep.subr.mxu0 0.0
      %1086 = vmatpush2.msra.mxu0 0.0
      %1087 = vmatprep.mubr.f32.mxu0 0.0
      %1088 = vmatmul.mubr.f32.gmra.mxu0 %v1018
      %v1089 = vpop.f32.mrf.mxu0
      %v1090 = vadd.f32 0.0, %v1089
      %v1091 = vpop.f32.mrf.mxu0
      %1092 = vmatprep.mubr.f32.mxu0 0.0
      %1093 = vmatmul.mubr.f32.gmra.mxu0 %v1021
      %v1094 = vpop.f32.mrf.mxu0
      %v1095 = vadd.f32 0.0, %v1094
      %v1096 = vpop.f32.mrf.mxu0
      %1097 = vdwg.mxu0
      %v1098 = vadd.f32 %v1000, %v1090
      %v1099 = vadd.f32 %v1001, %v1095
      %v1100 = vld [vmem:[#allocation2 + $0x40] sm:$0xff]
      %v1101 = vld [vmem:[#allocation2 + $0x48] sm:$0xff]
      %s1102 = scalar_lea.vmem %s2, 768
      %v1103 = vld [vmem:[%s1102] sm:$0xff]
      %v1104 = vld [vmem:[%s1102 + $0x8] sm:$0xff]
      %v1105 = vld [vmem:[%s1102 + $0x10] sm:$0xff]
      %v1106 = vld [vmem:[%s1102 + $0x18] sm:$0xff]
      %v1107 = vld [vmem:[%s1102 + $0x20] sm:$0xff]
      %v1108 = vld [vmem:[%s1102 + $0x28] sm:$0xff]
      %v1109 = vld [vmem:[%s1102 + $0x30] sm:$0xff]
      %v1110 = vld [vmem:[%s1102 + $0x38] sm:$0xff]
      %v1111 = vld [vmem:[%s1102 + $0x40] sm:$0xff]
      %v1112 = vld [vmem:[%s1102 + $0x48] sm:$0xff]
      %v1113 = vld [vmem:[%s1102 + $0x50] sm:$0xff]
      %v1114 = vld [vmem:[%s1102 + $0x58] sm:$0xff]
      %v1116 = vsel %vm306, %v1100, 0
      %v1119 = vsel %vm306, %v1101, 0
      %1121 = vmatprep.subr.mxu0 0.0
      %1122 = vmatpush1.msra.mxu0 0.0
      %1123 = vmatprep.subr.mxu0 0.0
      %1124 = vmatpush1.msra.mxu0 0.0
      %1125 = vmatprep.subr.mxu0 0.0
      %1126 = vmatpush1.msra.mxu0 0.0
      %1127 = vmatprep.subr.mxu0 0.0
      %1128 = vmatpush1.msra.mxu0 0.0
      %1129 = vmatprep.subr.mxu0 0.0
      %1130 = vmatpush1.msra.mxu0 %v1114
      %1131 = vmatprep.subr.mxu0 0.0
      %1132 = vmatpush1.msra.mxu0 %v1113
      %1133 = vmatprep.subr.mxu0 0.0
      %1134 = vmatpush1.msra.mxu0 %v1112
      %1135 = vmatprep.subr.mxu0 0.0
      %1136 = vmatpush1.msra.mxu0 %v1111
      %1137 = vmatprep.subr.mxu0 0.0
      %1138 = vmatpush1.msra.mxu0 %v1110
      %1139 = vmatprep.subr.mxu0 0.0
      %1140 = vmatpush1.msra.mxu0 %v1109
      %1141 = vmatprep.subr.mxu0 0.0
      %1142 = vmatpush1.msra.mxu0 %v1108
      %1143 = vmatprep.subr.mxu0 0.0
      %1144 = vmatpush1.msra.mxu0 %v1107
      %1145 = vmatprep.subr.mxu0 0.0
      %1146 = vmatpush1.msra.mxu0 %v1106
      %1147 = vmatprep.subr.mxu0 0.0
      %1148 = vmatpush1.msra.mxu0 %v1105
      %1149 = vmatprep.subr.mxu0 0.0
      %1150 = vmatpush1.msra.mxu0 %v1104
      %1151 = vmatprep.subr.mxu0 0.0
      %1152 = vmatpush1.msra.mxu0 %v1103
      %1153 = vmatprep.subr.mxu0 0.0
      %1154 = vmatpush2.msra.mxu0 0.0
      %1155 = vmatprep.subr.mxu0 0.0
      %1156 = vmatpush2.msra.mxu0 0.0
      %1157 = vmatprep.subr.mxu0 0.0
      %1158 = vmatpush2.msra.mxu0 0.0
      %1159 = vmatprep.subr.mxu0 0.0
      %1160 = vmatpush2.msra.mxu0 0.0
      %1161 = vmatprep.subr.mxu0 0.0
      %1162 = vmatpush2.msra.mxu0 0.0
      %1163 = vmatprep.subr.mxu0 0.0
      %1164 = vmatpush2.msra.mxu0 0.0
      %1165 = vmatprep.subr.mxu0 0.0
      %1166 = vmatpush2.msra.mxu0 0.0
      %1167 = vmatprep.subr.mxu0 0.0
      %1168 = vmatpush2.msra.mxu0 0.0
      %1169 = vmatprep.subr.mxu0 0.0
      %1170 = vmatpush2.msra.mxu0 0.0
      %1171 = vmatprep.subr.mxu0 0.0
      %1172 = vmatpush2.msra.mxu0 0.0
      %1173 = vmatprep.subr.mxu0 0.0
      %1174 = vmatpush2.msra.mxu0 0.0
      %1175 = vmatprep.subr.mxu0 0.0
      %1176 = vmatpush2.msra.mxu0 0.0
      %1177 = vmatprep.subr.mxu0 0.0
      %1178 = vmatpush2.msra.mxu0 0.0
      %1179 = vmatprep.subr.mxu0 0.0
      %1180 = vmatpush2.msra.mxu0 0.0
      %1181 = vmatprep.subr.mxu0 0.0
      %1182 = vmatpush2.msra.mxu0 0.0
      %1183 = vmatprep.subr.mxu0 0.0
      %1184 = vmatpush2.msra.mxu0 0.0
      %1185 = vmatprep.mubr.f32.mxu0 0.0
      %1186 = vmatmul.mubr.f32.gmra.mxu0 %v1116
      %v1187 = vpop.f32.mrf.mxu0
      %v1188 = vadd.f32 0.0, %v1187
      %v1189 = vpop.f32.mrf.mxu0
      %1190 = vmatprep.mubr.f32.mxu0 0.0
      %1191 = vmatmul.mubr.f32.gmra.mxu0 %v1119
      %v1192 = vpop.f32.mrf.mxu0
      %v1193 = vadd.f32 0.0, %v1192
      %v1194 = vpop.f32.mrf.mxu0
      %1195 = vdwg.mxu0
      %v1196 = vadd.f32 %v1098, %v1188
      %v1197 = vadd.f32 %v1099, %v1193
      %v1198 = vld [vmem:[#allocation2 + $0x48] sm:$0xff]
      %v1199 = vld [vmem:[#allocation2 + $0x50] sm:$0xff]
      %s1200 = scalar_lea.vmem %s2, 864
      %v1201 = vld [vmem:[%s1200] sm:$0xff]
      %v1202 = vld [vmem:[%s1200 + $0x8] sm:$0xff]
      %v1203 = vld [vmem:[%s1200 + $0x10] sm:$0xff]
      %v1204 = vld [vmem:[%s1200 + $0x18] sm:$0xff]
      %v1205 = vld [vmem:[%s1200 + $0x20] sm:$0xff]
      %v1206 = vld [vmem:[%s1200 + $0x28] sm:$0xff]
      %v1207 = vld [vmem:[%s1200 + $0x30] sm:$0xff]
      %v1208 = vld [vmem:[%s1200 + $0x38] sm:$0xff]
      %v1209 = vld [vmem:[%s1200 + $0x40] sm:$0xff]
      %v1210 = vld [vmem:[%s1200 + $0x48] sm:$0xff]
      %v1211 = vld [vmem:[%s1200 + $0x50] sm:$0xff]
      %v1212 = vld [vmem:[%s1200 + $0x58] sm:$0xff]
      %v1214 = vsel %vm306, %v1198, 0
      %v1217 = vsel %vm306, %v1199, 0
      %1219 = vmatprep.subr.mxu0 0.0
      %1220 = vmatpush1.msra.mxu0 0.0
      %1221 = vmatprep.subr.mxu0 0.0
      %1222 = vmatpush1.msra.mxu0 0.0
      %1223 = vmatprep.subr.mxu0 0.0
      %1224 = vmatpush1.msra.mxu0 0.0
      %1225 = vmatprep.subr.mxu0 0.0
      %1226 = vmatpush1.msra.mxu0 0.0
      %1227 = vmatprep.subr.mxu0 0.0
      %1228 = vmatpush1.msra.mxu0 %v1212
      %1229 = vmatprep.subr.mxu0 0.0
      %1230 = vmatpush1.msra.mxu0 %v1211
      %1231 = vmatprep.subr.mxu0 0.0
      %1232 = vmatpush1.msra.mxu0 %v1210
      %1233 = vmatprep.subr.mxu0 0.0
      %1234 = vmatpush1.msra.mxu0 %v1209
      %1235 = vmatprep.subr.mxu0 0.0
      %1236 = vmatpush1.msra.mxu0 %v1208
      %1237 = vmatprep.subr.mxu0 0.0
      %1238 = vmatpush1.msra.mxu0 %v1207
      %1239 = vmatprep.subr.mxu0 0.0
      %1240 = vmatpush1.msra.mxu0 %v1206
      %1241 = vmatprep.subr.mxu0 0.0
      %1242 = vmatpush1.msra.mxu0 %v1205
      %1243 = vmatprep.subr.mxu0 0.0
      %1244 = vmatpush1.msra.mxu0 %v1204
      %1245 = vmatprep.subr.mxu0 0.0
      %1246 = vmatpush1.msra.mxu0 %v1203
      %1247 = vmatprep.subr.mxu0 0.0
      %1248 = vmatpush1.msra.mxu0 %v1202
      %1249 = vmatprep.subr.mxu0 0.0
      %1250 = vmatpush1.msra.mxu0 %v1201
      %1251 = vmatprep.subr.mxu0 0.0
      %1252 = vmatpush2.msra.mxu0 0.0
      %1253 = vmatprep.subr.mxu0 0.0
      %1254 = vmatpush2.msra.mxu0 0.0
      %1255 = vmatprep.subr.mxu0 0.0
      %1256 = vmatpush2.msra.mxu0 0.0
      %1257 = vmatprep.subr.mxu0 0.0
      %1258 = vmatpush2.msra.mxu0 0.0
      %1259 = vmatprep.subr.mxu0 0.0
      %1260 = vmatpush2.msra.mxu0 0.0
      %1261 = vmatprep.subr.mxu0 0.0
      %1262 = vmatpush2.msra.mxu0 0.0
      %1263 = vmatprep.subr.mxu0 0.0
      %1264 = vmatpush2.msra.mxu0 0.0
      %1265 = vmatprep.subr.mxu0 0.0
      %1266 = vmatpush2.msra.mxu0 0.0
      %1267 = vmatprep.subr.mxu0 0.0
      %1268 = vmatpush2.msra.mxu0 0.0
      %1269 = vmatprep.subr.mxu0 0.0
      %1270 = vmatpush2.msra.mxu0 0.0
      %1271 = vmatprep.subr.mxu0 0.0
      %1272 = vmatpush2.msra.mxu0 0.0
      %1273 = vmatprep.subr.mxu0 0.0
      %1274 = vmatpush2.msra.mxu0 0.0
      %1275 = vmatprep.subr.mxu0 0.0
      %1276 = vmatpush2.msra.mxu0 0.0
      %1277 = vmatprep.subr.mxu0 0.0
      %1278 = vmatpush2.msra.mxu0 0.0
      %1279 = vmatprep.subr.mxu0 0.0
      %1280 = vmatpush2.msra.mxu0 0.0
      %1281 = vmatprep.subr.mxu0 0.0
      %1282 = vmatpush2.msra.mxu0 0.0
      %1283 = vmatprep.mubr.f32.mxu0 0.0
      %1284 = vmatmul.mubr.f32.gmra.mxu0 %v1214
      %v1285 = vpop.f32.mrf.mxu0
      %v1286 = vadd.f32 0.0, %v1285
      %v1287 = vpop.f32.mrf.mxu0
      %1288 = vmatprep.mubr.f32.mxu0 0.0
      %1289 = vmatmul.mubr.f32.gmra.mxu0 %v1217
      %v1290 = vpop.f32.mrf.mxu0
      %v1291 = vadd.f32 0.0, %v1290
      %v1292 = vpop.f32.mrf.mxu0
      %1293 = vdwg.mxu0
      %v1294 = vadd.f32 %v1196, %v1286
      %v1295 = vadd.f32 %v1197, %v1291
      %v1296 = vld [vmem:[#allocation2 + $0x50] sm:$0xff]
      %v1297 = vld [vmem:[#allocation2 + $0x58] sm:$0xff]
      %s1298 = scalar_lea.vmem %s2, 960
      %v1299 = vld [vmem:[%s1298] sm:$0xff]
      %v1300 = vld [vmem:[%s1298 + $0x8] sm:$0xff]
      %v1301 = vld [vmem:[%s1298 + $0x10] sm:$0xff]
      %v1302 = vld [vmem:[%s1298 + $0x18] sm:$0xff]
      %v1303 = vld [vmem:[%s1298 + $0x20] sm:$0xff]
      %v1304 = vld [vmem:[%s1298 + $0x28] sm:$0xff]
      %v1305 = vld [vmem:[%s1298 + $0x30] sm:$0xff]
      %v1306 = vld [vmem:[%s1298 + $0x38] sm:$0xff]
      %v1307 = vld [vmem:[%s1298 + $0x40] sm:$0xff]
      %v1308 = vld [vmem:[%s1298 + $0x48] sm:$0xff]
      %v1309 = vld [vmem:[%s1298 + $0x50] sm:$0xff]
      %v1310 = vld [vmem:[%s1298 + $0x58] sm:$0xff]
      %v1312 = vsel %vm306, %v1296, 0
      %v1315 = vsel %vm306, %v1297, 0
      %1317 = vmatprep.subr.mxu0 0.0
      %1318 = vmatpush1.msra.mxu0 0.0
      %1319 = vmatprep.subr.mxu0 0.0
      %1320 = vmatpush1.msra.mxu0 0.0
      %1321 = vmatprep.subr.mxu0 0.0
      %1322 = vmatpush1.msra.mxu0 0.0
      %1323 = vmatprep.subr.mxu0 0.0
      %1324 = vmatpush1.msra.mxu0 0.0
      %1325 = vmatprep.subr.mxu0 0.0
      %1326 = vmatpush1.msra.mxu0 %v1310
      %1327 = vmatprep.subr.mxu0 0.0
      %1328 = vmatpush1.msra.mxu0 %v1309
      %1329 = vmatprep.subr.mxu0 0.0
      %1330 = vmatpush1.msra.mxu0 %v1308
      %1331 = vmatprep.subr.mxu0 0.0
      %1332 = vmatpush1.msra.mxu0 %v1307
      %1333 = vmatprep.subr.mxu0 0.0
      %1334 = vmatpush1.msra.mxu0 %v1306
      %1335 = vmatprep.subr.mxu0 0.0
      %1336 = vmatpush1.msra.mxu0 %v1305
      %1337 = vmatprep.subr.mxu0 0.0
      %1338 = vmatpush1.msra.mxu0 %v1304
      %1339 = vmatprep.subr.mxu0 0.0
      %1340 = vmatpush1.msra.mxu0 %v1303
      %1341 = vmatprep.subr.mxu0 0.0
      %1342 = vmatpush1.msra.mxu0 %v1302
      %1343 = vmatprep.subr.mxu0 0.0
      %1344 = vmatpush1.msra.mxu0 %v1301
      %1345 = vmatprep.subr.mxu0 0.0
      %1346 = vmatpush1.msra.mxu0 %v1300
      %1347 = vmatprep.subr.mxu0 0.0
      %1348 = vmatpush1.msra.mxu0 %v1299
      %1349 = vmatprep.subr.mxu0 0.0
      %1350 = vmatpush2.msra.mxu0 0.0
      %1351 = vmatprep.subr.mxu0 0.0
      %1352 = vmatpush2.msra.mxu0 0.0
      %1353 = vmatprep.subr.mxu0 0.0
      %1354 = vmatpush2.msra.mxu0 0.0
      %1355 = vmatprep.subr.mxu0 0.0
      %1356 = vmatpush2.msra.mxu0 0.0
      %1357 = vmatprep.subr.mxu0 0.0
      %1358 = vmatpush2.msra.mxu0 0.0
      %1359 = vmatprep.subr.mxu0 0.0
      %1360 = vmatpush2.msra.mxu0 0.0
      %1361 = vmatprep.subr.mxu0 0.0
      %1362 = vmatpush2.msra.mxu0 0.0
      %1363 = vmatprep.subr.mxu0 0.0
      %1364 = vmatpush2.msra.mxu0 0.0
      %1365 = vmatprep.subr.mxu0 0.0
      %1366 = vmatpush2.msra.mxu0 0.0
      %1367 = vmatprep.subr.mxu0 0.0
      %1368 = vmatpush2.msra.mxu0 0.0
      %1369 = vmatprep.subr.mxu0 0.0
      %1370 = vmatpush2.msra.mxu0 0.0
      %1371 = vmatprep.subr.mxu0 0.0
      %1372 = vmatpush2.msra.mxu0 0.0
      %1373 = vmatprep.subr.mxu0 0.0
      %1374 = vmatpush2.msra.mxu0 0.0
      %1375 = vmatprep.subr.mxu0 0.0
      %1376 = vmatpush2.msra.mxu0 0.0
      %1377 = vmatprep.subr.mxu0 0.0
      %1378 = vmatpush2.msra.mxu0 0.0
      %1379 = vmatprep.subr.mxu0 0.0
      %1380 = vmatpush2.msra.mxu0 0.0
      %1381 = vmatprep.mubr.f32.mxu0 0.0
      %1382 = vmatmul.mubr.f32.gmra.mxu0 %v1312
      %v1383 = vpop.f32.mrf.mxu0
      %v1384 = vadd.f32 0.0, %v1383
      %v1385 = vpop.f32.mrf.mxu0
      %1386 = vmatprep.mubr.f32.mxu0 0.0
      %1387 = vmatmul.mubr.f32.gmra.mxu0 %v1315
      %v1388 = vpop.f32.mrf.mxu0
      %v1389 = vadd.f32 0.0, %v1388
      %v1390 = vpop.f32.mrf.mxu0
      %1391 = vdwg.mxu0
      %v1392 = vadd.f32 %v1294, %v1384
      %v1393 = vadd.f32 %v1295, %v1389
      %v1394 = vld [vmem:[#allocation2 + $0x58] sm:$0xff]
      %v1395 = vld [vmem:[#allocation2 + $0x60] sm:$0xff]
      %s1396 = scalar_lea.vmem %s2, 1056
      %v1397 = vld [vmem:[%s1396] sm:$0xff]
      %v1398 = vld [vmem:[%s1396 + $0x8] sm:$0xff]
      %v1399 = vld [vmem:[%s1396 + $0x10] sm:$0xff]
      %v1400 = vld [vmem:[%s1396 + $0x18] sm:$0xff]
      %v1401 = vld [vmem:[%s1396 + $0x20] sm:$0xff]
      %v1402 = vld [vmem:[%s1396 + $0x28] sm:$0xff]
      %v1403 = vld [vmem:[%s1396 + $0x30] sm:$0xff]
      %v1404 = vld [vmem:[%s1396 + $0x38] sm:$0xff]
      %v1405 = vld [vmem:[%s1396 + $0x40] sm:$0xff]
      %v1406 = vld [vmem:[%s1396 + $0x48] sm:$0xff]
      %v1407 = vld [vmem:[%s1396 + $0x50] sm:$0xff]
      %v1408 = vld [vmem:[%s1396 + $0x58] sm:$0xff]
      %v1410 = vsel %vm306, %v1394, 0
      %v1413 = vsel %vm306, %v1395, 0
      %1415 = vmatprep.subr.mxu0 0.0
      %1416 = vmatpush1.msra.mxu0 0.0
      %1417 = vmatprep.subr.mxu0 0.0
      %1418 = vmatpush1.msra.mxu0 0.0
      %1419 = vmatprep.subr.mxu0 0.0
      %1420 = vmatpush1.msra.mxu0 0.0
      %1421 = vmatprep.subr.mxu0 0.0
      %1422 = vmatpush1.msra.mxu0 0.0
      %1423 = vmatprep.subr.mxu0 0.0
      %1424 = vmatpush1.msra.mxu0 %v1408
      %1425 = vmatprep.subr.mxu0 0.0
      %1426 = vmatpush1.msra.mxu0 %v1407
      %1427 = vmatprep.subr.mxu0 0.0
      %1428 = vmatpush1.msra.mxu0 %v1406
      %1429 = vmatprep.subr.mxu0 0.0
      %1430 = vmatpush1.msra.mxu0 %v1405
      %1431 = vmatprep.subr.mxu0 0.0
      %1432 = vmatpush1.msra.mxu0 %v1404
      %1433 = vmatprep.subr.mxu0 0.0
      %1434 = vmatpush1.msra.mxu0 %v1403
      %1435 = vmatprep.subr.mxu0 0.0
      %1436 = vmatpush1.msra.mxu0 %v1402
      %1437 = vmatprep.subr.mxu0 0.0
      %1438 = vmatpush1.msra.mxu0 %v1401
      %1439 = vmatprep.subr.mxu0 0.0
      %1440 = vmatpush1.msra.mxu0 %v1400
      %1441 = vmatprep.subr.mxu0 0.0
      %1442 = vmatpush1.msra.mxu0 %v1399
      %1443 = vmatprep.subr.mxu0 0.0
      %1444 = vmatpush1.msra.mxu0 %v1398
      %1445 = vmatprep.subr.mxu0 0.0
      %1446 = vmatpush1.msra.mxu0 %v1397
      %1447 = vmatprep.subr.mxu0 0.0
      %1448 = vmatpush2.msra.mxu0 0.0
      %1449 = vmatprep.subr.mxu0 0.0
      %1450 = vmatpush2.msra.mxu0 0.0
      %1451 = vmatprep.subr.mxu0 0.0
      %1452 = vmatpush2.msra.mxu0 0.0
      %1453 = vmatprep.subr.mxu0 0.0
      %1454 = vmatpush2.msra.mxu0 0.0
      %1455 = vmatprep.subr.mxu0 0.0
      %1456 = vmatpush2.msra.mxu0 0.0
      %1457 = vmatprep.subr.mxu0 0.0
      %1458 = vmatpush2.msra.mxu0 0.0
      %1459 = vmatprep.subr.mxu0 0.0
      %1460 = vmatpush2.msra.mxu0 0.0
      %1461 = vmatprep.subr.mxu0 0.0
      %1462 = vmatpush2.msra.mxu0 0.0
      %1463 = vmatprep.subr.mxu0 0.0
      %1464 = vmatpush2.msra.mxu0 0.0
      %1465 = vmatprep.subr.mxu0 0.0
      %1466 = vmatpush2.msra.mxu0 0.0
      %1467 = vmatprep.subr.mxu0 0.0
      %1468 = vmatpush2.msra.mxu0 0.0
      %1469 = vmatprep.subr.mxu0 0.0
      %1470 = vmatpush2.msra.mxu0 0.0
      %1471 = vmatprep.subr.mxu0 0.0
      %1472 = vmatpush2.msra.mxu0 0.0
      %1473 = vmatprep.subr.mxu0 0.0
      %1474 = vmatpush2.msra.mxu0 0.0
      %1475 = vmatprep.subr.mxu0 0.0
      %1476 = vmatpush2.msra.mxu0 0.0
      %1477 = vmatprep.subr.mxu0 0.0
      %1478 = vmatpush2.msra.mxu0 0.0
      %1479 = vmatprep.mubr.f32.mxu0 0.0
      %1480 = vmatmul.mubr.f32.gmra.mxu0 %v1410
      %v1481 = vpop.f32.mrf.mxu0
      %v1482 = vadd.f32 0.0, %v1481
      %v1483 = vpop.f32.mrf.mxu0
      %1484 = vmatprep.mubr.f32.mxu0 0.0
      %1485 = vmatmul.mubr.f32.gmra.mxu0 %v1413
      %v1486 = vpop.f32.mrf.mxu0
      %v1487 = vadd.f32 0.0, %v1486
      %v1488 = vpop.f32.mrf.mxu0
      %1489 = vdwg.mxu0
      %v1490 = vadd.f32 %v1392, %v1482
      %v1491 = vadd.f32 %v1393, %v1487
      %v1492 = vld [vmem:[#allocation2 + $0x60] sm:$0xff]
      %v1493 = vld [vmem:[#allocation2 + $0x68] sm:$0xff]
      %s1494 = scalar_lea.vmem %s2, 1152
      %v1495 = vld [vmem:[%s1494] sm:$0xff]
      %v1496 = vld [vmem:[%s1494 + $0x8] sm:$0xff]
      %v1497 = vld [vmem:[%s1494 + $0x10] sm:$0xff]
      %v1498 = vld [vmem:[%s1494 + $0x18] sm:$0xff]
      %v1499 = vld [vmem:[%s1494 + $0x20] sm:$0xff]
      %v1500 = vld [vmem:[%s1494 + $0x28] sm:$0xff]
      %v1501 = vld [vmem:[%s1494 + $0x30] sm:$0xff]
      %v1502 = vld [vmem:[%s1494 + $0x38] sm:$0xff]
      %v1503 = vld [vmem:[%s1494 + $0x40] sm:$0xff]
      %v1504 = vld [vmem:[%s1494 + $0x48] sm:$0xff]
      %v1505 = vld [vmem:[%s1494 + $0x50] sm:$0xff]
      %v1506 = vld [vmem:[%s1494 + $0x58] sm:$0xff]
      %v1508 = vsel %vm306, %v1492, 0
      %v1511 = vsel %vm306, %v1493, 0
      %1513 = vmatprep.subr.mxu0 0.0
      %1514 = vmatpush1.msra.mxu0 0.0
      %1515 = vmatprep.subr.mxu0 0.0
      %1516 = vmatpush1.msra.mxu0 0.0
      %1517 = vmatprep.subr.mxu0 0.0
      %1518 = vmatpush1.msra.mxu0 0.0
      %1519 = vmatprep.subr.mxu0 0.0
      %1520 = vmatpush1.msra.mxu0 0.0
      %1521 = vmatprep.subr.mxu0 0.0
      %1522 = vmatpush1.msra.mxu0 %v1506
      %1523 = vmatprep.subr.mxu0 0.0
      %1524 = vmatpush1.msra.mxu0 %v1505
      %1525 = vmatprep.subr.mxu0 0.0
      %1526 = vmatpush1.msra.mxu0 %v1504
      %1527 = vmatprep.subr.mxu0 0.0
      %1528 = vmatpush1.msra.mxu0 %v1503
      %1529 = vmatprep.subr.mxu0 0.0
      %1530 = vmatpush1.msra.mxu0 %v1502
      %1531 = vmatprep.subr.mxu0 0.0
      %1532 = vmatpush1.msra.mxu0 %v1501
      %1533 = vmatprep.subr.mxu0 0.0
      %1534 = vmatpush1.msra.mxu0 %v1500
      %1535 = vmatprep.subr.mxu0 0.0
      %1536 = vmatpush1.msra.mxu0 %v1499
      %1537 = vmatprep.subr.mxu0 0.0
      %1538 = vmatpush1.msra.mxu0 %v1498
      %1539 = vmatprep.subr.mxu0 0.0
      %1540 = vmatpush1.msra.mxu0 %v1497
      %1541 = vmatprep.subr.mxu0 0.0
      %1542 = vmatpush1.msra.mxu0 %v1496
      %1543 = vmatprep.subr.mxu0 0.0
      %1544 = vmatpush1.msra.mxu0 %v1495
      %1545 = vmatprep.subr.mxu0 0.0
      %1546 = vmatpush2.msra.mxu0 0.0
      %1547 = vmatprep.subr.mxu0 0.0
      %1548 = vmatpush2.msra.mxu0 0.0
      %1549 = vmatprep.subr.mxu0 0.0
      %1550 = vmatpush2.msra.mxu0 0.0
      %1551 = vmatprep.subr.mxu0 0.0
      %1552 = vmatpush2.msra.mxu0 0.0
      %1553 = vmatprep.subr.mxu0 0.0
      %1554 = vmatpush2.msra.mxu0 0.0
      %1555 = vmatprep.subr.mxu0 0.0
      %1556 = vmatpush2.msra.mxu0 0.0
      %1557 = vmatprep.subr.mxu0 0.0
      %1558 = vmatpush2.msra.mxu0 0.0
      %1559 = vmatprep.subr.mxu0 0.0
      %1560 = vmatpush2.msra.mxu0 0.0
      %1561 = vmatprep.subr.mxu0 0.0
      %1562 = vmatpush2.msra.mxu0 0.0
      %1563 = vmatprep.subr.mxu0 0.0
      %1564 = vmatpush2.msra.mxu0 0.0
      %1565 = vmatprep.subr.mxu0 0.0
      %1566 = vmatpush2.msra.mxu0 0.0
      %1567 = vmatprep.subr.mxu0 0.0
      %1568 = vmatpush2.msra.mxu0 0.0
      %1569 = vmatprep.subr.mxu0 0.0
      %1570 = vmatpush2.msra.mxu0 0.0
      %1571 = vmatprep.subr.mxu0 0.0
      %1572 = vmatpush2.msra.mxu0 0.0
      %1573 = vmatprep.subr.mxu0 0.0
      %1574 = vmatpush2.msra.mxu0 0.0
      %1575 = vmatprep.subr.mxu0 0.0
      %1576 = vmatpush2.msra.mxu0 0.0
      %1577 = vmatprep.mubr.f32.mxu0 0.0
      %1578 = vmatmul.mubr.f32.gmra.mxu0 %v1508
      %v1579 = vpop.f32.mrf.mxu0
      %v1580 = vadd.f32 0.0, %v1579
      %v1581 = vpop.f32.mrf.mxu0
      %1582 = vmatprep.mubr.f32.mxu0 0.0
      %1583 = vmatmul.mubr.f32.gmra.mxu0 %v1511
      %v1584 = vpop.f32.mrf.mxu0
      %v1585 = vadd.f32 0.0, %v1584
      %v1586 = vpop.f32.mrf.mxu0
      %1587 = vdwg.mxu0
      %v1588 = vadd.f32 %v1490, %v1580
      %v1589 = vadd.f32 %v1491, %v1585
      %v1590 = vld [vmem:[#allocation2 + $0x68] sm:$0xff]
      %v1591 = vld [vmem:[#allocation2 + $0x70] sm:$0xff]
      %s1592 = scalar_lea.vmem %s2, 1248
      %v1593 = vld [vmem:[%s1592] sm:$0xff]
      %v1594 = vld [vmem:[%s1592 + $0x8] sm:$0xff]
      %v1595 = vld [vmem:[%s1592 + $0x10] sm:$0xff]
      %v1596 = vld [vmem:[%s1592 + $0x18] sm:$0xff]
      %v1597 = vld [vmem:[%s1592 + $0x20] sm:$0xff]
      %v1598 = vld [vmem:[%s1592 + $0x28] sm:$0xff]
      %v1599 = vld [vmem:[%s1592 + $0x30] sm:$0xff]
      %v1600 = vld [vmem:[%s1592 + $0x38] sm:$0xff]
      %v1601 = vld [vmem:[%s1592 + $0x40] sm:$0xff]
      %v1602 = vld [vmem:[%s1592 + $0x48] sm:$0xff]
      %v1603 = vld [vmem:[%s1592 + $0x50] sm:$0xff]
      %v1604 = vld [vmem:[%s1592 + $0x58] sm:$0xff]
      %v1606 = vsel %vm306, %v1590, 0
      %v1609 = vsel %vm306, %v1591, 0
      %1611 = vmatprep.subr.mxu0 0.0
      %1612 = vmatpush1.msra.mxu0 0.0
      %1613 = vmatprep.subr.mxu0 0.0
      %1614 = vmatpush1.msra.mxu0 0.0
      %1615 = vmatprep.subr.mxu0 0.0
      %1616 = vmatpush1.msra.mxu0 0.0
      %1617 = vmatprep.subr.mxu0 0.0
      %1618 = vmatpush1.msra.mxu0 0.0
      %1619 = vmatprep.subr.mxu0 0.0
      %1620 = vmatpush1.msra.mxu0 %v1604
      %1621 = vmatprep.subr.mxu0 0.0
      %1622 = vmatpush1.msra.mxu0 %v1603
      %1623 = vmatprep.subr.mxu0 0.0
      %1624 = vmatpush1.msra.mxu0 %v1602
      %1625 = vmatprep.subr.mxu0 0.0
      %1626 = vmatpush1.msra.mxu0 %v1601
      %1627 = vmatprep.subr.mxu0 0.0
      %1628 = vmatpush1.msra.mxu0 %v1600
      %1629 = vmatprep.subr.mxu0 0.0
      %1630 = vmatpush1.msra.mxu0 %v1599
      %1631 = vmatprep.subr.mxu0 0.0
      %1632 = vmatpush1.msra.mxu0 %v1598
      %1633 = vmatprep.subr.mxu0 0.0
      %1634 = vmatpush1.msra.mxu0 %v1597
      %1635 = vmatprep.subr.mxu0 0.0
      %1636 = vmatpush1.msra.mxu0 %v1596
      %1637 = vmatprep.subr.mxu0 0.0
      %1638 = vmatpush1.msra.mxu0 %v1595
      %1639 = vmatprep.subr.mxu0 0.0
      %1640 = vmatpush1.msra.mxu0 %v1594
      %1641 = vmatprep.subr.mxu0 0.0
      %1642 = vmatpush1.msra.mxu0 %v1593
      %1643 = vmatprep.subr.mxu0 0.0
      %1644 = vmatpush2.msra.mxu0 0.0
      %1645 = vmatprep.subr.mxu0 0.0
      %1646 = vmatpush2.msra.mxu0 0.0
      %1647 = vmatprep.subr.mxu0 0.0
      %1648 = vmatpush2.msra.mxu0 0.0
      %1649 = vmatprep.subr.mxu0 0.0
      %1650 = vmatpush2.msra.mxu0 0.0
      %1651 = vmatprep.subr.mxu0 0.0
      %1652 = vmatpush2.msra.mxu0 0.0
      %1653 = vmatprep.subr.mxu0 0.0
      %1654 = vmatpush2.msra.mxu0 0.0
      %1655 = vmatprep.subr.mxu0 0.0
      %1656 = vmatpush2.msra.mxu0 0.0
      %1657 = vmatprep.subr.mxu0 0.0
      %1658 = vmatpush2.msra.mxu0 0.0
      %1659 = vmatprep.subr.mxu0 0.0
      %1660 = vmatpush2.msra.mxu0 0.0
      %1661 = vmatprep.subr.mxu0 0.0
      %1662 = vmatpush2.msra.mxu0 0.0
      %1663 = vmatprep.subr.mxu0 0.0
      %1664 = vmatpush2.msra.mxu0 0.0
      %1665 = vmatprep.subr.mxu0 0.0
      %1666 = vmatpush2.msra.mxu0 0.0
      %1667 = vmatprep.subr.mxu0 0.0
      %1668 = vmatpush2.msra.mxu0 0.0
      %1669 = vmatprep.subr.mxu0 0.0
      %1670 = vmatpush2.msra.mxu0 0.0
      %1671 = vmatprep.subr.mxu0 0.0
      %1672 = vmatpush2.msra.mxu0 0.0
      %1673 = vmatprep.subr.mxu0 0.0
      %1674 = vmatpush2.msra.mxu0 0.0
      %1675 = vmatprep.mubr.f32.mxu0 0.0
      %1676 = vmatmul.mubr.f32.gmra.mxu0 %v1606
      %v1677 = vpop.f32.mrf.mxu0
      %v1678 = vadd.f32 0.0, %v1677
      %v1679 = vpop.f32.mrf.mxu0
      %1680 = vmatprep.mubr.f32.mxu0 0.0
      %1681 = vmatmul.mubr.f32.gmra.mxu0 %v1609
      %v1682 = vpop.f32.mrf.mxu0
      %v1683 = vadd.f32 0.0, %v1682
      %v1684 = vpop.f32.mrf.mxu0
      %1685 = vdwg.mxu0
      %v1686 = vadd.f32 %v1588, %v1678
      %v1687 = vadd.f32 %v1589, %v1683
      %v1688 = vld [vmem:[#allocation2 + $0x70] sm:$0xff]
      %v1689 = vld [vmem:[#allocation2 + $0x78] sm:$0xff]
      %s1690 = scalar_lea.vmem %s2, 1344
      %v1691 = vld [vmem:[%s1690] sm:$0xff]
      %v1692 = vld [vmem:[%s1690 + $0x8] sm:$0xff]
      %v1693 = vld [vmem:[%s1690 + $0x10] sm:$0xff]
      %v1694 = vld [vmem:[%s1690 + $0x18] sm:$0xff]
      %v1695 = vld [vmem:[%s1690 + $0x20] sm:$0xff]
      %v1696 = vld [vmem:[%s1690 + $0x28] sm:$0xff]
      %v1697 = vld [vmem:[%s1690 + $0x30] sm:$0xff]
      %v1698 = vld [vmem:[%s1690 + $0x38] sm:$0xff]
      %v1699 = vld [vmem:[%s1690 + $0x40] sm:$0xff]
      %v1700 = vld [vmem:[%s1690 + $0x48] sm:$0xff]
      %v1701 = vld [vmem:[%s1690 + $0x50] sm:$0xff]
      %v1702 = vld [vmem:[%s1690 + $0x58] sm:$0xff]
      %v1704 = vsel %vm306, %v1688, 0
      %v1707 = vsel %vm306, %v1689, 0
      %1709 = vmatprep.subr.mxu0 0.0
      %1710 = vmatpush1.msra.mxu0 0.0
      %1711 = vmatprep.subr.mxu0 0.0
      %1712 = vmatpush1.msra.mxu0 0.0
      %1713 = vmatprep.subr.mxu0 0.0
      %1714 = vmatpush1.msra.mxu0 0.0
      %1715 = vmatprep.subr.mxu0 0.0
      %1716 = vmatpush1.msra.mxu0 0.0
      %1717 = vmatprep.subr.mxu0 0.0
      %1718 = vmatpush1.msra.mxu0 %v1702
      %1719 = vmatprep.subr.mxu0 0.0
      %1720 = vmatpush1.msra.mxu0 %v1701
      %1721 = vmatprep.subr.mxu0 0.0
      %1722 = vmatpush1.msra.mxu0 %v1700
      %1723 = vmatprep.subr.mxu0 0.0
      %1724 = vmatpush1.msra.mxu0 %v1699
      %1725 = vmatprep.subr.mxu0 0.0
      %1726 = vmatpush1.msra.mxu0 %v1698
      %1727 = vmatprep.subr.mxu0 0.0
      %1728 = vmatpush1.msra.mxu0 %v1697
      %1729 = vmatprep.subr.mxu0 0.0
      %1730 = vmatpush1.msra.mxu0 %v1696
      %1731 = vmatprep.subr.mxu0 0.0
      %1732 = vmatpush1.msra.mxu0 %v1695
      %1733 = vmatprep.subr.mxu0 0.0
      %1734 = vmatpush1.msra.mxu0 %v1694
      %1735 = vmatprep.subr.mxu0 0.0
      %1736 = vmatpush1.msra.mxu0 %v1693
      %1737 = vmatprep.subr.mxu0 0.0
      %1738 = vmatpush1.msra.mxu0 %v1692
      %1739 = vmatprep.subr.mxu0 0.0
      %1740 = vmatpush1.msra.mxu0 %v1691
      %1741 = vmatprep.subr.mxu0 0.0
      %1742 = vmatpush2.msra.mxu0 0.0
      %1743 = vmatprep.subr.mxu0 0.0
      %1744 = vmatpush2.msra.mxu0 0.0
      %1745 = vmatprep.subr.mxu0 0.0
      %1746 = vmatpush2.msra.mxu0 0.0
      %1747 = vmatprep.subr.mxu0 0.0
      %1748 = vmatpush2.msra.mxu0 0.0
      %1749 = vmatprep.subr.mxu0 0.0
      %1750 = vmatpush2.msra.mxu0 0.0
      %1751 = vmatprep.subr.mxu0 0.0
      %1752 = vmatpush2.msra.mxu0 0.0
      %1753 = vmatprep.subr.mxu0 0.0
      %1754 = vmatpush2.msra.mxu0 0.0
      %1755 = vmatprep.subr.mxu0 0.0
      %1756 = vmatpush2.msra.mxu0 0.0
      %1757 = vmatprep.subr.mxu0 0.0
      %1758 = vmatpush2.msra.mxu0 0.0
      %1759 = vmatprep.subr.mxu0 0.0
      %1760 = vmatpush2.msra.mxu0 0.0
      %1761 = vmatprep.subr.mxu0 0.0
      %1762 = vmatpush2.msra.mxu0 0.0
      %1763 = vmatprep.subr.mxu0 0.0
      %1764 = vmatpush2.msra.mxu0 0.0
      %1765 = vmatprep.subr.mxu0 0.0
      %1766 = vmatpush2.msra.mxu0 0.0
      %1767 = vmatprep.subr.mxu0 0.0
      %1768 = vmatpush2.msra.mxu0 0.0
      %1769 = vmatprep.subr.mxu0 0.0
      %1770 = vmatpush2.msra.mxu0 0.0
      %1771 = vmatprep.subr.mxu0 0.0
      %1772 = vmatpush2.msra.mxu0 0.0
      %1773 = vmatprep.mubr.f32.mxu0 0.0
      %1774 = vmatmul.mubr.f32.gmra.mxu0 %v1704
      %v1775 = vpop.f32.mrf.mxu0
      %v1776 = vadd.f32 0.0, %v1775
      %v1777 = vpop.f32.mrf.mxu0
      %1778 = vmatprep.mubr.f32.mxu0 0.0
      %1779 = vmatmul.mubr.f32.gmra.mxu0 %v1707
      %v1780 = vpop.f32.mrf.mxu0
      %v1781 = vadd.f32 0.0, %v1780
      %v1782 = vpop.f32.mrf.mxu0
      %1783 = vdwg.mxu0
      %v1784 = vadd.f32 %v1686, %v1776
      %v1785 = vadd.f32 %v1687, %v1781
      %v1786 = vld [vmem:[#allocation2 + $0x78] sm:$0xff]
      %v1787 = vld [vmem:[#allocation2 + $0x80] sm:$0xff]
      %s1788 = scalar_lea.vmem %s2, 1440
      %v1789 = vld [vmem:[%s1788] sm:$0xff]
      %v1790 = vld [vmem:[%s1788 + $0x8] sm:$0xff]
      %v1791 = vld [vmem:[%s1788 + $0x10] sm:$0xff]
      %v1792 = vld [vmem:[%s1788 + $0x18] sm:$0xff]
      %v1793 = vld [vmem:[%s1788 + $0x20] sm:$0xff]
      %v1794 = vld [vmem:[%s1788 + $0x28] sm:$0xff]
      %v1795 = vld [vmem:[%s1788 + $0x30] sm:$0xff]
      %v1796 = vld [vmem:[%s1788 + $0x38] sm:$0xff]
      %v1797 = vld [vmem:[%s1788 + $0x40] sm:$0xff]
      %v1798 = vld [vmem:[%s1788 + $0x48] sm:$0xff]
      %v1799 = vld [vmem:[%s1788 + $0x50] sm:$0xff]
      %v1800 = vld [vmem:[%s1788 + $0x58] sm:$0xff]
      %v1802 = vsel %vm306, %v1786, 0
      %v1805 = vsel %vm306, %v1787, 0
      %1807 = vmatprep.subr.mxu0 0.0
      %1808 = vmatpush1.msra.mxu0 0.0
      %1809 = vmatprep.subr.mxu0 0.0
      %1810 = vmatpush1.msra.mxu0 0.0
      %1811 = vmatprep.subr.mxu0 0.0
      %1812 = vmatpush1.msra.mxu0 0.0
      %1813 = vmatprep.subr.mxu0 0.0
      %1814 = vmatpush1.msra.mxu0 0.0
      %1815 = vmatprep.subr.mxu0 0.0
      %1816 = vmatpush1.msra.mxu0 %v1800
      %1817 = vmatprep.subr.mxu0 0.0
      %1818 = vmatpush1.msra.mxu0 %v1799
      %1819 = vmatprep.subr.mxu0 0.0
      %1820 = vmatpush1.msra.mxu0 %v1798
      %1821 = vmatprep.subr.mxu0 0.0
      %1822 = vmatpush1.msra.mxu0 %v1797
      %1823 = vmatprep.subr.mxu0 0.0
      %1824 = vmatpush1.msra.mxu0 %v1796
      %1825 = vmatprep.subr.mxu0 0.0
      %1826 = vmatpush1.msra.mxu0 %v1795
      %1827 = vmatprep.subr.mxu0 0.0
      %1828 = vmatpush1.msra.mxu0 %v1794
      %1829 = vmatprep.subr.mxu0 0.0
      %1830 = vmatpush1.msra.mxu0 %v1793
      %1831 = vmatprep.subr.mxu0 0.0
      %1832 = vmatpush1.msra.mxu0 %v1792
      %1833 = vmatprep.subr.mxu0 0.0
      %1834 = vmatpush1.msra.mxu0 %v1791
      %1835 = vmatprep.subr.mxu0 0.0
      %1836 = vmatpush1.msra.mxu0 %v1790
      %1837 = vmatprep.subr.mxu0 0.0
      %1838 = vmatpush1.msra.mxu0 %v1789
      %1839 = vmatprep.subr.mxu0 0.0
      %1840 = vmatpush2.msra.mxu0 0.0
      %1841 = vmatprep.subr.mxu0 0.0
      %1842 = vmatpush2.msra.mxu0 0.0
      %1843 = vmatprep.subr.mxu0 0.0
      %1844 = vmatpush2.msra.mxu0 0.0
      %1845 = vmatprep.subr.mxu0 0.0
      %1846 = vmatpush2.msra.mxu0 0.0
      %1847 = vmatprep.subr.mxu0 0.0
      %1848 = vmatpush2.msra.mxu0 0.0
      %1849 = vmatprep.subr.mxu0 0.0
      %1850 = vmatpush2.msra.mxu0 0.0
      %1851 = vmatprep.subr.mxu0 0.0
      %1852 = vmatpush2.msra.mxu0 0.0
      %1853 = vmatprep.subr.mxu0 0.0
      %1854 = vmatpush2.msra.mxu0 0.0
      %1855 = vmatprep.subr.mxu0 0.0
      %1856 = vmatpush2.msra.mxu0 0.0
      %1857 = vmatprep.subr.mxu0 0.0
      %1858 = vmatpush2.msra.mxu0 0.0
      %1859 = vmatprep.subr.mxu0 0.0
      %1860 = vmatpush2.msra.mxu0 0.0
      %1861 = vmatprep.subr.mxu0 0.0
      %1862 = vmatpush2.msra.mxu0 0.0
      %1863 = vmatprep.subr.mxu0 0.0
      %1864 = vmatpush2.msra.mxu0 0.0
      %1865 = vmatprep.subr.mxu0 0.0
      %1866 = vmatpush2.msra.mxu0 0.0
      %1867 = vmatprep.subr.mxu0 0.0
      %1868 = vmatpush2.msra.mxu0 0.0
      %1869 = vmatprep.subr.mxu0 0.0
      %1870 = vmatpush2.msra.mxu0 0.0
      %1871 = vmatprep.mubr.f32.mxu0 0.0
      %1872 = vmatmul.mubr.f32.gmra.mxu0 %v1802
      %v1873 = vpop.f32.mrf.mxu0
      %v1874 = vadd.f32 0.0, %v1873
      %v1875 = vpop.f32.mrf.mxu0
      %1876 = vmatprep.mubr.f32.mxu0 0.0
      %1877 = vmatmul.mubr.f32.gmra.mxu0 %v1805
      %v1878 = vpop.f32.mrf.mxu0
      %v1879 = vadd.f32 0.0, %v1878
      %v1880 = vpop.f32.mrf.mxu0
      %1881 = vdwg.mxu0
      %v1882 = vadd.f32 %v1784, %v1874
      %v1883 = vadd.f32 %v1785, %v1879
      %v1884 = vld [vmem:[#allocation2 + $0x80] sm:$0xff]
      %v1885 = vld [vmem:[#allocation2 + $0x88] sm:$0xff]
      %s1886 = scalar_lea.vmem %s2, 1536
      %v1887 = vld [vmem:[%s1886] sm:$0xff]
      %v1888 = vld [vmem:[%s1886 + $0x8] sm:$0xff]
      %v1889 = vld [vmem:[%s1886 + $0x10] sm:$0xff]
      %v1890 = vld [vmem:[%s1886 + $0x18] sm:$0xff]
      %v1891 = vld [vmem:[%s1886 + $0x20] sm:$0xff]
      %v1892 = vld [vmem:[%s1886 + $0x28] sm:$0xff]
      %v1893 = vld [vmem:[%s1886 + $0x30] sm:$0xff]
      %v1894 = vld [vmem:[%s1886 + $0x38] sm:$0xff]
      %v1895 = vld [vmem:[%s1886 + $0x40] sm:$0xff]
      %v1896 = vld [vmem:[%s1886 + $0x48] sm:$0xff]
      %v1897 = vld [vmem:[%s1886 + $0x50] sm:$0xff]
      %v1898 = vld [vmem:[%s1886 + $0x58] sm:$0xff]
      %v1900 = vsel %vm306, %v1884, 0
      %v1903 = vsel %vm306, %v1885, 0
      %1905 = vmatprep.subr.mxu0 0.0
      %1906 = vmatpush1.msra.mxu0 0.0
      %1907 = vmatprep.subr.mxu0 0.0
      %1908 = vmatpush1.msra.mxu0 0.0
      %1909 = vmatprep.subr.mxu0 0.0
      %1910 = vmatpush1.msra.mxu0 0.0
      %1911 = vmatprep.subr.mxu0 0.0
      %1912 = vmatpush1.msra.mxu0 0.0
      %1913 = vmatprep.subr.mxu0 0.0
      %1914 = vmatpush1.msra.mxu0 %v1898
      %1915 = vmatprep.subr.mxu0 0.0
      %1916 = vmatpush1.msra.mxu0 %v1897
      %1917 = vmatprep.subr.mxu0 0.0
      %1918 = vmatpush1.msra.mxu0 %v1896
      %1919 = vmatprep.subr.mxu0 0.0
      %1920 = vmatpush1.msra.mxu0 %v1895
      %1921 = vmatprep.subr.mxu0 0.0
      %1922 = vmatpush1.msra.mxu0 %v1894
      %1923 = vmatprep.subr.mxu0 0.0
      %1924 = vmatpush1.msra.mxu0 %v1893
      %1925 = vmatprep.subr.mxu0 0.0
      %1926 = vmatpush1.msra.mxu0 %v1892
      %1927 = vmatprep.subr.mxu0 0.0
      %1928 = vmatpush1.msra.mxu0 %v1891
      %1929 = vmatprep.subr.mxu0 0.0
      %1930 = vmatpush1.msra.mxu0 %v1890
      %1931 = vmatprep.subr.mxu0 0.0
      %1932 = vmatpush1.msra.mxu0 %v1889
      %1933 = vmatprep.subr.mxu0 0.0
      %1934 = vmatpush1.msra.mxu0 %v1888
      %1935 = vmatprep.subr.mxu0 0.0
      %1936 = vmatpush1.msra.mxu0 %v1887
      %1937 = vmatprep.subr.mxu0 0.0
      %1938 = vmatpush2.msra.mxu0 0.0
      %1939 = vmatprep.subr.mxu0 0.0
      %1940 = vmatpush2.msra.mxu0 0.0
      %1941 = vmatprep.subr.mxu0 0.0
      %1942 = vmatpush2.msra.mxu0 0.0
      %1943 = vmatprep.subr.mxu0 0.0
      %1944 = vmatpush2.msra.mxu0 0.0
      %1945 = vmatprep.subr.mxu0 0.0
      %1946 = vmatpush2.msra.mxu0 0.0
      %1947 = vmatprep.subr.mxu0 0.0
      %1948 = vmatpush2.msra.mxu0 0.0
      %1949 = vmatprep.subr.mxu0 0.0
      %1950 = vmatpush2.msra.mxu0 0.0
      %1951 = vmatprep.subr.mxu0 0.0
      %1952 = vmatpush2.msra.mxu0 0.0
      %1953 = vmatprep.subr.mxu0 0.0
      %1954 = vmatpush2.msra.mxu0 0.0
      %1955 = vmatprep.subr.mxu0 0.0
      %1956 = vmatpush2.msra.mxu0 0.0
      %1957 = vmatprep.subr.mxu0 0.0
      %1958 = vmatpush2.msra.mxu0 0.0
      %1959 = vmatprep.subr.mxu0 0.0
      %1960 = vmatpush2.msra.mxu0 0.0
      %1961 = vmatprep.subr.mxu0 0.0
      %1962 = vmatpush2.msra.mxu0 0.0
      %1963 = vmatprep.subr.mxu0 0.0
      %1964 = vmatpush2.msra.mxu0 0.0
      %1965 = vmatprep.subr.mxu0 0.0
      %1966 = vmatpush2.msra.mxu0 0.0
      %1967 = vmatprep.subr.mxu0 0.0
      %1968 = vmatpush2.msra.mxu0 0.0
      %1969 = vmatprep.mubr.f32.mxu0 0.0
      %1970 = vmatmul.mubr.f32.gmra.mxu0 %v1900
      %v1971 = vpop.f32.mrf.mxu0
      %v1972 = vadd.f32 0.0, %v1971
      %v1973 = vpop.f32.mrf.mxu0
      %1974 = vmatprep.mubr.f32.mxu0 0.0
      %1975 = vmatmul.mubr.f32.gmra.mxu0 %v1903
      %v1976 = vpop.f32.mrf.mxu0
      %v1977 = vadd.f32 0.0, %v1976
      %v1978 = vpop.f32.mrf.mxu0
      %1979 = vdwg.mxu0
      %v1980 = vadd.f32 %v1882, %v1972
      %v1981 = vadd.f32 %v1883, %v1977
      %s1982 = scalar_lea.vmem %s257, %s268
      %v1983 = vld [vmem:[%s1982] sm:$0xff]
      %v1984 = vld [vmem:[%s1982 + $0x8] sm:$0xff]
      %v1985 = vld [vmem:[%s1982 + $0x10] sm:$0xff]
      %v1986 = vld [vmem:[%s1982 + $0x18] sm:$0xff]
      %v1987 = vld [vmem:[%s1982 + $0x20] sm:$0xff]
      %v1988 = vld [vmem:[%s1982 + $0x28] sm:$0xff]
      %v1989 = vld [vmem:[%s1982 + $0x30] sm:$0xff]
      %v1990 = vld [vmem:[%s1982 + $0x38] sm:$0xff]
      %v1991 = vld [vmem:[%s1982 + $0x40] sm:$0xff]
      %v1992 = vld [vmem:[%s1982 + $0x48] sm:$0xff]
      %v1993 = vld [vmem:[%s1982 + $0x50] sm:$0xff]
      %v1994 = vld [vmem:[%s1982 + $0x58] sm:$0xff]
      %v1995 = vld [vmem:[%s1982 + $0x60] sm:$0xff]
      %v1996 = vld [vmem:[%s1982 + $0x68] sm:$0xff]
      %v1997 = vld [vmem:[%s1982 + $0x70] sm:$0xff]
      %v1998 = vld [vmem:[%s1982 + $0x78] sm:$0xff]
      %v1999 = vld [vmem:[%s1982 + $0x80] sm:$0xff]
      %v2000 = vld [vmem:[%s1982 + $0x88] sm:$0xff]
      %v2001 = vtanh.pop %v1983
      %v2002 = vtanh.pop %v1984
      %v2003 = vtanh.pop %v1985
      %v2004 = vtanh.pop %v1986
      %v2005 = vtanh.pop %v1987
      %v2006 = vtanh.pop %v1988
      %v2007 = vtanh.pop %v1989
      %v2008 = vtanh.pop %v1990
      %v2009 = vtanh.pop %v1991
      %v2010 = vtanh.pop %v1992
      %v2011 = vtanh.pop %v1993
      %v2012 = vtanh.pop %v1994
      %v2013 = vtanh.pop %v1995
      %v2014 = vtanh.pop %v1996
      %v2015 = vtanh.pop %v1997
      %v2016 = vtanh.pop %v1998
      %v2017 = vtanh.pop %v1999
      %v2018 = vtanh.pop %v2000
      %2019 = vst [vmem:[#allocation3] sm:$0xff] %v2001
      %2020 = vst [vmem:[#allocation3 + $0x8] sm:$0xff] %v2002
      %2021 = vst [vmem:[#allocation3 + $0x10] sm:$0xff] %v2003
      %2022 = vst [vmem:[#allocation3 + $0x18] sm:$0xff] %v2004
      %2023 = vst [vmem:[#allocation3 + $0x20] sm:$0xff] %v2005
      %2024 = vst [vmem:[#allocation3 + $0x28] sm:$0xff] %v2006
      %2025 = vst [vmem:[#allocation3 + $0x30] sm:$0xff] %v2007
      %2026 = vst [vmem:[#allocation3 + $0x38] sm:$0xff] %v2008
      %2027 = vst [vmem:[#allocation3 + $0x40] sm:$0xff] %v2009
      %2028 = vst [vmem:[#allocation3 + $0x48] sm:$0xff] %v2010
      %2029 = vst [vmem:[#allocation3 + $0x50] sm:$0xff] %v2011
      %2030 = vst [vmem:[#allocation3 + $0x58] sm:$0xff] %v2012
      %2031 = vst [vmem:[#allocation3 + $0x60] sm:$0xff] %v2013
      %2032 = vst [vmem:[#allocation3 + $0x68] sm:$0xff] %v2014
      %2033 = vst [vmem:[#allocation3 + $0x70] sm:$0xff] %v2015
      %2034 = vst [vmem:[#allocation3 + $0x78] sm:$0xff] %v2016
      %2035 = vst [vmem:[#allocation3 + $0x80] sm:$0xff] %v2017
      %2036 = vst [vmem:[#allocation3 + $0x88] sm:$0xff] %v2018
      loop: start=0, step=1, limit=43
      $region41: #{skip_model_forward.4} parent=39 // loop_pre_header
        _
      $region42: #{skip_model_forward.4} parent=39 // loop_header
        %s2038 = sphi 0, %s2042
        %p2039 = scmp.ge.s32.totalorder %s2038, 43
        %v2043 = vphi %v1980, %v2340
        %v2044 = vphi %v1981, %v2341
      $region43: #{skip_model_forward.4} parent=39 // loop_header_branch
        %2041 = sbr.rel (%p2039) target = $region47
      $region44: #{skip_model_forward.4} parent=39 // loop_body
        %s2045 = smul.u32 %s2038, 3
        %s2046 = scalar_lea.vmem [#allocation3], %s2045
        %v2047 = vld [vmem:[%s2046] sm:$0xff]
        %v2048 = vld [vmem:[%s2046 + $0x8] sm:$0xff]
        %s2049 = smul.u32 %s2045, 128
        %s2050 = scalar_lea.vmem %s3, %s2049
        %v2051 = vld [vmem:[%s2050] sm:$0xff]
        %v2052 = vld [vmem:[%s2050 + $0x8] sm:$0xff]
        %v2053 = vld [vmem:[%s2050 + $0x10] sm:$0xff]
        %v2054 = vld [vmem:[%s2050 + $0x18] sm:$0xff]
        %v2055 = vld [vmem:[%s2050 + $0x20] sm:$0xff]
        %v2056 = vld [vmem:[%s2050 + $0x28] sm:$0xff]
        %v2057 = vld [vmem:[%s2050 + $0x30] sm:$0xff]
        %v2058 = vld [vmem:[%s2050 + $0x38] sm:$0xff]
        %v2059 = vld [vmem:[%s2050 + $0x40] sm:$0xff]
        %v2060 = vld [vmem:[%s2050 + $0x48] sm:$0xff]
        %v2061 = vld [vmem:[%s2050 + $0x50] sm:$0xff]
        %v2062 = vld [vmem:[%s2050 + $0x58] sm:$0xff]
        %v2063 = vld [vmem:[%s2050 + $0x60] sm:$0xff]
        %v2064 = vld [vmem:[%s2050 + $0x68] sm:$0xff]
        %v2065 = vld [vmem:[%s2050 + $0x70] sm:$0xff]
        %v2066 = vld [vmem:[%s2050 + $0x78] sm:$0xff]
        %2067 = vmatprep.subr.mxu0 0.0
        %2068 = vmatpush1.msra.mxu0 %v2066
        %2069 = vmatprep.subr.mxu0 0.0
        %2070 = vmatpush1.msra.mxu0 %v2065
        %2071 = vmatprep.subr.mxu0 0.0
        %2072 = vmatpush1.msra.mxu0 %v2064
        %2073 = vmatprep.subr.mxu0 0.0
        %2074 = vmatpush1.msra.mxu0 %v2063
        %2075 = vmatprep.subr.mxu0 0.0
        %2076 = vmatpush1.msra.mxu0 %v2062
        %2077 = vmatprep.subr.mxu0 0.0
        %2078 = vmatpush1.msra.mxu0 %v2061
        %2079 = vmatprep.subr.mxu0 0.0
        %2080 = vmatpush1.msra.mxu0 %v2060
        %2081 = vmatprep.subr.mxu0 0.0
        %2082 = vmatpush1.msra.mxu0 %v2059
        %2083 = vmatprep.subr.mxu0 0.0
        %2084 = vmatpush1.msra.mxu0 %v2058
        %2085 = vmatprep.subr.mxu0 0.0
        %2086 = vmatpush1.msra.mxu0 %v2057
        %2087 = vmatprep.subr.mxu0 0.0
        %2088 = vmatpush1.msra.mxu0 %v2056
        %2089 = vmatprep.subr.mxu0 0.0
        %2090 = vmatpush1.msra.mxu0 %v2055
        %2091 = vmatprep.subr.mxu0 0.0
        %2092 = vmatpush1.msra.mxu0 %v2054
        %2093 = vmatprep.subr.mxu0 0.0
        %2094 = vmatpush1.msra.mxu0 %v2053
        %2095 = vmatprep.subr.mxu0 0.0
        %2096 = vmatpush1.msra.mxu0 %v2052
        %2097 = vmatprep.subr.mxu0 0.0
        %2098 = vmatpush1.msra.mxu0 %v2051
        %2099 = vmatprep.subr.mxu0 0.0
        %2100 = vmatpush2.msra.mxu0 0.0
        %2101 = vmatprep.subr.mxu0 0.0
        %2102 = vmatpush2.msra.mxu0 0.0
        %2103 = vmatprep.subr.mxu0 0.0
        %2104 = vmatpush2.msra.mxu0 0.0
        %2105 = vmatprep.subr.mxu0 0.0
        %2106 = vmatpush2.msra.mxu0 0.0
        %2107 = vmatprep.subr.mxu0 0.0
        %2108 = vmatpush2.msra.mxu0 0.0
        %2109 = vmatprep.subr.mxu0 0.0
        %2110 = vmatpush2.msra.mxu0 0.0
        %2111 = vmatprep.subr.mxu0 0.0
        %2112 = vmatpush2.msra.mxu0 0.0
        %2113 = vmatprep.subr.mxu0 0.0
        %2114 = vmatpush2.msra.mxu0 0.0
        %2115 = vmatprep.subr.mxu0 0.0
        %2116 = vmatpush2.msra.mxu0 0.0
        %2117 = vmatprep.subr.mxu0 0.0
        %2118 = vmatpush2.msra.mxu0 0.0
        %2119 = vmatprep.subr.mxu0 0.0
        %2120 = vmatpush2.msra.mxu0 0.0
        %2121 = vmatprep.subr.mxu0 0.0
        %2122 = vmatpush2.msra.mxu0 0.0
        %2123 = vmatprep.subr.mxu0 0.0
        %2124 = vmatpush2.msra.mxu0 0.0
        %2125 = vmatprep.subr.mxu0 0.0
        %2126 = vmatpush2.msra.mxu0 0.0
        %2127 = vmatprep.subr.mxu0 0.0
        %2128 = vmatpush2.msra.mxu0 0.0
        %2129 = vmatprep.subr.mxu0 0.0
        %2130 = vmatpush2.msra.mxu0 0.0
        %2131 = vmatprep.mubr.f32.mxu0 0.0
        %2132 = vmatmul.mubr.f32.gmra.mxu0 %v2047
        %v2133 = vpop.f32.mrf.mxu0
        %v2134 = vadd.f32 0.0, %v2133
        %v2135 = vpop.f32.mrf.mxu0
        %2136 = vmatprep.mubr.f32.mxu0 0.0
        %2137 = vmatmul.mubr.f32.gmra.mxu0 %v2048
        %v2138 = vpop.f32.mrf.mxu0
        %v2139 = vadd.f32 0.0, %v2138
        %v2140 = vpop.f32.mrf.mxu0
        %2141 = vdwg.mxu0
        %v2142 = vadd.f32 %v2043, %v2134
        %v2143 = vadd.f32 %v2044, %v2139
        %s2144 = sadd.s32 %s2045, 1
        %s2145 = scalar_lea.vmem [#allocation3], %s2144
        %v2146 = vld [vmem:[%s2145] sm:$0xff]
        %v2147 = vld [vmem:[%s2145 + $0x8] sm:$0xff]
        %s2148 = smul.u32 %s2144, 128
        %s2149 = scalar_lea.vmem %s3, %s2148
        %v2150 = vld [vmem:[%s2149] sm:$0xff]
        %v2151 = vld [vmem:[%s2149 + $0x8] sm:$0xff]
        %v2152 = vld [vmem:[%s2149 + $0x10] sm:$0xff]
        %v2153 = vld [vmem:[%s2149 + $0x18] sm:$0xff]
        %v2154 = vld [vmem:[%s2149 + $0x20] sm:$0xff]
        %v2155 = vld [vmem:[%s2149 + $0x28] sm:$0xff]
        %v2156 = vld [vmem:[%s2149 + $0x30] sm:$0xff]
        %v2157 = vld [vmem:[%s2149 + $0x38] sm:$0xff]
        %v2158 = vld [vmem:[%s2149 + $0x40] sm:$0xff]
        %v2159 = vld [vmem:[%s2149 + $0x48] sm:$0xff]
        %v2160 = vld [vmem:[%s2149 + $0x50] sm:$0xff]
        %v2161 = vld [vmem:[%s2149 + $0x58] sm:$0xff]
        %v2162 = vld [vmem:[%s2149 + $0x60] sm:$0xff]
        %v2163 = vld [vmem:[%s2149 + $0x68] sm:$0xff]
        %v2164 = vld [vmem:[%s2149 + $0x70] sm:$0xff]
        %v2165 = vld [vmem:[%s2149 + $0x78] sm:$0xff]
        %2166 = vmatprep.subr.mxu0 0.0
        %2167 = vmatpush1.msra.mxu0 %v2165
        %2168 = vmatprep.subr.mxu0 0.0
        %2169 = vmatpush1.msra.mxu0 %v2164
        %2170 = vmatprep.subr.mxu0 0.0
        %2171 = vmatpush1.msra.mxu0 %v2163
        %2172 = vmatprep.subr.mxu0 0.0
        %2173 = vmatpush1.msra.mxu0 %v2162
        %2174 = vmatprep.subr.mxu0 0.0
        %2175 = vmatpush1.msra.mxu0 %v2161
        %2176 = vmatprep.subr.mxu0 0.0
        %2177 = vmatpush1.msra.mxu0 %v2160
        %2178 = vmatprep.subr.mxu0 0.0
        %2179 = vmatpush1.msra.mxu0 %v2159
        %2180 = vmatprep.subr.mxu0 0.0
        %2181 = vmatpush1.msra.mxu0 %v2158
        %2182 = vmatprep.subr.mxu0 0.0
        %2183 = vmatpush1.msra.mxu0 %v2157
        %2184 = vmatprep.subr.mxu0 0.0
        %2185 = vmatpush1.msra.mxu0 %v2156
        %2186 = vmatprep.subr.mxu0 0.0
        %2187 = vmatpush1.msra.mxu0 %v2155
        %2188 = vmatprep.subr.mxu0 0.0
        %2189 = vmatpush1.msra.mxu0 %v2154
        %2190 = vmatprep.subr.mxu0 0.0
        %2191 = vmatpush1.msra.mxu0 %v2153
        %2192 = vmatprep.subr.mxu0 0.0
        %2193 = vmatpush1.msra.mxu0 %v2152
        %2194 = vmatprep.subr.mxu0 0.0
        %2195 = vmatpush1.msra.mxu0 %v2151
        %2196 = vmatprep.subr.mxu0 0.0
        %2197 = vmatpush1.msra.mxu0 %v2150
        %2198 = vmatprep.subr.mxu0 0.0
        %2199 = vmatpush2.msra.mxu0 0.0
        %2200 = vmatprep.subr.mxu0 0.0
        %2201 = vmatpush2.msra.mxu0 0.0
        %2202 = vmatprep.subr.mxu0 0.0
        %2203 = vmatpush2.msra.mxu0 0.0
        %2204 = vmatprep.subr.mxu0 0.0
        %2205 = vmatpush2.msra.mxu0 0.0
        %2206 = vmatprep.subr.mxu0 0.0
        %2207 = vmatpush2.msra.mxu0 0.0
        %2208 = vmatprep.subr.mxu0 0.0
        %2209 = vmatpush2.msra.mxu0 0.0
        %2210 = vmatprep.subr.mxu0 0.0
        %2211 = vmatpush2.msra.mxu0 0.0
        %2212 = vmatprep.subr.mxu0 0.0
        %2213 = vmatpush2.msra.mxu0 0.0
        %2214 = vmatprep.subr.mxu0 0.0
        %2215 = vmatpush2.msra.mxu0 0.0
        %2216 = vmatprep.subr.mxu0 0.0
        %2217 = vmatpush2.msra.mxu0 0.0
        %2218 = vmatprep.subr.mxu0 0.0
        %2219 = vmatpush2.msra.mxu0 0.0
        %2220 = vmatprep.subr.mxu0 0.0
        %2221 = vmatpush2.msra.mxu0 0.0
        %2222 = vmatprep.subr.mxu0 0.0
        %2223 = vmatpush2.msra.mxu0 0.0
        %2224 = vmatprep.subr.mxu0 0.0
        %2225 = vmatpush2.msra.mxu0 0.0
        %2226 = vmatprep.subr.mxu0 0.0
        %2227 = vmatpush2.msra.mxu0 0.0
        %2228 = vmatprep.subr.mxu0 0.0
        %2229 = vmatpush2.msra.mxu0 0.0
        %2230 = vmatprep.mubr.f32.mxu0 0.0
        %2231 = vmatmul.mubr.f32.gmra.mxu0 %v2146
        %v2232 = vpop.f32.mrf.mxu0
        %v2233 = vadd.f32 0.0, %v2232
        %v2234 = vpop.f32.mrf.mxu0
        %2235 = vmatprep.mubr.f32.mxu0 0.0
        %2236 = vmatmul.mubr.f32.gmra.mxu0 %v2147
        %v2237 = vpop.f32.mrf.mxu0
        %v2238 = vadd.f32 0.0, %v2237
        %v2239 = vpop.f32.mrf.mxu0
        %2240 = vdwg.mxu0
        %v2241 = vadd.f32 %v2142, %v2233
        %v2242 = vadd.f32 %v2143, %v2238
        %s2243 = sadd.s32 %s2045, 2
        %s2244 = scalar_lea.vmem [#allocation3], %s2243
        %v2245 = vld [vmem:[%s2244] sm:$0xff]
        %v2246 = vld [vmem:[%s2244 + $0x8] sm:$0xff]
        %s2247 = smul.u32 %s2243, 128
        %s2248 = scalar_lea.vmem %s3, %s2247
        %v2249 = vld [vmem:[%s2248] sm:$0xff]
        %v2250 = vld [vmem:[%s2248 + $0x8] sm:$0xff]
        %v2251 = vld [vmem:[%s2248 + $0x10] sm:$0xff]
        %v2252 = vld [vmem:[%s2248 + $0x18] sm:$0xff]
        %v2253 = vld [vmem:[%s2248 + $0x20] sm:$0xff]
        %v2254 = vld [vmem:[%s2248 + $0x28] sm:$0xff]
        %v2255 = vld [vmem:[%s2248 + $0x30] sm:$0xff]
        %v2256 = vld [vmem:[%s2248 + $0x38] sm:$0xff]
        %v2257 = vld [vmem:[%s2248 + $0x40] sm:$0xff]
        %v2258 = vld [vmem:[%s2248 + $0x48] sm:$0xff]
        %v2259 = vld [vmem:[%s2248 + $0x50] sm:$0xff]
        %v2260 = vld [vmem:[%s2248 + $0x58] sm:$0xff]
        %v2261 = vld [vmem:[%s2248 + $0x60] sm:$0xff]
        %v2262 = vld [vmem:[%s2248 + $0x68] sm:$0xff]
        %v2263 = vld [vmem:[%s2248 + $0x70] sm:$0xff]
        %v2264 = vld [vmem:[%s2248 + $0x78] sm:$0xff]
        %2265 = vmatprep.subr.mxu0 0.0
        %2266 = vmatpush1.msra.mxu0 %v2264
        %2267 = vmatprep.subr.mxu0 0.0
        %2268 = vmatpush1.msra.mxu0 %v2263
        %2269 = vmatprep.subr.mxu0 0.0
        %2270 = vmatpush1.msra.mxu0 %v2262
        %2271 = vmatprep.subr.mxu0 0.0
        %2272 = vmatpush1.msra.mxu0 %v2261
        %2273 = vmatprep.subr.mxu0 0.0
        %2274 = vmatpush1.msra.mxu0 %v2260
        %2275 = vmatprep.subr.mxu0 0.0
        %2276 = vmatpush1.msra.mxu0 %v2259
        %2277 = vmatprep.subr.mxu0 0.0
        %2278 = vmatpush1.msra.mxu0 %v2258
        %2279 = vmatprep.subr.mxu0 0.0
        %2280 = vmatpush1.msra.mxu0 %v2257
        %2281 = vmatprep.subr.mxu0 0.0
        %2282 = vmatpush1.msra.mxu0 %v2256
        %2283 = vmatprep.subr.mxu0 0.0
        %2284 = vmatpush1.msra.mxu0 %v2255
        %2285 = vmatprep.subr.mxu0 0.0
        %2286 = vmatpush1.msra.mxu0 %v2254
        %2287 = vmatprep.subr.mxu0 0.0
        %2288 = vmatpush1.msra.mxu0 %v2253
        %2289 = vmatprep.subr.mxu0 0.0
        %2290 = vmatpush1.msra.mxu0 %v2252
        %2291 = vmatprep.subr.mxu0 0.0
        %2292 = vmatpush1.msra.mxu0 %v2251
        %2293 = vmatprep.subr.mxu0 0.0
        %2294 = vmatpush1.msra.mxu0 %v2250
        %2295 = vmatprep.subr.mxu0 0.0
        %2296 = vmatpush1.msra.mxu0 %v2249
        %2297 = vmatprep.subr.mxu0 0.0
        %2298 = vmatpush2.msra.mxu0 0.0
        %2299 = vmatprep.subr.mxu0 0.0
        %2300 = vmatpush2.msra.mxu0 0.0
        %2301 = vmatprep.subr.mxu0 0.0
        %2302 = vmatpush2.msra.mxu0 0.0
        %2303 = vmatprep.subr.mxu0 0.0
        %2304 = vmatpush2.msra.mxu0 0.0
        %2305 = vmatprep.subr.mxu0 0.0
        %2306 = vmatpush2.msra.mxu0 0.0
        %2307 = vmatprep.subr.mxu0 0.0
        %2308 = vmatpush2.msra.mxu0 0.0
        %2309 = vmatprep.subr.mxu0 0.0
        %2310 = vmatpush2.msra.mxu0 0.0
        %2311 = vmatprep.subr.mxu0 0.0
        %2312 = vmatpush2.msra.mxu0 0.0
        %2313 = vmatprep.subr.mxu0 0.0
        %2314 = vmatpush2.msra.mxu0 0.0
        %2315 = vmatprep.subr.mxu0 0.0
        %2316 = vmatpush2.msra.mxu0 0.0
        %2317 = vmatprep.subr.mxu0 0.0
        %2318 = vmatpush2.msra.mxu0 0.0
        %2319 = vmatprep.subr.mxu0 0.0
        %2320 = vmatpush2.msra.mxu0 0.0
        %2321 = vmatprep.subr.mxu0 0.0
        %2322 = vmatpush2.msra.mxu0 0.0
        %2323 = vmatprep.subr.mxu0 0.0
        %2324 = vmatpush2.msra.mxu0 0.0
        %2325 = vmatprep.subr.mxu0 0.0
        %2326 = vmatpush2.msra.mxu0 0.0
        %2327 = vmatprep.subr.mxu0 0.0
        %2328 = vmatpush2.msra.mxu0 0.0
        %2329 = vmatprep.mubr.f32.mxu0 0.0
        %2330 = vmatmul.mubr.f32.gmra.mxu0 %v2245
        %v2331 = vpop.f32.mrf.mxu0
        %v2332 = vadd.f32 0.0, %v2331
        %v2333 = vpop.f32.mrf.mxu0
        %2334 = vmatprep.mubr.f32.mxu0 0.0
        %2335 = vmatmul.mubr.f32.gmra.mxu0 %v2246
        %v2336 = vpop.f32.mrf.mxu0
        %v2337 = vadd.f32 0.0, %v2336
        %v2338 = vpop.f32.mrf.mxu0
        %2339 = vdwg.mxu0
        %v2340 = vadd.f32 %v2241, %v2332
        %v2341 = vadd.f32 %v2242, %v2337
      $region45: #{skip_model_forward.4} parent=39 // loop_footer
        %s2042 = sadd.s32 1, %s2038
      $region46: #{skip_model_forward.4} parent=39 // loop_footer_branch
        %2037 = sbr.rel target = $region42
      $region47: #{skip_model_forward.4} parent=39 // loop_exit
        _
      %v2342 = vld [vmem:[%s4] sm:$0x1]
      %v2344 = vlaneseq
      %v2345 = vshrl.u32 %v2344, 7
      %v2346 = vsub.s32 0, %v2345
      %v2347 = vrot.slane %v2342, %v2346
      %v2349 = vadd.f32 %v2043, %v2347
      %v2350 = vadd.f32 %v2044, %v2347
      %2351 = vst [vmem:[%s266] sm:$0xff] %v2349
      %2352 = vst [vmem:[%s266 + $0x8] sm:$0xff] %v2350
      %s2353 = smul.u32 2, %s21
      %p2354 = scmp.lt.s32.totalorder %s20, 1
      %s2355 = scalar_select %p2354, %s20, 1
      %p2356 = scmp.lt.s32.totalorder %s2353, 1
      %s2357 = scalar_select %p2356, %s2353, 1
      %s2358 = smul.addr %s2355, 2
      %s2359 = sadd.s32 %s2357, %s2358
      %s2360 = smul.addr %s2359, 8
      %s2361 = scalar_lea.vmem %s5, %s2360
      // Predicated region
      $region48: #{skip_model_forward.4} parent=39 // pred_check
        %p2362 = pneg %p163
      $region49: #{skip_model_forward.4} parent=39 // pred_check_branch
        %2364 = sbr.rel (%p2362) target = $region51
      $region50: #{skip_model_forward.4} parent=39 // pred_region
        %s2365 = smul.u32 2, %s21
      $region51: #{skip_model_forward.4} parent=39 // pred_fallthru
        _
    $region40: #{skip_model_forward.4} parent=5 // pred_fallthru
      _
    %p2366 = scmp.le.s32.totalorder 2, %s11
    // Predicated region
    $region52: #{skip_model_forward.4} parent=5 // pred_check
      %p2367 = pneg %p2366
    $region53: #{skip_model_forward.4} parent=5 // pred_check_branch
      %2369 = sbr.rel (%p2367) target = $region55
    $region54: #{skip_model_forward.4} parent=5 // pred_region
      %s2370 = ssub.s32 %s11, 2
      // Predicated region
      $region56: #{skip_model_forward.4} parent=54 // pred_check
        %p2371 = pneg %p169
      $region57: #{skip_model_forward.4} parent=54 // pred_check_branch
        %2373 = sbr.rel (%p2371) target = $region59
      $region58: #{skip_model_forward.4} parent=54 // pred_region
        %s2374 = smul.u32 2, %s23
        %p2375 = scmp.lt.s32.totalorder %s22, 1
        %s2376 = scalar_select %p2375, %s22, 1
        %p2377 = scmp.lt.s32.totalorder %s2374, 1
        %s2378 = scalar_select %p2377, %s2374, 1
        %s2379 = smul.addr %s2376, 2
        %s2380 = sadd.s32 %s2378, %s2379
        %s2381 = smul.addr %s2380, 8
        %s2382 = scalar_lea.vmem %s5, %s2381
      $region59: #{skip_model_forward.4} parent=54 // pred_fallthru
        _
    $region55: #{skip_model_forward.4} parent=5 // pred_fallthru
      _
  $region6: #{skip_model_forward.4} parent=0 // loop_footer
    %s15 = sadd.s32 1, %s11
  $region7: #{skip_model_forward.4} parent=0 // loop_footer_branch
    %10 = sbr.rel target = $region3
  $region8: #{skip_model_forward.4} parent=0 // loop_exit
    _

// kernel: skip_model_forward.5
$region0: #{skip_model_forward.5}
  #allocation0 [shape = 'u32[]', space=smem, size = 0x4, offset = 0x4, fixed_abs, tag = 'smem constant byte address 0x4 - core index']
  #allocation1 [shape = 'u32[144,128]{1,0:T(1,128)}', space=vmem, size = 0x12000, scoped, tag = 'internal scratch']
  #allocation2 [shape = 'f32[144,96]{1,0:T(8,128)}', space=vmem, size = 0x12000, scoped, tag = 'scratch operand']
  #allocation3 [shape = 'f32[144,128]{1,0:T(8,128)}', space=vmem, size = 0x12000, scoped, tag = 'scratch operand']
  #allocation4 [shape = 'f32[144,128]{1,0:T(8,128)}', space=vmem, size = 0x12000, scoped, tag = 'scratch operand']
  %s0 = inlined_call_operand.vmem [shape: f32[2,144,96], index: 0, kind: input, shape index: {}]
  %s1 = inlined_call_operand.vmem [shape: f32[2,144,128], index: 1, kind: input, shape index: {}]
  %s2 = inlined_call_operand.vmem [shape: f32[2,144,128], index: 2, kind: input, shape index: {}]
  %s3 = inlined_call_operand.vmem [shape: f32[17,96,8], index: 3, kind: input, shape index: {}]
  %s4 = inlined_call_operand.vmem [shape: f32[129,128,8], index: 4, kind: input, shape index: {}]
  %s5 = inlined_call_operand.vmem [shape: f32[129,128,8], index: 5, kind: input, shape index: {}]
  %s6 = inlined_call_operand.vmem [shape: f32[1,8], index: 6, kind: input, shape index: {}]
  %s7 = inlined_call_operand.hbm [shape: f32[2,8,16], index: 7, kind: output, shape index: {}]
  %s8 = sld [smem:[#allocation0]]
  $region75: #{skip_model_forward.5} parent=0
    _
  %s10 = ssub.s32 1, %s8
  %s11 = scalar_select 0, %s10, %s8
  $region1: #{skip_model_forward.5} parent=0
    #allocation5 [shape = 'u8[8192]{0}', space=vmem, size = 0x2000, scoped, tag = 'output window, operand 0']
    #allocation6 [shape = 's32[2]{0}', space=sflag, size = 0x8, scoped, tag = 'scoped memory for skip_model_forward.5']
    %12 = vsyncpa [#allocation6], 0
    %s13 = scalar_lea.sflag [#allocation6], 1
    %14 = vsyncpa %s13, 0
    loop: start=0, step=1, limit=4
    $region2: #{skip_model_forward.5} parent=1 // loop_pre_header
      _
    $region3: #{skip_model_forward.5} parent=1 // loop_header
      %s16 = sphi 0, %s20
      %p17 = scmp.ge.s32.totalorder %s16, 4
      %s23 = sphi 0, %s35
      %s24 = sphi 0, %s31
      %s25 = sphi 0, %s23
      %s26 = sphi 0, %s24
      %s27 = sphi 0, %s25
      %s28 = sphi 0, %s26
      %s38 = sphi 0, %s40
      %s41 = sphi 0, %s38
      %s42 = sphi 0, %s41
      %s58 = sphi 0, %s42
      %s64 = sphi 0, %s66
      %s67 = sphi 0, %s64
      %s68 = sphi 0, %s67
      %s84 = sphi 0, %s68
      %s90 = sphi 0, %s92
      %s93 = sphi 0, %s90
      %s94 = sphi 0, %s93
      %s110 = sphi 0, %s94
      %s114 = sphi 0, %s114
      %s116 = sphi 0, %s114
      %s117 = sphi 0, %s116
      %s131 = sphi 0, %s117
      %s135 = sphi 0, %s135
      %s137 = sphi 0, %s135
      %s138 = sphi 0, %s137
      %s152 = sphi 0, %s138
      %s156 = sphi 0, %s156
      %s158 = sphi 0, %s156
      %s159 = sphi 0, %s158
      %s173 = sphi 0, %s159
      %s177 = sphi 0, %s177
      %s179 = sphi 0, %s177
      %s180 = sphi 0, %s179
      %s194 = sphi 0, %s180
      %s202 = sphi 0, %s204
      %s205 = sphi 0, %s202
      %s206 = sphi 0, %s205
      %s222 = sphi 0, %s206
    $region4: #{skip_model_forward.5} parent=1 // loop_header_branch
      %19 = sbr.rel (%p17) target = $region8
    $region5: #{skip_model_forward.5} parent=1 // loop_body
      %s21 = ssub.s32 %s16, 1
      %s22 = ssub.s32 %s16, 2
      %s29 = sadd.s32 1, %s24
      %p30 = scmp.ge.s32.totalorder %s29, 1
      %s31 = scalar_select %p30, 0, %s29
      %s32 = sadd.s32 1, %s23
      %s33 = scalar_select %p30, %s32, %s23
      %p34 = scmp.ge.s32.totalorder %s33, 2
      %s35 = scalar_select %p34, 0, %s33
      %s36 = ssub.s32 %s23, %s35
      %p37 = scmp.eq.s32.totalorder %s36, 0
      %s39 = sadd.s32 %s38, 1
      %s40 = scalar_select %p37, %s38, %s39
      %p43 = pneg %p37
      %p44 = scmp.eq.s32.totalorder %s16, 1
      %p45 = por %p43, %p44
      %p46 = scmp.ne.s32.totalorder %s38, %s41
      %p47 = scmp.eq.s32.totalorder %s16, 0
      %p48 = por %p46, %p47
      %p49 = scmp.ne.s32.totalorder %s38, %s41
      %p50 = scmp.eq.s32.totalorder %s21, 1
      %p51 = por %p49, %p50
      %p52 = scmp.ne.s32.totalorder %s41, %s42
      %p53 = scmp.eq.s32.totalorder %s21, 0
      %p54 = por %p52, %p53
      %p55 = scmp.ne.s32.totalorder %s41, %s42
      %p56 = scmp.eq.s32.totalorder %s22, 1
      %p57 = por %p55, %p56
      %p59 = scmp.ne.s32.totalorder %s42, %s58
      %p60 = scmp.eq.s32.totalorder %s22, 0
      %p61 = por %p59, %p60
      %s62 = ssub.s32 %s23, %s35
      %p63 = scmp.eq.s32.totalorder %s62, 0
      %s65 = sadd.s32 %s64, 1
      %s66 = scalar_select %p63, %s64, %s65
      %p69 = pneg %p63
      %p70 = scmp.eq.s32.totalorder %s16, 1
      %p71 = por %p69, %p70
      %p72 = scmp.ne.s32.totalorder %s64, %s67
      %p73 = scmp.eq.s32.totalorder %s16, 0
      %p74 = por %p72, %p73
      %p75 = scmp.ne.s32.totalorder %s64, %s67
      %p76 = scmp.eq.s32.totalorder %s21, 1
      %p77 = por %p75, %p76
      %p78 = scmp.ne.s32.totalorder %s67, %s68
      %p79 = scmp.eq.s32.totalorder %s21, 0
      %p80 = por %p78, %p79
      %p81 = scmp.ne.s32.totalorder %s67, %s68
      %p82 = scmp.eq.s32.totalorder %s22, 1
      %p83 = por %p81, %p82
      %p85 = scmp.ne.s32.totalorder %s68, %s84
      %p86 = scmp.eq.s32.totalorder %s22, 0
      %p87 = por %p85, %p86
      %s88 = ssub.s32 %s23, %s35
      %p89 = scmp.eq.s32.totalorder %s88, 0
      %s91 = sadd.s32 %s90, 1
      %s92 = scalar_select %p89, %s90, %s91
      %p95 = pneg %p89
      %p96 = scmp.eq.s32.totalorder %s16, 1
      %p97 = por %p95, %p96
      %p98 = scmp.ne.s32.totalorder %s90, %s93
      %p99 = scmp.eq.s32.totalorder %s16, 0
      %p100 = por %p98, %p99
      %p101 = scmp.ne.s32.totalorder %s90, %s93
      %p102 = scmp.eq.s32.totalorder %s21, 1
      %p103 = por %p101, %p102
      %p104 = scmp.ne.s32.totalorder %s93, %s94
      %p105 = scmp.eq.s32.totalorder %s21, 0
      %p106 = por %p104, %p105
      %p107 = scmp.ne.s32.totalorder %s93, %s94
      %p108 = scmp.eq.s32.totalorder %s22, 1
      %p109 = por %p107, %p108
      %p111 = scmp.ne.s32.totalorder %s94, %s110
      %p112 = scmp.eq.s32.totalorder %s22, 0
      %p113 = por %p111, %p112
      %s115 = sadd.s32 %s114, 1
      %p118 = scmp.eq.s32.totalorder %s16, 1
      %p119 = scmp.ne.s32.totalorder %s114, %s116
      %p120 = scmp.eq.s32.totalorder %s16, 0
      %p121 = por %p119, %p120
      %p122 = scmp.ne.s32.totalorder %s114, %s116
      %p123 = scmp.eq.s32.totalorder %s21, 1
      %p124 = por %p122, %p123
      %p125 = scmp.ne.s32.totalorder %s116, %s117
      %p126 = scmp.eq.s32.totalorder %s21, 0
      %p127 = por %p125, %p126
      %p128 = scmp.ne.s32.totalorder %s116, %s117
      %p129 = scmp.eq.s32.totalorder %s22, 1
      %p130 = por %p128, %p129
      %p132 = scmp.ne.s32.totalorder %s117, %s131
      %p133 = scmp.eq.s32.totalorder %s22, 0
      %p134 = por %p132, %p133
      %s136 = sadd.s32 %s135, 1
      %p139 = scmp.eq.s32.totalorder %s16, 1
      %p140 = scmp.ne.s32.totalorder %s135, %s137
      %p141 = scmp.eq.s32.totalorder %s16, 0
      %p142 = por %p140, %p141
      %p143 = scmp.ne.s32.totalorder %s135, %s137
      %p144 = scmp.eq.s32.totalorder %s21, 1
      %p145 = por %p143, %p144
      %p146 = scmp.ne.s32.totalorder %s137, %s138
      %p147 = scmp.eq.s32.totalorder %s21, 0
      %p148 = por %p146, %p147
      %p149 = scmp.ne.s32.totalorder %s137, %s138
      %p150 = scmp.eq.s32.totalorder %s22, 1
      %p151 = por %p149, %p150
      %p153 = scmp.ne.s32.totalorder %s138, %s152
      %p154 = scmp.eq.s32.totalorder %s22, 0
      %p155 = por %p153, %p154
      %s157 = sadd.s32 %s156, 1
      %p160 = scmp.eq.s32.totalorder %s16, 1
      %p161 = scmp.ne.s32.totalorder %s156, %s158
      %p162 = scmp.eq.s32.totalorder %s16, 0
      %p163 = por %p161, %p162
      %p164 = scmp.ne.s32.totalorder %s156, %s158
      %p165 = scmp.eq.s32.totalorder %s21, 1
      %p166 = por %p164, %p165
      %p167 = scmp.ne.s32.totalorder %s158, %s159
      %p168 = scmp.eq.s32.totalorder %s21, 0
      %p169 = por %p167, %p168
      %p170 = scmp.ne.s32.totalorder %s158, %s159
      %p171 = scmp.eq.s32.totalorder %s22, 1
      %p172 = por %p170, %p171
      %p174 = scmp.ne.s32.totalorder %s159, %s173
      %p175 = scmp.eq.s32.totalorder %s22, 0
      %p176 = por %p174, %p175
      %s178 = sadd.s32 %s177, 1
      %p181 = scmp.eq.s32.totalorder %s16, 1
      %p182 = scmp.ne.s32.totalorder %s177, %s179
      %p183 = scmp.eq.s32.totalorder %s16, 0
      %p184 = por %p182, %p183
      %p185 = scmp.ne.s32.totalorder %s177, %s179
      %p186 = scmp.eq.s32.totalorder %s21, 1
      %p187 = por %p185, %p186
      %p188 = scmp.ne.s32.totalorder %s179, %s180
      %p189 = scmp.eq.s32.totalorder %s21, 0
      %p190 = por %p188, %p189
      %p191 = scmp.ne.s32.totalorder %s179, %s180
      %p192 = scmp.eq.s32.totalorder %s22, 1
      %p193 = por %p191, %p192
      %p195 = scmp.ne.s32.totalorder %s180, %s194
      %p196 = scmp.eq.s32.totalorder %s22, 0
      %p197 = por %p195, %p196
      %s198 = ssub.s32 %s23, %s35
      %s199 = ssub.s32 %s24, %s31
      %s200 = sor.u32 %s198, %s199
      %p201 = scmp.eq.s32.totalorder %s200, 0
      %s203 = sadd.s32 %s202, 1
      %s204 = scalar_select %p201, %s202, %s203
      %p207 = pneg %p201
      %p208 = scmp.eq.s32.totalorder %s16, 1
      %p209 = por %p207, %p208
      %p210 = scmp.ne.s32.totalorder %s202, %s205
      %p211 = scmp.eq.s32.totalorder %s16, 0
      %p212 = por %p210, %p211
      %p213 = scmp.ne.s32.totalorder %s202, %s205
      %p214 = scmp.eq.s32.totalorder %s21, 1
      %p215 = por %p213, %p214
      %p216 = scmp.ne.s32.totalorder %s205, %s206
      %p217 = scmp.eq.s32.totalorder %s21, 0
      %p218 = por %p216, %p217
      %p219 = scmp.ne.s32.totalorder %s205, %s206
      %p220 = scmp.eq.s32.totalorder %s22, 1
      %p221 = por %p219, %p220
      %p223 = scmp.ne.s32.totalorder %s206, %s222
      %p224 = scmp.eq.s32.totalorder %s22, 0
      %p225 = por %p223, %p224
      %p226 = scmp.le.s32.totalorder 1, %s16
      %p227 = scmp.lt.s32.totalorder %s16, 3
      %p228 = pnand %p226, %p227
      %p229 = pneg %p228
      // Predicated region
      $region9: #{skip_model_forward.5} parent=5 // pred_check
        _
      $region10: #{skip_model_forward.5} parent=5 // pred_check_branch
        %231 = sbr.rel (%p228) target = $region12
      $region11: #{skip_model_forward.5} parent=5 // pred_region
        %s232 = ssub.s32 %s16, 1
        // Predicated region
        $region13: #{skip_model_forward.5} parent=11 // pred_check
          %p233 = pneg %p127
        $region14: #{skip_model_forward.5} parent=11 // pred_check_branch
          %235 = sbr.rel (%p233) target = $region16
        $region15: #{skip_model_forward.5} parent=11 // pred_region
          _
        $region16: #{skip_model_forward.5} parent=11 // pred_fallthru
          _
        // Predicated region
        $region17: #{skip_model_forward.5} parent=11 // pred_check
          %p236 = pneg %p148
        $region18: #{skip_model_forward.5} parent=11 // pred_check_branch
          %238 = sbr.rel (%p236) target = $region20
        $region19: #{skip_model_forward.5} parent=11 // pred_region
          _
        $region20: #{skip_model_forward.5} parent=11 // pred_fallthru
          _
        // Predicated region
        $region21: #{skip_model_forward.5} parent=11 // pred_check
          %p239 = pneg %p169
        $region22: #{skip_model_forward.5} parent=11 // pred_check_branch
          %241 = sbr.rel (%p239) target = $region24
        $region23: #{skip_model_forward.5} parent=11 // pred_region
          _
        $region24: #{skip_model_forward.5} parent=11 // pred_fallthru
          _
        // Predicated region
        $region25: #{skip_model_forward.5} parent=11 // pred_check
          %p242 = pneg %p190
        $region26: #{skip_model_forward.5} parent=11 // pred_check_branch
          %244 = sbr.rel (%p242) target = $region28
        $region27: #{skip_model_forward.5} parent=11 // pred_region
          _
        $region28: #{skip_model_forward.5} parent=11 // pred_fallthru
          _
      $region12: #{skip_model_forward.5} parent=5 // pred_fallthru
        _
      %p245 = scmp.lt.s32.totalorder %s16, 2
      // Predicated region
      $region29: #{skip_model_forward.5} parent=5 // pred_check
        %p246 = pneg %p245
      $region30: #{skip_model_forward.5} parent=5 // pred_check_branch
        %248 = sbr.rel (%p246) target = $region32
      $region31: #{skip_model_forward.5} parent=5 // pred_region
        // Predicated region
        $region33: #{skip_model_forward.5} parent=31 // pred_check
          %p249 = pneg %p48
        $region34: #{skip_model_forward.5} parent=31 // pred_check_branch
          %251 = sbr.rel (%p249) target = $region36
        $region35: #{skip_model_forward.5} parent=31 // pred_region
          %p252 = scmp.lt.s32.totalorder %s23, 1
          %s253 = scalar_select %p252, %s23, 1
          %s254 = smul.addr %s253, 18
          %s255 = smul.addr %s254, 8
          %s256 = scalar_lea.vmem %s0, %s255
        $region36: #{skip_model_forward.5} parent=31 // pred_fallthru
          _
        // Predicated region
        $region37: #{skip_model_forward.5} parent=31 // pred_check
          %p257 = pneg %p74
        $region38: #{skip_model_forward.5} parent=31 // pred_check_branch
          %259 = sbr.rel (%p257) target = $region40
        $region39: #{skip_model_forward.5} parent=31 // pred_region
          %p260 = scmp.lt.s32.totalorder %s23, 1
          %s261 = scalar_select %p260, %s23, 1
          %s262 = smul.addr %s261, 18
          %s263 = smul.addr %s262, 8
          %s264 = scalar_lea.vmem %s1, %s263
        $region40: #{skip_model_forward.5} parent=31 // pred_fallthru
          _
        // Predicated region
        $region41: #{skip_model_forward.5} parent=31 // pred_check
          %p265 = pneg %p100
        $region42: #{skip_model_forward.5} parent=31 // pred_check_branch
          %267 = sbr.rel (%p265) target = $region44
        $region43: #{skip_model_forward.5} parent=31 // pred_region
          %p268 = scmp.lt.s32.totalorder %s23, 1
          %s269 = scalar_select %p268, %s23, 1
          %s270 = smul.addr %s269, 18
          %s271 = smul.addr %s270, 8
          %s272 = scalar_lea.vmem %s2, %s271
        $region44: #{skip_model_forward.5} parent=31 // pred_fallthru
          _
      $region32: #{skip_model_forward.5} parent=5 // pred_fallthru
        _
      %p273 = scmp.le.s32.totalorder 1, %s16
      %p274 = scmp.lt.s32.totalorder %s16, 3
      %p275 = pnand %p273, %p274
      %p276 = pneg %p275
      // Predicated region
      $region45: #{skip_model_forward.5} parent=5 // pred_check
        _
      $region46: #{skip_model_forward.5} parent=5 // pred_check_branch
        %278 = sbr.rel (%p275) target = $region48
      $region47: #{skip_model_forward.5} parent=5 // pred_region
        %s279 = ssub.s32 %s16, 1
        %p280 = scmp.lt.s32.totalorder %s25, 1
        %s281 = scalar_select %p280, %s25, 1
        %s282 = smul.addr %s281, 18
        %s283 = smul.addr %s282, 8
        %s284 = scalar_lea.vmem %s0, %s283
        %p285 = pneg %p54
        %p286 = pneg %p51
        %p287 = scmp.lt.s32.totalorder %s25, 1
        %s288 = scalar_select %p287, %s25, 1
        %s289 = smul.addr %s288, 18
        %s290 = smul.addr %s289, 8
        %s291 = scalar_lea.vmem %s1, %s290
        %p292 = pneg %p80
        %p293 = pneg %p77
        %p294 = scmp.lt.s32.totalorder %s25, 1
        %s295 = scalar_select %p294, %s25, 1
        %s296 = smul.addr %s295, 18
        %s297 = smul.addr %s296, 8
        %s298 = scalar_lea.vmem %s2, %s297
        %p299 = pneg %p106
        %p300 = pneg %p103
        %p301 = pneg %p127
        %p302 = pneg %p124
        %p303 = pneg %p148
        %p304 = pneg %p145
        %p305 = pneg %p169
        %p306 = pneg %p166
        %p307 = pneg %p190
        %p308 = pneg %p187
        %p309 = pneg %p218
        %p310 = pneg %p215
        %s311 = sand.u32 %s205, 1
        %s312 = scalar_lea.sflag [#allocation6], %s311
        %s313 = sand.u32 %s205, 1
        %s314 = smul.addr %s313, 8
        %s315 = scalar_lea.vmem [#allocation5], %s314
        %p316 = scmp.lt.s32.totalorder %s25, 1
        %s317 = scalar_select %p316, %s25, 1
        %s318 = smul.addr %s317, 18
        %s319 = smul.addr %s318, 8
        %s320 = scalar_lea.vmem %s0, %s319
        %p321 = scmp.lt.s32.totalorder %s25, 1
        %s322 = scalar_select %p321, %s25, 1
        %s323 = smul.addr %s322, 18
        %s324 = smul.addr %s323, 8
        %s325 = scalar_lea.vmem %s1, %s324
        %p326 = scmp.lt.s32.totalorder %s25, 1
        %s327 = scalar_select %p326, %s25, 1
        %s328 = smul.addr %s327, 18
        %s329 = smul.addr %s328, 8
        %s330 = scalar_lea.vmem %s2, %s329
        %s331 = smul.u32 %s26, 16
        %s332 = scalar_lea.vmem %s320, %s331
        %v333 = vld [vmem:[%s332] sm:$0xff]
        %v334 = vld [vmem:[%s332 + $0x8] sm:$0xff]
        %v335 = vld [vmem:[%s332 + $0x10] sm:$0xff]
        %v336 = vld [vmem:[%s332 + $0x18] sm:$0xff]
        %v337 = vld [vmem:[%s332 + $0x20] sm:$0xff]
        %v338 = vld [vmem:[%s332 + $0x28] sm:$0xff]
        %v339 = vld [vmem:[%s332 + $0x30] sm:$0xff]
        %v340 = vld [vmem:[%s332 + $0x38] sm:$0xff]
        %v341 = vld [vmem:[%s332 + $0x40] sm:$0xff]
        %v342 = vld [vmem:[%s332 + $0x48] sm:$0xff]
        %v343 = vld [vmem:[%s332 + $0x50] sm:$0xff]
        %v344 = vld [vmem:[%s332 + $0x58] sm:$0xff]
        %v345 = vld [vmem:[%s332 + $0x60] sm:$0xff]
        %v346 = vld [vmem:[%s332 + $0x68] sm:$0xff]
        %v347 = vld [vmem:[%s332 + $0x70] sm:$0xff]
        %v348 = vld [vmem:[%s332 + $0x78] sm:$0xff]
        %v349 = vld [vmem:[%s332 + $0x80] sm:$0xff]
        %v350 = vld [vmem:[%s332 + $0x88] sm:$0xff]
        %v351 = vtanh.pop %v333
        %v352 = vtanh.pop %v334
        %v353 = vtanh.pop %v335
        %v354 = vtanh.pop %v336
        %v355 = vtanh.pop %v337
        %v356 = vtanh.pop %v338
        %v357 = vtanh.pop %v339
        %v358 = vtanh.pop %v340
        %v359 = vtanh.pop %v341
        %v360 = vtanh.pop %v342
        %v361 = vtanh.pop %v343
        %v362 = vtanh.pop %v344
        %v363 = vtanh.pop %v345
        %v364 = vtanh.pop %v346
        %v365 = vtanh.pop %v347
        %v366 = vtanh.pop %v348
        %v367 = vtanh.pop %v349
        %v368 = vtanh.pop %v350
        %vm369 = vcmask 785408
        %370 = vst.msk [vmem:[#allocation2] sm:$0xff] %vm369, %v351
        %371 = vst.msk [vmem:[#allocation2 + $0x8] sm:$0xff] %vm369, %v352
        %372 = vst.msk [vmem:[#allocation2 + $0x10] sm:$0xff] %vm369, %v353
        %373 = vst.msk [vmem:[#allocation2 + $0x18] sm:$0xff] %vm369, %v354
        %374 = vst.msk [vmem:[#allocation2 + $0x20] sm:$0xff] %vm369, %v355
        %375 = vst.msk [vmem:[#allocation2 + $0x28] sm:$0xff] %vm369, %v356
        %376 = vst.msk [vmem:[#allocation2 + $0x30] sm:$0xff] %vm369, %v357
        %377 = vst.msk [vmem:[#allocation2 + $0x38] sm:$0xff] %vm369, %v358
        %378 = vst.msk [vmem:[#allocation2 + $0x40] sm:$0xff] %vm369, %v359
        %379 = vst.msk [vmem:[#allocation2 + $0x48] sm:$0xff] %vm369, %v360
        %380 = vst.msk [vmem:[#allocation2 + $0x50] sm:$0xff] %vm369, %v361
        %381 = vst.msk [vmem:[#allocation2 + $0x58] sm:$0xff] %vm369, %v362
        %382 = vst.msk [vmem:[#allocation2 + $0x60] sm:$0xff] %vm369, %v363
        %383 = vst.msk [vmem:[#allocation2 + $0x68] sm:$0xff] %vm369, %v364
        %384 = vst.msk [vmem:[#allocation2 + $0x70] sm:$0xff] %vm369, %v365
        %385 = vst.msk [vmem:[#allocation2 + $0x78] sm:$0xff] %vm369, %v366
        %386 = vst.msk [vmem:[#allocation2 + $0x80] sm:$0xff] %vm369, %v367
        %387 = vst.msk [vmem:[#allocation2 + $0x88] sm:$0xff] %vm369, %v368
        %v388 = vld [vmem:[#allocation2] sm:$0xff]
        %v389 = vld [vmem:[#allocation2 + $0x8] sm:$0xff]
        %v390 = vld [vmem:[%s3] sm:$0xff]
        %v391 = vld [vmem:[%s3 + $0x8] sm:$0xff]
        %v392 = vld [vmem:[%s3 + $0x10] sm:$0xff]
        %v393 = vld [vmem:[%s3 + $0x18] sm:$0xff]
        %v394 = vld [vmem:[%s3 + $0x20] sm:$0xff]
        %v395 = vld [vmem:[%s3 + $0x28] sm:$0xff]
        %v396 = vld [vmem:[%s3 + $0x30] sm:$0xff]
        %v397 = vld [vmem:[%s3 + $0x38] sm:$0xff]
        %v398 = vld [vmem:[%s3 + $0x40] sm:$0xff]
        %v399 = vld [vmem:[%s3 + $0x48] sm:$0xff]
        %v400 = vld [vmem:[%s3 + $0x50] sm:$0xff]
        %v401 = vld [vmem:[%s3 + $0x58] sm:$0xff]
        %v402 = vld [vmem:[#allocation2 + $0x10] sm:$0xff]
        %s403 = scalar_lea.vmem %s3, 96
        %v404 = vld [vmem:[%s403] sm:$0xff]
        %v405 = vld [vmem:[%s403 + $0x8] sm:$0xff]
        %v406 = vld [vmem:[%s403 + $0x10] sm:$0xff]
        %v407 = vld [vmem:[%s403 + $0x18] sm:$0xff]
        %v408 = vld [vmem:[%s403 + $0x20] sm:$0xff]
        %v409 = vld [vmem:[%s403 + $0x28] sm:$0xff]
        %v410 = vld [vmem:[%s403 + $0x30] sm:$0xff]
        %v411 = vld [vmem:[%s403 + $0x38] sm:$0xff]
        %v412 = vld [vmem:[%s403 + $0x40] sm:$0xff]
        %v413 = vld [vmem:[%s403 + $0x48] sm:$0xff]
        %v414 = vld [vmem:[%s403 + $0x50] sm:$0xff]
        %v415 = vld [vmem:[%s403 + $0x58] sm:$0xff]
        %v417 = vsel %vm369, %v389, 0
        %v420 = vsel %vm369, %v402, 0
        %422 = vmatprep.subr.mxu0 0.0
        %423 = vmatpush1.msra.mxu0 0.0
        %424 = vmatprep.subr.mxu0 0.0
        %425 = vmatpush1.msra.mxu0 0.0
        %426 = vmatprep.subr.mxu0 0.0
        %427 = vmatpush1.msra.mxu0 0.0
        %428 = vmatprep.subr.mxu0 0.0
        %429 = vmatpush1.msra.mxu0 0.0
        %430 = vmatprep.subr.mxu0 0.0
        %431 = vmatpush1.msra.mxu0 %v415
        %432 = vmatprep.subr.mxu0 0.0
        %433 = vmatpush1.msra.mxu0 %v414
        %434 = vmatprep.subr.mxu0 0.0
        %435 = vmatpush1.msra.mxu0 %v413
        %436 = vmatprep.subr.mxu0 0.0
        %437 = vmatpush1.msra.mxu0 %v412
        %438 = vmatprep.subr.mxu0 0.0
        %439 = vmatpush1.msra.mxu0 %v411
        %440 = vmatprep.subr.mxu0 0.0
        %441 = vmatpush1.msra.mxu0 %v410
        %442 = vmatprep.subr.mxu0 0.0
        %443 = vmatpush1.msra.mxu0 %v409
        %444 = vmatprep.subr.mxu0 0.0
        %445 = vmatpush1.msra.mxu0 %v408
        %446 = vmatprep.subr.mxu0 0.0
        %447 = vmatpush1.msra.mxu0 %v407
        %448 = vmatprep.subr.mxu0 0.0
        %449 = vmatpush1.msra.mxu0 %v406
        %450 = vmatprep.subr.mxu0 0.0
        %451 = vmatpush1.msra.mxu0 %v405
        %452 = vmatprep.subr.mxu0 0.0
        %453 = vmatpush1.msra.mxu0 %v404
        %454 = vmatprep.subr.mxu0 0.0
        %455 = vmatpush2.msra.mxu0 0.0
        %456 = vmatprep.subr.mxu0 0.0
        %457 = vmatpush2.msra.mxu0 0.0
        %458 = vmatprep.subr.mxu0 0.0
        %459 = vmatpush2.msra.mxu0 0.0
        %460 = vmatprep.subr.mxu0 0.0
        %461 = vmatpush2.msra.mxu0 0.0
        %462 = vmatprep.subr.mxu0 0.0
        %463 = vmatpush2.msra.mxu0 0.0
        %464 = vmatprep.subr.mxu0 0.0
        %465 = vmatpush2.msra.mxu0 0.0
        %466 = vmatprep.subr.mxu0 0.0
        %467 = vmatpush2.msra.mxu0 0.0
        %468 = vmatprep.subr.mxu0 0.0
        %469 = vmatpush2.msra.mxu0 0.0
        %470 = vmatprep.subr.mxu0 0.0
        %471 = vmatpush2.msra.mxu0 0.0
        %472 = vmatprep.subr.mxu0 0.0
        %473 = vmatpush2.msra.mxu0 0.0
        %474 = vmatprep.subr.mxu0 0.0
        %475 = vmatpush2.msra.mxu0 0.0
        %476 = vmatprep.subr.mxu0 0.0
        %477 = vmatpush2.msra.mxu0 0.0
        %478 = vmatprep.subr.mxu0 0.0
        %479 = vmatpush2.msra.mxu0 0.0
        %480 = vmatprep.subr.mxu0 0.0
        %481 = vmatpush2.msra.mxu0 0.0
        %482 = vmatprep.subr.mxu0 0.0
        %483 = vmatpush2.msra.mxu0 0.0
        %484 = vmatprep.subr.mxu0 0.0
        %485 = vmatpush2.msra.mxu0 0.0
        %486 = vmatprep.mubr.f32.mxu0 0.0
        %487 = vmatmul.mubr.f32.gmra.mxu0 %v417
        %v488 = vpop.f32.mrf.mxu0
        %v489 = vadd.f32 0.0, %v488
        %v490 = vpop.f32.mrf.mxu0
        %491 = vmatprep.mubr.f32.mxu0 0.0
        %492 = vmatmul.mubr.f32.gmra.mxu0 %v420
        %v493 = vpop.f32.mrf.mxu0
        %v494 = vadd.f32 0.0, %v493
        %v495 = vpop.f32.mrf.mxu0
        %496 = vdwg.mxu0
        %v498 = vsel %vm369, %v388, 0
        %500 = vmatprep.subr.mxu0 0.0
        %501 = vmatpush1.msra.mxu0 0.0
        %502 = vmatprep.subr.mxu0 0.0
        %503 = vmatpush1.msra.mxu0 0.0
        %504 = vmatprep.subr.mxu0 0.0
        %505 = vmatpush1.msra.mxu0 0.0
        %506 = vmatprep.subr.mxu0 0.0
        %507 = vmatpush1.msra.mxu0 0.0
        %508 = vmatprep.subr.mxu0 0.0
        %509 = vmatpush1.msra.mxu0 %v401
        %510 = vmatprep.subr.mxu0 0.0
        %511 = vmatpush1.msra.mxu0 %v400
        %512 = vmatprep.subr.mxu0 0.0
        %513 = vmatpush1.msra.mxu0 %v399
        %514 = vmatprep.subr.mxu0 0.0
        %515 = vmatpush1.msra.mxu0 %v398
        %516 = vmatprep.subr.mxu0 0.0
        %517 = vmatpush1.msra.mxu0 %v397
        %518 = vmatprep.subr.mxu0 0.0
        %519 = vmatpush1.msra.mxu0 %v396
        %520 = vmatprep.subr.mxu0 0.0
        %521 = vmatpush1.msra.mxu0 %v395
        %522 = vmatprep.subr.mxu0 0.0
        %523 = vmatpush1.msra.mxu0 %v394
        %524 = vmatprep.subr.mxu0 0.0
        %525 = vmatpush1.msra.mxu0 %v393
        %526 = vmatprep.subr.mxu0 0.0
        %527 = vmatpush1.msra.mxu0 %v392
        %528 = vmatprep.subr.mxu0 0.0
        %529 = vmatpush1.msra.mxu0 %v391
        %530 = vmatprep.subr.mxu0 0.0
        %531 = vmatpush1.msra.mxu0 %v390
        %532 = vmatprep.subr.mxu0 0.0
        %533 = vmatpush2.msra.mxu0 0.0
        %534 = vmatprep.subr.mxu0 0.0
        %535 = vmatpush2.msra.mxu0 0.0
        %536 = vmatprep.subr.mxu0 0.0
        %537 = vmatpush2.msra.mxu0 0.0
        %538 = vmatprep.subr.mxu0 0.0
        %539 = vmatpush2.msra.mxu0 0.0
        %540 = vmatprep.subr.mxu0 0.0
        %541 = vmatpush2.msra.mxu0 0.0
        %542 = vmatprep.subr.mxu0 0.0
        %543 = vmatpush2.msra.mxu0 0.0
        %544 = vmatprep.subr.mxu0 0.0
        %545 = vmatpush2.msra.mxu0 0.0
        %546 = vmatprep.subr.mxu0 0.0
        %547 = vmatpush2.msra.mxu0 0.0
        %548 = vmatprep.subr.mxu0 0.0
        %549 = vmatpush2.msra.mxu0 0.0
        %550 = vmatprep.subr.mxu0 0.0
        %551 = vmatpush2.msra.mxu0 0.0
        %552 = vmatprep.subr.mxu0 0.0
        %553 = vmatpush2.msra.mxu0 0.0
        %554 = vmatprep.subr.mxu0 0.0
        %555 = vmatpush2.msra.mxu0 0.0
        %556 = vmatprep.subr.mxu0 0.0
        %557 = vmatpush2.msra.mxu0 0.0
        %558 = vmatprep.subr.mxu0 0.0
        %559 = vmatpush2.msra.mxu0 0.0
        %560 = vmatprep.subr.mxu0 0.0
        %561 = vmatpush2.msra.mxu0 0.0
        %562 = vmatprep.subr.mxu0 0.0
        %563 = vmatpush2.msra.mxu0 0.0
        %564 = vmatprep.mubr.f32.mxu0 0.0
        %565 = vmatmul.mubr.f32.gmra.mxu0 %v498
        %v566 = vpop.f32.mrf.mxu0
        %v567 = vadd.f32 %v489, %v566
        %v568 = vpop.f32.mrf.mxu0
        %569 = vmatprep.mubr.f32.mxu0 0.0
        %570 = vmatmul.mubr.f32.gmra.mxu0 %v417
        %v571 = vpop.f32.mrf.mxu0
        %v572 = vadd.f32 %v494, %v571
        %v573 = vpop.f32.mrf.mxu0
        %574 = vdwg.mxu0
        %v575 = vld [vmem:[#allocation2 + $0x10] sm:$0xff]
        %v576 = vld [vmem:[#allocation2 + $0x18] sm:$0xff]
        %s577 = scalar_lea.vmem %s3, 192
        %v578 = vld [vmem:[%s577] sm:$0xff]
        %v579 = vld [vmem:[%s577 + $0x8] sm:$0xff]
        %v580 = vld [vmem:[%s577 + $0x10] sm:$0xff]
        %v581 = vld [vmem:[%s577 + $0x18] sm:$0xff]
        %v582 = vld [vmem:[%s577 + $0x20] sm:$0xff]
        %v583 = vld [vmem:[%s577 + $0x28] sm:$0xff]
        %v584 = vld [vmem:[%s577 + $0x30] sm:$0xff]
        %v585 = vld [vmem:[%s577 + $0x38] sm:$0xff]
        %v586 = vld [vmem:[%s577 + $0x40] sm:$0xff]
        %v587 = vld [vmem:[%s577 + $0x48] sm:$0xff]
        %v588 = vld [vmem:[%s577 + $0x50] sm:$0xff]
        %v589 = vld [vmem:[%s577 + $0x58] sm:$0xff]
        %v591 = vsel %vm369, %v575, 0
        %v594 = vsel %vm369, %v576, 0
        %596 = vmatprep.subr.mxu0 0.0
        %597 = vmatpush1.msra.mxu0 0.0
        %598 = vmatprep.subr.mxu0 0.0
        %599 = vmatpush1.msra.mxu0 0.0
        %600 = vmatprep.subr.mxu0 0.0
        %601 = vmatpush1.msra.mxu0 0.0
        %602 = vmatprep.subr.mxu0 0.0
        %603 = vmatpush1.msra.mxu0 0.0
        %604 = vmatprep.subr.mxu0 0.0
        %605 = vmatpush1.msra.mxu0 %v589
        %606 = vmatprep.subr.mxu0 0.0
        %607 = vmatpush1.msra.mxu0 %v588
        %608 = vmatprep.subr.mxu0 0.0
        %609 = vmatpush1.msra.mxu0 %v587
        %610 = vmatprep.subr.mxu0 0.0
        %611 = vmatpush1.msra.mxu0 %v586
        %612 = vmatprep.subr.mxu0 0.0
        %613 = vmatpush1.msra.mxu0 %v585
        %614 = vmatprep.subr.mxu0 0.0
        %615 = vmatpush1.msra.mxu0 %v584
        %616 = vmatprep.subr.mxu0 0.0
        %617 = vmatpush1.msra.mxu0 %v583
        %618 = vmatprep.subr.mxu0 0.0
        %619 = vmatpush1.msra.mxu0 %v582
        %620 = vmatprep.subr.mxu0 0.0
        %621 = vmatpush1.msra.mxu0 %v581
        %622 = vmatprep.subr.mxu0 0.0
        %623 = vmatpush1.msra.mxu0 %v580
        %624 = vmatprep.subr.mxu0 0.0
        %625 = vmatpush1.msra.mxu0 %v579
        %626 = vmatprep.subr.mxu0 0.0
        %627 = vmatpush1.msra.mxu0 %v578
        %628 = vmatprep.subr.mxu0 0.0
        %629 = vmatpush2.msra.mxu0 0.0
        %630 = vmatprep.subr.mxu0 0.0
        %631 = vmatpush2.msra.mxu0 0.0
        %632 = vmatprep.subr.mxu0 0.0
        %633 = vmatpush2.msra.mxu0 0.0
        %634 = vmatprep.subr.mxu0 0.0
        %635 = vmatpush2.msra.mxu0 0.0
        %636 = vmatprep.subr.mxu0 0.0
        %637 = vmatpush2.msra.mxu0 0.0
        %638 = vmatprep.subr.mxu0 0.0
        %639 = vmatpush2.msra.mxu0 0.0
        %640 = vmatprep.subr.mxu0 0.0
        %641 = vmatpush2.msra.mxu0 0.0
        %642 = vmatprep.subr.mxu0 0.0
        %643 = vmatpush2.msra.mxu0 0.0
        %644 = vmatprep.subr.mxu0 0.0
        %645 = vmatpush2.msra.mxu0 0.0
        %646 = vmatprep.subr.mxu0 0.0
        %647 = vmatpush2.msra.mxu0 0.0
        %648 = vmatprep.subr.mxu0 0.0
        %649 = vmatpush2.msra.mxu0 0.0
        %650 = vmatprep.subr.mxu0 0.0
        %651 = vmatpush2.msra.mxu0 0.0
        %652 = vmatprep.subr.mxu0 0.0
        %653 = vmatpush2.msra.mxu0 0.0
        %654 = vmatprep.subr.mxu0 0.0
        %655 = vmatpush2.msra.mxu0 0.0
        %656 = vmatprep.subr.mxu0 0.0
        %657 = vmatpush2.msra.mxu0 0.0
        %658 = vmatprep.subr.mxu0 0.0
        %659 = vmatpush2.msra.mxu0 0.0
        %660 = vmatprep.mubr.f32.mxu0 0.0
        %661 = vmatmul.mubr.f32.gmra.mxu0 %v591
        %v662 = vpop.f32.mrf.mxu0
        %v663 = vadd.f32 0.0, %v662
        %v664 = vpop.f32.mrf.mxu0
        %665 = vmatprep.mubr.f32.mxu0 0.0
        %666 = vmatmul.mubr.f32.gmra.mxu0 %v594
        %v667 = vpop.f32.mrf.mxu0
        %v668 = vadd.f32 0.0, %v667
        %v669 = vpop.f32.mrf.mxu0
        %670 = vdwg.mxu0
        %v671 = vadd.f32 %v567, %v663
        %v672 = vadd.f32 %v572, %v668
        %v673 = vld [vmem:[#allocation2 + $0x18] sm:$0xff]
        %v674 = vld [vmem:[#allocation2 + $0x20] sm:$0xff]
        %s675 = scalar_lea.vmem %s3, 288
        %v676 = vld [vmem:[%s675] sm:$0xff]
        %v677 = vld [vmem:[%s675 + $0x8] sm:$0xff]
        %v678 = vld [vmem:[%s675 + $0x10] sm:$0xff]
        %v679 = vld [vmem:[%s675 + $0x18] sm:$0xff]
        %v680 = vld [vmem:[%s675 + $0x20] sm:$0xff]
        %v681 = vld [vmem:[%s675 + $0x28] sm:$0xff]
        %v682 = vld [vmem:[%s675 + $0x30] sm:$0xff]
        %v683 = vld [vmem:[%s675 + $0x38] sm:$0xff]
        %v684 = vld [vmem:[%s675 + $0x40] sm:$0xff]
        %v685 = vld [vmem:[%s675 + $0x48] sm:$0xff]
        %v686 = vld [vmem:[%s675 + $0x50] sm:$0xff]
        %v687 = vld [vmem:[%s675 + $0x58] sm:$0xff]
        %v689 = vsel %vm369, %v673, 0
        %v692 = vsel %vm369, %v674, 0
        %694 = vmatprep.subr.mxu0 0.0
        %695 = vmatpush1.msra.mxu0 0.0
        %696 = vmatprep.subr.mxu0 0.0
        %697 = vmatpush1.msra.mxu0 0.0
        %698 = vmatprep.subr.mxu0 0.0
        %699 = vmatpush1.msra.mxu0 0.0
        %700 = vmatprep.subr.mxu0 0.0
        %701 = vmatpush1.msra.mxu0 0.0
        %702 = vmatprep.subr.mxu0 0.0
        %703 = vmatpush1.msra.mxu0 %v687
        %704 = vmatprep.subr.mxu0 0.0
        %705 = vmatpush1.msra.mxu0 %v686
        %706 = vmatprep.subr.mxu0 0.0
        %707 = vmatpush1.msra.mxu0 %v685
        %708 = vmatprep.subr.mxu0 0.0
        %709 = vmatpush1.msra.mxu0 %v684
        %710 = vmatprep.subr.mxu0 0.0
        %711 = vmatpush1.msra.mxu0 %v683
        %712 = vmatprep.subr.mxu0 0.0
        %713 = vmatpush1.msra.mxu0 %v682
        %714 = vmatprep.subr.mxu0 0.0
        %715 = vmatpush1.msra.mxu0 %v681
        %716 = vmatprep.subr.mxu0 0.0
        %717 = vmatpush1.msra.mxu0 %v680
        %718 = vmatprep.subr.mxu0 0.0
        %719 = vmatpush1.msra.mxu0 %v679
        %720 = vmatprep.subr.mxu0 0.0
        %721 = vmatpush1.msra.mxu0 %v678
        %722 = vmatprep.subr.mxu0 0.0
        %723 = vmatpush1.msra.mxu0 %v677
        %724 = vmatprep.subr.mxu0 0.0
        %725 = vmatpush1.msra.mxu0 %v676
        %726 = vmatprep.subr.mxu0 0.0
        %727 = vmatpush2.msra.mxu0 0.0
        %728 = vmatprep.subr.mxu0 0.0
        %729 = vmatpush2.msra.mxu0 0.0
        %730 = vmatprep.subr.mxu0 0.0
        %731 = vmatpush2.msra.mxu0 0.0
        %732 = vmatprep.subr.mxu0 0.0
        %733 = vmatpush2.msra.mxu0 0.0
        %734 = vmatprep.subr.mxu0 0.0
        %735 = vmatpush2.msra.mxu0 0.0
        %736 = vmatprep.subr.mxu0 0.0
        %737 = vmatpush2.msra.mxu0 0.0
        %738 = vmatprep.subr.mxu0 0.0
        %739 = vmatpush2.msra.mxu0 0.0
        %740 = vmatprep.subr.mxu0 0.0
        %741 = vmatpush2.msra.mxu0 0.0
        %742 = vmatprep.subr.mxu0 0.0
        %743 = vmatpush2.msra.mxu0 0.0
        %744 = vmatprep.subr.mxu0 0.0
        %745 = vmatpush2.msra.mxu0 0.0
        %746 = vmatprep.subr.mxu0 0.0
        %747 = vmatpush2.msra.mxu0 0.0
        %748 = vmatprep.subr.mxu0 0.0
        %749 = vmatpush2.msra.mxu0 0.0
        %750 = vmatprep.subr.mxu0 0.0
        %751 = vmatpush2.msra.mxu0 0.0
        %752 = vmatprep.subr.mxu0 0.0
        %753 = vmatpush2.msra.mxu0 0.0
        %754 = vmatprep.subr.mxu0 0.0
        %755 = vmatpush2.msra.mxu0 0.0
        %756 = vmatprep.subr.mxu0 0.0
        %757 = vmatpush2.msra.mxu0 0.0
        %758 = vmatprep.mubr.f32.mxu0 0.0
        %759 = vmatmul.mubr.f32.gmra.mxu0 %v689
        %v760 = vpop.f32.mrf.mxu0
        %v761 = vadd.f32 0.0, %v760
        %v762 = vpop.f32.mrf.mxu0
        %763 = vmatprep.mubr.f32.mxu0 0.0
        %764 = vmatmul.mubr.f32.gmra.mxu0 %v692
        %v765 = vpop.f32.mrf.mxu0
        %v766 = vadd.f32 0.0, %v765
        %v767 = vpop.f32.mrf.mxu0
        %768 = vdwg.mxu0
        %v769 = vadd.f32 %v671, %v761
        %v770 = vadd.f32 %v672, %v766
        %v771 = vld [vmem:[#allocation2 + $0x20] sm:$0xff]
        %v772 = vld [vmem:[#allocation2 + $0x28] sm:$0xff]
        %s773 = scalar_lea.vmem %s3, 384
        %v774 = vld [vmem:[%s773] sm:$0xff]
        %v775 = vld [vmem:[%s773 + $0x8] sm:$0xff]
        %v776 = vld [vmem:[%s773 + $0x10] sm:$0xff]
        %v777 = vld [vmem:[%s773 + $0x18] sm:$0xff]
        %v778 = vld [vmem:[%s773 + $0x20] sm:$0xff]
        %v779 = vld [vmem:[%s773 + $0x28] sm:$0xff]
        %v780 = vld [vmem:[%s773 + $0x30] sm:$0xff]
        %v781 = vld [vmem:[%s773 + $0x38] sm:$0xff]
        %v782 = vld [vmem:[%s773 + $0x40] sm:$0xff]
        %v783 = vld [vmem:[%s773 + $0x48] sm:$0xff]
        %v784 = vld [vmem:[%s773 + $0x50] sm:$0xff]
        %v785 = vld [vmem:[%s773 + $0x58] sm:$0xff]
        %v787 = vsel %vm369, %v771, 0
        %v790 = vsel %vm369, %v772, 0
        %792 = vmatprep.subr.mxu0 0.0
        %793 = vmatpush1.msra.mxu0 0.0
        %794 = vmatprep.subr.mxu0 0.0
        %795 = vmatpush1.msra.mxu0 0.0
        %796 = vmatprep.subr.mxu0 0.0
        %797 = vmatpush1.msra.mxu0 0.0
        %798 = vmatprep.subr.mxu0 0.0
        %799 = vmatpush1.msra.mxu0 0.0
        %800 = vmatprep.subr.mxu0 0.0
        %801 = vmatpush1.msra.mxu0 %v785
        %802 = vmatprep.subr.mxu0 0.0
        %803 = vmatpush1.msra.mxu0 %v784
        %804 = vmatprep.subr.mxu0 0.0
        %805 = vmatpush1.msra.mxu0 %v783
        %806 = vmatprep.subr.mxu0 0.0
        %807 = vmatpush1.msra.mxu0 %v782
        %808 = vmatprep.subr.mxu0 0.0
        %809 = vmatpush1.msra.mxu0 %v781
        %810 = vmatprep.subr.mxu0 0.0
        %811 = vmatpush1.msra.mxu0 %v780
        %812 = vmatprep.subr.mxu0 0.0
        %813 = vmatpush1.msra.mxu0 %v779
        %814 = vmatprep.subr.mxu0 0.0
        %815 = vmatpush1.msra.mxu0 %v778
        %816 = vmatprep.subr.mxu0 0.0
        %817 = vmatpush1.msra.mxu0 %v777
        %818 = vmatprep.subr.mxu0 0.0
        %819 = vmatpush1.msra.mxu0 %v776
        %820 = vmatprep.subr.mxu0 0.0
        %821 = vmatpush1.msra.mxu0 %v775
        %822 = vmatprep.subr.mxu0 0.0
        %823 = vmatpush1.msra.mxu0 %v774
        %824 = vmatprep.subr.mxu0 0.0
        %825 = vmatpush2.msra.mxu0 0.0
        %826 = vmatprep.subr.mxu0 0.0
        %827 = vmatpush2.msra.mxu0 0.0
        %828 = vmatprep.subr.mxu0 0.0
        %829 = vmatpush2.msra.mxu0 0.0
        %830 = vmatprep.subr.mxu0 0.0
        %831 = vmatpush2.msra.mxu0 0.0
        %832 = vmatprep.subr.mxu0 0.0
        %833 = vmatpush2.msra.mxu0 0.0
        %834 = vmatprep.subr.mxu0 0.0
        %835 = vmatpush2.msra.mxu0 0.0
        %836 = vmatprep.subr.mxu0 0.0
        %837 = vmatpush2.msra.mxu0 0.0
        %838 = vmatprep.subr.mxu0 0.0
        %839 = vmatpush2.msra.mxu0 0.0
        %840 = vmatprep.subr.mxu0 0.0
        %841 = vmatpush2.msra.mxu0 0.0
        %842 = vmatprep.subr.mxu0 0.0
        %843 = vmatpush2.msra.mxu0 0.0
        %844 = vmatprep.subr.mxu0 0.0
        %845 = vmatpush2.msra.mxu0 0.0
        %846 = vmatprep.subr.mxu0 0.0
        %847 = vmatpush2.msra.mxu0 0.0
        %848 = vmatprep.subr.mxu0 0.0
        %849 = vmatpush2.msra.mxu0 0.0
        %850 = vmatprep.subr.mxu0 0.0
        %851 = vmatpush2.msra.mxu0 0.0
        %852 = vmatprep.subr.mxu0 0.0
        %853 = vmatpush2.msra.mxu0 0.0
        %854 = vmatprep.subr.mxu0 0.0
        %855 = vmatpush2.msra.mxu0 0.0
        %856 = vmatprep.mubr.f32.mxu0 0.0
        %857 = vmatmul.mubr.f32.gmra.mxu0 %v787
        %v858 = vpop.f32.mrf.mxu0
        %v859 = vadd.f32 0.0, %v858
        %v860 = vpop.f32.mrf.mxu0
        %861 = vmatprep.mubr.f32.mxu0 0.0
        %862 = vmatmul.mubr.f32.gmra.mxu0 %v790
        %v863 = vpop.f32.mrf.mxu0
        %v864 = vadd.f32 0.0, %v863
        %v865 = vpop.f32.mrf.mxu0
        %866 = vdwg.mxu0
        %v867 = vadd.f32 %v769, %v859
        %v868 = vadd.f32 %v770, %v864
        %v869 = vld [vmem:[#allocation2 + $0x28] sm:$0xff]
        %v870 = vld [vmem:[#allocation2 + $0x30] sm:$0xff]
        %s871 = scalar_lea.vmem %s3, 480
        %v872 = vld [vmem:[%s871] sm:$0xff]
        %v873 = vld [vmem:[%s871 + $0x8] sm:$0xff]
        %v874 = vld [vmem:[%s871 + $0x10] sm:$0xff]
        %v875 = vld [vmem:[%s871 + $0x18] sm:$0xff]
        %v876 = vld [vmem:[%s871 + $0x20] sm:$0xff]
        %v877 = vld [vmem:[%s871 + $0x28] sm:$0xff]
        %v878 = vld [vmem:[%s871 + $0x30] sm:$0xff]
        %v879 = vld [vmem:[%s871 + $0x38] sm:$0xff]
        %v880 = vld [vmem:[%s871 + $0x40] sm:$0xff]
        %v881 = vld [vmem:[%s871 + $0x48] sm:$0xff]
        %v882 = vld [vmem:[%s871 + $0x50] sm:$0xff]
        %v883 = vld [vmem:[%s871 + $0x58] sm:$0xff]
        %v885 = vsel %vm369, %v869, 0
        %v888 = vsel %vm369, %v870, 0
        %890 = vmatprep.subr.mxu0 0.0
        %891 = vmatpush1.msra.mxu0 0.0
        %892 = vmatprep.subr.mxu0 0.0
        %893 = vmatpush1.msra.mxu0 0.0
        %894 = vmatprep.subr.mxu0 0.0
        %895 = vmatpush1.msra.mxu0 0.0
        %896 = vmatprep.subr.mxu0 0.0
        %897 = vmatpush1.msra.mxu0 0.0
        %898 = vmatprep.subr.mxu0 0.0
        %899 = vmatpush1.msra.mxu0 %v883
        %900 = vmatprep.subr.mxu0 0.0
        %901 = vmatpush1.msra.mxu0 %v882
        %902 = vmatprep.subr.mxu0 0.0
        %903 = vmatpush1.msra.mxu0 %v881
        %904 = vmatprep.subr.mxu0 0.0
        %905 = vmatpush1.msra.mxu0 %v880
        %906 = vmatprep.subr.mxu0 0.0
        %907 = vmatpush1.msra.mxu0 %v879
        %908 = vmatprep.subr.mxu0 0.0
        %909 = vmatpush1.msra.mxu0 %v878
        %910 = vmatprep.subr.mxu0 0.0
        %911 = vmatpush1.msra.mxu0 %v877
        %912 = vmatprep.subr.mxu0 0.0
        %913 = vmatpush1.msra.mxu0 %v876
        %914 = vmatprep.subr.mxu0 0.0
        %915 = vmatpush1.msra.mxu0 %v875
        %916 = vmatprep.subr.mxu0 0.0
        %917 = vmatpush1.msra.mxu0 %v874
        %918 = vmatprep.subr.mxu0 0.0
        %919 = vmatpush1.msra.mxu0 %v873
        %920 = vmatprep.subr.mxu0 0.0
        %921 = vmatpush1.msra.mxu0 %v872
        %922 = vmatprep.subr.mxu0 0.0
        %923 = vmatpush2.msra.mxu0 0.0
        %924 = vmatprep.subr.mxu0 0.0
        %925 = vmatpush2.msra.mxu0 0.0
        %926 = vmatprep.subr.mxu0 0.0
        %927 = vmatpush2.msra.mxu0 0.0
        %928 = vmatprep.subr.mxu0 0.0
        %929 = vmatpush2.msra.mxu0 0.0
        %930 = vmatprep.subr.mxu0 0.0
        %931 = vmatpush2.msra.mxu0 0.0
        %932 = vmatprep.subr.mxu0 0.0
        %933 = vmatpush2.msra.mxu0 0.0
        %934 = vmatprep.subr.mxu0 0.0
        %935 = vmatpush2.msra.mxu0 0.0
        %936 = vmatprep.subr.mxu0 0.0
        %937 = vmatpush2.msra.mxu0 0.0
        %938 = vmatprep.subr.mxu0 0.0
        %939 = vmatpush2.msra.mxu0 0.0
        %940 = vmatprep.subr.mxu0 0.0
        %941 = vmatpush2.msra.mxu0 0.0
        %942 = vmatprep.subr.mxu0 0.0
        %943 = vmatpush2.msra.mxu0 0.0
        %944 = vmatprep.subr.mxu0 0.0
        %945 = vmatpush2.msra.mxu0 0.0
        %946 = vmatprep.subr.mxu0 0.0
        %947 = vmatpush2.msra.mxu0 0.0
        %948 = vmatprep.subr.mxu0 0.0
        %949 = vmatpush2.msra.mxu0 0.0
        %950 = vmatprep.subr.mxu0 0.0
        %951 = vmatpush2.msra.mxu0 0.0
        %952 = vmatprep.subr.mxu0 0.0
        %953 = vmatpush2.msra.mxu0 0.0
        %954 = vmatprep.mubr.f32.mxu0 0.0
        %955 = vmatmul.mubr.f32.gmra.mxu0 %v885
        %v956 = vpop.f32.mrf.mxu0
        %v957 = vadd.f32 0.0, %v956
        %v958 = vpop.f32.mrf.mxu0
        %959 = vmatprep.mubr.f32.mxu0 0.0
        %960 = vmatmul.mubr.f32.gmra.mxu0 %v888
        %v961 = vpop.f32.mrf.mxu0
        %v962 = vadd.f32 0.0, %v961
        %v963 = vpop.f32.mrf.mxu0
        %964 = vdwg.mxu0
        %v965 = vadd.f32 %v867, %v957
        %v966 = vadd.f32 %v868, %v962
        %v967 = vld [vmem:[#allocation2 + $0x30] sm:$0xff]
        %v968 = vld [vmem:[#allocation2 + $0x38] sm:$0xff]
        %s969 = scalar_lea.vmem %s3, 576
        %v970 = vld [vmem:[%s969] sm:$0xff]
        %v971 = vld [vmem:[%s969 + $0x8] sm:$0xff]
        %v972 = vld [vmem:[%s969 + $0x10] sm:$0xff]
        %v973 = vld [vmem:[%s969 + $0x18] sm:$0xff]
        %v974 = vld [vmem:[%s969 + $0x20] sm:$0xff]
        %v975 = vld [vmem:[%s969 + $0x28] sm:$0xff]
        %v976 = vld [vmem:[%s969 + $0x30] sm:$0xff]
        %v977 = vld [vmem:[%s969 + $0x38] sm:$0xff]
        %v978 = vld [vmem:[%s969 + $0x40] sm:$0xff]
        %v979 = vld [vmem:[%s969 + $0x48] sm:$0xff]
        %v980 = vld [vmem:[%s969 + $0x50] sm:$0xff]
        %v981 = vld [vmem:[%s969 + $0x58] sm:$0xff]
        %v983 = vsel %vm369, %v967, 0
        %v986 = vsel %vm369, %v968, 0
        %988 = vmatprep.subr.mxu0 0.0
        %989 = vmatpush1.msra.mxu0 0.0
        %990 = vmatprep.subr.mxu0 0.0
        %991 = vmatpush1.msra.mxu0 0.0
        %992 = vmatprep.subr.mxu0 0.0
        %993 = vmatpush1.msra.mxu0 0.0
        %994 = vmatprep.subr.mxu0 0.0
        %995 = vmatpush1.msra.mxu0 0.0
        %996 = vmatprep.subr.mxu0 0.0
        %997 = vmatpush1.msra.mxu0 %v981
        %998 = vmatprep.subr.mxu0 0.0
        %999 = vmatpush1.msra.mxu0 %v980
        %1000 = vmatprep.subr.mxu0 0.0
        %1001 = vmatpush1.msra.mxu0 %v979
        %1002 = vmatprep.subr.mxu0 0.0
        %1003 = vmatpush1.msra.mxu0 %v978
        %1004 = vmatprep.subr.mxu0 0.0
        %1005 = vmatpush1.msra.mxu0 %v977
        %1006 = vmatprep.subr.mxu0 0.0
        %1007 = vmatpush1.msra.mxu0 %v976
        %1008 = vmatprep.subr.mxu0 0.0
        %1009 = vmatpush1.msra.mxu0 %v975
        %1010 = vmatprep.subr.mxu0 0.0
        %1011 = vmatpush1.msra.mxu0 %v974
        %1012 = vmatprep.subr.mxu0 0.0
        %1013 = vmatpush1.msra.mxu0 %v973
        %1014 = vmatprep.subr.mxu0 0.0
        %1015 = vmatpush1.msra.mxu0 %v972
        %1016 = vmatprep.subr.mxu0 0.0
        %1017 = vmatpush1.msra.mxu0 %v971
        %1018 = vmatprep.subr.mxu0 0.0
        %1019 = vmatpush1.msra.mxu0 %v970
        %1020 = vmatprep.subr.mxu0 0.0
        %1021 = vmatpush2.msra.mxu0 0.0
        %1022 = vmatprep.subr.mxu0 0.0
        %1023 = vmatpush2.msra.mxu0 0.0
        %1024 = vmatprep.subr.mxu0 0.0
        %1025 = vmatpush2.msra.mxu0 0.0
        %1026 = vmatprep.subr.mxu0 0.0
        %1027 = vmatpush2.msra.mxu0 0.0
        %1028 = vmatprep.subr.mxu0 0.0
        %1029 = vmatpush2.msra.mxu0 0.0
        %1030 = vmatprep.subr.mxu0 0.0
        %1031 = vmatpush2.msra.mxu0 0.0
        %1032 = vmatprep.subr.mxu0 0.0
        %1033 = vmatpush2.msra.mxu0 0.0
        %1034 = vmatprep.subr.mxu0 0.0
        %1035 = vmatpush2.msra.mxu0 0.0
        %1036 = vmatprep.subr.mxu0 0.0
        %1037 = vmatpush2.msra.mxu0 0.0
        %1038 = vmatprep.subr.mxu0 0.0
        %1039 = vmatpush2.msra.mxu0 0.0
        %1040 = vmatprep.subr.mxu0 0.0
        %1041 = vmatpush2.msra.mxu0 0.0
        %1042 = vmatprep.subr.mxu0 0.0
        %1043 = vmatpush2.msra.mxu0 0.0
        %1044 = vmatprep.subr.mxu0 0.0
        %1045 = vmatpush2.msra.mxu0 0.0
        %1046 = vmatprep.subr.mxu0 0.0
        %1047 = vmatpush2.msra.mxu0 0.0
        %1048 = vmatprep.subr.mxu0 0.0
        %1049 = vmatpush2.msra.mxu0 0.0
        %1050 = vmatprep.subr.mxu0 0.0
        %1051 = vmatpush2.msra.mxu0 0.0
        %1052 = vmatprep.mubr.f32.mxu0 0.0
        %1053 = vmatmul.mubr.f32.gmra.mxu0 %v983
        %v1054 = vpop.f32.mrf.mxu0
        %v1055 = vadd.f32 0.0, %v1054
        %v1056 = vpop.f32.mrf.mxu0
        %1057 = vmatprep.mubr.f32.mxu0 0.0
        %1058 = vmatmul.mubr.f32.gmra.mxu0 %v986
        %v1059 = vpop.f32.mrf.mxu0
        %v1060 = vadd.f32 0.0, %v1059
        %v1061 = vpop.f32.mrf.mxu0
        %1062 = vdwg.mxu0
        %v1063 = vadd.f32 %v965, %v1055
        %v1064 = vadd.f32 %v966, %v1060
        %v1065 = vld [vmem:[#allocation2 + $0x38] sm:$0xff]
        %v1066 = vld [vmem:[#allocation2 + $0x40] sm:$0xff]
        %s1067 = scalar_lea.vmem %s3, 672
        %v1068 = vld [vmem:[%s1067] sm:$0xff]
        %v1069 = vld [vmem:[%s1067 + $0x8] sm:$0xff]
        %v1070 = vld [vmem:[%s1067 + $0x10] sm:$0xff]
        %v1071 = vld [vmem:[%s1067 + $0x18] sm:$0xff]
        %v1072 = vld [vmem:[%s1067 + $0x20] sm:$0xff]
        %v1073 = vld [vmem:[%s1067 + $0x28] sm:$0xff]
        %v1074 = vld [vmem:[%s1067 + $0x30] sm:$0xff]
        %v1075 = vld [vmem:[%s1067 + $0x38] sm:$0xff]
        %v1076 = vld [vmem:[%s1067 + $0x40] sm:$0xff]
        %v1077 = vld [vmem:[%s1067 + $0x48] sm:$0xff]
        %v1078 = vld [vmem:[%s1067 + $0x50] sm:$0xff]
        %v1079 = vld [vmem:[%s1067 + $0x58] sm:$0xff]
        %v1081 = vsel %vm369, %v1065, 0
        %v1084 = vsel %vm369, %v1066, 0
        %1086 = vmatprep.subr.mxu0 0.0
        %1087 = vmatpush1.msra.mxu0 0.0
        %1088 = vmatprep.subr.mxu0 0.0
        %1089 = vmatpush1.msra.mxu0 0.0
        %1090 = vmatprep.subr.mxu0 0.0
        %1091 = vmatpush1.msra.mxu0 0.0
        %1092 = vmatprep.subr.mxu0 0.0
        %1093 = vmatpush1.msra.mxu0 0.0
        %1094 = vmatprep.subr.mxu0 0.0
        %1095 = vmatpush1.msra.mxu0 %v1079
        %1096 = vmatprep.subr.mxu0 0.0
        %1097 = vmatpush1.msra.mxu0 %v1078
        %1098 = vmatprep.subr.mxu0 0.0
        %1099 = vmatpush1.msra.mxu0 %v1077
        %1100 = vmatprep.subr.mxu0 0.0
        %1101 = vmatpush1.msra.mxu0 %v1076
        %1102 = vmatprep.subr.mxu0 0.0
        %1103 = vmatpush1.msra.mxu0 %v1075
        %1104 = vmatprep.subr.mxu0 0.0
        %1105 = vmatpush1.msra.mxu0 %v1074
        %1106 = vmatprep.subr.mxu0 0.0
        %1107 = vmatpush1.msra.mxu0 %v1073
        %1108 = vmatprep.subr.mxu0 0.0
        %1109 = vmatpush1.msra.mxu0 %v1072
        %1110 = vmatprep.subr.mxu0 0.0
        %1111 = vmatpush1.msra.mxu0 %v1071
        %1112 = vmatprep.subr.mxu0 0.0
        %1113 = vmatpush1.msra.mxu0 %v1070
        %1114 = vmatprep.subr.mxu0 0.0
        %1115 = vmatpush1.msra.mxu0 %v1069
        %1116 = vmatprep.subr.mxu0 0.0
        %1117 = vmatpush1.msra.mxu0 %v1068
        %1118 = vmatprep.subr.mxu0 0.0
        %1119 = vmatpush2.msra.mxu0 0.0
        %1120 = vmatprep.subr.mxu0 0.0
        %1121 = vmatpush2.msra.mxu0 0.0
        %1122 = vmatprep.subr.mxu0 0.0
        %1123 = vmatpush2.msra.mxu0 0.0
        %1124 = vmatprep.subr.mxu0 0.0
        %1125 = vmatpush2.msra.mxu0 0.0
        %1126 = vmatprep.subr.mxu0 0.0
        %1127 = vmatpush2.msra.mxu0 0.0
        %1128 = vmatprep.subr.mxu0 0.0
        %1129 = vmatpush2.msra.mxu0 0.0
        %1130 = vmatprep.subr.mxu0 0.0
        %1131 = vmatpush2.msra.mxu0 0.0
        %1132 = vmatprep.subr.mxu0 0.0
        %1133 = vmatpush2.msra.mxu0 0.0
        %1134 = vmatprep.subr.mxu0 0.0
        %1135 = vmatpush2.msra.mxu0 0.0
        %1136 = vmatprep.subr.mxu0 0.0
        %1137 = vmatpush2.msra.mxu0 0.0
        %1138 = vmatprep.subr.mxu0 0.0
        %1139 = vmatpush2.msra.mxu0 0.0
        %1140 = vmatprep.subr.mxu0 0.0
        %1141 = vmatpush2.msra.mxu0 0.0
        %1142 = vmatprep.subr.mxu0 0.0
        %1143 = vmatpush2.msra.mxu0 0.0
        %1144 = vmatprep.subr.mxu0 0.0
        %1145 = vmatpush2.msra.mxu0 0.0
        %1146 = vmatprep.subr.mxu0 0.0
        %1147 = vmatpush2.msra.mxu0 0.0
        %1148 = vmatprep.subr.mxu0 0.0
        %1149 = vmatpush2.msra.mxu0 0.0
        %1150 = vmatprep.mubr.f32.mxu0 0.0
        %1151 = vmatmul.mubr.f32.gmra.mxu0 %v1081
        %v1152 = vpop.f32.mrf.mxu0
        %v1153 = vadd.f32 0.0, %v1152
        %v1154 = vpop.f32.mrf.mxu0
        %1155 = vmatprep.mubr.f32.mxu0 0.0
        %1156 = vmatmul.mubr.f32.gmra.mxu0 %v1084
        %v1157 = vpop.f32.mrf.mxu0
        %v1158 = vadd.f32 0.0, %v1157
        %v1159 = vpop.f32.mrf.mxu0
        %1160 = vdwg.mxu0
        %v1161 = vadd.f32 %v1063, %v1153
        %v1162 = vadd.f32 %v1064, %v1158
        %v1163 = vld [vmem:[#allocation2 + $0x40] sm:$0xff]
        %v1164 = vld [vmem:[#allocation2 + $0x48] sm:$0xff]
        %s1165 = scalar_lea.vmem %s3, 768
        %v1166 = vld [vmem:[%s1165] sm:$0xff]
        %v1167 = vld [vmem:[%s1165 + $0x8] sm:$0xff]
        %v1168 = vld [vmem:[%s1165 + $0x10] sm:$0xff]
        %v1169 = vld [vmem:[%s1165 + $0x18] sm:$0xff]
        %v1170 = vld [vmem:[%s1165 + $0x20] sm:$0xff]
        %v1171 = vld [vmem:[%s1165 + $0x28] sm:$0xff]
        %v1172 = vld [vmem:[%s1165 + $0x30] sm:$0xff]
        %v1173 = vld [vmem:[%s1165 + $0x38] sm:$0xff]
        %v1174 = vld [vmem:[%s1165 + $0x40] sm:$0xff]
        %v1175 = vld [vmem:[%s1165 + $0x48] sm:$0xff]
        %v1176 = vld [vmem:[%s1165 + $0x50] sm:$0xff]
        %v1177 = vld [vmem:[%s1165 + $0x58] sm:$0xff]
        %v1179 = vsel %vm369, %v1163, 0
        %v1182 = vsel %vm369, %v1164, 0
        %1184 = vmatprep.subr.mxu0 0.0
        %1185 = vmatpush1.msra.mxu0 0.0
        %1186 = vmatprep.subr.mxu0 0.0
        %1187 = vmatpush1.msra.mxu0 0.0
        %1188 = vmatprep.subr.mxu0 0.0
        %1189 = vmatpush1.msra.mxu0 0.0
        %1190 = vmatprep.subr.mxu0 0.0
        %1191 = vmatpush1.msra.mxu0 0.0
        %1192 = vmatprep.subr.mxu0 0.0
        %1193 = vmatpush1.msra.mxu0 %v1177
        %1194 = vmatprep.subr.mxu0 0.0
        %1195 = vmatpush1.msra.mxu0 %v1176
        %1196 = vmatprep.subr.mxu0 0.0
        %1197 = vmatpush1.msra.mxu0 %v1175
        %1198 = vmatprep.subr.mxu0 0.0
        %1199 = vmatpush1.msra.mxu0 %v1174
        %1200 = vmatprep.subr.mxu0 0.0
        %1201 = vmatpush1.msra.mxu0 %v1173
        %1202 = vmatprep.subr.mxu0 0.0
        %1203 = vmatpush1.msra.mxu0 %v1172
        %1204 = vmatprep.subr.mxu0 0.0
        %1205 = vmatpush1.msra.mxu0 %v1171
        %1206 = vmatprep.subr.mxu0 0.0
        %1207 = vmatpush1.msra.mxu0 %v1170
        %1208 = vmatprep.subr.mxu0 0.0
        %1209 = vmatpush1.msra.mxu0 %v1169
        %1210 = vmatprep.subr.mxu0 0.0
        %1211 = vmatpush1.msra.mxu0 %v1168
        %1212 = vmatprep.subr.mxu0 0.0
        %1213 = vmatpush1.msra.mxu0 %v1167
        %1214 = vmatprep.subr.mxu0 0.0
        %1215 = vmatpush1.msra.mxu0 %v1166
        %1216 = vmatprep.subr.mxu0 0.0
        %1217 = vmatpush2.msra.mxu0 0.0
        %1218 = vmatprep.subr.mxu0 0.0
        %1219 = vmatpush2.msra.mxu0 0.0
        %1220 = vmatprep.subr.mxu0 0.0
        %1221 = vmatpush2.msra.mxu0 0.0
        %1222 = vmatprep.subr.mxu0 0.0
        %1223 = vmatpush2.msra.mxu0 0.0
        %1224 = vmatprep.subr.mxu0 0.0
        %1225 = vmatpush2.msra.mxu0 0.0
        %1226 = vmatprep.subr.mxu0 0.0
        %1227 = vmatpush2.msra.mxu0 0.0
        %1228 = vmatprep.subr.mxu0 0.0
        %1229 = vmatpush2.msra.mxu0 0.0
        %1230 = vmatprep.subr.mxu0 0.0
        %1231 = vmatpush2.msra.mxu0 0.0
        %1232 = vmatprep.subr.mxu0 0.0
        %1233 = vmatpush2.msra.mxu0 0.0
        %1234 = vmatprep.subr.mxu0 0.0
        %1235 = vmatpush2.msra.mxu0 0.0
        %1236 = vmatprep.subr.mxu0 0.0
        %1237 = vmatpush2.msra.mxu0 0.0
        %1238 = vmatprep.subr.mxu0 0.0
        %1239 = vmatpush2.msra.mxu0 0.0
        %1240 = vmatprep.subr.mxu0 0.0
        %1241 = vmatpush2.msra.mxu0 0.0
        %1242 = vmatprep.subr.mxu0 0.0
        %1243 = vmatpush2.msra.mxu0 0.0
        %1244 = vmatprep.subr.mxu0 0.0
        %1245 = vmatpush2.msra.mxu0 0.0
        %1246 = vmatprep.subr.mxu0 0.0
        %1247 = vmatpush2.msra.mxu0 0.0
        %1248 = vmatprep.mubr.f32.mxu0 0.0
        %1249 = vmatmul.mubr.f32.gmra.mxu0 %v1179
        %v1250 = vpop.f32.mrf.mxu0
        %v1251 = vadd.f32 0.0, %v1250
        %v1252 = vpop.f32.mrf.mxu0
        %1253 = vmatprep.mubr.f32.mxu0 0.0
        %1254 = vmatmul.mubr.f32.gmra.mxu0 %v1182
        %v1255 = vpop.f32.mrf.mxu0
        %v1256 = vadd.f32 0.0, %v1255
        %v1257 = vpop.f32.mrf.mxu0
        %1258 = vdwg.mxu0
        %v1259 = vadd.f32 %v1161, %v1251
        %v1260 = vadd.f32 %v1162, %v1256
        %v1261 = vld [vmem:[#allocation2 + $0x48] sm:$0xff]
        %v1262 = vld [vmem:[#allocation2 + $0x50] sm:$0xff]
        %s1263 = scalar_lea.vmem %s3, 864
        %v1264 = vld [vmem:[%s1263] sm:$0xff]
        %v1265 = vld [vmem:[%s1263 + $0x8] sm:$0xff]
        %v1266 = vld [vmem:[%s1263 + $0x10] sm:$0xff]
        %v1267 = vld [vmem:[%s1263 + $0x18] sm:$0xff]
        %v1268 = vld [vmem:[%s1263 + $0x20] sm:$0xff]
        %v1269 = vld [vmem:[%s1263 + $0x28] sm:$0xff]
        %v1270 = vld [vmem:[%s1263 + $0x30] sm:$0xff]
        %v1271 = vld [vmem:[%s1263 + $0x38] sm:$0xff]
        %v1272 = vld [vmem:[%s1263 + $0x40] sm:$0xff]
        %v1273 = vld [vmem:[%s1263 + $0x48] sm:$0xff]
        %v1274 = vld [vmem:[%s1263 + $0x50] sm:$0xff]
        %v1275 = vld [vmem:[%s1263 + $0x58] sm:$0xff]
        %v1277 = vsel %vm369, %v1261, 0
        %v1280 = vsel %vm369, %v1262, 0
        %1282 = vmatprep.subr.mxu0 0.0
        %1283 = vmatpush1.msra.mxu0 0.0
        %1284 = vmatprep.subr.mxu0 0.0
        %1285 = vmatpush1.msra.mxu0 0.0
        %1286 = vmatprep.subr.mxu0 0.0
        %1287 = vmatpush1.msra.mxu0 0.0
        %1288 = vmatprep.subr.mxu0 0.0
        %1289 = vmatpush1.msra.mxu0 0.0
        %1290 = vmatprep.subr.mxu0 0.0
        %1291 = vmatpush1.msra.mxu0 %v1275
        %1292 = vmatprep.subr.mxu0 0.0
        %1293 = vmatpush1.msra.mxu0 %v1274
        %1294 = vmatprep.subr.mxu0 0.0
        %1295 = vmatpush1.msra.mxu0 %v1273
        %1296 = vmatprep.subr.mxu0 0.0
        %1297 = vmatpush1.msra.mxu0 %v1272
        %1298 = vmatprep.subr.mxu0 0.0
        %1299 = vmatpush1.msra.mxu0 %v1271
        %1300 = vmatprep.subr.mxu0 0.0
        %1301 = vmatpush1.msra.mxu0 %v1270
        %1302 = vmatprep.subr.mxu0 0.0
        %1303 = vmatpush1.msra.mxu0 %v1269
        %1304 = vmatprep.subr.mxu0 0.0
        %1305 = vmatpush1.msra.mxu0 %v1268
        %1306 = vmatprep.subr.mxu0 0.0
        %1307 = vmatpush1.msra.mxu0 %v1267
        %1308 = vmatprep.subr.mxu0 0.0
        %1309 = vmatpush1.msra.mxu0 %v1266
        %1310 = vmatprep.subr.mxu0 0.0
        %1311 = vmatpush1.msra.mxu0 %v1265
        %1312 = vmatprep.subr.mxu0 0.0
        %1313 = vmatpush1.msra.mxu0 %v1264
        %1314 = vmatprep.subr.mxu0 0.0
        %1315 = vmatpush2.msra.mxu0 0.0
        %1316 = vmatprep.subr.mxu0 0.0
        %1317 = vmatpush2.msra.mxu0 0.0
        %1318 = vmatprep.subr.mxu0 0.0
        %1319 = vmatpush2.msra.mxu0 0.0
        %1320 = vmatprep.subr.mxu0 0.0
        %1321 = vmatpush2.msra.mxu0 0.0
        %1322 = vmatprep.subr.mxu0 0.0
        %1323 = vmatpush2.msra.mxu0 0.0
        %1324 = vmatprep.subr.mxu0 0.0
        %1325 = vmatpush2.msra.mxu0 0.0
        %1326 = vmatprep.subr.mxu0 0.0
        %1327 = vmatpush2.msra.mxu0 0.0
        %1328 = vmatprep.subr.mxu0 0.0
        %1329 = vmatpush2.msra.mxu0 0.0
        %1330 = vmatprep.subr.mxu0 0.0
        %1331 = vmatpush2.msra.mxu0 0.0
        %1332 = vmatprep.subr.mxu0 0.0
        %1333 = vmatpush2.msra.mxu0 0.0
        %1334 = vmatprep.subr.mxu0 0.0
        %1335 = vmatpush2.msra.mxu0 0.0
        %1336 = vmatprep.subr.mxu0 0.0
        %1337 = vmatpush2.msra.mxu0 0.0
        %1338 = vmatprep.subr.mxu0 0.0
        %1339 = vmatpush2.msra.mxu0 0.0
        %1340 = vmatprep.subr.mxu0 0.0
        %1341 = vmatpush2.msra.mxu0 0.0
        %1342 = vmatprep.subr.mxu0 0.0
        %1343 = vmatpush2.msra.mxu0 0.0
        %1344 = vmatprep.subr.mxu0 0.0
        %1345 = vmatpush2.msra.mxu0 0.0
        %1346 = vmatprep.mubr.f32.mxu0 0.0
        %1347 = vmatmul.mubr.f32.gmra.mxu0 %v1277
        %v1348 = vpop.f32.mrf.mxu0
        %v1349 = vadd.f32 0.0, %v1348
        %v1350 = vpop.f32.mrf.mxu0
        %1351 = vmatprep.mubr.f32.mxu0 0.0
        %1352 = vmatmul.mubr.f32.gmra.mxu0 %v1280
        %v1353 = vpop.f32.mrf.mxu0
        %v1354 = vadd.f32 0.0, %v1353
        %v1355 = vpop.f32.mrf.mxu0
        %1356 = vdwg.mxu0
        %v1357 = vadd.f32 %v1259, %v1349
        %v1358 = vadd.f32 %v1260, %v1354
        %v1359 = vld [vmem:[#allocation2 + $0x50] sm:$0xff]
        %v1360 = vld [vmem:[#allocation2 + $0x58] sm:$0xff]
        %s1361 = scalar_lea.vmem %s3, 960
        %v1362 = vld [vmem:[%s1361] sm:$0xff]
        %v1363 = vld [vmem:[%s1361 + $0x8] sm:$0xff]
        %v1364 = vld [vmem:[%s1361 + $0x10] sm:$0xff]
        %v1365 = vld [vmem:[%s1361 + $0x18] sm:$0xff]
        %v1366 = vld [vmem:[%s1361 + $0x20] sm:$0xff]
        %v1367 = vld [vmem:[%s1361 + $0x28] sm:$0xff]
        %v1368 = vld [vmem:[%s1361 + $0x30] sm:$0xff]
        %v1369 = vld [vmem:[%s1361 + $0x38] sm:$0xff]
        %v1370 = vld [vmem:[%s1361 + $0x40] sm:$0xff]
        %v1371 = vld [vmem:[%s1361 + $0x48] sm:$0xff]
        %v1372 = vld [vmem:[%s1361 + $0x50] sm:$0xff]
        %v1373 = vld [vmem:[%s1361 + $0x58] sm:$0xff]
        %v1375 = vsel %vm369, %v1359, 0
        %v1378 = vsel %vm369, %v1360, 0
        %1380 = vmatprep.subr.mxu0 0.0
        %1381 = vmatpush1.msra.mxu0 0.0
        %1382 = vmatprep.subr.mxu0 0.0
        %1383 = vmatpush1.msra.mxu0 0.0
        %1384 = vmatprep.subr.mxu0 0.0
        %1385 = vmatpush1.msra.mxu0 0.0
        %1386 = vmatprep.subr.mxu0 0.0
        %1387 = vmatpush1.msra.mxu0 0.0
        %1388 = vmatprep.subr.mxu0 0.0
        %1389 = vmatpush1.msra.mxu0 %v1373
        %1390 = vmatprep.subr.mxu0 0.0
        %1391 = vmatpush1.msra.mxu0 %v1372
        %1392 = vmatprep.subr.mxu0 0.0
        %1393 = vmatpush1.msra.mxu0 %v1371
        %1394 = vmatprep.subr.mxu0 0.0
        %1395 = vmatpush1.msra.mxu0 %v1370
        %1396 = vmatprep.subr.mxu0 0.0
        %1397 = vmatpush1.msra.mxu0 %v1369
        %1398 = vmatprep.subr.mxu0 0.0
        %1399 = vmatpush1.msra.mxu0 %v1368
        %1400 = vmatprep.subr.mxu0 0.0
        %1401 = vmatpush1.msra.mxu0 %v1367
        %1402 = vmatprep.subr.mxu0 0.0
        %1403 = vmatpush1.msra.mxu0 %v1366
        %1404 = vmatprep.subr.mxu0 0.0
        %1405 = vmatpush1.msra.mxu0 %v1365
        %1406 = vmatprep.subr.mxu0 0.0
        %1407 = vmatpush1.msra.mxu0 %v1364
        %1408 = vmatprep.subr.mxu0 0.0
        %1409 = vmatpush1.msra.mxu0 %v1363
        %1410 = vmatprep.subr.mxu0 0.0
        %1411 = vmatpush1.msra.mxu0 %v1362
        %1412 = vmatprep.subr.mxu0 0.0
        %1413 = vmatpush2.msra.mxu0 0.0
        %1414 = vmatprep.subr.mxu0 0.0
        %1415 = vmatpush2.msra.mxu0 0.0
        %1416 = vmatprep.subr.mxu0 0.0
        %1417 = vmatpush2.msra.mxu0 0.0
        %1418 = vmatprep.subr.mxu0 0.0
        %1419 = vmatpush2.msra.mxu0 0.0
        %1420 = vmatprep.subr.mxu0 0.0
        %1421 = vmatpush2.msra.mxu0 0.0
        %1422 = vmatprep.subr.mxu0 0.0
        %1423 = vmatpush2.msra.mxu0 0.0
        %1424 = vmatprep.subr.mxu0 0.0
        %1425 = vmatpush2.msra.mxu0 0.0
        %1426 = vmatprep.subr.mxu0 0.0
        %1427 = vmatpush2.msra.mxu0 0.0
        %1428 = vmatprep.subr.mxu0 0.0
        %1429 = vmatpush2.msra.mxu0 0.0
        %1430 = vmatprep.subr.mxu0 0.0
        %1431 = vmatpush2.msra.mxu0 0.0
        %1432 = vmatprep.subr.mxu0 0.0
        %1433 = vmatpush2.msra.mxu0 0.0
        %1434 = vmatprep.subr.mxu0 0.0
        %1435 = vmatpush2.msra.mxu0 0.0
        %1436 = vmatprep.subr.mxu0 0.0
        %1437 = vmatpush2.msra.mxu0 0.0
        %1438 = vmatprep.subr.mxu0 0.0
        %1439 = vmatpush2.msra.mxu0 0.0
        %1440 = vmatprep.subr.mxu0 0.0
        %1441 = vmatpush2.msra.mxu0 0.0
        %1442 = vmatprep.subr.mxu0 0.0
        %1443 = vmatpush2.msra.mxu0 0.0
        %1444 = vmatprep.mubr.f32.mxu0 0.0
        %1445 = vmatmul.mubr.f32.gmra.mxu0 %v1375
        %v1446 = vpop.f32.mrf.mxu0
        %v1447 = vadd.f32 0.0, %v1446
        %v1448 = vpop.f32.mrf.mxu0
        %1449 = vmatprep.mubr.f32.mxu0 0.0
        %1450 = vmatmul.mubr.f32.gmra.mxu0 %v1378
        %v1451 = vpop.f32.mrf.mxu0
        %v1452 = vadd.f32 0.0, %v1451
        %v1453 = vpop.f32.mrf.mxu0
        %1454 = vdwg.mxu0
        %v1455 = vadd.f32 %v1357, %v1447
        %v1456 = vadd.f32 %v1358, %v1452
        %v1457 = vld [vmem:[#allocation2 + $0x58] sm:$0xff]
        %v1458 = vld [vmem:[#allocation2 + $0x60] sm:$0xff]
        %s1459 = scalar_lea.vmem %s3, 1056
        %v1460 = vld [vmem:[%s1459] sm:$0xff]
        %v1461 = vld [vmem:[%s1459 + $0x8] sm:$0xff]
        %v1462 = vld [vmem:[%s1459 + $0x10] sm:$0xff]
        %v1463 = vld [vmem:[%s1459 + $0x18] sm:$0xff]
        %v1464 = vld [vmem:[%s1459 + $0x20] sm:$0xff]
        %v1465 = vld [vmem:[%s1459 + $0x28] sm:$0xff]
        %v1466 = vld [vmem:[%s1459 + $0x30] sm:$0xff]
        %v1467 = vld [vmem:[%s1459 + $0x38] sm:$0xff]
        %v1468 = vld [vmem:[%s1459 + $0x40] sm:$0xff]
        %v1469 = vld [vmem:[%s1459 + $0x48] sm:$0xff]
        %v1470 = vld [vmem:[%s1459 + $0x50] sm:$0xff]
        %v1471 = vld [vmem:[%s1459 + $0x58] sm:$0xff]
        %v1473 = vsel %vm369, %v1457, 0
        %v1476 = vsel %vm369, %v1458, 0
        %1478 = vmatprep.subr.mxu0 0.0
        %1479 = vmatpush1.msra.mxu0 0.0
        %1480 = vmatprep.subr.mxu0 0.0
        %1481 = vmatpush1.msra.mxu0 0.0
        %1482 = vmatprep.subr.mxu0 0.0
        %1483 = vmatpush1.msra.mxu0 0.0
        %1484 = vmatprep.subr.mxu0 0.0
        %1485 = vmatpush1.msra.mxu0 0.0
        %1486 = vmatprep.subr.mxu0 0.0
        %1487 = vmatpush1.msra.mxu0 %v1471
        %1488 = vmatprep.subr.mxu0 0.0
        %1489 = vmatpush1.msra.mxu0 %v1470
        %1490 = vmatprep.subr.mxu0 0.0
        %1491 = vmatpush1.msra.mxu0 %v1469
        %1492 = vmatprep.subr.mxu0 0.0
        %1493 = vmatpush1.msra.mxu0 %v1468
        %1494 = vmatprep.subr.mxu0 0.0
        %1495 = vmatpush1.msra.mxu0 %v1467
        %1496 = vmatprep.subr.mxu0 0.0
        %1497 = vmatpush1.msra.mxu0 %v1466
        %1498 = vmatprep.subr.mxu0 0.0
        %1499 = vmatpush1.msra.mxu0 %v1465
        %1500 = vmatprep.subr.mxu0 0.0
        %1501 = vmatpush1.msra.mxu0 %v1464
        %1502 = vmatprep.subr.mxu0 0.0
        %1503 = vmatpush1.msra.mxu0 %v1463
        %1504 = vmatprep.subr.mxu0 0.0
        %1505 = vmatpush1.msra.mxu0 %v1462
        %1506 = vmatprep.subr.mxu0 0.0
        %1507 = vmatpush1.msra.mxu0 %v1461
        %1508 = vmatprep.subr.mxu0 0.0
        %1509 = vmatpush1.msra.mxu0 %v1460
        %1510 = vmatprep.subr.mxu0 0.0
        %1511 = vmatpush2.msra.mxu0 0.0
        %1512 = vmatprep.subr.mxu0 0.0
        %1513 = vmatpush2.msra.mxu0 0.0
        %1514 = vmatprep.subr.mxu0 0.0
        %1515 = vmatpush2.msra.mxu0 0.0
        %1516 = vmatprep.subr.mxu0 0.0
        %1517 = vmatpush2.msra.mxu0 0.0
        %1518 = vmatprep.subr.mxu0 0.0
        %1519 = vmatpush2.msra.mxu0 0.0
        %1520 = vmatprep.subr.mxu0 0.0
        %1521 = vmatpush2.msra.mxu0 0.0
        %1522 = vmatprep.subr.mxu0 0.0
        %1523 = vmatpush2.msra.mxu0 0.0
        %1524 = vmatprep.subr.mxu0 0.0
        %1525 = vmatpush2.msra.mxu0 0.0
        %1526 = vmatprep.subr.mxu0 0.0
        %1527 = vmatpush2.msra.mxu0 0.0
        %1528 = vmatprep.subr.mxu0 0.0
        %1529 = vmatpush2.msra.mxu0 0.0
        %1530 = vmatprep.subr.mxu0 0.0
        %1531 = vmatpush2.msra.mxu0 0.0
        %1532 = vmatprep.subr.mxu0 0.0
        %1533 = vmatpush2.msra.mxu0 0.0
        %1534 = vmatprep.subr.mxu0 0.0
        %1535 = vmatpush2.msra.mxu0 0.0
        %1536 = vmatprep.subr.mxu0 0.0
        %1537 = vmatpush2.msra.mxu0 0.0
        %1538 = vmatprep.subr.mxu0 0.0
        %1539 = vmatpush2.msra.mxu0 0.0
        %1540 = vmatprep.subr.mxu0 0.0
        %1541 = vmatpush2.msra.mxu0 0.0
        %1542 = vmatprep.mubr.f32.mxu0 0.0
        %1543 = vmatmul.mubr.f32.gmra.mxu0 %v1473
        %v1544 = vpop.f32.mrf.mxu0
        %v1545 = vadd.f32 0.0, %v1544
        %v1546 = vpop.f32.mrf.mxu0
        %1547 = vmatprep.mubr.f32.mxu0 0.0
        %1548 = vmatmul.mubr.f32.gmra.mxu0 %v1476
        %v1549 = vpop.f32.mrf.mxu0
        %v1550 = vadd.f32 0.0, %v1549
        %v1551 = vpop.f32.mrf.mxu0
        %1552 = vdwg.mxu0
        %v1553 = vadd.f32 %v1455, %v1545
        %v1554 = vadd.f32 %v1456, %v1550
        %v1555 = vld [vmem:[#allocation2 + $0x60] sm:$0xff]
        %v1556 = vld [vmem:[#allocation2 + $0x68] sm:$0xff]
        %s1557 = scalar_lea.vmem %s3, 1152
        %v1558 = vld [vmem:[%s1557] sm:$0xff]
        %v1559 = vld [vmem:[%s1557 + $0x8] sm:$0xff]
        %v1560 = vld [vmem:[%s1557 + $0x10] sm:$0xff]
        %v1561 = vld [vmem:[%s1557 + $0x18] sm:$0xff]
        %v1562 = vld [vmem:[%s1557 + $0x20] sm:$0xff]
        %v1563 = vld [vmem:[%s1557 + $0x28] sm:$0xff]
        %v1564 = vld [vmem:[%s1557 + $0x30] sm:$0xff]
        %v1565 = vld [vmem:[%s1557 + $0x38] sm:$0xff]
        %v1566 = vld [vmem:[%s1557 + $0x40] sm:$0xff]
        %v1567 = vld [vmem:[%s1557 + $0x48] sm:$0xff]
        %v1568 = vld [vmem:[%s1557 + $0x50] sm:$0xff]
        %v1569 = vld [vmem:[%s1557 + $0x58] sm:$0xff]
        %v1571 = vsel %vm369, %v1555, 0
        %v1574 = vsel %vm369, %v1556, 0
        %1576 = vmatprep.subr.mxu0 0.0
        %1577 = vmatpush1.msra.mxu0 0.0
        %1578 = vmatprep.subr.mxu0 0.0
        %1579 = vmatpush1.msra.mxu0 0.0
        %1580 = vmatprep.subr.mxu0 0.0
        %1581 = vmatpush1.msra.mxu0 0.0
        %1582 = vmatprep.subr.mxu0 0.0
        %1583 = vmatpush1.msra.mxu0 0.0
        %1584 = vmatprep.subr.mxu0 0.0
        %1585 = vmatpush1.msra.mxu0 %v1569
        %1586 = vmatprep.subr.mxu0 0.0
        %1587 = vmatpush1.msra.mxu0 %v1568
        %1588 = vmatprep.subr.mxu0 0.0
        %1589 = vmatpush1.msra.mxu0 %v1567
        %1590 = vmatprep.subr.mxu0 0.0
        %1591 = vmatpush1.msra.mxu0 %v1566
        %1592 = vmatprep.subr.mxu0 0.0
        %1593 = vmatpush1.msra.mxu0 %v1565
        %1594 = vmatprep.subr.mxu0 0.0
        %1595 = vmatpush1.msra.mxu0 %v1564
        %1596 = vmatprep.subr.mxu0 0.0
        %1597 = vmatpush1.msra.mxu0 %v1563
        %1598 = vmatprep.subr.mxu0 0.0
        %1599 = vmatpush1.msra.mxu0 %v1562
        %1600 = vmatprep.subr.mxu0 0.0
        %1601 = vmatpush1.msra.mxu0 %v1561
        %1602 = vmatprep.subr.mxu0 0.0
        %1603 = vmatpush1.msra.mxu0 %v1560
        %1604 = vmatprep.subr.mxu0 0.0
        %1605 = vmatpush1.msra.mxu0 %v1559
        %1606 = vmatprep.subr.mxu0 0.0
        %1607 = vmatpush1.msra.mxu0 %v1558
        %1608 = vmatprep.subr.mxu0 0.0
        %1609 = vmatpush2.msra.mxu0 0.0
        %1610 = vmatprep.subr.mxu0 0.0
        %1611 = vmatpush2.msra.mxu0 0.0
        %1612 = vmatprep.subr.mxu0 0.0
        %1613 = vmatpush2.msra.mxu0 0.0
        %1614 = vmatprep.subr.mxu0 0.0
        %1615 = vmatpush2.msra.mxu0 0.0
        %1616 = vmatprep.subr.mxu0 0.0
        %1617 = vmatpush2.msra.mxu0 0.0
        %1618 = vmatprep.subr.mxu0 0.0
        %1619 = vmatpush2.msra.mxu0 0.0
        %1620 = vmatprep.subr.mxu0 0.0
        %1621 = vmatpush2.msra.mxu0 0.0
        %1622 = vmatprep.subr.mxu0 0.0
        %1623 = vmatpush2.msra.mxu0 0.0
        %1624 = vmatprep.subr.mxu0 0.0
        %1625 = vmatpush2.msra.mxu0 0.0
        %1626 = vmatprep.subr.mxu0 0.0
        %1627 = vmatpush2.msra.mxu0 0.0
        %1628 = vmatprep.subr.mxu0 0.0
        %1629 = vmatpush2.msra.mxu0 0.0
        %1630 = vmatprep.subr.mxu0 0.0
        %1631 = vmatpush2.msra.mxu0 0.0
        %1632 = vmatprep.subr.mxu0 0.0
        %1633 = vmatpush2.msra.mxu0 0.0
        %1634 = vmatprep.subr.mxu0 0.0
        %1635 = vmatpush2.msra.mxu0 0.0
        %1636 = vmatprep.subr.mxu0 0.0
        %1637 = vmatpush2.msra.mxu0 0.0
        %1638 = vmatprep.subr.mxu0 0.0
        %1639 = vmatpush2.msra.mxu0 0.0
        %1640 = vmatprep.mubr.f32.mxu0 0.0
        %1641 = vmatmul.mubr.f32.gmra.mxu0 %v1571
        %v1642 = vpop.f32.mrf.mxu0
        %v1643 = vadd.f32 0.0, %v1642
        %v1644 = vpop.f32.mrf.mxu0
        %1645 = vmatprep.mubr.f32.mxu0 0.0
        %1646 = vmatmul.mubr.f32.gmra.mxu0 %v1574
        %v1647 = vpop.f32.mrf.mxu0
        %v1648 = vadd.f32 0.0, %v1647
        %v1649 = vpop.f32.mrf.mxu0
        %1650 = vdwg.mxu0
        %v1651 = vadd.f32 %v1553, %v1643
        %v1652 = vadd.f32 %v1554, %v1648
        %v1653 = vld [vmem:[#allocation2 + $0x68] sm:$0xff]
        %v1654 = vld [vmem:[#allocation2 + $0x70] sm:$0xff]
        %s1655 = scalar_lea.vmem %s3, 1248
        %v1656 = vld [vmem:[%s1655] sm:$0xff]
        %v1657 = vld [vmem:[%s1655 + $0x8] sm:$0xff]
        %v1658 = vld [vmem:[%s1655 + $0x10] sm:$0xff]
        %v1659 = vld [vmem:[%s1655 + $0x18] sm:$0xff]
        %v1660 = vld [vmem:[%s1655 + $0x20] sm:$0xff]
        %v1661 = vld [vmem:[%s1655 + $0x28] sm:$0xff]
        %v1662 = vld [vmem:[%s1655 + $0x30] sm:$0xff]
        %v1663 = vld [vmem:[%s1655 + $0x38] sm:$0xff]
        %v1664 = vld [vmem:[%s1655 + $0x40] sm:$0xff]
        %v1665 = vld [vmem:[%s1655 + $0x48] sm:$0xff]
        %v1666 = vld [vmem:[%s1655 + $0x50] sm:$0xff]
        %v1667 = vld [vmem:[%s1655 + $0x58] sm:$0xff]
        %v1669 = vsel %vm369, %v1653, 0
        %v1672 = vsel %vm369, %v1654, 0
        %1674 = vmatprep.subr.mxu0 0.0
        %1675 = vmatpush1.msra.mxu0 0.0
        %1676 = vmatprep.subr.mxu0 0.0
        %1677 = vmatpush1.msra.mxu0 0.0
        %1678 = vmatprep.subr.mxu0 0.0
        %1679 = vmatpush1.msra.mxu0 0.0
        %1680 = vmatprep.subr.mxu0 0.0
        %1681 = vmatpush1.msra.mxu0 0.0
        %1682 = vmatprep.subr.mxu0 0.0
        %1683 = vmatpush1.msra.mxu0 %v1667
        %1684 = vmatprep.subr.mxu0 0.0
        %1685 = vmatpush1.msra.mxu0 %v1666
        %1686 = vmatprep.subr.mxu0 0.0
        %1687 = vmatpush1.msra.mxu0 %v1665
        %1688 = vmatprep.subr.mxu0 0.0
        %1689 = vmatpush1.msra.mxu0 %v1664
        %1690 = vmatprep.subr.mxu0 0.0
        %1691 = vmatpush1.msra.mxu0 %v1663
        %1692 = vmatprep.subr.mxu0 0.0
        %1693 = vmatpush1.msra.mxu0 %v1662
        %1694 = vmatprep.subr.mxu0 0.0
        %1695 = vmatpush1.msra.mxu0 %v1661
        %1696 = vmatprep.subr.mxu0 0.0
        %1697 = vmatpush1.msra.mxu0 %v1660
        %1698 = vmatprep.subr.mxu0 0.0
        %1699 = vmatpush1.msra.mxu0 %v1659
        %1700 = vmatprep.subr.mxu0 0.0
        %1701 = vmatpush1.msra.mxu0 %v1658
        %1702 = vmatprep.subr.mxu0 0.0
        %1703 = vmatpush1.msra.mxu0 %v1657
        %1704 = vmatprep.subr.mxu0 0.0
        %1705 = vmatpush1.msra.mxu0 %v1656
        %1706 = vmatprep.subr.mxu0 0.0
        %1707 = vmatpush2.msra.mxu0 0.0
        %1708 = vmatprep.subr.mxu0 0.0
        %1709 = vmatpush2.msra.mxu0 0.0
        %1710 = vmatprep.subr.mxu0 0.0
        %1711 = vmatpush2.msra.mxu0 0.0
        %1712 = vmatprep.subr.mxu0 0.0
        %1713 = vmatpush2.msra.mxu0 0.0
        %1714 = vmatprep.subr.mxu0 0.0
        %1715 = vmatpush2.msra.mxu0 0.0
        %1716 = vmatprep.subr.mxu0 0.0
        %1717 = vmatpush2.msra.mxu0 0.0
        %1718 = vmatprep.subr.mxu0 0.0
        %1719 = vmatpush2.msra.mxu0 0.0
        %1720 = vmatprep.subr.mxu0 0.0
        %1721 = vmatpush2.msra.mxu0 0.0
        %1722 = vmatprep.subr.mxu0 0.0
        %1723 = vmatpush2.msra.mxu0 0.0
        %1724 = vmatprep.subr.mxu0 0.0
        %1725 = vmatpush2.msra.mxu0 0.0
        %1726 = vmatprep.subr.mxu0 0.0
        %1727 = vmatpush2.msra.mxu0 0.0
        %1728 = vmatprep.subr.mxu0 0.0
        %1729 = vmatpush2.msra.mxu0 0.0
        %1730 = vmatprep.subr.mxu0 0.0
        %1731 = vmatpush2.msra.mxu0 0.0
        %1732 = vmatprep.subr.mxu0 0.0
        %1733 = vmatpush2.msra.mxu0 0.0
        %1734 = vmatprep.subr.mxu0 0.0
        %1735 = vmatpush2.msra.mxu0 0.0
        %1736 = vmatprep.subr.mxu0 0.0
        %1737 = vmatpush2.msra.mxu0 0.0
        %1738 = vmatprep.mubr.f32.mxu0 0.0
        %1739 = vmatmul.mubr.f32.gmra.mxu0 %v1669
        %v1740 = vpop.f32.mrf.mxu0
        %v1741 = vadd.f32 0.0, %v1740
        %v1742 = vpop.f32.mrf.mxu0
        %1743 = vmatprep.mubr.f32.mxu0 0.0
        %1744 = vmatmul.mubr.f32.gmra.mxu0 %v1672
        %v1745 = vpop.f32.mrf.mxu0
        %v1746 = vadd.f32 0.0, %v1745
        %v1747 = vpop.f32.mrf.mxu0
        %1748 = vdwg.mxu0
        %v1749 = vadd.f32 %v1651, %v1741
        %v1750 = vadd.f32 %v1652, %v1746
        %v1751 = vld [vmem:[#allocation2 + $0x70] sm:$0xff]
        %v1752 = vld [vmem:[#allocation2 + $0x78] sm:$0xff]
        %s1753 = scalar_lea.vmem %s3, 1344
        %v1754 = vld [vmem:[%s1753] sm:$0xff]
        %v1755 = vld [vmem:[%s1753 + $0x8] sm:$0xff]
        %v1756 = vld [vmem:[%s1753 + $0x10] sm:$0xff]
        %v1757 = vld [vmem:[%s1753 + $0x18] sm:$0xff]
        %v1758 = vld [vmem:[%s1753 + $0x20] sm:$0xff]
        %v1759 = vld [vmem:[%s1753 + $0x28] sm:$0xff]
        %v1760 = vld [vmem:[%s1753 + $0x30] sm:$0xff]
        %v1761 = vld [vmem:[%s1753 + $0x38] sm:$0xff]
        %v1762 = vld [vmem:[%s1753 + $0x40] sm:$0xff]
        %v1763 = vld [vmem:[%s1753 + $0x48] sm:$0xff]
        %v1764 = vld [vmem:[%s1753 + $0x50] sm:$0xff]
        %v1765 = vld [vmem:[%s1753 + $0x58] sm:$0xff]
        %v1767 = vsel %vm369, %v1751, 0
        %v1770 = vsel %vm369, %v1752, 0
        %1772 = vmatprep.subr.mxu0 0.0
        %1773 = vmatpush1.msra.mxu0 0.0
        %1774 = vmatprep.subr.mxu0 0.0
        %1775 = vmatpush1.msra.mxu0 0.0
        %1776 = vmatprep.subr.mxu0 0.0
        %1777 = vmatpush1.msra.mxu0 0.0
        %1778 = vmatprep.subr.mxu0 0.0
        %1779 = vmatpush1.msra.mxu0 0.0
        %1780 = vmatprep.subr.mxu0 0.0
        %1781 = vmatpush1.msra.mxu0 %v1765
        %1782 = vmatprep.subr.mxu0 0.0
        %1783 = vmatpush1.msra.mxu0 %v1764
        %1784 = vmatprep.subr.mxu0 0.0
        %1785 = vmatpush1.msra.mxu0 %v1763
        %1786 = vmatprep.subr.mxu0 0.0
        %1787 = vmatpush1.msra.mxu0 %v1762
        %1788 = vmatprep.subr.mxu0 0.0
        %1789 = vmatpush1.msra.mxu0 %v1761
        %1790 = vmatprep.subr.mxu0 0.0
        %1791 = vmatpush1.msra.mxu0 %v1760
        %1792 = vmatprep.subr.mxu0 0.0
        %1793 = vmatpush1.msra.mxu0 %v1759
        %1794 = vmatprep.subr.mxu0 0.0
        %1795 = vmatpush1.msra.mxu0 %v1758
        %1796 = vmatprep.subr.mxu0 0.0
        %1797 = vmatpush1.msra.mxu0 %v1757
        %1798 = vmatprep.subr.mxu0 0.0
        %1799 = vmatpush1.msra.mxu0 %v1756
        %1800 = vmatprep.subr.mxu0 0.0
        %1801 = vmatpush1.msra.mxu0 %v1755
        %1802 = vmatprep.subr.mxu0 0.0
        %1803 = vmatpush1.msra.mxu0 %v1754
        %1804 = vmatprep.subr.mxu0 0.0
        %1805 = vmatpush2.msra.mxu0 0.0
        %1806 = vmatprep.subr.mxu0 0.0
        %1807 = vmatpush2.msra.mxu0 0.0
        %1808 = vmatprep.subr.mxu0 0.0
        %1809 = vmatpush2.msra.mxu0 0.0
        %1810 = vmatprep.subr.mxu0 0.0
        %1811 = vmatpush2.msra.mxu0 0.0
        %1812 = vmatprep.subr.mxu0 0.0
        %1813 = vmatpush2.msra.mxu0 0.0
        %1814 = vmatprep.subr.mxu0 0.0
        %1815 = vmatpush2.msra.mxu0 0.0
        %1816 = vmatprep.subr.mxu0 0.0
        %1817 = vmatpush2.msra.mxu0 0.0
        %1818 = vmatprep.subr.mxu0 0.0
        %1819 = vmatpush2.msra.mxu0 0.0
        %1820 = vmatprep.subr.mxu0 0.0
        %1821 = vmatpush2.msra.mxu0 0.0
        %1822 = vmatprep.subr.mxu0 0.0
        %1823 = vmatpush2.msra.mxu0 0.0
        %1824 = vmatprep.subr.mxu0 0.0
        %1825 = vmatpush2.msra.mxu0 0.0
        %1826 = vmatprep.subr.mxu0 0.0
        %1827 = vmatpush2.msra.mxu0 0.0
        %1828 = vmatprep.subr.mxu0 0.0
        %1829 = vmatpush2.msra.mxu0 0.0
        %1830 = vmatprep.subr.mxu0 0.0
        %1831 = vmatpush2.msra.mxu0 0.0
        %1832 = vmatprep.subr.mxu0 0.0
        %1833 = vmatpush2.msra.mxu0 0.0
        %1834 = vmatprep.subr.mxu0 0.0
        %1835 = vmatpush2.msra.mxu0 0.0
        %1836 = vmatprep.mubr.f32.mxu0 0.0
        %1837 = vmatmul.mubr.f32.gmra.mxu0 %v1767
        %v1838 = vpop.f32.mrf.mxu0
        %v1839 = vadd.f32 0.0, %v1838
        %v1840 = vpop.f32.mrf.mxu0
        %1841 = vmatprep.mubr.f32.mxu0 0.0
        %1842 = vmatmul.mubr.f32.gmra.mxu0 %v1770
        %v1843 = vpop.f32.mrf.mxu0
        %v1844 = vadd.f32 0.0, %v1843
        %v1845 = vpop.f32.mrf.mxu0
        %1846 = vdwg.mxu0
        %v1847 = vadd.f32 %v1749, %v1839
        %v1848 = vadd.f32 %v1750, %v1844
        %v1849 = vld [vmem:[#allocation2 + $0x78] sm:$0xff]
        %v1850 = vld [vmem:[#allocation2 + $0x80] sm:$0xff]
        %s1851 = scalar_lea.vmem %s3, 1440
        %v1852 = vld [vmem:[%s1851] sm:$0xff]
        %v1853 = vld [vmem:[%s1851 + $0x8] sm:$0xff]
        %v1854 = vld [vmem:[%s1851 + $0x10] sm:$0xff]
        %v1855 = vld [vmem:[%s1851 + $0x18] sm:$0xff]
        %v1856 = vld [vmem:[%s1851 + $0x20] sm:$0xff]
        %v1857 = vld [vmem:[%s1851 + $0x28] sm:$0xff]
        %v1858 = vld [vmem:[%s1851 + $0x30] sm:$0xff]
        %v1859 = vld [vmem:[%s1851 + $0x38] sm:$0xff]
        %v1860 = vld [vmem:[%s1851 + $0x40] sm:$0xff]
        %v1861 = vld [vmem:[%s1851 + $0x48] sm:$0xff]
        %v1862 = vld [vmem:[%s1851 + $0x50] sm:$0xff]
        %v1863 = vld [vmem:[%s1851 + $0x58] sm:$0xff]
        %v1865 = vsel %vm369, %v1849, 0
        %v1868 = vsel %vm369, %v1850, 0
        %1870 = vmatprep.subr.mxu0 0.0
        %1871 = vmatpush1.msra.mxu0 0.0
        %1872 = vmatprep.subr.mxu0 0.0
        %1873 = vmatpush1.msra.mxu0 0.0
        %1874 = vmatprep.subr.mxu0 0.0
        %1875 = vmatpush1.msra.mxu0 0.0
        %1876 = vmatprep.subr.mxu0 0.0
        %1877 = vmatpush1.msra.mxu0 0.0
        %1878 = vmatprep.subr.mxu0 0.0
        %1879 = vmatpush1.msra.mxu0 %v1863
        %1880 = vmatprep.subr.mxu0 0.0
        %1881 = vmatpush1.msra.mxu0 %v1862
        %1882 = vmatprep.subr.mxu0 0.0
        %1883 = vmatpush1.msra.mxu0 %v1861
        %1884 = vmatprep.subr.mxu0 0.0
        %1885 = vmatpush1.msra.mxu0 %v1860
        %1886 = vmatprep.subr.mxu0 0.0
        %1887 = vmatpush1.msra.mxu0 %v1859
        %1888 = vmatprep.subr.mxu0 0.0
        %1889 = vmatpush1.msra.mxu0 %v1858
        %1890 = vmatprep.subr.mxu0 0.0
        %1891 = vmatpush1.msra.mxu0 %v1857
        %1892 = vmatprep.subr.mxu0 0.0
        %1893 = vmatpush1.msra.mxu0 %v1856
        %1894 = vmatprep.subr.mxu0 0.0
        %1895 = vmatpush1.msra.mxu0 %v1855
        %1896 = vmatprep.subr.mxu0 0.0
        %1897 = vmatpush1.msra.mxu0 %v1854
        %1898 = vmatprep.subr.mxu0 0.0
        %1899 = vmatpush1.msra.mxu0 %v1853
        %1900 = vmatprep.subr.mxu0 0.0
        %1901 = vmatpush1.msra.mxu0 %v1852
        %1902 = vmatprep.subr.mxu0 0.0
        %1903 = vmatpush2.msra.mxu0 0.0
        %1904 = vmatprep.subr.mxu0 0.0
        %1905 = vmatpush2.msra.mxu0 0.0
        %1906 = vmatprep.subr.mxu0 0.0
        %1907 = vmatpush2.msra.mxu0 0.0
        %1908 = vmatprep.subr.mxu0 0.0
        %1909 = vmatpush2.msra.mxu0 0.0
        %1910 = vmatprep.subr.mxu0 0.0
        %1911 = vmatpush2.msra.mxu0 0.0
        %1912 = vmatprep.subr.mxu0 0.0
        %1913 = vmatpush2.msra.mxu0 0.0
        %1914 = vmatprep.subr.mxu0 0.0
        %1915 = vmatpush2.msra.mxu0 0.0
        %1916 = vmatprep.subr.mxu0 0.0
        %1917 = vmatpush2.msra.mxu0 0.0
        %1918 = vmatprep.subr.mxu0 0.0
        %1919 = vmatpush2.msra.mxu0 0.0
        %1920 = vmatprep.subr.mxu0 0.0
        %1921 = vmatpush2.msra.mxu0 0.0
        %1922 = vmatprep.subr.mxu0 0.0
        %1923 = vmatpush2.msra.mxu0 0.0
        %1924 = vmatprep.subr.mxu0 0.0
        %1925 = vmatpush2.msra.mxu0 0.0
        %1926 = vmatprep.subr.mxu0 0.0
        %1927 = vmatpush2.msra.mxu0 0.0
        %1928 = vmatprep.subr.mxu0 0.0
        %1929 = vmatpush2.msra.mxu0 0.0
        %1930 = vmatprep.subr.mxu0 0.0
        %1931 = vmatpush2.msra.mxu0 0.0
        %1932 = vmatprep.subr.mxu0 0.0
        %1933 = vmatpush2.msra.mxu0 0.0
        %1934 = vmatprep.mubr.f32.mxu0 0.0
        %1935 = vmatmul.mubr.f32.gmra.mxu0 %v1865
        %v1936 = vpop.f32.mrf.mxu0
        %v1937 = vadd.f32 0.0, %v1936
        %v1938 = vpop.f32.mrf.mxu0
        %1939 = vmatprep.mubr.f32.mxu0 0.0
        %1940 = vmatmul.mubr.f32.gmra.mxu0 %v1868
        %v1941 = vpop.f32.mrf.mxu0
        %v1942 = vadd.f32 0.0, %v1941
        %v1943 = vpop.f32.mrf.mxu0
        %1944 = vdwg.mxu0
        %v1945 = vadd.f32 %v1847, %v1937
        %v1946 = vadd.f32 %v1848, %v1942
        %v1947 = vld [vmem:[#allocation2 + $0x80] sm:$0xff]
        %v1948 = vld [vmem:[#allocation2 + $0x88] sm:$0xff]
        %s1949 = scalar_lea.vmem %s3, 1536
        %v1950 = vld [vmem:[%s1949] sm:$0xff]
        %v1951 = vld [vmem:[%s1949 + $0x8] sm:$0xff]
        %v1952 = vld [vmem:[%s1949 + $0x10] sm:$0xff]
        %v1953 = vld [vmem:[%s1949 + $0x18] sm:$0xff]
        %v1954 = vld [vmem:[%s1949 + $0x20] sm:$0xff]
        %v1955 = vld [vmem:[%s1949 + $0x28] sm:$0xff]
        %v1956 = vld [vmem:[%s1949 + $0x30] sm:$0xff]
        %v1957 = vld [vmem:[%s1949 + $0x38] sm:$0xff]
        %v1958 = vld [vmem:[%s1949 + $0x40] sm:$0xff]
        %v1959 = vld [vmem:[%s1949 + $0x48] sm:$0xff]
        %v1960 = vld [vmem:[%s1949 + $0x50] sm:$0xff]
        %v1961 = vld [vmem:[%s1949 + $0x58] sm:$0xff]
        %v1963 = vsel %vm369, %v1947, 0
        %v1966 = vsel %vm369, %v1948, 0
        %1968 = vmatprep.subr.mxu0 0.0
        %1969 = vmatpush1.msra.mxu0 0.0
        %1970 = vmatprep.subr.mxu0 0.0
        %1971 = vmatpush1.msra.mxu0 0.0
        %1972 = vmatprep.subr.mxu0 0.0
        %1973 = vmatpush1.msra.mxu0 0.0
        %1974 = vmatprep.subr.mxu0 0.0
        %1975 = vmatpush1.msra.mxu0 0.0
        %1976 = vmatprep.subr.mxu0 0.0
        %1977 = vmatpush1.msra.mxu0 %v1961
        %1978 = vmatprep.subr.mxu0 0.0
        %1979 = vmatpush1.msra.mxu0 %v1960
        %1980 = vmatprep.subr.mxu0 0.0
        %1981 = vmatpush1.msra.mxu0 %v1959
        %1982 = vmatprep.subr.mxu0 0.0
        %1983 = vmatpush1.msra.mxu0 %v1958
        %1984 = vmatprep.subr.mxu0 0.0
        %1985 = vmatpush1.msra.mxu0 %v1957
        %1986 = vmatprep.subr.mxu0 0.0
        %1987 = vmatpush1.msra.mxu0 %v1956
        %1988 = vmatprep.subr.mxu0 0.0
        %1989 = vmatpush1.msra.mxu0 %v1955
        %1990 = vmatprep.subr.mxu0 0.0
        %1991 = vmatpush1.msra.mxu0 %v1954
        %1992 = vmatprep.subr.mxu0 0.0
        %1993 = vmatpush1.msra.mxu0 %v1953
        %1994 = vmatprep.subr.mxu0 0.0
        %1995 = vmatpush1.msra.mxu0 %v1952
        %1996 = vmatprep.subr.mxu0 0.0
        %1997 = vmatpush1.msra.mxu0 %v1951
        %1998 = vmatprep.subr.mxu0 0.0
        %1999 = vmatpush1.msra.mxu0 %v1950
        %2000 = vmatprep.subr.mxu0 0.0
        %2001 = vmatpush2.msra.mxu0 0.0
        %2002 = vmatprep.subr.mxu0 0.0
        %2003 = vmatpush2.msra.mxu0 0.0
        %2004 = vmatprep.subr.mxu0 0.0
        %2005 = vmatpush2.msra.mxu0 0.0
        %2006 = vmatprep.subr.mxu0 0.0
        %2007 = vmatpush2.msra.mxu0 0.0
        %2008 = vmatprep.subr.mxu0 0.0
        %2009 = vmatpush2.msra.mxu0 0.0
        %2010 = vmatprep.subr.mxu0 0.0
        %2011 = vmatpush2.msra.mxu0 0.0
        %2012 = vmatprep.subr.mxu0 0.0
        %2013 = vmatpush2.msra.mxu0 0.0
        %2014 = vmatprep.subr.mxu0 0.0
        %2015 = vmatpush2.msra.mxu0 0.0
        %2016 = vmatprep.subr.mxu0 0.0
        %2017 = vmatpush2.msra.mxu0 0.0
        %2018 = vmatprep.subr.mxu0 0.0
        %2019 = vmatpush2.msra.mxu0 0.0
        %2020 = vmatprep.subr.mxu0 0.0
        %2021 = vmatpush2.msra.mxu0 0.0
        %2022 = vmatprep.subr.mxu0 0.0
        %2023 = vmatpush2.msra.mxu0 0.0
        %2024 = vmatprep.subr.mxu0 0.0
        %2025 = vmatpush2.msra.mxu0 0.0
        %2026 = vmatprep.subr.mxu0 0.0
        %2027 = vmatpush2.msra.mxu0 0.0
        %2028 = vmatprep.subr.mxu0 0.0
        %2029 = vmatpush2.msra.mxu0 0.0
        %2030 = vmatprep.subr.mxu0 0.0
        %2031 = vmatpush2.msra.mxu0 0.0
        %2032 = vmatprep.mubr.f32.mxu0 0.0
        %2033 = vmatmul.mubr.f32.gmra.mxu0 %v1963
        %v2034 = vpop.f32.mrf.mxu0
        %v2035 = vadd.f32 0.0, %v2034
        %v2036 = vpop.f32.mrf.mxu0
        %2037 = vmatprep.mubr.f32.mxu0 0.0
        %2038 = vmatmul.mubr.f32.gmra.mxu0 %v1966
        %v2039 = vpop.f32.mrf.mxu0
        %v2040 = vadd.f32 0.0, %v2039
        %v2041 = vpop.f32.mrf.mxu0
        %2042 = vdwg.mxu0
        %v2043 = vadd.f32 %v1945, %v2035
        %v2044 = vadd.f32 %v1946, %v2040
        %s2045 = scalar_lea.vmem %s325, %s331
        %v2046 = vld [vmem:[%s2045] sm:$0xff]
        %v2047 = vld [vmem:[%s2045 + $0x8] sm:$0xff]
        %v2048 = vld [vmem:[%s2045 + $0x10] sm:$0xff]
        %v2049 = vld [vmem:[%s2045 + $0x18] sm:$0xff]
        %v2050 = vld [vmem:[%s2045 + $0x20] sm:$0xff]
        %v2051 = vld [vmem:[%s2045 + $0x28] sm:$0xff]
        %v2052 = vld [vmem:[%s2045 + $0x30] sm:$0xff]
        %v2053 = vld [vmem:[%s2045 + $0x38] sm:$0xff]
        %v2054 = vld [vmem:[%s2045 + $0x40] sm:$0xff]
        %v2055 = vld [vmem:[%s2045 + $0x48] sm:$0xff]
        %v2056 = vld [vmem:[%s2045 + $0x50] sm:$0xff]
        %v2057 = vld [vmem:[%s2045 + $0x58] sm:$0xff]
        %v2058 = vld [vmem:[%s2045 + $0x60] sm:$0xff]
        %v2059 = vld [vmem:[%s2045 + $0x68] sm:$0xff]
        %v2060 = vld [vmem:[%s2045 + $0x70] sm:$0xff]
        %v2061 = vld [vmem:[%s2045 + $0x78] sm:$0xff]
        %v2062 = vld [vmem:[%s2045 + $0x80] sm:$0xff]
        %v2063 = vld [vmem:[%s2045 + $0x88] sm:$0xff]
        %v2064 = vtanh.pop %v2046
        %v2065 = vtanh.pop %v2047
        %v2066 = vtanh.pop %v2048
        %v2067 = vtanh.pop %v2049
        %v2068 = vtanh.pop %v2050
        %v2069 = vtanh.pop %v2051
        %v2070 = vtanh.pop %v2052
        %v2071 = vtanh.pop %v2053
        %v2072 = vtanh.pop %v2054
        %v2073 = vtanh.pop %v2055
        %v2074 = vtanh.pop %v2056
        %v2075 = vtanh.pop %v2057
        %v2076 = vtanh.pop %v2058
        %v2077 = vtanh.pop %v2059
        %v2078 = vtanh.pop %v2060
        %v2079 = vtanh.pop %v2061
        %v2080 = vtanh.pop %v2062
        %v2081 = vtanh.pop %v2063
        %2082 = vst [vmem:[#allocation3] sm:$0xff] %v2064
        %2083 = vst [vmem:[#allocation3 + $0x8] sm:$0xff] %v2065
        %2084 = vst [vmem:[#allocation3 + $0x10] sm:$0xff] %v2066
        %2085 = vst [vmem:[#allocation3 + $0x18] sm:$0xff] %v2067
        %2086 = vst [vmem:[#allocation3 + $0x20] sm:$0xff] %v2068
        %2087 = vst [vmem:[#allocation3 + $0x28] sm:$0xff] %v2069
        %2088 = vst [vmem:[#allocation3 + $0x30] sm:$0xff] %v2070
        %2089 = vst [vmem:[#allocation3 + $0x38] sm:$0xff] %v2071
        %2090 = vst [vmem:[#allocation3 + $0x40] sm:$0xff] %v2072
        %2091 = vst [vmem:[#allocation3 + $0x48] sm:$0xff] %v2073
        %2092 = vst [vmem:[#allocation3 + $0x50] sm:$0xff] %v2074
        %2093 = vst [vmem:[#allocation3 + $0x58] sm:$0xff] %v2075
        %2094 = vst [vmem:[#allocation3 + $0x60] sm:$0xff] %v2076
        %2095 = vst [vmem:[#allocation3 + $0x68] sm:$0xff] %v2077
        %2096 = vst [vmem:[#allocation3 + $0x70] sm:$0xff] %v2078
        %2097 = vst [vmem:[#allocation3 + $0x78] sm:$0xff] %v2079
        %2098 = vst [vmem:[#allocation3 + $0x80] sm:$0xff] %v2080
        %2099 = vst [vmem:[#allocation3 + $0x88] sm:$0xff] %v2081
        loop: start=0, step=1, limit=43
        $region49: #{skip_model_forward.5} parent=47 // loop_pre_header
          _
        $region50: #{skip_model_forward.5} parent=47 // loop_header
          %s2101 = sphi 0, %s2105
          %p2102 = scmp.ge.s32.totalorder %s2101, 43
          %v2106 = vphi %v2043, %v2403
          %v2107 = vphi %v2044, %v2404
        $region51: #{skip_model_forward.5} parent=47 // loop_header_branch
          %2104 = sbr.rel (%p2102) target = $region55
        $region52: #{skip_model_forward.5} parent=47 // loop_body
          %s2108 = smul.u32 %s2101, 3
          %s2109 = scalar_lea.vmem [#allocation3], %s2108
          %v2110 = vld [vmem:[%s2109] sm:$0xff]
          %v2111 = vld [vmem:[%s2109 + $0x8] sm:$0xff]
          %s2112 = smul.u32 %s2108, 128
          %s2113 = scalar_lea.vmem %s4, %s2112
          %v2114 = vld [vmem:[%s2113] sm:$0xff]
          %v2115 = vld [vmem:[%s2113 + $0x8] sm:$0xff]
          %v2116 = vld [vmem:[%s2113 + $0x10] sm:$0xff]
          %v2117 = vld [vmem:[%s2113 + $0x18] sm:$0xff]
          %v2118 = vld [vmem:[%s2113 + $0x20] sm:$0xff]
          %v2119 = vld [vmem:[%s2113 + $0x28] sm:$0xff]
          %v2120 = vld [vmem:[%s2113 + $0x30] sm:$0xff]
          %v2121 = vld [vmem:[%s2113 + $0x38] sm:$0xff]
          %v2122 = vld [vmem:[%s2113 + $0x40] sm:$0xff]
          %v2123 = vld [vmem:[%s2113 + $0x48] sm:$0xff]
          %v2124 = vld [vmem:[%s2113 + $0x50] sm:$0xff]
          %v2125 = vld [vmem:[%s2113 + $0x58] sm:$0xff]
          %v2126 = vld [vmem:[%s2113 + $0x60] sm:$0xff]
          %v2127 = vld [vmem:[%s2113 + $0x68] sm:$0xff]
          %v2128 = vld [vmem:[%s2113 + $0x70] sm:$0xff]
          %v2129 = vld [vmem:[%s2113 + $0x78] sm:$0xff]
          %2130 = vmatprep.subr.mxu0 0.0
          %2131 = vmatpush1.msra.mxu0 %v2129
          %2132 = vmatprep.subr.mxu0 0.0
          %2133 = vmatpush1.msra.mxu0 %v2128
          %2134 = vmatprep.subr.mxu0 0.0
          %2135 = vmatpush1.msra.mxu0 %v2127
          %2136 = vmatprep.subr.mxu0 0.0
          %2137 = vmatpush1.msra.mxu0 %v2126
          %2138 = vmatprep.subr.mxu0 0.0
          %2139 = vmatpush1.msra.mxu0 %v2125
          %2140 = vmatprep.subr.mxu0 0.0
          %2141 = vmatpush1.msra.mxu0 %v2124
          %2142 = vmatprep.subr.mxu0 0.0
          %2143 = vmatpush1.msra.mxu0 %v2123
          %2144 = vmatprep.subr.mxu0 0.0
          %2145 = vmatpush1.msra.mxu0 %v2122
          %2146 = vmatprep.subr.mxu0 0.0
          %2147 = vmatpush1.msra.mxu0 %v2121
          %2148 = vmatprep.subr.mxu0 0.0
          %2149 = vmatpush1.msra.mxu0 %v2120
          %2150 = vmatprep.subr.mxu0 0.0
          %2151 = vmatpush1.msra.mxu0 %v2119
          %2152 = vmatprep.subr.mxu0 0.0
          %2153 = vmatpush1.msra.mxu0 %v2118
          %2154 = vmatprep.subr.mxu0 0.0
          %2155 = vmatpush1.msra.mxu0 %v2117
          %2156 = vmatprep.subr.mxu0 0.0
          %2157 = vmatpush1.msra.mxu0 %v2116
          %2158 = vmatprep.subr.mxu0 0.0
          %2159 = vmatpush1.msra.mxu0 %v2115
          %2160 = vmatprep.subr.mxu0 0.0
          %2161 = vmatpush1.msra.mxu0 %v2114
          %2162 = vmatprep.subr.mxu0 0.0
          %2163 = vmatpush2.msra.mxu0 0.0
          %2164 = vmatprep.subr.mxu0 0.0
          %2165 = vmatpush2.msra.mxu0 0.0
          %2166 = vmatprep.subr.mxu0 0.0
          %2167 = vmatpush2.msra.mxu0 0.0
          %2168 = vmatprep.subr.mxu0 0.0
          %2169 = vmatpush2.msra.mxu0 0.0
          %2170 = vmatprep.subr.mxu0 0.0
          %2171 = vmatpush2.msra.mxu0 0.0
          %2172 = vmatprep.subr.mxu0 0.0
          %2173 = vmatpush2.msra.mxu0 0.0
          %2174 = vmatprep.subr.mxu0 0.0
          %2175 = vmatpush2.msra.mxu0 0.0
          %2176 = vmatprep.subr.mxu0 0.0
          %2177 = vmatpush2.msra.mxu0 0.0
          %2178 = vmatprep.subr.mxu0 0.0
          %2179 = vmatpush2.msra.mxu0 0.0
          %2180 = vmatprep.subr.mxu0 0.0
          %2181 = vmatpush2.msra.mxu0 0.0
          %2182 = vmatprep.subr.mxu0 0.0
          %2183 = vmatpush2.msra.mxu0 0.0
          %2184 = vmatprep.subr.mxu0 0.0
          %2185 = vmatpush2.msra.mxu0 0.0
          %2186 = vmatprep.subr.mxu0 0.0
          %2187 = vmatpush2.msra.mxu0 0.0
          %2188 = vmatprep.subr.mxu0 0.0
          %2189 = vmatpush2.msra.mxu0 0.0
          %2190 = vmatprep.subr.mxu0 0.0
          %2191 = vmatpush2.msra.mxu0 0.0
          %2192 = vmatprep.subr.mxu0 0.0
          %2193 = vmatpush2.msra.mxu0 0.0
          %2194 = vmatprep.mubr.f32.mxu0 0.0
          %2195 = vmatmul.mubr.f32.gmra.mxu0 %v2110
          %v2196 = vpop.f32.mrf.mxu0
          %v2197 = vadd.f32 0.0, %v2196
          %v2198 = vpop.f32.mrf.mxu0
          %2199 = vmatprep.mubr.f32.mxu0 0.0
          %2200 = vmatmul.mubr.f32.gmra.mxu0 %v2111
          %v2201 = vpop.f32.mrf.mxu0
          %v2202 = vadd.f32 0.0, %v2201
          %v2203 = vpop.f32.mrf.mxu0
          %2204 = vdwg.mxu0
          %v2205 = vadd.f32 %v2106, %v2197
          %v2206 = vadd.f32 %v2107, %v2202
          %s2207 = sadd.s32 %s2108, 1
          %s2208 = scalar_lea.vmem [#allocation3], %s2207
          %v2209 = vld [vmem:[%s2208] sm:$0xff]
          %v2210 = vld [vmem:[%s2208 + $0x8] sm:$0xff]
          %s2211 = smul.u32 %s2207, 128
          %s2212 = scalar_lea.vmem %s4, %s2211
          %v2213 = vld [vmem:[%s2212] sm:$0xff]
          %v2214 = vld [vmem:[%s2212 + $0x8] sm:$0xff]
          %v2215 = vld [vmem:[%s2212 + $0x10] sm:$0xff]
          %v2216 = vld [vmem:[%s2212 + $0x18] sm:$0xff]
          %v2217 = vld [vmem:[%s2212 + $0x20] sm:$0xff]
          %v2218 = vld [vmem:[%s2212 + $0x28] sm:$0xff]
          %v2219 = vld [vmem:[%s2212 + $0x30] sm:$0xff]
          %v2220 = vld [vmem:[%s2212 + $0x38] sm:$0xff]
          %v2221 = vld [vmem:[%s2212 + $0x40] sm:$0xff]
          %v2222 = vld [vmem:[%s2212 + $0x48] sm:$0xff]
          %v2223 = vld [vmem:[%s2212 + $0x50] sm:$0xff]
          %v2224 = vld [vmem:[%s2212 + $0x58] sm:$0xff]
          %v2225 = vld [vmem:[%s2212 + $0x60] sm:$0xff]
          %v2226 = vld [vmem:[%s2212 + $0x68] sm:$0xff]
          %v2227 = vld [vmem:[%s2212 + $0x70] sm:$0xff]
          %v2228 = vld [vmem:[%s2212 + $0x78] sm:$0xff]
          %2229 = vmatprep.subr.mxu0 0.0
          %2230 = vmatpush1.msra.mxu0 %v2228
          %2231 = vmatprep.subr.mxu0 0.0
          %2232 = vmatpush1.msra.mxu0 %v2227
          %2233 = vmatprep.subr.mxu0 0.0
          %2234 = vmatpush1.msra.mxu0 %v2226
          %2235 = vmatprep.subr.mxu0 0.0
          %2236 = vmatpush1.msra.mxu0 %v2225
          %2237 = vmatprep.subr.mxu0 0.0
          %2238 = vmatpush1.msra.mxu0 %v2224
          %2239 = vmatprep.subr.mxu0 0.0
          %2240 = vmatpush1.msra.mxu0 %v2223
          %2241 = vmatprep.subr.mxu0 0.0
          %2242 = vmatpush1.msra.mxu0 %v2222
          %2243 = vmatprep.subr.mxu0 0.0
          %2244 = vmatpush1.msra.mxu0 %v2221
          %2245 = vmatprep.subr.mxu0 0.0
          %2246 = vmatpush1.msra.mxu0 %v2220
          %2247 = vmatprep.subr.mxu0 0.0
          %2248 = vmatpush1.msra.mxu0 %v2219
          %2249 = vmatprep.subr.mxu0 0.0
          %2250 = vmatpush1.msra.mxu0 %v2218
          %2251 = vmatprep.subr.mxu0 0.0
          %2252 = vmatpush1.msra.mxu0 %v2217
          %2253 = vmatprep.subr.mxu0 0.0
          %2254 = vmatpush1.msra.mxu0 %v2216
          %2255 = vmatprep.subr.mxu0 0.0
          %2256 = vmatpush1.msra.mxu0 %v2215
          %2257 = vmatprep.subr.mxu0 0.0
          %2258 = vmatpush1.msra.mxu0 %v2214
          %2259 = vmatprep.subr.mxu0 0.0
          %2260 = vmatpush1.msra.mxu0 %v2213
          %2261 = vmatprep.subr.mxu0 0.0
          %2262 = vmatpush2.msra.mxu0 0.0
          %2263 = vmatprep.subr.mxu0 0.0
          %2264 = vmatpush2.msra.mxu0 0.0
          %2265 = vmatprep.subr.mxu0 0.0
          %2266 = vmatpush2.msra.mxu0 0.0
          %2267 = vmatprep.subr.mxu0 0.0
          %2268 = vmatpush2.msra.mxu0 0.0
          %2269 = vmatprep.subr.mxu0 0.0
          %2270 = vmatpush2.msra.mxu0 0.0
          %2271 = vmatprep.subr.mxu0 0.0
          %2272 = vmatpush2.msra.mxu0 0.0
          %2273 = vmatprep.subr.mxu0 0.0
          %2274 = vmatpush2.msra.mxu0 0.0
          %2275 = vmatprep.subr.mxu0 0.0
          %2276 = vmatpush2.msra.mxu0 0.0
          %2277 = vmatprep.subr.mxu0 0.0
          %2278 = vmatpush2.msra.mxu0 0.0
          %2279 = vmatprep.subr.mxu0 0.0
          %2280 = vmatpush2.msra.mxu0 0.0
          %2281 = vmatprep.subr.mxu0 0.0
          %2282 = vmatpush2.msra.mxu0 0.0
          %2283 = vmatprep.subr.mxu0 0.0
          %2284 = vmatpush2.msra.mxu0 0.0
          %2285 = vmatprep.subr.mxu0 0.0
          %2286 = vmatpush2.msra.mxu0 0.0
          %2287 = vmatprep.subr.mxu0 0.0
          %2288 = vmatpush2.msra.mxu0 0.0
          %2289 = vmatprep.subr.mxu0 0.0
          %2290 = vmatpush2.msra.mxu0 0.0
          %2291 = vmatprep.subr.mxu0 0.0
          %2292 = vmatpush2.msra.mxu0 0.0
          %2293 = vmatprep.mubr.f32.mxu0 0.0
          %2294 = vmatmul.mubr.f32.gmra.mxu0 %v2209
          %v2295 = vpop.f32.mrf.mxu0
          %v2296 = vadd.f32 0.0, %v2295
          %v2297 = vpop.f32.mrf.mxu0
          %2298 = vmatprep.mubr.f32.mxu0 0.0
          %2299 = vmatmul.mubr.f32.gmra.mxu0 %v2210
          %v2300 = vpop.f32.mrf.mxu0
          %v2301 = vadd.f32 0.0, %v2300
          %v2302 = vpop.f32.mrf.mxu0
          %2303 = vdwg.mxu0
          %v2304 = vadd.f32 %v2205, %v2296
          %v2305 = vadd.f32 %v2206, %v2301
          %s2306 = sadd.s32 %s2108, 2
          %s2307 = scalar_lea.vmem [#allocation3], %s2306
          %v2308 = vld [vmem:[%s2307] sm:$0xff]
          %v2309 = vld [vmem:[%s2307 + $0x8] sm:$0xff]
          %s2310 = smul.u32 %s2306, 128
          %s2311 = scalar_lea.vmem %s4, %s2310
          %v2312 = vld [vmem:[%s2311] sm:$0xff]
          %v2313 = vld [vmem:[%s2311 + $0x8] sm:$0xff]
          %v2314 = vld [vmem:[%s2311 + $0x10] sm:$0xff]
          %v2315 = vld [vmem:[%s2311 + $0x18] sm:$0xff]
          %v2316 = vld [vmem:[%s2311 + $0x20] sm:$0xff]
          %v2317 = vld [vmem:[%s2311 + $0x28] sm:$0xff]
          %v2318 = vld [vmem:[%s2311 + $0x30] sm:$0xff]
          %v2319 = vld [vmem:[%s2311 + $0x38] sm:$0xff]
          %v2320 = vld [vmem:[%s2311 + $0x40] sm:$0xff]
          %v2321 = vld [vmem:[%s2311 + $0x48] sm:$0xff]
          %v2322 = vld [vmem:[%s2311 + $0x50] sm:$0xff]
          %v2323 = vld [vmem:[%s2311 + $0x58] sm:$0xff]
          %v2324 = vld [vmem:[%s2311 + $0x60] sm:$0xff]
          %v2325 = vld [vmem:[%s2311 + $0x68] sm:$0xff]
          %v2326 = vld [vmem:[%s2311 + $0x70] sm:$0xff]
          %v2327 = vld [vmem:[%s2311 + $0x78] sm:$0xff]
          %2328 = vmatprep.subr.mxu0 0.0
          %2329 = vmatpush1.msra.mxu0 %v2327
          %2330 = vmatprep.subr.mxu0 0.0
          %2331 = vmatpush1.msra.mxu0 %v2326
          %2332 = vmatprep.subr.mxu0 0.0
          %2333 = vmatpush1.msra.mxu0 %v2325
          %2334 = vmatprep.subr.mxu0 0.0
          %2335 = vmatpush1.msra.mxu0 %v2324
          %2336 = vmatprep.subr.mxu0 0.0
          %2337 = vmatpush1.msra.mxu0 %v2323
          %2338 = vmatprep.subr.mxu0 0.0
          %2339 = vmatpush1.msra.mxu0 %v2322
          %2340 = vmatprep.subr.mxu0 0.0
          %2341 = vmatpush1.msra.mxu0 %v2321
          %2342 = vmatprep.subr.mxu0 0.0
          %2343 = vmatpush1.msra.mxu0 %v2320
          %2344 = vmatprep.subr.mxu0 0.0
          %2345 = vmatpush1.msra.mxu0 %v2319
          %2346 = vmatprep.subr.mxu0 0.0
          %2347 = vmatpush1.msra.mxu0 %v2318
          %2348 = vmatprep.subr.mxu0 0.0
          %2349 = vmatpush1.msra.mxu0 %v2317
          %2350 = vmatprep.subr.mxu0 0.0
          %2351 = vmatpush1.msra.mxu0 %v2316
          %2352 = vmatprep.subr.mxu0 0.0
          %2353 = vmatpush1.msra.mxu0 %v2315
          %2354 = vmatprep.subr.mxu0 0.0
          %2355 = vmatpush1.msra.mxu0 %v2314
          %2356 = vmatprep.subr.mxu0 0.0
          %2357 = vmatpush1.msra.mxu0 %v2313
          %2358 = vmatprep.subr.mxu0 0.0
          %2359 = vmatpush1.msra.mxu0 %v2312
          %2360 = vmatprep.subr.mxu0 0.0
          %2361 = vmatpush2.msra.mxu0 0.0
          %2362 = vmatprep.subr.mxu0 0.0
          %2363 = vmatpush2.msra.mxu0 0.0
          %2364 = vmatprep.subr.mxu0 0.0
          %2365 = vmatpush2.msra.mxu0 0.0
          %2366 = vmatprep.subr.mxu0 0.0
          %2367 = vmatpush2.msra.mxu0 0.0
          %2368 = vmatprep.subr.mxu0 0.0
          %2369 = vmatpush2.msra.mxu0 0.0
          %2370 = vmatprep.subr.mxu0 0.0
          %2371 = vmatpush2.msra.mxu0 0.0
          %2372 = vmatprep.subr.mxu0 0.0
          %2373 = vmatpush2.msra.mxu0 0.0
          %2374 = vmatprep.subr.mxu0 0.0
          %2375 = vmatpush2.msra.mxu0 0.0
          %2376 = vmatprep.subr.mxu0 0.0
          %2377 = vmatpush2.msra.mxu0 0.0
          %2378 = vmatprep.subr.mxu0 0.0
          %2379 = vmatpush2.msra.mxu0 0.0
          %2380 = vmatprep.subr.mxu0 0.0
          %2381 = vmatpush2.msra.mxu0 0.0
          %2382 = vmatprep.subr.mxu0 0.0
          %2383 = vmatpush2.msra.mxu0 0.0
          %2384 = vmatprep.subr.mxu0 0.0
          %2385 = vmatpush2.msra.mxu0 0.0
          %2386 = vmatprep.subr.mxu0 0.0
          %2387 = vmatpush2.msra.mxu0 0.0
          %2388 = vmatprep.subr.mxu0 0.0
          %2389 = vmatpush2.msra.mxu0 0.0
          %2390 = vmatprep.subr.mxu0 0.0
          %2391 = vmatpush2.msra.mxu0 0.0
          %2392 = vmatprep.mubr.f32.mxu0 0.0
          %2393 = vmatmul.mubr.f32.gmra.mxu0 %v2308
          %v2394 = vpop.f32.mrf.mxu0
          %v2395 = vadd.f32 0.0, %v2394
          %v2396 = vpop.f32.mrf.mxu0
          %2397 = vmatprep.mubr.f32.mxu0 0.0
          %2398 = vmatmul.mubr.f32.gmra.mxu0 %v2309
          %v2399 = vpop.f32.mrf.mxu0
          %v2400 = vadd.f32 0.0, %v2399
          %v2401 = vpop.f32.mrf.mxu0
          %2402 = vdwg.mxu0
          %v2403 = vadd.f32 %v2304, %v2395
          %v2404 = vadd.f32 %v2305, %v2400
        $region53: #{skip_model_forward.5} parent=47 // loop_footer
          %s2105 = sadd.s32 1, %s2101
        $region54: #{skip_model_forward.5} parent=47 // loop_footer_branch
          %2100 = sbr.rel target = $region50
        $region55: #{skip_model_forward.5} parent=47 // loop_exit
          _
        %s2405 = scalar_lea.vmem %s330, %s331
        %v2406 = vld [vmem:[%s2405] sm:$0xff]
        %v2407 = vld [vmem:[%s2405 + $0x8] sm:$0xff]
        %v2408 = vld [vmem:[%s2405 + $0x10] sm:$0xff]
        %v2409 = vld [vmem:[%s2405 + $0x18] sm:$0xff]
        %v2410 = vld [vmem:[%s2405 + $0x20] sm:$0xff]
        %v2411 = vld [vmem:[%s2405 + $0x28] sm:$0xff]
        %v2412 = vld [vmem:[%s2405 + $0x30] sm:$0xff]
        %v2413 = vld [vmem:[%s2405 + $0x38] sm:$0xff]
        %v2414 = vld [vmem:[%s2405 + $0x40] sm:$0xff]
        %v2415 = vld [vmem:[%s2405 + $0x48] sm:$0xff]
        %v2416 = vld [vmem:[%s2405 + $0x50] sm:$0xff]
        %v2417 = vld [vmem:[%s2405 + $0x58] sm:$0xff]
        %v2418 = vld [vmem:[%s2405 + $0x60] sm:$0xff]
        %v2419 = vld [vmem:[%s2405 + $0x68] sm:$0xff]
        %v2420 = vld [vmem:[%s2405 + $0x70] sm:$0xff]
        %v2421 = vld [vmem:[%s2405 + $0x78] sm:$0xff]
        %v2422 = vld [vmem:[%s2405 + $0x80] sm:$0xff]
        %v2423 = vld [vmem:[%s2405 + $0x88] sm:$0xff]
        %v2424 = vtanh.pop %v2406
        %v2425 = vtanh.pop %v2407
        %v2426 = vtanh.pop %v2408
        %v2427 = vtanh.pop %v2409
        %v2428 = vtanh.pop %v2410
        %v2429 = vtanh.pop %v2411
        %v2430 = vtanh.pop %v2412
        %v2431 = vtanh.pop %v2413
        %v2432 = vtanh.pop %v2414
        %v2433 = vtanh.pop %v2415
        %v2434 = vtanh.pop %v2416
        %v2435 = vtanh.pop %v2417
        %v2436 = vtanh.pop %v2418
        %v2437 = vtanh.pop %v2419
        %v2438 = vtanh.pop %v2420
        %v2439 = vtanh.pop %v2421
        %v2440 = vtanh.pop %v2422
        %v2441 = vtanh.pop %v2423
        %2442 = vst [vmem:[#allocation4] sm:$0xff] %v2424
        %2443 = vst [vmem:[#allocation4 + $0x8] sm:$0xff] %v2425
        %2444 = vst [vmem:[#allocation4 + $0x10] sm:$0xff] %v2426
        %2445 = vst [vmem:[#allocation4 + $0x18] sm:$0xff] %v2427
        %2446 = vst [vmem:[#allocation4 + $0x20] sm:$0xff] %v2428
        %2447 = vst [vmem:[#allocation4 + $0x28] sm:$0xff] %v2429
        %2448 = vst [vmem:[#allocation4 + $0x30] sm:$0xff] %v2430
        %2449 = vst [vmem:[#allocation4 + $0x38] sm:$0xff] %v2431
        %2450 = vst [vmem:[#allocation4 + $0x40] sm:$0xff] %v2432
        %2451 = vst [vmem:[#allocation4 + $0x48] sm:$0xff] %v2433
        %2452 = vst [vmem:[#allocation4 + $0x50] sm:$0xff] %v2434
        %2453 = vst [vmem:[#allocation4 + $0x58] sm:$0xff] %v2435
        %2454 = vst [vmem:[#allocation4 + $0x60] sm:$0xff] %v2436
        %2455 = vst [vmem:[#allocation4 + $0x68] sm:$0xff] %v2437
        %2456 = vst [vmem:[#allocation4 + $0x70] sm:$0xff] %v2438
        %2457 = vst [vmem:[#allocation4 + $0x78] sm:$0xff] %v2439
        %2458 = vst [vmem:[#allocation4 + $0x80] sm:$0xff] %v2440
        %2459 = vst [vmem:[#allocation4 + $0x88] sm:$0xff] %v2441
        loop: start=0, step=1, limit=43
        $region56: #{skip_model_forward.5} parent=47 // loop_pre_header
          _
        $region57: #{skip_model_forward.5} parent=47 // loop_header
          %s2461 = sphi 0, %s2465
          %p2462 = scmp.ge.s32.totalorder %s2461, 43
          %v2466 = vphi %v2106, %v2763
          %v2467 = vphi %v2107, %v2764
        $region58: #{skip_model_forward.5} parent=47 // loop_header_branch
          %2464 = sbr.rel (%p2462) target = $region62
        $region59: #{skip_model_forward.5} parent=47 // loop_body
          %s2468 = smul.u32 %s2461, 3
          %s2469 = scalar_lea.vmem [#allocation4], %s2468
          %v2470 = vld [vmem:[%s2469] sm:$0xff]
          %v2471 = vld [vmem:[%s2469 + $0x8] sm:$0xff]
          %s2472 = smul.u32 %s2468, 128
          %s2473 = scalar_lea.vmem %s5, %s2472
          %v2474 = vld [vmem:[%s2473] sm:$0xff]
          %v2475 = vld [vmem:[%s2473 + $0x8] sm:$0xff]
          %v2476 = vld [vmem:[%s2473 + $0x10] sm:$0xff]
          %v2477 = vld [vmem:[%s2473 + $0x18] sm:$0xff]
          %v2478 = vld [vmem:[%s2473 + $0x20] sm:$0xff]
          %v2479 = vld [vmem:[%s2473 + $0x28] sm:$0xff]
          %v2480 = vld [vmem:[%s2473 + $0x30] sm:$0xff]
          %v2481 = vld [vmem:[%s2473 + $0x38] sm:$0xff]
          %v2482 = vld [vmem:[%s2473 + $0x40] sm:$0xff]
          %v2483 = vld [vmem:[%s2473 + $0x48] sm:$0xff]
          %v2484 = vld [vmem:[%s2473 + $0x50] sm:$0xff]
          %v2485 = vld [vmem:[%s2473 + $0x58] sm:$0xff]
          %v2486 = vld [vmem:[%s2473 + $0x60] sm:$0xff]
          %v2487 = vld [vmem:[%s2473 + $0x68] sm:$0xff]
          %v2488 = vld [vmem:[%s2473 + $0x70] sm:$0xff]
          %v2489 = vld [vmem:[%s2473 + $0x78] sm:$0xff]
          %2490 = vmatprep.subr.mxu0 0.0
          %2491 = vmatpush1.msra.mxu0 %v2489
          %2492 = vmatprep.subr.mxu0 0.0
          %2493 = vmatpush1.msra.mxu0 %v2488
          %2494 = vmatprep.subr.mxu0 0.0
          %2495 = vmatpush1.msra.mxu0 %v2487
          %2496 = vmatprep.subr.mxu0 0.0
          %2497 = vmatpush1.msra.mxu0 %v2486
          %2498 = vmatprep.subr.mxu0 0.0
          %2499 = vmatpush1.msra.mxu0 %v2485
          %2500 = vmatprep.subr.mxu0 0.0
          %2501 = vmatpush1.msra.mxu0 %v2484
          %2502 = vmatprep.subr.mxu0 0.0
          %2503 = vmatpush1.msra.mxu0 %v2483
          %2504 = vmatprep.subr.mxu0 0.0
          %2505 = vmatpush1.msra.mxu0 %v2482
          %2506 = vmatprep.subr.mxu0 0.0
          %2507 = vmatpush1.msra.mxu0 %v2481
          %2508 = vmatprep.subr.mxu0 0.0
          %2509 = vmatpush1.msra.mxu0 %v2480
          %2510 = vmatprep.subr.mxu0 0.0
          %2511 = vmatpush1.msra.mxu0 %v2479
          %2512 = vmatprep.subr.mxu0 0.0
          %2513 = vmatpush1.msra.mxu0 %v2478
          %2514 = vmatprep.subr.mxu0 0.0
          %2515 = vmatpush1.msra.mxu0 %v2477
          %2516 = vmatprep.subr.mxu0 0.0
          %2517 = vmatpush1.msra.mxu0 %v2476
          %2518 = vmatprep.subr.mxu0 0.0
          %2519 = vmatpush1.msra.mxu0 %v2475
          %2520 = vmatprep.subr.mxu0 0.0
          %2521 = vmatpush1.msra.mxu0 %v2474
          %2522 = vmatprep.subr.mxu0 0.0
          %2523 = vmatpush2.msra.mxu0 0.0
          %2524 = vmatprep.subr.mxu0 0.0
          %2525 = vmatpush2.msra.mxu0 0.0
          %2526 = vmatprep.subr.mxu0 0.0
          %2527 = vmatpush2.msra.mxu0 0.0
          %2528 = vmatprep.subr.mxu0 0.0
          %2529 = vmatpush2.msra.mxu0 0.0
          %2530 = vmatprep.subr.mxu0 0.0
          %2531 = vmatpush2.msra.mxu0 0.0
          %2532 = vmatprep.subr.mxu0 0.0
          %2533 = vmatpush2.msra.mxu0 0.0
          %2534 = vmatprep.subr.mxu0 0.0
          %2535 = vmatpush2.msra.mxu0 0.0
          %2536 = vmatprep.subr.mxu0 0.0
          %2537 = vmatpush2.msra.mxu0 0.0
          %2538 = vmatprep.subr.mxu0 0.0
          %2539 = vmatpush2.msra.mxu0 0.0
          %2540 = vmatprep.subr.mxu0 0.0
          %2541 = vmatpush2.msra.mxu0 0.0
          %2542 = vmatprep.subr.mxu0 0.0
          %2543 = vmatpush2.msra.mxu0 0.0
          %2544 = vmatprep.subr.mxu0 0.0
          %2545 = vmatpush2.msra.mxu0 0.0
          %2546 = vmatprep.subr.mxu0 0.0
          %2547 = vmatpush2.msra.mxu0 0.0
          %2548 = vmatprep.subr.mxu0 0.0
          %2549 = vmatpush2.msra.mxu0 0.0
          %2550 = vmatprep.subr.mxu0 0.0
          %2551 = vmatpush2.msra.mxu0 0.0
          %2552 = vmatprep.subr.mxu0 0.0
          %2553 = vmatpush2.msra.mxu0 0.0
          %2554 = vmatprep.mubr.f32.mxu0 0.0
          %2555 = vmatmul.mubr.f32.gmra.mxu0 %v2470
          %v2556 = vpop.f32.mrf.mxu0
          %v2557 = vadd.f32 0.0, %v2556
          %v2558 = vpop.f32.mrf.mxu0
          %2559 = vmatprep.mubr.f32.mxu0 0.0
          %2560 = vmatmul.mubr.f32.gmra.mxu0 %v2471
          %v2561 = vpop.f32.mrf.mxu0
          %v2562 = vadd.f32 0.0, %v2561
          %v2563 = vpop.f32.mrf.mxu0
          %2564 = vdwg.mxu0
          %v2565 = vadd.f32 %v2466, %v2557
          %v2566 = vadd.f32 %v2467, %v2562
          %s2567 = sadd.s32 %s2468, 1
          %s2568 = scalar_lea.vmem [#allocation4], %s2567
          %v2569 = vld [vmem:[%s2568] sm:$0xff]
          %v2570 = vld [vmem:[%s2568 + $0x8] sm:$0xff]
          %s2571 = smul.u32 %s2567, 128
          %s2572 = scalar_lea.vmem %s5, %s2571
          %v2573 = vld [vmem:[%s2572] sm:$0xff]
          %v2574 = vld [vmem:[%s2572 + $0x8] sm:$0xff]
          %v2575 = vld [vmem:[%s2572 + $0x10] sm:$0xff]
          %v2576 = vld [vmem:[%s2572 + $0x18] sm:$0xff]
          %v2577 = vld [vmem:[%s2572 + $0x20] sm:$0xff]
          %v2578 = vld [vmem:[%s2572 + $0x28] sm:$0xff]
          %v2579 = vld [vmem:[%s2572 + $0x30] sm:$0xff]
          %v2580 = vld [vmem:[%s2572 + $0x38] sm:$0xff]
          %v2581 = vld [vmem:[%s2572 + $0x40] sm:$0xff]
          %v2582 = vld [vmem:[%s2572 + $0x48] sm:$0xff]
          %v2583 = vld [vmem:[%s2572 + $0x50] sm:$0xff]
          %v2584 = vld [vmem:[%s2572 + $0x58] sm:$0xff]
          %v2585 = vld [vmem:[%s2572 + $0x60] sm:$0xff]
          %v2586 = vld [vmem:[%s2572 + $0x68] sm:$0xff]
          %v2587 = vld [vmem:[%s2572 + $0x70] sm:$0xff]
          %v2588 = vld [vmem:[%s2572 + $0x78] sm:$0xff]
          %2589 = vmatprep.subr.mxu0 0.0
          %2590 = vmatpush1.msra.mxu0 %v2588
          %2591 = vmatprep.subr.mxu0 0.0
          %2592 = vmatpush1.msra.mxu0 %v2587
          %2593 = vmatprep.subr.mxu0 0.0
          %2594 = vmatpush1.msra.mxu0 %v2586
          %2595 = vmatprep.subr.mxu0 0.0
          %2596 = vmatpush1.msra.mxu0 %v2585
          %2597 = vmatprep.subr.mxu0 0.0
          %2598 = vmatpush1.msra.mxu0 %v2584
          %2599 = vmatprep.subr.mxu0 0.0
          %2600 = vmatpush1.msra.mxu0 %v2583
          %2601 = vmatprep.subr.mxu0 0.0
          %2602 = vmatpush1.msra.mxu0 %v2582
          %2603 = vmatprep.subr.mxu0 0.0
          %2604 = vmatpush1.msra.mxu0 %v2581
          %2605 = vmatprep.subr.mxu0 0.0
          %2606 = vmatpush1.msra.mxu0 %v2580
          %2607 = vmatprep.subr.mxu0 0.0
          %2608 = vmatpush1.msra.mxu0 %v2579
          %2609 = vmatprep.subr.mxu0 0.0
          %2610 = vmatpush1.msra.mxu0 %v2578
          %2611 = vmatprep.subr.mxu0 0.0
          %2612 = vmatpush1.msra.mxu0 %v2577
          %2613 = vmatprep.subr.mxu0 0.0
          %2614 = vmatpush1.msra.mxu0 %v2576
          %2615 = vmatprep.subr.mxu0 0.0
          %2616 = vmatpush1.msra.mxu0 %v2575
          %2617 = vmatprep.subr.mxu0 0.0
          %2618 = vmatpush1.msra.mxu0 %v2574
          %2619 = vmatprep.subr.mxu0 0.0
          %2620 = vmatpush1.msra.mxu0 %v2573
          %2621 = vmatprep.subr.mxu0 0.0
          %2622 = vmatpush2.msra.mxu0 0.0
          %2623 = vmatprep.subr.mxu0 0.0
          %2624 = vmatpush2.msra.mxu0 0.0
          %2625 = vmatprep.subr.mxu0 0.0
          %2626 = vmatpush2.msra.mxu0 0.0
          %2627 = vmatprep.subr.mxu0 0.0
          %2628 = vmatpush2.msra.mxu0 0.0
          %2629 = vmatprep.subr.mxu0 0.0
          %2630 = vmatpush2.msra.mxu0 0.0
          %2631 = vmatprep.subr.mxu0 0.0
          %2632 = vmatpush2.msra.mxu0 0.0
          %2633 = vmatprep.subr.mxu0 0.0
          %2634 = vmatpush2.msra.mxu0 0.0
          %2635 = vmatprep.subr.mxu0 0.0
          %2636 = vmatpush2.msra.mxu0 0.0
          %2637 = vmatprep.subr.mxu0 0.0
          %2638 = vmatpush2.msra.mxu0 0.0
          %2639 = vmatprep.subr.mxu0 0.0
          %2640 = vmatpush2.msra.mxu0 0.0
          %2641 = vmatprep.subr.mxu0 0.0
          %2642 = vmatpush2.msra.mxu0 0.0
          %2643 = vmatprep.subr.mxu0 0.0
          %2644 = vmatpush2.msra.mxu0 0.0
          %2645 = vmatprep.subr.mxu0 0.0
          %2646 = vmatpush2.msra.mxu0 0.0
          %2647 = vmatprep.subr.mxu0 0.0
          %2648 = vmatpush2.msra.mxu0 0.0
          %2649 = vmatprep.subr.mxu0 0.0
          %2650 = vmatpush2.msra.mxu0 0.0
          %2651 = vmatprep.subr.mxu0 0.0
          %2652 = vmatpush2.msra.mxu0 0.0
          %2653 = vmatprep.mubr.f32.mxu0 0.0
          %2654 = vmatmul.mubr.f32.gmra.mxu0 %v2569
          %v2655 = vpop.f32.mrf.mxu0
          %v2656 = vadd.f32 0.0, %v2655
          %v2657 = vpop.f32.mrf.mxu0
          %2658 = vmatprep.mubr.f32.mxu0 0.0
          %2659 = vmatmul.mubr.f32.gmra.mxu0 %v2570
          %v2660 = vpop.f32.mrf.mxu0
          %v2661 = vadd.f32 0.0, %v2660
          %v2662 = vpop.f32.mrf.mxu0
          %2663 = vdwg.mxu0
          %v2664 = vadd.f32 %v2565, %v2656
          %v2665 = vadd.f32 %v2566, %v2661
          %s2666 = sadd.s32 %s2468, 2
          %s2667 = scalar_lea.vmem [#allocation4], %s2666
          %v2668 = vld [vmem:[%s2667] sm:$0xff]
          %v2669 = vld [vmem:[%s2667 + $0x8] sm:$0xff]
          %s2670 = smul.u32 %s2666, 128
          %s2671 = scalar_lea.vmem %s5, %s2670
          %v2672 = vld [vmem:[%s2671] sm:$0xff]
          %v2673 = vld [vmem:[%s2671 + $0x8] sm:$0xff]
          %v2674 = vld [vmem:[%s2671 + $0x10] sm:$0xff]
          %v2675 = vld [vmem:[%s2671 + $0x18] sm:$0xff]
          %v2676 = vld [vmem:[%s2671 + $0x20] sm:$0xff]
          %v2677 = vld [vmem:[%s2671 + $0x28] sm:$0xff]
          %v2678 = vld [vmem:[%s2671 + $0x30] sm:$0xff]
          %v2679 = vld [vmem:[%s2671 + $0x38] sm:$0xff]
          %v2680 = vld [vmem:[%s2671 + $0x40] sm:$0xff]
          %v2681 = vld [vmem:[%s2671 + $0x48] sm:$0xff]
          %v2682 = vld [vmem:[%s2671 + $0x50] sm:$0xff]
          %v2683 = vld [vmem:[%s2671 + $0x58] sm:$0xff]
          %v2684 = vld [vmem:[%s2671 + $0x60] sm:$0xff]
          %v2685 = vld [vmem:[%s2671 + $0x68] sm:$0xff]
          %v2686 = vld [vmem:[%s2671 + $0x70] sm:$0xff]
          %v2687 = vld [vmem:[%s2671 + $0x78] sm:$0xff]
          %2688 = vmatprep.subr.mxu0 0.0
          %2689 = vmatpush1.msra.mxu0 %v2687
          %2690 = vmatprep.subr.mxu0 0.0
          %2691 = vmatpush1.msra.mxu0 %v2686
          %2692 = vmatprep.subr.mxu0 0.0
          %2693 = vmatpush1.msra.mxu0 %v2685
          %2694 = vmatprep.subr.mxu0 0.0
          %2695 = vmatpush1.msra.mxu0 %v2684
          %2696 = vmatprep.subr.mxu0 0.0
          %2697 = vmatpush1.msra.mxu0 %v2683
          %2698 = vmatprep.subr.mxu0 0.0
          %2699 = vmatpush1.msra.mxu0 %v2682
          %2700 = vmatprep.subr.mxu0 0.0
          %2701 = vmatpush1.msra.mxu0 %v2681
          %2702 = vmatprep.subr.mxu0 0.0
          %2703 = vmatpush1.msra.mxu0 %v2680
          %2704 = vmatprep.subr.mxu0 0.0
          %2705 = vmatpush1.msra.mxu0 %v2679
          %2706 = vmatprep.subr.mxu0 0.0
          %2707 = vmatpush1.msra.mxu0 %v2678
          %2708 = vmatprep.subr.mxu0 0.0
          %2709 = vmatpush1.msra.mxu0 %v2677
          %2710 = vmatprep.subr.mxu0 0.0
          %2711 = vmatpush1.msra.mxu0 %v2676
          %2712 = vmatprep.subr.mxu0 0.0
          %2713 = vmatpush1.msra.mxu0 %v2675
          %2714 = vmatprep.subr.mxu0 0.0
          %2715 = vmatpush1.msra.mxu0 %v2674
          %2716 = vmatprep.subr.mxu0 0.0
          %2717 = vmatpush1.msra.mxu0 %v2673
          %2718 = vmatprep.subr.mxu0 0.0
          %2719 = vmatpush1.msra.mxu0 %v2672
          %2720 = vmatprep.subr.mxu0 0.0
          %2721 = vmatpush2.msra.mxu0 0.0
          %2722 = vmatprep.subr.mxu0 0.0
          %2723 = vmatpush2.msra.mxu0 0.0
          %2724 = vmatprep.subr.mxu0 0.0
          %2725 = vmatpush2.msra.mxu0 0.0
          %2726 = vmatprep.subr.mxu0 0.0
          %2727 = vmatpush2.msra.mxu0 0.0
          %2728 = vmatprep.subr.mxu0 0.0
          %2729 = vmatpush2.msra.mxu0 0.0
          %2730 = vmatprep.subr.mxu0 0.0
          %2731 = vmatpush2.msra.mxu0 0.0
          %2732 = vmatprep.subr.mxu0 0.0
          %2733 = vmatpush2.msra.mxu0 0.0
          %2734 = vmatprep.subr.mxu0 0.0
          %2735 = vmatpush2.msra.mxu0 0.0
          %2736 = vmatprep.subr.mxu0 0.0
          %2737 = vmatpush2.msra.mxu0 0.0
          %2738 = vmatprep.subr.mxu0 0.0
          %2739 = vmatpush2.msra.mxu0 0.0
          %2740 = vmatprep.subr.mxu0 0.0
          %2741 = vmatpush2.msra.mxu0 0.0
          %2742 = vmatprep.subr.mxu0 0.0
          %2743 = vmatpush2.msra.mxu0 0.0
          %2744 = vmatprep.subr.mxu0 0.0
          %2745 = vmatpush2.msra.mxu0 0.0
          %2746 = vmatprep.subr.mxu0 0.0
          %2747 = vmatpush2.msra.mxu0 0.0
          %2748 = vmatprep.subr.mxu0 0.0
          %2749 = vmatpush2.msra.mxu0 0.0
          %2750 = vmatprep.subr.mxu0 0.0
          %2751 = vmatpush2.msra.mxu0 0.0
          %2752 = vmatprep.mubr.f32.mxu0 0.0
          %2753 = vmatmul.mubr.f32.gmra.mxu0 %v2668
          %v2754 = vpop.f32.mrf.mxu0
          %v2755 = vadd.f32 0.0, %v2754
          %v2756 = vpop.f32.mrf.mxu0
          %2757 = vmatprep.mubr.f32.mxu0 0.0
          %2758 = vmatmul.mubr.f32.gmra.mxu0 %v2669
          %v2759 = vpop.f32.mrf.mxu0
          %v2760 = vadd.f32 0.0, %v2759
          %v2761 = vpop.f32.mrf.mxu0
          %2762 = vdwg.mxu0
          %v2763 = vadd.f32 %v2664, %v2755
          %v2764 = vadd.f32 %v2665, %v2760
        $region60: #{skip_model_forward.5} parent=47 // loop_footer
          %s2465 = sadd.s32 1, %s2461
        $region61: #{skip_model_forward.5} parent=47 // loop_footer_branch
          %2460 = sbr.rel target = $region57
        $region62: #{skip_model_forward.5} parent=47 // loop_exit
          _
        %v2765 = vld [vmem:[%s6] sm:$0x1]
        %v2767 = vlaneseq
        %v2768 = vshrl.u32 %v2767, 7
        %v2769 = vsub.s32 0, %v2768
        %v2770 = vrot.slane %v2765, %v2769
        %v2772 = vadd.f32 %v2466, %v2770
        %v2773 = vadd.f32 %v2467, %v2770
        %2774 = vxpose.xlu0.b32.start [1/16] %v2772, 128
        %2775 = vxpose.xlu0.b32.cont [2/16] %v2773, 128
        %2776 = vxpose.xlu0.b32.cont [3/16] 0.0, 128
        %2777 = vxpose.xlu0.b32.cont [4/16] 0.0, 128
        %2778 = vxpose.xlu0.b32.cont [5/16] 0.0, 128
        %2779 = vxpose.xlu0.b32.cont [6/16] 0.0, 128
        %2780 = vxpose.xlu0.b32.cont [7/16] 0.0, 128
        %2781 = vxpose.xlu0.b32.cont [8/16] 0.0, 128
        %2782 = vxpose.xlu0.b32.cont [9/16] 0.0, 128
        %2783 = vxpose.xlu0.b32.cont [10/16] 0.0, 128
        %2784 = vxpose.xlu0.b32.cont [11/16] 0.0, 128
        %2785 = vxpose.xlu0.b32.cont [12/16] 0.0, 128
        %2786 = vxpose.xlu0.b32.cont [13/16] 0.0, 128
        %2787 = vxpose.xlu0.b32.cont [14/16] 0.0, 128
        %2788 = vxpose.xlu0.b32.cont [15/16] 0.0, 128
        %2789 = vxpose.xlu0.b32.end [16/16] 0.0, 128
        %v2790 = vpop.trf.xlu0
        %v2791 = vpop.trf.xlu0
        %v2792 = vpop.trf.xlu0
        %v2793 = vpop.trf.xlu0
        %v2794 = vpop.trf.xlu0
        %v2795 = vpop.trf.xlu0
        %v2796 = vpop.trf.xlu0
        %v2797 = vpop.trf.xlu0
        %v2798 = vpop.trf.xlu0
        %v2799 = vpop.trf.xlu0
        %v2800 = vpop.trf.xlu0
        %v2801 = vpop.trf.xlu0
        %v2802 = vpop.trf.xlu0
        %v2803 = vpop.trf.xlu0
        %v2804 = vpop.trf.xlu0
        %v2805 = vpop.trf.xlu0
        %vm2806 = vcmask 130048
        %2807 = vst.msk [vmem:[%s315] sm:$0xff] %vm2806, %v2790
        %s2808 = sand.u32 %s205, 1
        %s2809 = scalar_lea.sflag [#allocation6], %s2808
        %s2810 = sand.u32 %s205, 1
        %s2811 = smul.addr %s2810, 8
        %s2812 = scalar_lea.vmem [#allocation5], %s2811
        // Predicated region
        $region63: #{skip_model_forward.5} parent=47 // pred_check
          %p2813 = pneg %p215
        $region64: #{skip_model_forward.5} parent=47 // pred_check_branch
          %2815 = sbr.rel (%p2813) target = $region66
        $region65: #{skip_model_forward.5} parent=47 // pred_region
          %s2817 = ssub.s32 128, 128
          %2818 = vsyncadd %s2809, %s2817
          %s2819 = sadd.s32 %s26, %s25
          %s2820 = smul.addr %s2819, 128
          %s2821 = scalar_lea.hbm %s7, %s2820
          %s2823 = sshll.u32 %s2812, 4
          %s2824 = int_to_ptr.vmem [resolvable:$true] %s2823
          %2826 = dma.vmem_to_hbm [thread:$0]  %s2824, 128, %s2821, %s2809
        $region66: #{skip_model_forward.5} parent=47 // pred_fallthru
          _
      $region48: #{skip_model_forward.5} parent=5 // pred_fallthru
        _
      %p2827 = scmp.le.s32.totalorder 2, %s16
      // Predicated region
      $region67: #{skip_model_forward.5} parent=5 // pred_check
        %p2828 = pneg %p2827
      $region68: #{skip_model_forward.5} parent=5 // pred_check_branch
        %2830 = sbr.rel (%p2828) target = $region70
      $region69: #{skip_model_forward.5} parent=5 // pred_region
        %s2831 = ssub.s32 %s16, 2
        // Predicated region
        $region71: #{skip_model_forward.5} parent=69 // pred_check
          %p2832 = pneg %p221
        $region72: #{skip_model_forward.5} parent=69 // pred_check_branch
          %2834 = sbr.rel (%p2832) target = $region74
        $region73: #{skip_model_forward.5} parent=69 // pred_region
          %s2835 = sand.u32 %s206, 1
          %s2836 = scalar_lea.sflag [#allocation6], %s2835
          %s2837 = sand.u32 %s206, 1
          %s2838 = smul.addr %s2837, 8
          %s2839 = scalar_lea.vmem [#allocation5], %s2838
          %2840 = dma.done %s2836, 128
        $region74: #{skip_model_forward.5} parent=69 // pred_fallthru
          _
      $region70: #{skip_model_forward.5} parent=5 // pred_fallthru
        _
    $region6: #{skip_model_forward.5} parent=1 // loop_footer
      %s20 = sadd.s32 1, %s16
    $region7: #{skip_model_forward.5} parent=1 // loop_footer_branch
      %15 = sbr.rel target = $region3
    $region8: #{skip_model_forward.5} parent=1 // loop_exit
      _
    %2841 = vsyncpa [#allocation6], 1
    %s2842 = scalar_lea.sflag [#allocation6], 1
    %2843 = vsyncpa %s2842, 1

</llo_original>
